<compile_context>
chip_gen: v7x
topology: tpu7x:2x2x1
jax: 0.10.0
libtpu: 0.0.40
codegen_flags: <defaults>
</compile_context>

<pallas_src>
import functools

import jax
import jax.numpy as jnp
import numpy as np
from jax.experimental import pallas as pl
from jax.experimental.pallas import tpu as pltpu


# ---------------------------------------------------------------------------
# Generation-dependent VMEM sizing (conservative fallback = v7x-class)
# ---------------------------------------------------------------------------
def _vmem_capacity_bytes():
    try:
        info = pltpu.get_tpu_info()
        for name in ("vmem_capacity_bytes", "vmem_size_bytes", "vmem_bytes"):
            v = getattr(info, name, None)
            if v:
                return int(v)
    except Exception:
        pass
    try:
        kind = jax.devices()[0].device_kind.lower()
        if any(tag in kind for tag in ("v4", "v5", "v6")):
            return 128 * 1024 * 1024
    except Exception:
        pass
    return 64 * 1024 * 1024


_VMEM_CAP = _vmem_capacity_bytes()
if _VMEM_CAP >= 120 * 1024 * 1024:          # v4 / v5e / v6e: 128 MiB VMEM
    _VMEM_LIMIT = 96 * 1024 * 1024
    _TILE_BUDGET = 40 * 1024 * 1024
else:                                        # v7x-class: 64 MiB per TensorCore
    _VMEM_LIMIT = 48 * 1024 * 1024
    _TILE_BUDGET = 18 * 1024 * 1024


def _rup(x, m):
    return ((x + m - 1) // m) * m


# ---------------------------------------------------------------------------
# Pallas kernels
# ---------------------------------------------------------------------------
def _enc1_kernel(x_ref, w_ref, scale_ref, shift_ref, o_ref):
    """enc1: 3x3 conv (Cin=3) + BN affine + ReLU + fused MaxPool2d(4,4).

    x_ref:     (1, TM, 108) bf16 -- each row is one 4x4 pool window's 6x6x3
               input patch (k ordered (dy, dx, c)).
    w_ref:     (108, 16*Cout) bf16 -- N ordered (jy, jx, co).
    The 4x4 max-pool is a 4-level max tree over the 16 lane groups of Cout.
    """
    p = jnp.dot(x_ref[0], w_ref[...], preferred_element_type=jnp.float32)
    p = jnp.maximum(p * scale_ref[...] + shift_ref[...], 0.0)
    width = p.shape[1]
    cout = o_ref.shape[-1]
    while width > cout:                       # 16*Cout -> Cout (static trip count)
        width //= 2
        p = jnp.maximum(p[:, :width], p[:, width:2 * width])
    o_ref[0] = p.astype(o_ref.dtype)


def _conv_bn_relu_kernel(x_ref, w_ref, scale_ref, shift_ref, o_ref, *, pool):
    """Fused 3x3 conv (+BN affine +ReLU +optional 4x4 MaxPool) for Cin >= 32.

    x_ref: (1, TH, W+2, 3*Cin) bf16 -- the channel dim already holds the 3 dy
           taps; the 3 dx taps are accumulating MXU dots of K = 3*Cin below.
    w_ref: (9*Cin, Cout) bf16 ordered (dx, dy, ci).
    """
    _, th, w_in, kc = x_ref.shape
    cout = w_ref.shape[1]
    ow = w_in - 2
    acc = None
    for dx in range(3):
        xs = x_ref[0, :, dx:dx + ow, :].reshape(th * ow, kc)
        part = jnp.dot(xs, w_ref[dx * kc:(dx + 1) * kc, :],
                       preferred_element_type=jnp.float32)
        acc = part if acc is None else acc + part
    y = jnp.maximum(acc * scale_ref[...] + shift_ref[...], 0.0)
    y = y.reshape(th, ow, cout)
    if pool:                                  # fused MaxPool2d(4, 4)
        y = y.reshape(th // 4, 4, ow // 4, 4, cout)
        y = jnp.max(y, axis=3)
        y = jnp.max(y, axis=1)
    o_ref[0] = y.astype(o_ref.dtype)


def _matmul_bias_kernel(x_ref, w_ref, b_ref, o_ref):
    y = jnp.dot(x_ref[...], w_ref[...], preferred_element_type=jnp.float32)
    o_ref[...] = (y + b_ref[...]).astype(o_ref.dtype)


def _convt4_kernel(x_ref, w_ref, b_ref, o_ref):
    """ConvTranspose2d(k=4, s=4) with the pixel shuffle folded into the store
    layout: the output block is (1, TH, 4, W, 4*Cout); N ordered (i, j, cout)."""
    _, th, w, cin = x_ref.shape
    n16 = w_ref.shape[1]
    cout4 = n16 // 4
    x2d = x_ref[0].reshape(th * w, cin)
    p = jnp.dot(x2d, w_ref[...], preferred_element_type=jnp.float32) + b_ref[...]
    for i in range(4):
        yi = p[:, i * cout4:(i + 1) * cout4].reshape(th, w, cout4)
        o_ref[0, :, i, :, :] = yi.astype(o_ref.dtype)


def _final_kernel(x_ref, w_ref, b_ref, o_ref):
    """tanh(Conv2d(6->3, k=1)(cat([x, x]))) on NCHW planes with folded weights.

    x_ref: (1, 3, TH, W) float32 (lane-dense W), w_ref: (3, 3) f32 in SMEM,
    b_ref: (1, 3) f32 in SMEM.  Writes the NCHW float32 output directly.
    """
    for c in range(3):
        acc = x_ref[0, 0] * w_ref[0, c]
        acc = acc + x_ref[0, 1] * w_ref[1, c]
        acc = acc + x_ref[0, 2] * w_ref[2, c]
        o_ref[0, c] = jnp.tanh(acc + b_ref[0, c])


# ---------------------------------------------------------------------------
# Tile pickers
# ---------------------------------------------------------------------------
def _pick_enc1_tile(m, n16):
    # bf16 input double-buffered (lane-padded to 128), f32 dot result + one max
    # temp, bf16 output double-buffered (lane-padded).
    per_row = 2 * 128 * 2 + 2 * n16 * 4 + 2 * 128 * 2
    cands = [t for t in range(m, 0, -1) if m % t == 0 and (t % 8 == 0 or t == m)]
    for t in cands:
        if t * per_row <= _TILE_BUDGET:
            return t
    return cands[-1]


def _pick_conv_tile(out_h, w_in, kc, cout, pool):
    step = 4 if pool else 1
    kcp, coutp = _rup(kc, 128), _rup(cout, 128)
    ow = w_in - 2

    def est(th):
        in_b = 2 * th * w_in * kcp * 2                 # double-buffered bf16 input
        shift_b = th * ow * kcp * 2                    # dx-shifted slice copy
        acc_b = th * ow * coutp * 4                    # f32 accumulator
        out_b = 2 * max(th // step, 1) * (ow // step) * coutp * 2
        w_b = 2 * 9 * (kc // 3) * cout * 2
        return in_b + shift_b + acc_b + out_b + w_b

    ths = [t for t in range(out_h, 0, -1)
           if out_h % t == 0 and (t % step == 0 or t == out_h)]
    for th in ths:
        if est(th) <= _TILE_BUDGET:
            return th
    return ths[-1]


def _pick_rows(h, per_row_bytes, budget, align=1):
    cands = [t for t in range(h, 0, -1) if h % t == 0 and (t % align == 0 or t == h)]
    for t in cands:
        if t * per_row_bytes <= budget:
            return t
    return cands[-1]


def _pick_m_tile(m, k, n):
    cands = [t for t in range(m, 0, -1) if m % t == 0 and (t % 8 == 0 or t == m)]
    for t in cands:
        if 2 * t * k * 2 + t * _rup(n, 128) * 4 + 2 * k * n * 2 <= _TILE_BUDGET:
            return t
    return cands[-1]


# ---------------------------------------------------------------------------
# enc1: pool-window grouped implicit GEMM
# ---------------------------------------------------------------------------
def _enc1_pack_input(x):
    """(B,H,W,3) bf16 -> (B, H/4*W/4, 108): per 4x4 pool window, its 6x6x3 patch."""
    b, h, w, cin = x.shape
    xp = jnp.pad(x, ((0, 0), (1, 1), (1, 1), (0, 0)))
    cols = [xp[:, dy:dy + h - 3:4, dx:dx + w - 3:4, :]
            for dy in range(6) for dx in range(6)]
    xin = jnp.concatenate(cols, axis=-1)               # (B, H/4, W/4, 36*cin)
    return xin.reshape(b, (h // 4) * (w // 4), 36 * cin)


def _enc1_pack_weight(w):
    """HWIO (3,3,cin,cout) -> (36*cin, 16*cout); N ordered (jy, jx, co)."""
    _, _, cin, cout = w.shape
    blocks = []
    for jy in range(4):
        for jx in range(4):
            wp = jnp.zeros((6, 6, cin, cout), w.dtype)
            wp = wp.at[jy:jy + 3, jx:jx + 3].set(w)
            blocks.append(wp.reshape(36 * cin, cout))
    return jnp.concatenate(blocks, axis=1)


def enc1_block(x, p):
    """Conv2d(3->32, 3x3, pad=1) + BN + ReLU + MaxPool2d(4,4)."""
    b, h, w, cin = x.shape
    cout = p["w"].shape[-1]
    hp, wp = h // 4, w // 4
    m = hp * wp
    xin = _enc1_pack_input(x)
    w108 = _enc1_pack_weight(p["w"])
    n16 = 16 * cout
    scale = jnp.tile(p["scale"], (1, 16))
    shift = jnp.tile(p["shift"], (1, 16))
    tm = _pick_enc1_tile(m, n16)
    out = pl.pallas_call(
        _enc1_kernel,
        out_shape=jax.ShapeDtypeStruct((b, m, cout), jnp.bfloat16),
        grid_spec=pltpu.PrefetchScalarGridSpec(
            num_scalar_prefetch=0,
            grid=(b, m // tm),
            in_specs=[
                pl.BlockSpec((1, tm, 36 * cin), lambda bi, mi: (bi, mi, 0)),
                pl.BlockSpec((36 * cin, n16), lambda bi, mi: (0, 0)),
                pl.BlockSpec((1, n16), lambda bi, mi: (0, 0)),
                pl.BlockSpec((1, n16), lambda bi, mi: (0, 0)),
            ],
            out_specs=pl.BlockSpec((1, tm, cout), lambda bi, mi: (bi, mi, 0)),
        ),
        compiler_params=pltpu.CompilerParams(
            dimension_semantics=("parallel", "parallel"),
            vmem_limit_bytes=_VMEM_LIMIT,
        ),
    )(xin, w108, scale, shift)
    return out.reshape(b, hp, wp, cout)


# ---------------------------------------------------------------------------
# Generic conv block (Cin >= 32), fc, conv-transpose, final stage
# ---------------------------------------------------------------------------
def _conv_bn_relu(xin, w, scale, shift, *, pool, out_h, out_w, cout):
    b, _, w_in, kc = xin.shape
    step = 4 if pool else 1
    th = _pick_conv_tile(out_h, w_in, kc, cout, pool)
    n_row = out_h // th
    ho, wo = out_h // step, out_w // step
    tho, two = max(th // step, 1), out_w // step
    kernel = functools.partial(_conv_bn_relu_kernel, pool=pool)
    return pl.pallas_call(
        kernel,
        out_shape=jax.ShapeDtypeStruct((b, ho, wo, cout), jnp.bfloat16),
        grid_spec=pltpu.PrefetchScalarGridSpec(
            num_scalar_prefetch=0,
            grid=(b, n_row),
            in_specs=[
                pl.BlockSpec((1, th, w_in, kc), lambda bi, ri: (bi, ri, 0, 0)),
                pl.BlockSpec((3 * kc, cout), lambda bi, ri: (0, 0)),
                pl.BlockSpec((1, cout), lambda bi, ri: (0, 0)),
                pl.BlockSpec((1, cout), lambda bi, ri: (0, 0)),
            ],
            out_specs=pl.BlockSpec((1, tho, two, cout),
                                   lambda bi, ri: (bi, ri, 0, 0)),
        ),
        compiler_params=pltpu.CompilerParams(
            dimension_semantics=("parallel", "parallel"),
            vmem_limit_bytes=_VMEM_LIMIT,
        ),
    )(xin, w, scale, shift)


def conv_block(x, p, *, pool):
    """Conv2d(3x3, pad=1) + folded BatchNorm2d + ReLU (+ MaxPool2d(4,4))."""
    _, h, w, cin = x.shape
    cout = p["w"].shape[-1]
    xp = jnp.pad(x, ((0, 0), (1, 1), (1, 1), (0, 0)))
    # dy-stack only (3x activation bytes instead of 9x); dx handled in-kernel.
    xin = jnp.concatenate([xp[:, dy:dy + h, :, :] for dy in range(3)], axis=-1)
    wpk = jnp.transpose(p["w"], (1, 0, 2, 3)).reshape(9 * cin, cout)   # (dx,dy,ci)
    return _conv_bn_relu(xin, wpk, p["scale"], p["shift"],
                         pool=pool, out_h=h, out_w=w, cout=cout)


def matmul_bias(x2d, w, bias):
    m, k = x2d.shape
    n = w.shape[1]
    tm = _pick_m_tile(m, k, n)
    return pl.pallas_call(
        _matmul_bias_kernel,
        out_shape=jax.ShapeDtypeStruct((m, n), jnp.float32),
        grid_spec=pltpu.PrefetchScalarGridSpec(
            num_scalar_prefetch=0,
            grid=(m // tm,),
            in_specs=[
                pl.BlockSpec((tm, k), lambda i: (i, 0)),
                pl.BlockSpec((k, n), lambda i: (0, 0)),
                pl.BlockSpec((1, n), lambda i: (0, 0)),
            ],
            out_specs=pl.BlockSpec((tm, n), lambda i: (i, 0)),
        ),
        compiler_params=pltpu.CompilerParams(
            dimension_semantics=("parallel",),
            vmem_limit_bytes=_VMEM_LIMIT,
        ),
    )(x2d, w, bias)


def conv_transpose4(x, p):
    """ConvTranspose2d(kernel=4, stride=4) with fused pixel-shuffle layout."""
    b, h, w, cin = x.shape
    n16 = p["w"].shape[1]
    cout = n16 // 16
    wbytes = 2 * cin * n16 * 2
    per_row = 2 * w * cin * 2 + w * _rup(n16, 128) * 4 + 2 * 4 * w * 4 * cout * 2
    th = _pick_rows(h, per_row, max(_TILE_BUDGET - wbytes, per_row))
    out = pl.pallas_call(
        _convt4_kernel,
        out_shape=jax.ShapeDtypeStruct((b, h, 4, w, 4 * cout), jnp.bfloat16),
        grid_spec=pltpu.PrefetchScalarGridSpec(
            num_scalar_prefetch=0,
            grid=(b, h // th),
            in_specs=[
                pl.BlockSpec((1, th, w, cin), lambda bi, ri: (bi, ri, 0, 0)),
                pl.BlockSpec((cin, n16), lambda bi, ri: (0, 0)),
                pl.BlockSpec((1, n16), lambda bi, ri: (0, 0)),
            ],
            out_specs=pl.BlockSpec((1, th, 4, w, 4 * cout),
                                   lambda bi, ri: (bi, ri, 0, 0, 0)),
        ),
        compiler_params=pltpu.CompilerParams(
            dimension_semantics=("parallel", "parallel"),
            vmem_limit_bytes=_VMEM_LIMIT,
        ),
    )(x, p["w"], p["b"])
    # (B, H, 4, W, 4*Cout) -> (B, 4H, 4W, Cout): free row-major reshape.
    return out.reshape(b, 4 * h, 4 * w, cout)


def final_conv_tanh(x_nchw, p):
    """tanh(Conv2d(6->3, k=1)(cat([crop(x, up0), x], dim=1))).

    crop(x, up0) is the identity here (H, W are multiples of 4^5), so both
    concat halves are x; the 1x1-conv weights are folded (w_eff = w[:3]+w[3:])
    and x is read from HBM only once.
    """
    bsz, _, h, w = x_nchw.shape
    w_eff = p["w"][:3] + p["w"][3:]
    per_row = (2 + 2) * 3 * w * 4
    th = _pick_rows(h, per_row, _TILE_BUDGET, align=8)
    return pl.pallas_call(
        _final_kernel,
        out_shape=jax.ShapeDtypeStruct((bsz, 3, h, w), jnp.float32),
        grid_spec=pltpu.PrefetchScalarGridSpec(
            num_scalar_prefetch=0,
            grid=(bsz, h // th),
            in_specs=[
                pl.BlockSpec((1, 3, th, w), lambda bi, ri: (bi, 0, ri, 0)),
                pl.BlockSpec(memory_space=pltpu.MemorySpace.SMEM),
                pl.BlockSpec(memory_space=pltpu.MemorySpace.SMEM),
            ],
            out_specs=pl.BlockSpec((1, 3, th, w), lambda bi, ri: (bi, 0, ri, 0)),
        ),
        compiler_params=pltpu.CompilerParams(
            dimension_semantics=("parallel", "parallel"),
            vmem_limit_bytes=_VMEM_LIMIT,
        ),
    )(x_nchw, w_eff, p["b"])


def center_crop(feat, h, w):
    _, fh, fw, _ = feat.shape
    top, left = (fh - h) // 2, (fw - w) // 2
    return feat[:, top:top + h, left:left + w, :]


# ---------------------------------------------------------------------------
# Deterministic parameter init (matches module __init__ shapes)
# ---------------------------------------------------------------------------
def _xavier(key, shape, fan_in, fan_out):
    bound = float(np.sqrt(6.0 / (fan_in + fan_out)))
    return jax.random.uniform(key, shape, jnp.float32, -bound, bound)


def _conv_block_params(key, cin, cout):
    w = _xavier(key, (3, 3, cin, cout), 9 * cin, 9 * cout).astype(jnp.bfloat16)
    # BatchNorm2d eval-mode fold: scale = gamma/sqrt(var+eps), shift = beta - mean*scale
    scale = jnp.full((1, cout), 1.0 / np.sqrt(1.0 + 1e-5), jnp.float32)
    shift = jnp.zeros((1, cout), jnp.float32)     # conv bias (zeros) folded too
    return {"w": w, "scale": scale, "shift": shift}


def _upscale_params(key, cin, cout):
    kw, kb = jax.random.split(key)
    bound = 1.0 / float(np.sqrt(cout * 16))   # torch default init for ConvTranspose2d
    w = jax.random.uniform(kw, (cin, 16 * cout), jnp.float32,
                           -bound, bound).astype(jnp.bfloat16)
    b = jax.random.uniform(kb, (cout,), jnp.float32, -bound, bound)
    return {"w": w, "b": jnp.tile(b, 16)[None, :]}


def init_params(key, input_hw):
    bh = input_hw // 4 ** 5   # bottleneck spatial size after five /4 pools
    keys = jax.random.split(key, 16)
    p = {}
    p["enc1"] = _conv_block_params(keys[0], 3, 32)
    p["enc2"] = _conv_block_params(keys[1], 32, 64)
    p["enc3"] = _conv_block_params(keys[2], 64, 128)
    p["enc4"] = _conv_block_params(keys[3], 128, 256)
    p["bottleneck"] = _conv_block_params(keys[4], 256, 512)
    fc_in = 512 * bh * bh
    p["fc"] = {"w": _xavier(keys[5], (fc_in, 512), fc_in, 512).astype(jnp.bfloat16),
               "b": jnp.zeros((1, 512), jnp.float32)}
    p["up4"] = _upscale_params(keys[6], 512, 256)
    p["dec4"] = _conv_block_params(keys[7], 512, 256)
    p["up3"] = _upscale_params(keys[8], 256, 128)
    p["dec3"] = _conv_block_params(keys[9], 256, 128)
    p["up2"] = _upscale_params(keys[10], 128, 64)
    p["dec2"] = _conv_block_params(keys[11], 128, 64)
    p["up1"] = _upscale_params(keys[12], 64, 32)
    p["dec1"] = _conv_block_params(keys[13], 64, 32)
    p["up0"] = _upscale_params(keys[14], 32, 3)
    p["final"] = {"w": _xavier(keys[15], (6, 3), 6, 3),
                  "b": jnp.zeros((1, 3), jnp.float32)}
    return p


# ---------------------------------------------------------------------------
# Forward pass (faithful to the reference dataflow)
# ---------------------------------------------------------------------------
def unet_forward(params, x_nchw, enc=False):
    xf = x_nchw.astype(jnp.float32)                                # NCHW f32
    x = jnp.transpose(xf, (0, 2, 3, 1)).astype(jnp.bfloat16)       # NHWC bf16

    enc1 = enc1_block(x, params["enc1"])      # encoder1(x) called twice in ref; identical
    enc2 = conv_block(enc1, params["enc2"], pool=True)
    enc3 = conv_block(enc2, params["enc3"], pool=True)
    enc4 = conv_block(enc3, params["enc4"], pool=True)
    bott = conv_block(enc4, params["bottleneck"], pool=True)

    # Dropout(p=0.3): identity in eval mode.
    b = bott.shape[0]
    bott_flat = jnp.transpose(bott, (0, 3, 1, 2)).reshape(b, -1)   # torch Flatten order
    encoded = matmul_bias(bott_flat, params["fc"]["w"], params["fc"]["b"])

    # Decoder -- faithful: crop(encX, upX) returns the center-cropped *encoder*
    # feature, so each stage consumes cat([encX, encX]) and the upsampled values
    # are discarded.  Under jit, XLA DCEs the value-unused branches.
    up4 = conv_transpose4(bott, params["up4"])
    c4 = center_crop(enc4, up4.shape[1], up4.shape[2])
    dec4 = conv_block(jnp.concatenate([c4, enc4], axis=-1), params["dec4"], pool=False)

    up3 = conv_transpose4(dec4, params["up3"])
    c3 = center_crop(enc3, up3.shape[1], up3.shape[2])
    dec3 = conv_block(jnp.concatenate([c3, enc3], axis=-1), params["dec3"], pool=False)

    up2 = conv_transpose4(dec3, params["up2"])
    c2 = center_crop(enc2, up2.shape[1], up2.shape[2])
    dec2 = conv_block(jnp.concatenate([c2, enc2], axis=-1), params["dec2"], pool=False)

    up1 = conv_transpose4(dec2, params["up1"])
    c1 = center_crop(enc1, up1.shape[1], up1.shape[2])
    dec1 = conv_block(jnp.concatenate([c1, enc1], axis=-1), params["dec1"], pool=False)

    up0 = conv_transpose4(dec1, params["up0"])
    # crop(x, up0) is the identity (same static spatial shape): fold it into the
    # final kernel (reads x once with summed 1x1-conv weights).
    assert up0.shape[1] == xf.shape[2] and up0.shape[2] == xf.shape[3]
    out = final_conv_tanh(xf, params["final"])

    if enc:
        return encoded
    return out


if __name__ == "__main__":
    # Smallest spatial size the five MaxPool2d(4,4) stages support is 4**5 = 1024.
    B, C, H, W = 1, 3, 1024, 1024
    key_params, key_x = jax.random.split(jax.random.PRNGKey(0))
    params = init_params(key_params, H)
    x = jax.random.uniform(key_x, (B, C, H, W), jnp.float32, -1.0, 1.0)

    fwd = jax.jit(unet_forward, static_argnames=("enc",))
    out = jax.block_until_ready(fwd(params, x, enc=False))
    encoded = jax.block_until_ready(fwd(params, x, enc=True))

    assert out.shape == (B, 3, H, W) and out.dtype == jnp.float32
    assert encoded.shape == (B, 512) and encoded.dtype == jnp.float32
    assert bool(jnp.isfinite(out).all()) and bool(jnp.isfinite(encoded).all())

    # Smoke-test the decoder-side kernels (value-dead in the reference forward,
    # hence DCE'd inside the jitted calls above) so they compile & run.
    sk1, sk2 = jax.random.split(jax.random.PRNGKey(1))
    t = jax.random.uniform(sk1, (1, 16, 16, 64), jnp.float32).astype(jnp.bfloat16)
    dec_p = _conv_block_params(sk2, 128, 64)
    d = jax.block_until_ready(conv_block(jnp.concatenate([t, t], axis=-1),
                                         dec_p, pool=False))
    up_p = _upscale_params(sk2, 64, 32)
    u = jax.block_until_ready(conv_transpose4(t, up_p))
    assert d.shape == (1, 16, 16, 64) and u.shape == (1, 64, 64, 32)
    assert bool(jnp.isfinite(d.astype(jnp.float32)).all())
    assert bool(jnp.isfinite(u.astype(jnp.float32)).all())

    print("KERNEL_OK")
</pallas_src>

<mosaic_0001>
module attributes {stable_mosaic.version = 11 : i64} {
  func.func @_final_kernel(%arg0: i32, %arg1: i32, %arg2: memref<1x3x256x1024xf32, #tpu.memory_space<vmem>>, %arg3: memref<3x3xf32, #tpu.memory_space<smem>>, %arg4: memref<1x3xf32, #tpu.memory_space<smem>>, %arg5: memref<1x3x256x1024xf32, #tpu.memory_space<vmem>>) attributes {dimension_semantics = [#tpu.dimension_semantics<parallel>, #tpu.dimension_semantics<parallel>], iteration_bounds = array<i64: 1, 4>, scalar_prefetch = 0 : i64, scratch_operands = 0 : i64, tpu.core_type = #tpu.core_type<tc>, window_params = [{transform_indices = @transform_0, window_bounds = array<i64: 1, 3, 256, 1024>}, {transform_indices = @transform_1, window_bounds = array<i64: 3, 3>}, {transform_indices = @transform_2, window_bounds = array<i64: 1, 3>}, {transform_indices = @transform_3, window_bounds = array<i64: 1, 3, 256, 1024>}]} {
    %c0 = arith.constant 0 : index
    %c0_0 = arith.constant 0 : index
    %c0_1 = arith.constant 0 : index
    %c0_2 = arith.constant 0 : index
    %0 = vector.load %arg2[%c0, %c0_0, %c0_1, %c0_2] : memref<1x3x256x1024xf32, #tpu.memory_space<vmem>>, vector<1x1x256x1024xf32>
    %1 = vector.shape_cast %0 : vector<1x1x256x1024xf32> to vector<256x1024xf32>
    %c0_3 = arith.constant 0 : index
    %c0_4 = arith.constant 0 : index
    %2 = memref.load %arg3[%c0_3, %c0_4] : memref<3x3xf32, #tpu.memory_space<smem>>
    %3 = vector.broadcast %2 : f32 to vector<256x1024xf32>
    %4 = arith.mulf %1, %3 : vector<256x1024xf32>
    %c0_5 = arith.constant 0 : index
    %c1 = arith.constant 1 : index
    %c0_6 = arith.constant 0 : index
    %c0_7 = arith.constant 0 : index
    %5 = vector.load %arg2[%c0_5, %c1, %c0_6, %c0_7] : memref<1x3x256x1024xf32, #tpu.memory_space<vmem>>, vector<1x1x256x1024xf32>
    %6 = vector.shape_cast %5 : vector<1x1x256x1024xf32> to vector<256x1024xf32>
    %c1_8 = arith.constant 1 : index
    %c0_9 = arith.constant 0 : index
    %7 = memref.load %arg3[%c1_8, %c0_9] : memref<3x3xf32, #tpu.memory_space<smem>>
    %8 = vector.broadcast %7 : f32 to vector<256x1024xf32>
    %9 = arith.mulf %6, %8 : vector<256x1024xf32>
    %10 = arith.addf %4, %9 : vector<256x1024xf32>
    %c0_10 = arith.constant 0 : index
    %c2 = arith.constant 2 : index
    %c0_11 = arith.constant 0 : index
    %c0_12 = arith.constant 0 : index
    %11 = vector.load %arg2[%c0_10, %c2, %c0_11, %c0_12] : memref<1x3x256x1024xf32, #tpu.memory_space<vmem>>, vector<1x1x256x1024xf32>
    %12 = vector.shape_cast %11 : vector<1x1x256x1024xf32> to vector<256x1024xf32>
    %c2_13 = arith.constant 2 : index
    %c0_14 = arith.constant 0 : index
    %13 = memref.load %arg3[%c2_13, %c0_14] : memref<3x3xf32, #tpu.memory_space<smem>>
    %14 = vector.broadcast %13 : f32 to vector<256x1024xf32>
    %15 = arith.mulf %12, %14 : vector<256x1024xf32>
    %16 = arith.addf %10, %15 : vector<256x1024xf32>
    %c0_15 = arith.constant 0 : index
    %c0_16 = arith.constant 0 : index
    %17 = memref.load %arg4[%c0_15, %c0_16] : memref<1x3xf32, #tpu.memory_space<smem>>
    %18 = vector.broadcast %17 : f32 to vector<256x1024xf32>
    %19 = arith.addf %16, %18 : vector<256x1024xf32>
    %20 = math.tanh %19 : vector<256x1024xf32>
    %c0_17 = arith.constant 0 : index
    %c0_18 = arith.constant 0 : index
    %c0_19 = arith.constant 0 : index
    %c0_20 = arith.constant 0 : index
    %21 = vector.load %arg5[%c0_17, %c0_18, %c0_19, %c0_20] : memref<1x3x256x1024xf32, #tpu.memory_space<vmem>>, vector<1x1x256x1024xf32>
    %22 = vector.shape_cast %21 : vector<1x1x256x1024xf32> to vector<256x1024xf32>
    %23 = vector.shape_cast %20 : vector<256x1024xf32> to vector<1x1x256x1024xf32>
    tpu.vector_store %arg5[%c0_17, %c0_18, %c0_19, %c0_20], %23 {strides = array<i32>} : memref<1x3x256x1024xf32, #tpu.memory_space<vmem>>, vector<1x1x256x1024xf32>,
    %c0_21 = arith.constant 0 : index
    %c0_22 = arith.constant 0 : index
    %c0_23 = arith.constant 0 : index
    %c0_24 = arith.constant 0 : index
    %24 = vector.load %arg2[%c0_21, %c0_22, %c0_23, %c0_24] : memref<1x3x256x1024xf32, #tpu.memory_space<vmem>>, vector<1x1x256x1024xf32>
    %25 = vector.shape_cast %24 : vector<1x1x256x1024xf32> to vector<256x1024xf32>
    %c0_25 = arith.constant 0 : index
    %c1_26 = arith.constant 1 : index
    %26 = memref.load %arg3[%c0_25, %c1_26] : memref<3x3xf32, #tpu.memory_space<smem>>
    %27 = vector.broadcast %26 : f32 to vector<256x1024xf32>
    %28 = arith.mulf %25, %27 : vector<256x1024xf32>
    %c0_27 = arith.constant 0 : index
    %c1_28 = arith.constant 1 : index
    %c0_29 = arith.constant 0 : index
    %c0_30 = arith.constant 0 : index
    %29 = vector.load %arg2[%c0_27, %c1_28, %c0_29, %c0_30] : memref<1x3x256x1024xf32, #tpu.memory_space<vmem>>, vector<1x1x256x1024xf32>
    %30 = vector.shape_cast %29 : vector<1x1x256x1024xf32> to vector<256x1024xf32>
    %c1_31 = arith.constant 1 : index
    %c1_32 = arith.constant 1 : index
    %31 = memref.load %arg3[%c1_31, %c1_32] : memref<3x3xf32, #tpu.memory_space<smem>>
    %32 = vector.broadcast %31 : f32 to vector<256x1024xf32>
    %33 = arith.mulf %30, %32 : vector<256x1024xf32>
    %34 = arith.addf %28, %33 : vector<256x1024xf32>
    %c0_33 = arith.constant 0 : index
    %c2_34 = arith.constant 2 : index
    %c0_35 = arith.constant 0 : index
    %c0_36 = arith.constant 0 : index
    %35 = vector.load %arg2[%c0_33, %c2_34, %c0_35, %c0_36] : memref<1x3x256x1024xf32, #tpu.memory_space<vmem>>, vector<1x1x256x1024xf32>
    %36 = vector.shape_cast %35 : vector<1x1x256x1024xf32> to vector<256x1024xf32>
    %c2_37 = arith.constant 2 : index
    %c1_38 = arith.constant 1 : index
    %37 = memref.load %arg3[%c2_37, %c1_38] : memref<3x3xf32, #tpu.memory_space<smem>>
    %38 = vector.broadcast %37 : f32 to vector<256x1024xf32>
    %39 = arith.mulf %36, %38 : vector<256x1024xf32>
    %40 = arith.addf %34, %39 : vector<256x1024xf32>
    %c0_39 = arith.constant 0 : index
    %c1_40 = arith.constant 1 : index
    %41 = memref.load %arg4[%c0_39, %c1_40] : memref<1x3xf32, #tpu.memory_space<smem>>
    %42 = vector.broadcast %41 : f32 to vector<256x1024xf32>
    %43 = arith.addf %40, %42 : vector<256x1024xf32>
    %44 = math.tanh %43 : vector<256x1024xf32>
    %c0_41 = arith.constant 0 : index
    %c1_42 = arith.constant 1 : index
    %c0_43 = arith.constant 0 : index
    %c0_44 = arith.constant 0 : index
    %45 = vector.load %arg5[%c0_41, %c1_42, %c0_43, %c0_44] : memref<1x3x256x1024xf32, #tpu.memory_space<vmem>>, vector<1x1x256x1024xf32>
    %46 = vector.shape_cast %45 : vector<1x1x256x1024xf32> to vector<256x1024xf32>
    %47 = vector.shape_cast %44 : vector<256x1024xf32> to vector<1x1x256x1024xf32>
    tpu.vector_store %arg5[%c0_41, %c1_42, %c0_43, %c0_44], %47 {strides = array<i32>} : memref<1x3x256x1024xf32, #tpu.memory_space<vmem>>, vector<1x1x256x1024xf32>,
    %c0_45 = arith.constant 0 : index
    %c0_46 = arith.constant 0 : index
    %c0_47 = arith.constant 0 : index
    %c0_48 = arith.constant 0 : index
    %48 = vector.load %arg2[%c0_45, %c0_46, %c0_47, %c0_48] : memref<1x3x256x1024xf32, #tpu.memory_space<vmem>>, vector<1x1x256x1024xf32>
    %49 = vector.shape_cast %48 : vector<1x1x256x1024xf32> to vector<256x1024xf32>
    %c0_49 = arith.constant 0 : index
    %c2_50 = arith.constant 2 : index
    %50 = memref.load %arg3[%c0_49, %c2_50] : memref<3x3xf32, #tpu.memory_space<smem>>
    %51 = vector.broadcast %50 : f32 to vector<256x1024xf32>
    %52 = arith.mulf %49, %51 : vector<256x1024xf32>
    %c0_51 = arith.constant 0 : index
    %c1_52 = arith.constant 1 : index
    %c0_53 = arith.constant 0 : index
    %c0_54 = arith.constant 0 : index
    %53 = vector.load %arg2[%c0_51, %c1_52, %c0_53, %c0_54] : memref<1x3x256x1024xf32, #tpu.memory_space<vmem>>, vector<1x1x256x1024xf32>
    %54 = vector.shape_cast %53 : vector<1x1x256x1024xf32> to vector<256x1024xf32>
    %c1_55 = arith.constant 1 : index
    %c2_56 = arith.constant 2 : index
    %55 = memref.load %arg3[%c1_55, %c2_56] : memref<3x3xf32, #tpu.memory_space<smem>>
    %56 = vector.broadcast %55 : f32 to vector<256x1024xf32>
    %57 = arith.mulf %54, %56 : vector<256x1024xf32>
    %58 = arith.addf %52, %57 : vector<256x1024xf32>
    %c0_57 = arith.constant 0 : index
    %c2_58 = arith.constant 2 : index
    %c0_59 = arith.constant 0 : index
    %c0_60 = arith.constant 0 : index
    %59 = vector.load %arg2[%c0_57, %c2_58, %c0_59, %c0_60] : memref<1x3x256x1024xf32, #tpu.memory_space<vmem>>, vector<1x1x256x1024xf32>
    %60 = vector.shape_cast %59 : vector<1x1x256x1024xf32> to vector<256x1024xf32>
    %c2_61 = arith.constant 2 : index
    %c2_62 = arith.constant 2 : index
    %61 = memref.load %arg3[%c2_61, %c2_62] : memref<3x3xf32, #tpu.memory_space<smem>>
    %62 = vector.broadcast %61 : f32 to vector<256x1024xf32>
    %63 = arith.mulf %60, %62 : vector<256x1024xf32>
    %64 = arith.addf %58, %63 : vector<256x1024xf32>
    %c0_63 = arith.constant 0 : index
    %c2_64 = arith.constant 2 : index
    %65 = memref.load %arg4[%c0_63, %c2_64] : memref<1x3xf32, #tpu.memory_space<smem>>
    %66 = vector.broadcast %65 : f32 to vector<256x1024xf32>
    %67 = arith.addf %64, %66 : vector<256x1024xf32>
    %68 = math.tanh %67 : vector<256x1024xf32>
    %c0_65 = arith.constant 0 : index
    %c2_66 = arith.constant 2 : index
    %c0_67 = arith.constant 0 : index
    %c0_68 = arith.constant 0 : index
    %69 = vector.load %arg5[%c0_65, %c2_66, %c0_67, %c0_68] : memref<1x3x256x1024xf32, #tpu.memory_space<vmem>>, vector<1x1x256x1024xf32>
    %70 = vector.shape_cast %69 : vector<1x1x256x1024xf32> to vector<256x1024xf32>
    %71 = vector.shape_cast %68 : vector<256x1024xf32> to vector<1x1x256x1024xf32>
    tpu.vector_store %arg5[%c0_65, %c2_66, %c0_67, %c0_68], %71 {strides = array<i32>} : memref<1x3x256x1024xf32, #tpu.memory_space<vmem>>, vector<1x1x256x1024xf32>,
    return
  }
  func.func @transform_0(%arg0: i32, %arg1: i32) -> (i32, i32, i32, i32) {
    %c0_i32 = arith.constant 0 : i32
    %c0_i32_0 = arith.constant 0 : i32
    %c0_i32_1 = arith.constant 0 : i32
    return %arg0, %c0_i32, %arg1, %c0_i32_0 : i32, i32, i32, i32
  }
  func.func @transform_1(%arg0: i32, %arg1: i32) -> (i32, i32) {
    %c0_i32 = arith.constant 0 : i32
    %c0_i32_0 = arith.constant 0 : i32
    %c0_i32_1 = arith.constant 0 : i32
    return %c0_i32, %c0_i32_0 : i32, i32
  }
  func.func @transform_2(%arg0: i32, %arg1: i32) -> (i32, i32) {
    %c0_i32 = arith.constant 0 : i32
    %c0_i32_0 = arith.constant 0 : i32
    %c0_i32_1 = arith.constant 0 : i32
    return %c0_i32, %c0_i32_0 : i32, i32
  }
  func.func @transform_3(%arg0: i32, %arg1: i32) -> (i32, i32, i32, i32) {
    %c0_i32 = arith.constant 0 : i32
    %c0_i32_0 = arith.constant 0 : i32
    %c0_i32_1 = arith.constant 0 : i32
    return %arg0, %c0_i32, %arg1, %c0_i32_0 : i32, i32, i32, i32
  }
}

</mosaic_0001>

<llo_original>
// kernel: unet_forward.1
$region0: #{unet_forward.1}
  #allocation0 [shape = 'u32[]', space=smem, size = 0x4, offset = 0x4, fixed_abs, tag = 'smem constant byte address 0x4 - core index']
  #allocation1 [shape = 'u32[144,128]{1,0:T(1,128)}', space=vmem, size = 0x12000, scoped, tag = 'internal scratch']
  #allocation10 [shape = 's32[]', space=sflag, size = 0x4, offset = 0, fixed_abs, tag = 'sflag constant byte address 0x0 - dummy sync flag']
  #allocation12 [shape = 's32[]', space=sflag, size = 0x4, offset = 0, fixed_abs, tag = 'sflag constant byte address 0x0 - dummy sync flag']
  %s0 = inlined_call_operand.hbm [shape: f32[1,3,1024,1024], index: 0, kind: input, shape index: {}]
  %s1 = inlined_call_operand.vmem [shape: f32[3,3], index: 1, kind: input, shape index: {}]
  %s2 = inlined_call_operand.hbm [shape: f32[1,3], index: 2, kind: input, shape index: {}]
  %s3 = inlined_call_operand.hbm [shape: f32[1,3,1024,1024], index: 3, kind: output, shape index: {}]
  %s4 = sld [smem:[#allocation0]]
  $region57: #{unet_forward.1} parent=0
    _
  %s6 = ssub.s32 1, %s4
  %s7 = scalar_select 0, %s6, %s4
  $region1: #{unet_forward.1} parent=0
    #allocation2 [shape = 'u8[6291456]{0}', space=vmem, size = 0x600000, scoped, tag = 'input window, operand 0']
    #allocation3 [shape = 's32[2]{0}', space=sflag, size = 0x8, scoped, tag = 'scoped memory for unet_forward.1']
    #allocation4 [shape = 's32[2]{0}', space=sflag, size = 0x8, scoped, tag = 'scoped memory for unet_forward.1']
    #allocation5 [shape = 's32[2]{0}', space=sflag, size = 0x8, scoped, tag = 'scoped memory for unet_forward.1']
    #allocation6 [shape = 's32[2]{0}', space=sflag, size = 0x8, scoped, tag = 'scoped memory for unet_forward.1']
    #allocation7 [shape = 'u8[2048]{0}', space=smem, size = 0x800, scoped, tag = 'input window, operand 1, single buffered']
    #allocation8 [shape = 'u8[512]{0}', space=smem, size = 0x200, scoped, tag = 'input window, operand 2, single buffered']
    #allocation9 [shape = 'u8[6291456]{0}', space=vmem, size = 0x600000, scoped, tag = 'output window, operand 0']
    %8 = vsyncpa [#allocation3], 0
    %s9 = scalar_lea.sflag [#allocation3], 1
    %10 = vsyncpa %s9, 0
    %11 = vsyncpa [#allocation6], 0
    %12 = vsyncpa [#allocation5], 0
    %13 = vsyncpa [#allocation4], 0
    %s14 = scalar_lea.sflag [#allocation4], 1
    %15 = vsyncpa %s14, 0
    loop: start=0, step=1, limit=6
    $region2: #{unet_forward.1} parent=1 // loop_pre_header
      _
    $region3: #{unet_forward.1} parent=1 // loop_header
      %s17 = sphi 0, %s21
      %p18 = scmp.ge.s32.totalorder %s17, 6
      %s24 = sphi 0, %s36
      %s25 = sphi 0, %s32
      %s26 = sphi 0, %s24
      %s27 = sphi 0, %s25
      %s28 = sphi 0, %s26
      %s29 = sphi 0, %s27
      %s41 = sphi 0, %s43
      %s44 = sphi 0, %s41
      %s45 = sphi 0, %s44
      %s61 = sphi 0, %s45
      %s65 = sphi 0, %s65
      %s67 = sphi 0, %s65
      %s68 = sphi 0, %s67
      %s82 = sphi 0, %s68
      %s86 = sphi 0, %s86
      %s88 = sphi 0, %s86
      %s89 = sphi 0, %s88
      %s103 = sphi 0, %s89
      %s111 = sphi 0, %s113
      %s114 = sphi 0, %s111
      %s115 = sphi 0, %s114
      %s131 = sphi 0, %s115
    $region4: #{unet_forward.1} parent=1 // loop_header_branch
      %20 = sbr.rel (%p18) target = $region8
    $region5: #{unet_forward.1} parent=1 // loop_body
      %s22 = ssub.s32 %s17, 1
      %s23 = ssub.s32 %s17, 2
      %s30 = sadd.s32 1, %s25
      %p31 = scmp.ge.s32.totalorder %s30, 4
      %s32 = scalar_select %p31, 0, %s30
      %s33 = sadd.s32 1, %s24
      %s34 = scalar_select %p31, %s33, %s24
      %p35 = scmp.ge.s32.totalorder %s34, 1
      %s36 = scalar_select %p35, 0, %s34
      %s37 = ssub.s32 %s24, %s36
      %s38 = ssub.s32 %s25, %s32
      %s39 = sor.u32 %s37, %s38
      %p40 = scmp.eq.s32.totalorder %s39, 0
      %s42 = sadd.s32 %s41, 1
      %s43 = scalar_select %p40, %s41, %s42
      %p46 = pneg %p40
      %p47 = scmp.eq.s32.totalorder %s17, 3
      %p48 = por %p46, %p47
      %p49 = scmp.ne.s32.totalorder %s41, %s44
      %p50 = scmp.eq.s32.totalorder %s17, 0
      %p51 = por %p49, %p50
      %p52 = scmp.ne.s32.totalorder %s41, %s44
      %p53 = scmp.eq.s32.totalorder %s22, 3
      %p54 = por %p52, %p53
      %p55 = scmp.ne.s32.totalorder %s44, %s45
      %p56 = scmp.eq.s32.totalorder %s22, 0
      %p57 = por %p55, %p56
      %p58 = scmp.ne.s32.totalorder %s44, %s45
      %p59 = scmp.eq.s32.totalorder %s23, 3
      %p60 = por %p58, %p59
      %p62 = scmp.ne.s32.totalorder %s45, %s61
      %p63 = scmp.eq.s32.totalorder %s23, 0
      %p64 = por %p62, %p63
      %s66 = sadd.s32 %s65, 1
      %p69 = scmp.eq.s32.totalorder %s17, 3
      %p70 = scmp.ne.s32.totalorder %s65, %s67
      %p71 = scmp.eq.s32.totalorder %s17, 0
      %p72 = por %p70, %p71
      %p73 = scmp.ne.s32.totalorder %s65, %s67
      %p74 = scmp.eq.s32.totalorder %s22, 3
      %p75 = por %p73, %p74
      %p76 = scmp.ne.s32.totalorder %s67, %s68
      %p77 = scmp.eq.s32.totalorder %s22, 0
      %p78 = por %p76, %p77
      %p79 = scmp.ne.s32.totalorder %s67, %s68
      %p80 = scmp.eq.s32.totalorder %s23, 3
      %p81 = por %p79, %p80
      %p83 = scmp.ne.s32.totalorder %s68, %s82
      %p84 = scmp.eq.s32.totalorder %s23, 0
      %p85 = por %p83, %p84
      %s87 = sadd.s32 %s86, 1
      %p90 = scmp.eq.s32.totalorder %s17, 3
      %p91 = scmp.ne.s32.totalorder %s86, %s88
      %p92 = scmp.eq.s32.totalorder %s17, 0
      %p93 = por %p91, %p92
      %p94 = scmp.ne.s32.totalorder %s86, %s88
      %p95 = scmp.eq.s32.totalorder %s22, 3
      %p96 = por %p94, %p95
      %p97 = scmp.ne.s32.totalorder %s88, %s89
      %p98 = scmp.eq.s32.totalorder %s22, 0
      %p99 = por %p97, %p98
      %p100 = scmp.ne.s32.totalorder %s88, %s89
      %p101 = scmp.eq.s32.totalorder %s23, 3
      %p102 = por %p100, %p101
      %p104 = scmp.ne.s32.totalorder %s89, %s103
      %p105 = scmp.eq.s32.totalorder %s23, 0
      %p106 = por %p104, %p105
      %s107 = ssub.s32 %s24, %s36
      %s108 = ssub.s32 %s25, %s32
      %s109 = sor.u32 %s107, %s108
      %p110 = scmp.eq.s32.totalorder %s109, 0
      %s112 = sadd.s32 %s111, 1
      %s113 = scalar_select %p110, %s111, %s112
      %p116 = pneg %p110
      %p117 = scmp.eq.s32.totalorder %s17, 3
      %p118 = por %p116, %p117
      %p119 = scmp.ne.s32.totalorder %s111, %s114
      %p120 = scmp.eq.s32.totalorder %s17, 0
      %p121 = por %p119, %p120
      %p122 = scmp.ne.s32.totalorder %s111, %s114
      %p123 = scmp.eq.s32.totalorder %s22, 3
      %p124 = por %p122, %p123
      %p125 = scmp.ne.s32.totalorder %s114, %s115
      %p126 = scmp.eq.s32.totalorder %s22, 0
      %p127 = por %p125, %p126
      %p128 = scmp.ne.s32.totalorder %s114, %s115
      %p129 = scmp.eq.s32.totalorder %s23, 3
      %p130 = por %p128, %p129
      %p132 = scmp.ne.s32.totalorder %s115, %s131
      %p133 = scmp.eq.s32.totalorder %s23, 0
      %p134 = por %p132, %p133
      %p135 = scmp.le.s32.totalorder 1, %s17
      %p136 = scmp.lt.s32.totalorder %s17, 5
      %p137 = pnand %p135, %p136
      %p138 = pneg %p137
      // Predicated region
      $region9: #{unet_forward.1} parent=5 // pred_check
        _
      $region10: #{unet_forward.1} parent=5 // pred_check_branch
        %140 = sbr.rel (%p137) target = $region12
      $region11: #{unet_forward.1} parent=5 // pred_region
        %s141 = ssub.s32 %s17, 1
        // Predicated region
        $region13: #{unet_forward.1} parent=11 // pred_check
          %p142 = pneg %p78
        $region14: #{unet_forward.1} parent=11 // pred_check_branch
          %144 = sbr.rel (%p142) target = $region16
        $region15: #{unet_forward.1} parent=11 // pred_region
          %s146 = ssub.s32 64, 64
          %147 = vsyncadd [#allocation6], %s146
          %s149 = sshll.u32 %s1, 4
          %s150 = int_to_ptr.vmem [resolvable:$true] %s149
          %152 = dma.vmem_to_smem %s150, 64, [#allocation7], [#allocation6]
        $region16: #{unet_forward.1} parent=11 // pred_fallthru
          _
        // Predicated region
        $region17: #{unet_forward.1} parent=11 // pred_check
          %p153 = pneg %p99
        $region18: #{unet_forward.1} parent=11 // pred_check_branch
          %155 = sbr.rel (%p153) target = $region20
        $region19: #{unet_forward.1} parent=11 // pred_region
          %s157 = ssub.s32 16, 16
          %158 = vsyncadd [#allocation5], %s157
          %161 = dma.hbm_to_smem %s2, 16, [#allocation8], [#allocation5]
        $region20: #{unet_forward.1} parent=11 // pred_fallthru
          _
      $region12: #{unet_forward.1} parent=5 // pred_fallthru
        _
      %p162 = scmp.lt.s32.totalorder %s17, 4
      // Predicated region
      $region21: #{unet_forward.1} parent=5 // pred_check
        %p163 = pneg %p162
      $region22: #{unet_forward.1} parent=5 // pred_check_branch
        %165 = sbr.rel (%p163) target = $region24
      $region23: #{unet_forward.1} parent=5 // pred_region
        // Predicated region
        $region25: #{unet_forward.1} parent=23 // pred_check
          %p166 = pneg %p51
        $region26: #{unet_forward.1} parent=23 // pred_check_branch
          %168 = sbr.rel (%p166) target = $region28
        $region27: #{unet_forward.1} parent=23 // pred_region
          #allocation11 [shape = 'u32[6]{0}', space=smem, size = 0x18, scoped, tag = 'DMA stride descriptor']
          %s169 = sand.u32 %s41, 1
          %s170 = scalar_lea.sflag [#allocation3], %s169
          %s171 = sand.u32 %s41, 1
          %s172 = smul.addr %s171, 6144
          %s173 = scalar_lea.vmem [#allocation2], %s172
          %s174 = smul.u32 32, %s25
          %s176 = ssub.s32 98304, 98304
          %177 = vsyncadd %s170, %s176
          %s178 = smul.addr %s174, 8
          %s179 = smul.addr %s24, 3072
          %s180 = sadd.s32 %s178, %s179
          %s181 = smul.addr %s180, 128
          %s182 = scalar_lea.hbm %s0, %s181
          %s184 = sshll.u32 1, 14
          %s185 = sxor.u32 4294967295, %s184
          %s187 = sld [smem:[#allocation0]]
          %s188 = sadd.s32 2, %s187
          %s190 = sshll.u32 7, 26
          %s191 = sxor.u32 4294967295, %s190
          %s192 = sand.u32 0, %s191
          %s193 = sshll.u32 %s188, 26
          %s194 = sor.u32 %s192, %s193
          %s195 = sshll.u32 %s173, 4
          %s196 = int_to_ptr.vmem [resolvable:$true] %s195
          %202 = sst [smem:[#allocation11]] 131072
          %s203 = scalar_lea.smem [#allocation11], 1
          %204 = sst [smem:[%s203]] 32768
          %s205 = scalar_lea.smem [#allocation11], 2
          %206 = sst [smem:[%s205]] 32
          %s207 = scalar_lea.smem [#allocation11], 3
          %208 = sst [smem:[%s207]] 1024
          %s209 = scalar_lea.smem [#allocation11], 4
          %210 = sst [smem:[%s209]] 1024
          %s211 = scalar_lea.smem [#allocation11], 5
          %212 = sst [smem:[%s211]] 64
          %214 = dma.general %s182, 98304, %s196, %s170, [#allocation10], [#allocation11], %s194, 0
        $region28: #{unet_forward.1} parent=23 // pred_fallthru
          _
      $region24: #{unet_forward.1} parent=5 // pred_fallthru
        _
      %p215 = scmp.le.s32.totalorder 1, %s17
      %p216 = scmp.lt.s32.totalorder %s17, 5
      %p217 = pnand %p215, %p216
      %p218 = pneg %p217
      // Predicated region
      $region29: #{unet_forward.1} parent=5 // pred_check
        _
      $region30: #{unet_forward.1} parent=5 // pred_check_branch
        %220 = sbr.rel (%p217) target = $region32
      $region31: #{unet_forward.1} parent=5 // pred_region
        %s221 = ssub.s32 %s17, 1
        %s222 = sand.u32 %s44, 1
        %s223 = scalar_lea.sflag [#allocation3], %s222
        %s224 = sand.u32 %s44, 1
        %s225 = smul.addr %s224, 6144
        %s226 = scalar_lea.vmem [#allocation2], %s225
        // Predicated region
        $region33: #{unet_forward.1} parent=31 // pred_check
          %p227 = pneg %p57
        $region34: #{unet_forward.1} parent=31 // pred_check_branch
          %229 = sbr.rel (%p227) target = $region36
        $region35: #{unet_forward.1} parent=31 // pred_region
          %230 = dma.done %s223, 98304
        $region36: #{unet_forward.1} parent=31 // pred_fallthru
          _
        // Predicated region
        $region37: #{unet_forward.1} parent=31 // pred_check
          %p231 = pneg %p78
        $region38: #{unet_forward.1} parent=31 // pred_check_branch
          %233 = sbr.rel (%p231) target = $region40
        $region39: #{unet_forward.1} parent=31 // pred_region
          %234 = dma.done [#allocation6], 64
        $region40: #{unet_forward.1} parent=31 // pred_fallthru
          _
        // Predicated region
        $region41: #{unet_forward.1} parent=31 // pred_check
          %p235 = pneg %p99
        $region42: #{unet_forward.1} parent=31 // pred_check_branch
          %237 = sbr.rel (%p235) target = $region44
        $region43: #{unet_forward.1} parent=31 // pred_region
          %238 = dma.done [#allocation5], 16
        $region44: #{unet_forward.1} parent=31 // pred_fallthru
          _
        %239 = sfence
        %s240 = sand.u32 %s44, 1
        %s241 = scalar_lea.sflag [#allocation3], %s240
        %s242 = sand.u32 %s44, 1
        %s243 = smul.addr %s242, 6144
        %s244 = scalar_lea.vmem [#allocation2], %s243
        %p245 = pneg %p57
        %p246 = pneg %p54
        %p247 = pneg %p78
        %p248 = pneg %p75
        %p249 = pneg %p99
        %p250 = pneg %p96
        %p251 = pneg %p127
        %p252 = pneg %p124
        %s253 = sand.u32 %s114, 1
        %s254 = scalar_lea.sflag [#allocation4], %s253
        %s255 = sand.u32 %s114, 1
        %s256 = smul.addr %s255, 6144
        %s257 = scalar_lea.vmem [#allocation9], %s256
        %s258 = smul.u32 32, %s27
        %s259 = smul.u32 32, %s27
        %v260 = vld [vmem:[%s226] sm:$0xff]
        %v261 = vld [vmem:[%s226 + $0x8] sm:$0xff]
        %v262 = vld [vmem:[%s226 + $0x10] sm:$0xff]
        %v263 = vld [vmem:[%s226 + $0x18] sm:$0xff]
        %v264 = vld [vmem:[%s226 + $0x20] sm:$0xff]
        %v265 = vld [vmem:[%s226 + $0x28] sm:$0xff]
        %v266 = vld [vmem:[%s226 + $0x30] sm:$0xff]
        %v267 = vld [vmem:[%s226 + $0x38] sm:$0xff]
        %v268 = vld [vmem:[%s226 + $0x40] sm:$0xff]
        %v269 = vld [vmem:[%s226 + $0x48] sm:$0xff]
        %v270 = vld [vmem:[%s226 + $0x50] sm:$0xff]
        %v271 = vld [vmem:[%s226 + $0x58] sm:$0xff]
        %v272 = vld [vmem:[%s226 + $0x60] sm:$0xff]
        %v273 = vld [vmem:[%s226 + $0x68] sm:$0xff]
        %v274 = vld [vmem:[%s226 + $0x70] sm:$0xff]
        %v275 = vld [vmem:[%s226 + $0x78] sm:$0xff]
        %v276 = vld [vmem:[%s226 + $0x80] sm:$0xff]
        %v277 = vld [vmem:[%s226 + $0x88] sm:$0xff]
        %v278 = vld [vmem:[%s226 + $0x90] sm:$0xff]
        %v279 = vld [vmem:[%s226 + $0x98] sm:$0xff]
        %v280 = vld [vmem:[%s226 + $0xa0] sm:$0xff]
        %v281 = vld [vmem:[%s226 + $0xa8] sm:$0xff]
        %v282 = vld [vmem:[%s226 + $0xb0] sm:$0xff]
        %v283 = vld [vmem:[%s226 + $0xb8] sm:$0xff]
        %v284 = vld [vmem:[%s226 + $0xc0] sm:$0xff]
        %v285 = vld [vmem:[%s226 + $0xc8] sm:$0xff]
        %v286 = vld [vmem:[%s226 + $0xd0] sm:$0xff]
        %v287 = vld [vmem:[%s226 + $0xd8] sm:$0xff]
        %v288 = vld [vmem:[%s226 + $0xe0] sm:$0xff]
        %v289 = vld [vmem:[%s226 + $0xe8] sm:$0xff]
        %v290 = vld [vmem:[%s226 + $0xf0] sm:$0xff]
        %v291 = vld [vmem:[%s226 + $0xf8] sm:$0xff]
        %v292 = vld [vmem:[%s226 + $0x100] sm:$0xff]
        %v293 = vld [vmem:[%s226 + $0x108] sm:$0xff]
        %v294 = vld [vmem:[%s226 + $0x110] sm:$0xff]
        %v295 = vld [vmem:[%s226 + $0x118] sm:$0xff]
        %v296 = vld [vmem:[%s226 + $0x120] sm:$0xff]
        %v297 = vld [vmem:[%s226 + $0x128] sm:$0xff]
        %v298 = vld [vmem:[%s226 + $0x130] sm:$0xff]
        %v299 = vld [vmem:[%s226 + $0x138] sm:$0xff]
        %v300 = vld [vmem:[%s226 + $0x140] sm:$0xff]
        %v301 = vld [vmem:[%s226 + $0x148] sm:$0xff]
        %v302 = vld [vmem:[%s226 + $0x150] sm:$0xff]
        %v303 = vld [vmem:[%s226 + $0x158] sm:$0xff]
        %v304 = vld [vmem:[%s226 + $0x160] sm:$0xff]
        %v305 = vld [vmem:[%s226 + $0x168] sm:$0xff]
        %v306 = vld [vmem:[%s226 + $0x170] sm:$0xff]
        %v307 = vld [vmem:[%s226 + $0x178] sm:$0xff]
        %v308 = vld [vmem:[%s226 + $0x180] sm:$0xff]
        %v309 = vld [vmem:[%s226 + $0x188] sm:$0xff]
        %v310 = vld [vmem:[%s226 + $0x190] sm:$0xff]
        %v311 = vld [vmem:[%s226 + $0x198] sm:$0xff]
        %v312 = vld [vmem:[%s226 + $0x1a0] sm:$0xff]
        %v313 = vld [vmem:[%s226 + $0x1a8] sm:$0xff]
        %v314 = vld [vmem:[%s226 + $0x1b0] sm:$0xff]
        %v315 = vld [vmem:[%s226 + $0x1b8] sm:$0xff]
        %v316 = vld [vmem:[%s226 + $0x1c0] sm:$0xff]
        %v317 = vld [vmem:[%s226 + $0x1c8] sm:$0xff]
        %v318 = vld [vmem:[%s226 + $0x1d0] sm:$0xff]
        %v319 = vld [vmem:[%s226 + $0x1d8] sm:$0xff]
        %v320 = vld [vmem:[%s226 + $0x1e0] sm:$0xff]
        %v321 = vld [vmem:[%s226 + $0x1e8] sm:$0xff]
        %v322 = vld [vmem:[%s226 + $0x1f0] sm:$0xff]
        %v323 = vld [vmem:[%s226 + $0x1f8] sm:$0xff]
        %v324 = vld [vmem:[%s226 + $0x200] sm:$0xff]
        %v325 = vld [vmem:[%s226 + $0x208] sm:$0xff]
        %v326 = vld [vmem:[%s226 + $0x210] sm:$0xff]
        %v327 = vld [vmem:[%s226 + $0x218] sm:$0xff]
        %v328 = vld [vmem:[%s226 + $0x220] sm:$0xff]
        %v329 = vld [vmem:[%s226 + $0x228] sm:$0xff]
        %v330 = vld [vmem:[%s226 + $0x230] sm:$0xff]
        %v331 = vld [vmem:[%s226 + $0x238] sm:$0xff]
        %v332 = vld [vmem:[%s226 + $0x240] sm:$0xff]
        %v333 = vld [vmem:[%s226 + $0x248] sm:$0xff]
        %v334 = vld [vmem:[%s226 + $0x250] sm:$0xff]
        %v335 = vld [vmem:[%s226 + $0x258] sm:$0xff]
        %v336 = vld [vmem:[%s226 + $0x260] sm:$0xff]
        %v337 = vld [vmem:[%s226 + $0x268] sm:$0xff]
        %v338 = vld [vmem:[%s226 + $0x270] sm:$0xff]
        %v339 = vld [vmem:[%s226 + $0x278] sm:$0xff]
        %v340 = vld [vmem:[%s226 + $0x280] sm:$0xff]
        %v341 = vld [vmem:[%s226 + $0x288] sm:$0xff]
        %v342 = vld [vmem:[%s226 + $0x290] sm:$0xff]
        %v343 = vld [vmem:[%s226 + $0x298] sm:$0xff]
        %v344 = vld [vmem:[%s226 + $0x2a0] sm:$0xff]
        %v345 = vld [vmem:[%s226 + $0x2a8] sm:$0xff]
        %v346 = vld [vmem:[%s226 + $0x2b0] sm:$0xff]
        %v347 = vld [vmem:[%s226 + $0x2b8] sm:$0xff]
        %v348 = vld [vmem:[%s226 + $0x2c0] sm:$0xff]
        %v349 = vld [vmem:[%s226 + $0x2c8] sm:$0xff]
        %v350 = vld [vmem:[%s226 + $0x2d0] sm:$0xff]
        %v351 = vld [vmem:[%s226 + $0x2d8] sm:$0xff]
        %v352 = vld [vmem:[%s226 + $0x2e0] sm:$0xff]
        %v353 = vld [vmem:[%s226 + $0x2e8] sm:$0xff]
        %v354 = vld [vmem:[%s226 + $0x2f0] sm:$0xff]
        %v355 = vld [vmem:[%s226 + $0x2f8] sm:$0xff]
        %v356 = vld [vmem:[%s226 + $0x300] sm:$0xff]
        %v357 = vld [vmem:[%s226 + $0x308] sm:$0xff]
        %v358 = vld [vmem:[%s226 + $0x310] sm:$0xff]
        %v359 = vld [vmem:[%s226 + $0x318] sm:$0xff]
        %v360 = vld [vmem:[%s226 + $0x320] sm:$0xff]
        %v361 = vld [vmem:[%s226 + $0x328] sm:$0xff]
        %v362 = vld [vmem:[%s226 + $0x330] sm:$0xff]
        %v363 = vld [vmem:[%s226 + $0x338] sm:$0xff]
        %v364 = vld [vmem:[%s226 + $0x340] sm:$0xff]
        %v365 = vld [vmem:[%s226 + $0x348] sm:$0xff]
        %v366 = vld [vmem:[%s226 + $0x350] sm:$0xff]
        %v367 = vld [vmem:[%s226 + $0x358] sm:$0xff]
        %v368 = vld [vmem:[%s226 + $0x360] sm:$0xff]
        %v369 = vld [vmem:[%s226 + $0x368] sm:$0xff]
        %v370 = vld [vmem:[%s226 + $0x370] sm:$0xff]
        %v371 = vld [vmem:[%s226 + $0x378] sm:$0xff]
        %v372 = vld [vmem:[%s226 + $0x380] sm:$0xff]
        %v373 = vld [vmem:[%s226 + $0x388] sm:$0xff]
        %v374 = vld [vmem:[%s226 + $0x390] sm:$0xff]
        %v375 = vld [vmem:[%s226 + $0x398] sm:$0xff]
        %v376 = vld [vmem:[%s226 + $0x3a0] sm:$0xff]
        %v377 = vld [vmem:[%s226 + $0x3a8] sm:$0xff]
        %v378 = vld [vmem:[%s226 + $0x3b0] sm:$0xff]
        %v379 = vld [vmem:[%s226 + $0x3b8] sm:$0xff]
        %v380 = vld [vmem:[%s226 + $0x3c0] sm:$0xff]
        %v381 = vld [vmem:[%s226 + $0x3c8] sm:$0xff]
        %v382 = vld [vmem:[%s226 + $0x3d0] sm:$0xff]
        %v383 = vld [vmem:[%s226 + $0x3d8] sm:$0xff]
        %v384 = vld [vmem:[%s226 + $0x3e0] sm:$0xff]
        %v385 = vld [vmem:[%s226 + $0x3e8] sm:$0xff]
        %v386 = vld [vmem:[%s226 + $0x3f0] sm:$0xff]
        %v387 = vld [vmem:[%s226 + $0x3f8] sm:$0xff]
        %v388 = vld [vmem:[%s226 + $0x400] sm:$0xff]
        %v389 = vld [vmem:[%s226 + $0x408] sm:$0xff]
        %v390 = vld [vmem:[%s226 + $0x410] sm:$0xff]
        %v391 = vld [vmem:[%s226 + $0x418] sm:$0xff]
        %v392 = vld [vmem:[%s226 + $0x420] sm:$0xff]
        %v393 = vld [vmem:[%s226 + $0x428] sm:$0xff]
        %v394 = vld [vmem:[%s226 + $0x430] sm:$0xff]
        %v395 = vld [vmem:[%s226 + $0x438] sm:$0xff]
        %v396 = vld [vmem:[%s226 + $0x440] sm:$0xff]
        %v397 = vld [vmem:[%s226 + $0x448] sm:$0xff]
        %v398 = vld [vmem:[%s226 + $0x450] sm:$0xff]
        %v399 = vld [vmem:[%s226 + $0x458] sm:$0xff]
        %v400 = vld [vmem:[%s226 + $0x460] sm:$0xff]
        %v401 = vld [vmem:[%s226 + $0x468] sm:$0xff]
        %v402 = vld [vmem:[%s226 + $0x470] sm:$0xff]
        %v403 = vld [vmem:[%s226 + $0x478] sm:$0xff]
        %v404 = vld [vmem:[%s226 + $0x480] sm:$0xff]
        %v405 = vld [vmem:[%s226 + $0x488] sm:$0xff]
        %v406 = vld [vmem:[%s226 + $0x490] sm:$0xff]
        %v407 = vld [vmem:[%s226 + $0x498] sm:$0xff]
        %v408 = vld [vmem:[%s226 + $0x4a0] sm:$0xff]
        %v409 = vld [vmem:[%s226 + $0x4a8] sm:$0xff]
        %v410 = vld [vmem:[%s226 + $0x4b0] sm:$0xff]
        %v411 = vld [vmem:[%s226 + $0x4b8] sm:$0xff]
        %v412 = vld [vmem:[%s226 + $0x4c0] sm:$0xff]
        %v413 = vld [vmem:[%s226 + $0x4c8] sm:$0xff]
        %v414 = vld [vmem:[%s226 + $0x4d0] sm:$0xff]
        %v415 = vld [vmem:[%s226 + $0x4d8] sm:$0xff]
        %v416 = vld [vmem:[%s226 + $0x4e0] sm:$0xff]
        %v417 = vld [vmem:[%s226 + $0x4e8] sm:$0xff]
        %v418 = vld [vmem:[%s226 + $0x4f0] sm:$0xff]
        %v419 = vld [vmem:[%s226 + $0x4f8] sm:$0xff]
        %v420 = vld [vmem:[%s226 + $0x500] sm:$0xff]
        %v421 = vld [vmem:[%s226 + $0x508] sm:$0xff]
        %v422 = vld [vmem:[%s226 + $0x510] sm:$0xff]
        %v423 = vld [vmem:[%s226 + $0x518] sm:$0xff]
        %v424 = vld [vmem:[%s226 + $0x520] sm:$0xff]
        %v425 = vld [vmem:[%s226 + $0x528] sm:$0xff]
        %v426 = vld [vmem:[%s226 + $0x530] sm:$0xff]
        %v427 = vld [vmem:[%s226 + $0x538] sm:$0xff]
        %v428 = vld [vmem:[%s226 + $0x540] sm:$0xff]
        %v429 = vld [vmem:[%s226 + $0x548] sm:$0xff]
        %v430 = vld [vmem:[%s226 + $0x550] sm:$0xff]
        %v431 = vld [vmem:[%s226 + $0x558] sm:$0xff]
        %v432 = vld [vmem:[%s226 + $0x560] sm:$0xff]
        %v433 = vld [vmem:[%s226 + $0x568] sm:$0xff]
        %v434 = vld [vmem:[%s226 + $0x570] sm:$0xff]
        %v435 = vld [vmem:[%s226 + $0x578] sm:$0xff]
        %v436 = vld [vmem:[%s226 + $0x580] sm:$0xff]
        %v437 = vld [vmem:[%s226 + $0x588] sm:$0xff]
        %v438 = vld [vmem:[%s226 + $0x590] sm:$0xff]
        %v439 = vld [vmem:[%s226 + $0x598] sm:$0xff]
        %v440 = vld [vmem:[%s226 + $0x5a0] sm:$0xff]
        %v441 = vld [vmem:[%s226 + $0x5a8] sm:$0xff]
        %v442 = vld [vmem:[%s226 + $0x5b0] sm:$0xff]
        %v443 = vld [vmem:[%s226 + $0x5b8] sm:$0xff]
        %v444 = vld [vmem:[%s226 + $0x5c0] sm:$0xff]
        %v445 = vld [vmem:[%s226 + $0x5c8] sm:$0xff]
        %v446 = vld [vmem:[%s226 + $0x5d0] sm:$0xff]
        %v447 = vld [vmem:[%s226 + $0x5d8] sm:$0xff]
        %v448 = vld [vmem:[%s226 + $0x5e0] sm:$0xff]
        %v449 = vld [vmem:[%s226 + $0x5e8] sm:$0xff]
        %v450 = vld [vmem:[%s226 + $0x5f0] sm:$0xff]
        %v451 = vld [vmem:[%s226 + $0x5f8] sm:$0xff]
        %v452 = vld [vmem:[%s226 + $0x600] sm:$0xff]
        %v453 = vld [vmem:[%s226 + $0x608] sm:$0xff]
        %v454 = vld [vmem:[%s226 + $0x610] sm:$0xff]
        %v455 = vld [vmem:[%s226 + $0x618] sm:$0xff]
        %v456 = vld [vmem:[%s226 + $0x620] sm:$0xff]
        %v457 = vld [vmem:[%s226 + $0x628] sm:$0xff]
        %v458 = vld [vmem:[%s226 + $0x630] sm:$0xff]
        %v459 = vld [vmem:[%s226 + $0x638] sm:$0xff]
        %v460 = vld [vmem:[%s226 + $0x640] sm:$0xff]
        %v461 = vld [vmem:[%s226 + $0x648] sm:$0xff]
        %v462 = vld [vmem:[%s226 + $0x650] sm:$0xff]
        %v463 = vld [vmem:[%s226 + $0x658] sm:$0xff]
        %v464 = vld [vmem:[%s226 + $0x660] sm:$0xff]
        %v465 = vld [vmem:[%s226 + $0x668] sm:$0xff]
        %v466 = vld [vmem:[%s226 + $0x670] sm:$0xff]
        %v467 = vld [vmem:[%s226 + $0x678] sm:$0xff]
        %v468 = vld [vmem:[%s226 + $0x680] sm:$0xff]
        %v469 = vld [vmem:[%s226 + $0x688] sm:$0xff]
        %v470 = vld [vmem:[%s226 + $0x690] sm:$0xff]
        %v471 = vld [vmem:[%s226 + $0x698] sm:$0xff]
        %v472 = vld [vmem:[%s226 + $0x6a0] sm:$0xff]
        %v473 = vld [vmem:[%s226 + $0x6a8] sm:$0xff]
        %v474 = vld [vmem:[%s226 + $0x6b0] sm:$0xff]
        %v475 = vld [vmem:[%s226 + $0x6b8] sm:$0xff]
        %v476 = vld [vmem:[%s226 + $0x6c0] sm:$0xff]
        %v477 = vld [vmem:[%s226 + $0x6c8] sm:$0xff]
        %v478 = vld [vmem:[%s226 + $0x6d0] sm:$0xff]
        %v479 = vld [vmem:[%s226 + $0x6d8] sm:$0xff]
        %v480 = vld [vmem:[%s226 + $0x6e0] sm:$0xff]
        %v481 = vld [vmem:[%s226 + $0x6e8] sm:$0xff]
        %v482 = vld [vmem:[%s226 + $0x6f0] sm:$0xff]
        %v483 = vld [vmem:[%s226 + $0x6f8] sm:$0xff]
        %v484 = vld [vmem:[%s226 + $0x700] sm:$0xff]
        %v485 = vld [vmem:[%s226 + $0x708] sm:$0xff]
        %v486 = vld [vmem:[%s226 + $0x710] sm:$0xff]
        %v487 = vld [vmem:[%s226 + $0x718] sm:$0xff]
        %v488 = vld [vmem:[%s226 + $0x720] sm:$0xff]
        %v489 = vld [vmem:[%s226 + $0x728] sm:$0xff]
        %v490 = vld [vmem:[%s226 + $0x730] sm:$0xff]
        %v491 = vld [vmem:[%s226 + $0x738] sm:$0xff]
        %v492 = vld [vmem:[%s226 + $0x740] sm:$0xff]
        %v493 = vld [vmem:[%s226 + $0x748] sm:$0xff]
        %v494 = vld [vmem:[%s226 + $0x750] sm:$0xff]
        %v495 = vld [vmem:[%s226 + $0x758] sm:$0xff]
        %v496 = vld [vmem:[%s226 + $0x760] sm:$0xff]
        %v497 = vld [vmem:[%s226 + $0x768] sm:$0xff]
        %v498 = vld [vmem:[%s226 + $0x770] sm:$0xff]
        %v499 = vld [vmem:[%s226 + $0x778] sm:$0xff]
        %v500 = vld [vmem:[%s226 + $0x780] sm:$0xff]
        %v501 = vld [vmem:[%s226 + $0x788] sm:$0xff]
        %v502 = vld [vmem:[%s226 + $0x790] sm:$0xff]
        %v503 = vld [vmem:[%s226 + $0x798] sm:$0xff]
        %v504 = vld [vmem:[%s226 + $0x7a0] sm:$0xff]
        %v505 = vld [vmem:[%s226 + $0x7a8] sm:$0xff]
        %v506 = vld [vmem:[%s226 + $0x7b0] sm:$0xff]
        %v507 = vld [vmem:[%s226 + $0x7b8] sm:$0xff]
        %v508 = vld [vmem:[%s226 + $0x7c0] sm:$0xff]
        %v509 = vld [vmem:[%s226 + $0x7c8] sm:$0xff]
        %v510 = vld [vmem:[%s226 + $0x7d0] sm:$0xff]
        %v511 = vld [vmem:[%s226 + $0x7d8] sm:$0xff]
        %v512 = vld [vmem:[%s226 + $0x7e0] sm:$0xff]
        %v513 = vld [vmem:[%s226 + $0x7e8] sm:$0xff]
        %v514 = vld [vmem:[%s226 + $0x7f0] sm:$0xff]
        %v515 = vld [vmem:[%s226 + $0x7f8] sm:$0xff]
        %s516 = sld [smem:[#allocation7]]
        %v517 = vstv %s516
        %v518 = vmul.f32 %v260, %v517
        %v519 = vmul.f32 %v261, %v517
        %v520 = vmul.f32 %v262, %v517
        %v521 = vmul.f32 %v263, %v517
        %v522 = vmul.f32 %v264, %v517
        %v523 = vmul.f32 %v265, %v517
        %v524 = vmul.f32 %v266, %v517
        %v525 = vmul.f32 %v267, %v517
        %v526 = vmul.f32 %v268, %v517
        %v527 = vmul.f32 %v269, %v517
        %v528 = vmul.f32 %v270, %v517
        %v529 = vmul.f32 %v271, %v517
        %v530 = vmul.f32 %v272, %v517
        %v531 = vmul.f32 %v273, %v517
        %v532 = vmul.f32 %v274, %v517
        %v533 = vmul.f32 %v275, %v517
        %v534 = vmul.f32 %v276, %v517
        %v535 = vmul.f32 %v277, %v517
        %v536 = vmul.f32 %v278, %v517
        %v537 = vmul.f32 %v279, %v517
        %v538 = vmul.f32 %v280, %v517
        %v539 = vmul.f32 %v281, %v517
        %v540 = vmul.f32 %v282, %v517
        %v541 = vmul.f32 %v283, %v517
        %v542 = vmul.f32 %v284, %v517
        %v543 = vmul.f32 %v285, %v517
        %v544 = vmul.f32 %v286, %v517
        %v545 = vmul.f32 %v287, %v517
        %v546 = vmul.f32 %v288, %v517
        %v547 = vmul.f32 %v289, %v517
        %v548 = vmul.f32 %v290, %v517
        %v549 = vmul.f32 %v291, %v517
        %v550 = vmul.f32 %v292, %v517
        %v551 = vmul.f32 %v293, %v517
        %v552 = vmul.f32 %v294, %v517
        %v553 = vmul.f32 %v295, %v517
        %v554 = vmul.f32 %v296, %v517
        %v555 = vmul.f32 %v297, %v517
        %v556 = vmul.f32 %v298, %v517
        %v557 = vmul.f32 %v299, %v517
        %v558 = vmul.f32 %v300, %v517
        %v559 = vmul.f32 %v301, %v517
        %v560 = vmul.f32 %v302, %v517
        %v561 = vmul.f32 %v303, %v517
        %v562 = vmul.f32 %v304, %v517
        %v563 = vmul.f32 %v305, %v517
        %v564 = vmul.f32 %v306, %v517
        %v565 = vmul.f32 %v307, %v517
        %v566 = vmul.f32 %v308, %v517
        %v567 = vmul.f32 %v309, %v517
        %v568 = vmul.f32 %v310, %v517
        %v569 = vmul.f32 %v311, %v517
        %v570 = vmul.f32 %v312, %v517
        %v571 = vmul.f32 %v313, %v517
        %v572 = vmul.f32 %v314, %v517
        %v573 = vmul.f32 %v315, %v517
        %v574 = vmul.f32 %v316, %v517
        %v575 = vmul.f32 %v317, %v517
        %v576 = vmul.f32 %v318, %v517
        %v577 = vmul.f32 %v319, %v517
        %v578 = vmul.f32 %v320, %v517
        %v579 = vmul.f32 %v321, %v517
        %v580 = vmul.f32 %v322, %v517
        %v581 = vmul.f32 %v323, %v517
        %v582 = vmul.f32 %v324, %v517
        %v583 = vmul.f32 %v325, %v517
        %v584 = vmul.f32 %v326, %v517
        %v585 = vmul.f32 %v327, %v517
        %v586 = vmul.f32 %v328, %v517
        %v587 = vmul.f32 %v329, %v517
        %v588 = vmul.f32 %v330, %v517
        %v589 = vmul.f32 %v331, %v517
        %v590 = vmul.f32 %v332, %v517
        %v591 = vmul.f32 %v333, %v517
        %v592 = vmul.f32 %v334, %v517
        %v593 = vmul.f32 %v335, %v517
        %v594 = vmul.f32 %v336, %v517
        %v595 = vmul.f32 %v337, %v517
        %v596 = vmul.f32 %v338, %v517
        %v597 = vmul.f32 %v339, %v517
        %v598 = vmul.f32 %v340, %v517
        %v599 = vmul.f32 %v341, %v517
        %v600 = vmul.f32 %v342, %v517
        %v601 = vmul.f32 %v343, %v517
        %v602 = vmul.f32 %v344, %v517
        %v603 = vmul.f32 %v345, %v517
        %v604 = vmul.f32 %v346, %v517
        %v605 = vmul.f32 %v347, %v517
        %v606 = vmul.f32 %v348, %v517
        %v607 = vmul.f32 %v349, %v517
        %v608 = vmul.f32 %v350, %v517
        %v609 = vmul.f32 %v351, %v517
        %v610 = vmul.f32 %v352, %v517
        %v611 = vmul.f32 %v353, %v517
        %v612 = vmul.f32 %v354, %v517
        %v613 = vmul.f32 %v355, %v517
        %v614 = vmul.f32 %v356, %v517
        %v615 = vmul.f32 %v357, %v517
        %v616 = vmul.f32 %v358, %v517
        %v617 = vmul.f32 %v359, %v517
        %v618 = vmul.f32 %v360, %v517
        %v619 = vmul.f32 %v361, %v517
        %v620 = vmul.f32 %v362, %v517
        %v621 = vmul.f32 %v363, %v517
        %v622 = vmul.f32 %v364, %v517
        %v623 = vmul.f32 %v365, %v517
        %v624 = vmul.f32 %v366, %v517
        %v625 = vmul.f32 %v367, %v517
        %v626 = vmul.f32 %v368, %v517
        %v627 = vmul.f32 %v369, %v517
        %v628 = vmul.f32 %v370, %v517
        %v629 = vmul.f32 %v371, %v517
        %v630 = vmul.f32 %v372, %v517
        %v631 = vmul.f32 %v373, %v517
        %v632 = vmul.f32 %v374, %v517
        %v633 = vmul.f32 %v375, %v517
        %v634 = vmul.f32 %v376, %v517
        %v635 = vmul.f32 %v377, %v517
        %v636 = vmul.f32 %v378, %v517
        %v637 = vmul.f32 %v379, %v517
        %v638 = vmul.f32 %v380, %v517
        %v639 = vmul.f32 %v381, %v517
        %v640 = vmul.f32 %v382, %v517
        %v641 = vmul.f32 %v383, %v517
        %v642 = vmul.f32 %v384, %v517
        %v643 = vmul.f32 %v385, %v517
        %v644 = vmul.f32 %v386, %v517
        %v645 = vmul.f32 %v387, %v517
        %v646 = vmul.f32 %v388, %v517
        %v647 = vmul.f32 %v389, %v517
        %v648 = vmul.f32 %v390, %v517
        %v649 = vmul.f32 %v391, %v517
        %v650 = vmul.f32 %v392, %v517
        %v651 = vmul.f32 %v393, %v517
        %v652 = vmul.f32 %v394, %v517
        %v653 = vmul.f32 %v395, %v517
        %v654 = vmul.f32 %v396, %v517
        %v655 = vmul.f32 %v397, %v517
        %v656 = vmul.f32 %v398, %v517
        %v657 = vmul.f32 %v399, %v517
        %v658 = vmul.f32 %v400, %v517
        %v659 = vmul.f32 %v401, %v517
        %v660 = vmul.f32 %v402, %v517
        %v661 = vmul.f32 %v403, %v517
        %v662 = vmul.f32 %v404, %v517
        %v663 = vmul.f32 %v405, %v517
        %v664 = vmul.f32 %v406, %v517
        %v665 = vmul.f32 %v407, %v517
        %v666 = vmul.f32 %v408, %v517
        %v667 = vmul.f32 %v409, %v517
        %v668 = vmul.f32 %v410, %v517
        %v669 = vmul.f32 %v411, %v517
        %v670 = vmul.f32 %v412, %v517
        %v671 = vmul.f32 %v413, %v517
        %v672 = vmul.f32 %v414, %v517
        %v673 = vmul.f32 %v415, %v517
        %v674 = vmul.f32 %v416, %v517
        %v675 = vmul.f32 %v417, %v517
        %v676 = vmul.f32 %v418, %v517
        %v677 = vmul.f32 %v419, %v517
        %v678 = vmul.f32 %v420, %v517
        %v679 = vmul.f32 %v421, %v517
        %v680 = vmul.f32 %v422, %v517
        %v681 = vmul.f32 %v423, %v517
        %v682 = vmul.f32 %v424, %v517
        %v683 = vmul.f32 %v425, %v517
        %v684 = vmul.f32 %v426, %v517
        %v685 = vmul.f32 %v427, %v517
        %v686 = vmul.f32 %v428, %v517
        %v687 = vmul.f32 %v429, %v517
        %v688 = vmul.f32 %v430, %v517
        %v689 = vmul.f32 %v431, %v517
        %v690 = vmul.f32 %v432, %v517
        %v691 = vmul.f32 %v433, %v517
        %v692 = vmul.f32 %v434, %v517
        %v693 = vmul.f32 %v435, %v517
        %v694 = vmul.f32 %v436, %v517
        %v695 = vmul.f32 %v437, %v517
        %v696 = vmul.f32 %v438, %v517
        %v697 = vmul.f32 %v439, %v517
        %v698 = vmul.f32 %v440, %v517
        %v699 = vmul.f32 %v441, %v517
        %v700 = vmul.f32 %v442, %v517
        %v701 = vmul.f32 %v443, %v517
        %v702 = vmul.f32 %v444, %v517
        %v703 = vmul.f32 %v445, %v517
        %v704 = vmul.f32 %v446, %v517
        %v705 = vmul.f32 %v447, %v517
        %v706 = vmul.f32 %v448, %v517
        %v707 = vmul.f32 %v449, %v517
        %v708 = vmul.f32 %v450, %v517
        %v709 = vmul.f32 %v451, %v517
        %v710 = vmul.f32 %v452, %v517
        %v711 = vmul.f32 %v453, %v517
        %v712 = vmul.f32 %v454, %v517
        %v713 = vmul.f32 %v455, %v517
        %v714 = vmul.f32 %v456, %v517
        %v715 = vmul.f32 %v457, %v517
        %v716 = vmul.f32 %v458, %v517
        %v717 = vmul.f32 %v459, %v517
        %v718 = vmul.f32 %v460, %v517
        %v719 = vmul.f32 %v461, %v517
        %v720 = vmul.f32 %v462, %v517
        %v721 = vmul.f32 %v463, %v517
        %v722 = vmul.f32 %v464, %v517
        %v723 = vmul.f32 %v465, %v517
        %v724 = vmul.f32 %v466, %v517
        %v725 = vmul.f32 %v467, %v517
        %v726 = vmul.f32 %v468, %v517
        %v727 = vmul.f32 %v469, %v517
        %v728 = vmul.f32 %v470, %v517
        %v729 = vmul.f32 %v471, %v517
        %v730 = vmul.f32 %v472, %v517
        %v731 = vmul.f32 %v473, %v517
        %v732 = vmul.f32 %v474, %v517
        %v733 = vmul.f32 %v475, %v517
        %v734 = vmul.f32 %v476, %v517
        %v735 = vmul.f32 %v477, %v517
        %v736 = vmul.f32 %v478, %v517
        %v737 = vmul.f32 %v479, %v517
        %v738 = vmul.f32 %v480, %v517
        %v739 = vmul.f32 %v481, %v517
        %v740 = vmul.f32 %v482, %v517
        %v741 = vmul.f32 %v483, %v517
        %v742 = vmul.f32 %v484, %v517
        %v743 = vmul.f32 %v485, %v517
        %v744 = vmul.f32 %v486, %v517
        %v745 = vmul.f32 %v487, %v517
        %v746 = vmul.f32 %v488, %v517
        %v747 = vmul.f32 %v489, %v517
        %v748 = vmul.f32 %v490, %v517
        %v749 = vmul.f32 %v491, %v517
        %v750 = vmul.f32 %v492, %v517
        %v751 = vmul.f32 %v493, %v517
        %v752 = vmul.f32 %v494, %v517
        %v753 = vmul.f32 %v495, %v517
        %v754 = vmul.f32 %v496, %v517
        %v755 = vmul.f32 %v497, %v517
        %v756 = vmul.f32 %v498, %v517
        %v757 = vmul.f32 %v499, %v517
        %v758 = vmul.f32 %v500, %v517
        %v759 = vmul.f32 %v501, %v517
        %v760 = vmul.f32 %v502, %v517
        %v761 = vmul.f32 %v503, %v517
        %v762 = vmul.f32 %v504, %v517
        %v763 = vmul.f32 %v505, %v517
        %v764 = vmul.f32 %v506, %v517
        %v765 = vmul.f32 %v507, %v517
        %v766 = vmul.f32 %v508, %v517
        %v767 = vmul.f32 %v509, %v517
        %v768 = vmul.f32 %v510, %v517
        %v769 = vmul.f32 %v511, %v517
        %v770 = vmul.f32 %v512, %v517
        %v771 = vmul.f32 %v513, %v517
        %v772 = vmul.f32 %v514, %v517
        %v773 = vmul.f32 %v515, %v517
        %s774 = scalar_lea.vmem %s226, 2048 [#allocation2]
        %v775 = vld [vmem:[%s774] sm:$0xff]
        %v776 = vld [vmem:[%s774 + $0x8] sm:$0xff]
        %v777 = vld [vmem:[%s774 + $0x10] sm:$0xff]
        %v778 = vld [vmem:[%s774 + $0x18] sm:$0xff]
        %v779 = vld [vmem:[%s774 + $0x20] sm:$0xff]
        %v780 = vld [vmem:[%s774 + $0x28] sm:$0xff]
        %v781 = vld [vmem:[%s774 + $0x30] sm:$0xff]
        %v782 = vld [vmem:[%s774 + $0x38] sm:$0xff]
        %v783 = vld [vmem:[%s774 + $0x40] sm:$0xff]
        %v784 = vld [vmem:[%s774 + $0x48] sm:$0xff]
        %v785 = vld [vmem:[%s774 + $0x50] sm:$0xff]
        %v786 = vld [vmem:[%s774 + $0x58] sm:$0xff]
        %v787 = vld [vmem:[%s774 + $0x60] sm:$0xff]
        %v788 = vld [vmem:[%s774 + $0x68] sm:$0xff]
        %v789 = vld [vmem:[%s774 + $0x70] sm:$0xff]
        %v790 = vld [vmem:[%s774 + $0x78] sm:$0xff]
        %v791 = vld [vmem:[%s774 + $0x80] sm:$0xff]
        %v792 = vld [vmem:[%s774 + $0x88] sm:$0xff]
        %v793 = vld [vmem:[%s774 + $0x90] sm:$0xff]
        %v794 = vld [vmem:[%s774 + $0x98] sm:$0xff]
        %v795 = vld [vmem:[%s774 + $0xa0] sm:$0xff]
        %v796 = vld [vmem:[%s774 + $0xa8] sm:$0xff]
        %v797 = vld [vmem:[%s774 + $0xb0] sm:$0xff]
        %v798 = vld [vmem:[%s774 + $0xb8] sm:$0xff]
        %v799 = vld [vmem:[%s774 + $0xc0] sm:$0xff]
        %v800 = vld [vmem:[%s774 + $0xc8] sm:$0xff]
        %v801 = vld [vmem:[%s774 + $0xd0] sm:$0xff]
        %v802 = vld [vmem:[%s774 + $0xd8] sm:$0xff]
        %v803 = vld [vmem:[%s774 + $0xe0] sm:$0xff]
        %v804 = vld [vmem:[%s774 + $0xe8] sm:$0xff]
        %v805 = vld [vmem:[%s774 + $0xf0] sm:$0xff]
        %v806 = vld [vmem:[%s774 + $0xf8] sm:$0xff]
        %v807 = vld [vmem:[%s774 + $0x100] sm:$0xff]
        %v808 = vld [vmem:[%s774 + $0x108] sm:$0xff]
        %v809 = vld [vmem:[%s774 + $0x110] sm:$0xff]
        %v810 = vld [vmem:[%s774 + $0x118] sm:$0xff]
        %v811 = vld [vmem:[%s774 + $0x120] sm:$0xff]
        %v812 = vld [vmem:[%s774 + $0x128] sm:$0xff]
        %v813 = vld [vmem:[%s774 + $0x130] sm:$0xff]
        %v814 = vld [vmem:[%s774 + $0x138] sm:$0xff]
        %v815 = vld [vmem:[%s774 + $0x140] sm:$0xff]
        %v816 = vld [vmem:[%s774 + $0x148] sm:$0xff]
        %v817 = vld [vmem:[%s774 + $0x150] sm:$0xff]
        %v818 = vld [vmem:[%s774 + $0x158] sm:$0xff]
        %v819 = vld [vmem:[%s774 + $0x160] sm:$0xff]
        %v820 = vld [vmem:[%s774 + $0x168] sm:$0xff]
        %v821 = vld [vmem:[%s774 + $0x170] sm:$0xff]
        %v822 = vld [vmem:[%s774 + $0x178] sm:$0xff]
        %v823 = vld [vmem:[%s774 + $0x180] sm:$0xff]
        %v824 = vld [vmem:[%s774 + $0x188] sm:$0xff]
        %v825 = vld [vmem:[%s774 + $0x190] sm:$0xff]
        %v826 = vld [vmem:[%s774 + $0x198] sm:$0xff]
        %v827 = vld [vmem:[%s774 + $0x1a0] sm:$0xff]
        %v828 = vld [vmem:[%s774 + $0x1a8] sm:$0xff]
        %v829 = vld [vmem:[%s774 + $0x1b0] sm:$0xff]
        %v830 = vld [vmem:[%s774 + $0x1b8] sm:$0xff]
        %v831 = vld [vmem:[%s774 + $0x1c0] sm:$0xff]
        %v832 = vld [vmem:[%s774 + $0x1c8] sm:$0xff]
        %v833 = vld [vmem:[%s774 + $0x1d0] sm:$0xff]
        %v834 = vld [vmem:[%s774 + $0x1d8] sm:$0xff]
        %v835 = vld [vmem:[%s774 + $0x1e0] sm:$0xff]
        %v836 = vld [vmem:[%s774 + $0x1e8] sm:$0xff]
        %v837 = vld [vmem:[%s774 + $0x1f0] sm:$0xff]
        %v838 = vld [vmem:[%s774 + $0x1f8] sm:$0xff]
        %v839 = vld [vmem:[%s774 + $0x200] sm:$0xff]
        %v840 = vld [vmem:[%s774 + $0x208] sm:$0xff]
        %v841 = vld [vmem:[%s774 + $0x210] sm:$0xff]
        %v842 = vld [vmem:[%s774 + $0x218] sm:$0xff]
        %v843 = vld [vmem:[%s774 + $0x220] sm:$0xff]
        %v844 = vld [vmem:[%s774 + $0x228] sm:$0xff]
        %v845 = vld [vmem:[%s774 + $0x230] sm:$0xff]
        %v846 = vld [vmem:[%s774 + $0x238] sm:$0xff]
        %v847 = vld [vmem:[%s774 + $0x240] sm:$0xff]
        %v848 = vld [vmem:[%s774 + $0x248] sm:$0xff]
        %v849 = vld [vmem:[%s774 + $0x250] sm:$0xff]
        %v850 = vld [vmem:[%s774 + $0x258] sm:$0xff]
        %v851 = vld [vmem:[%s774 + $0x260] sm:$0xff]
        %v852 = vld [vmem:[%s774 + $0x268] sm:$0xff]
        %v853 = vld [vmem:[%s774 + $0x270] sm:$0xff]
        %v854 = vld [vmem:[%s774 + $0x278] sm:$0xff]
        %v855 = vld [vmem:[%s774 + $0x280] sm:$0xff]
        %v856 = vld [vmem:[%s774 + $0x288] sm:$0xff]
        %v857 = vld [vmem:[%s774 + $0x290] sm:$0xff]
        %v858 = vld [vmem:[%s774 + $0x298] sm:$0xff]
        %v859 = vld [vmem:[%s774 + $0x2a0] sm:$0xff]
        %v860 = vld [vmem:[%s774 + $0x2a8] sm:$0xff]
        %v861 = vld [vmem:[%s774 + $0x2b0] sm:$0xff]
        %v862 = vld [vmem:[%s774 + $0x2b8] sm:$0xff]
        %v863 = vld [vmem:[%s774 + $0x2c0] sm:$0xff]
        %v864 = vld [vmem:[%s774 + $0x2c8] sm:$0xff]
        %v865 = vld [vmem:[%s774 + $0x2d0] sm:$0xff]
        %v866 = vld [vmem:[%s774 + $0x2d8] sm:$0xff]
        %v867 = vld [vmem:[%s774 + $0x2e0] sm:$0xff]
        %v868 = vld [vmem:[%s774 + $0x2e8] sm:$0xff]
        %v869 = vld [vmem:[%s774 + $0x2f0] sm:$0xff]
        %v870 = vld [vmem:[%s774 + $0x2f8] sm:$0xff]
        %v871 = vld [vmem:[%s774 + $0x300] sm:$0xff]
        %v872 = vld [vmem:[%s774 + $0x308] sm:$0xff]
        %v873 = vld [vmem:[%s774 + $0x310] sm:$0xff]
        %v874 = vld [vmem:[%s774 + $0x318] sm:$0xff]
        %v875 = vld [vmem:[%s774 + $0x320] sm:$0xff]
        %v876 = vld [vmem:[%s774 + $0x328] sm:$0xff]
        %v877 = vld [vmem:[%s774 + $0x330] sm:$0xff]
        %v878 = vld [vmem:[%s774 + $0x338] sm:$0xff]
        %v879 = vld [vmem:[%s774 + $0x340] sm:$0xff]
        %v880 = vld [vmem:[%s774 + $0x348] sm:$0xff]
        %v881 = vld [vmem:[%s774 + $0x350] sm:$0xff]
        %v882 = vld [vmem:[%s774 + $0x358] sm:$0xff]
        %v883 = vld [vmem:[%s774 + $0x360] sm:$0xff]
        %v884 = vld [vmem:[%s774 + $0x368] sm:$0xff]
        %v885 = vld [vmem:[%s774 + $0x370] sm:$0xff]
        %v886 = vld [vmem:[%s774 + $0x378] sm:$0xff]
        %v887 = vld [vmem:[%s774 + $0x380] sm:$0xff]
        %v888 = vld [vmem:[%s774 + $0x388] sm:$0xff]
        %v889 = vld [vmem:[%s774 + $0x390] sm:$0xff]
        %v890 = vld [vmem:[%s774 + $0x398] sm:$0xff]
        %v891 = vld [vmem:[%s774 + $0x3a0] sm:$0xff]
        %v892 = vld [vmem:[%s774 + $0x3a8] sm:$0xff]
        %v893 = vld [vmem:[%s774 + $0x3b0] sm:$0xff]
        %v894 = vld [vmem:[%s774 + $0x3b8] sm:$0xff]
        %v895 = vld [vmem:[%s774 + $0x3c0] sm:$0xff]
        %v896 = vld [vmem:[%s774 + $0x3c8] sm:$0xff]
        %v897 = vld [vmem:[%s774 + $0x3d0] sm:$0xff]
        %v898 = vld [vmem:[%s774 + $0x3d8] sm:$0xff]
        %v899 = vld [vmem:[%s774 + $0x3e0] sm:$0xff]
        %v900 = vld [vmem:[%s774 + $0x3e8] sm:$0xff]
        %v901 = vld [vmem:[%s774 + $0x3f0] sm:$0xff]
        %v902 = vld [vmem:[%s774 + $0x3f8] sm:$0xff]
        %v903 = vld [vmem:[%s774 + $0x400] sm:$0xff]
        %v904 = vld [vmem:[%s774 + $0x408] sm:$0xff]
        %v905 = vld [vmem:[%s774 + $0x410] sm:$0xff]
        %v906 = vld [vmem:[%s774 + $0x418] sm:$0xff]
        %v907 = vld [vmem:[%s774 + $0x420] sm:$0xff]
        %v908 = vld [vmem:[%s774 + $0x428] sm:$0xff]
        %v909 = vld [vmem:[%s774 + $0x430] sm:$0xff]
        %v910 = vld [vmem:[%s774 + $0x438] sm:$0xff]
        %v911 = vld [vmem:[%s774 + $0x440] sm:$0xff]
        %v912 = vld [vmem:[%s774 + $0x448] sm:$0xff]
        %v913 = vld [vmem:[%s774 + $0x450] sm:$0xff]
        %v914 = vld [vmem:[%s774 + $0x458] sm:$0xff]
        %v915 = vld [vmem:[%s774 + $0x460] sm:$0xff]
        %v916 = vld [vmem:[%s774 + $0x468] sm:$0xff]
        %v917 = vld [vmem:[%s774 + $0x470] sm:$0xff]
        %v918 = vld [vmem:[%s774 + $0x478] sm:$0xff]
        %v919 = vld [vmem:[%s774 + $0x480] sm:$0xff]
        %v920 = vld [vmem:[%s774 + $0x488] sm:$0xff]
        %v921 = vld [vmem:[%s774 + $0x490] sm:$0xff]
        %v922 = vld [vmem:[%s774 + $0x498] sm:$0xff]
        %v923 = vld [vmem:[%s774 + $0x4a0] sm:$0xff]
        %v924 = vld [vmem:[%s774 + $0x4a8] sm:$0xff]
        %v925 = vld [vmem:[%s774 + $0x4b0] sm:$0xff]
        %v926 = vld [vmem:[%s774 + $0x4b8] sm:$0xff]
        %v927 = vld [vmem:[%s774 + $0x4c0] sm:$0xff]
        %v928 = vld [vmem:[%s774 + $0x4c8] sm:$0xff]
        %v929 = vld [vmem:[%s774 + $0x4d0] sm:$0xff]
        %v930 = vld [vmem:[%s774 + $0x4d8] sm:$0xff]
        %v931 = vld [vmem:[%s774 + $0x4e0] sm:$0xff]
        %v932 = vld [vmem:[%s774 + $0x4e8] sm:$0xff]
        %v933 = vld [vmem:[%s774 + $0x4f0] sm:$0xff]
        %v934 = vld [vmem:[%s774 + $0x4f8] sm:$0xff]
        %v935 = vld [vmem:[%s774 + $0x500] sm:$0xff]
        %v936 = vld [vmem:[%s774 + $0x508] sm:$0xff]
        %v937 = vld [vmem:[%s774 + $0x510] sm:$0xff]
        %v938 = vld [vmem:[%s774 + $0x518] sm:$0xff]
        %v939 = vld [vmem:[%s774 + $0x520] sm:$0xff]
        %v940 = vld [vmem:[%s774 + $0x528] sm:$0xff]
        %v941 = vld [vmem:[%s774 + $0x530] sm:$0xff]
        %v942 = vld [vmem:[%s774 + $0x538] sm:$0xff]
        %v943 = vld [vmem:[%s774 + $0x540] sm:$0xff]
        %v944 = vld [vmem:[%s774 + $0x548] sm:$0xff]
        %v945 = vld [vmem:[%s774 + $0x550] sm:$0xff]
        %v946 = vld [vmem:[%s774 + $0x558] sm:$0xff]
        %v947 = vld [vmem:[%s774 + $0x560] sm:$0xff]
        %v948 = vld [vmem:[%s774 + $0x568] sm:$0xff]
        %v949 = vld [vmem:[%s774 + $0x570] sm:$0xff]
        %v950 = vld [vmem:[%s774 + $0x578] sm:$0xff]
        %v951 = vld [vmem:[%s774 + $0x580] sm:$0xff]
        %v952 = vld [vmem:[%s774 + $0x588] sm:$0xff]
        %v953 = vld [vmem:[%s774 + $0x590] sm:$0xff]
        %v954 = vld [vmem:[%s774 + $0x598] sm:$0xff]
        %v955 = vld [vmem:[%s774 + $0x5a0] sm:$0xff]
        %v956 = vld [vmem:[%s774 + $0x5a8] sm:$0xff]
        %v957 = vld [vmem:[%s774 + $0x5b0] sm:$0xff]
        %v958 = vld [vmem:[%s774 + $0x5b8] sm:$0xff]
        %v959 = vld [vmem:[%s774 + $0x5c0] sm:$0xff]
        %v960 = vld [vmem:[%s774 + $0x5c8] sm:$0xff]
        %v961 = vld [vmem:[%s774 + $0x5d0] sm:$0xff]
        %v962 = vld [vmem:[%s774 + $0x5d8] sm:$0xff]
        %v963 = vld [vmem:[%s774 + $0x5e0] sm:$0xff]
        %v964 = vld [vmem:[%s774 + $0x5e8] sm:$0xff]
        %v965 = vld [vmem:[%s774 + $0x5f0] sm:$0xff]
        %v966 = vld [vmem:[%s774 + $0x5f8] sm:$0xff]
        %v967 = vld [vmem:[%s774 + $0x600] sm:$0xff]
        %v968 = vld [vmem:[%s774 + $0x608] sm:$0xff]
        %v969 = vld [vmem:[%s774 + $0x610] sm:$0xff]
        %v970 = vld [vmem:[%s774 + $0x618] sm:$0xff]
        %v971 = vld [vmem:[%s774 + $0x620] sm:$0xff]
        %v972 = vld [vmem:[%s774 + $0x628] sm:$0xff]
        %v973 = vld [vmem:[%s774 + $0x630] sm:$0xff]
        %v974 = vld [vmem:[%s774 + $0x638] sm:$0xff]
        %v975 = vld [vmem:[%s774 + $0x640] sm:$0xff]
        %v976 = vld [vmem:[%s774 + $0x648] sm:$0xff]
        %v977 = vld [vmem:[%s774 + $0x650] sm:$0xff]
        %v978 = vld [vmem:[%s774 + $0x658] sm:$0xff]
        %v979 = vld [vmem:[%s774 + $0x660] sm:$0xff]
        %v980 = vld [vmem:[%s774 + $0x668] sm:$0xff]
        %v981 = vld [vmem:[%s774 + $0x670] sm:$0xff]
        %v982 = vld [vmem:[%s774 + $0x678] sm:$0xff]
        %v983 = vld [vmem:[%s774 + $0x680] sm:$0xff]
        %v984 = vld [vmem:[%s774 + $0x688] sm:$0xff]
        %v985 = vld [vmem:[%s774 + $0x690] sm:$0xff]
        %v986 = vld [vmem:[%s774 + $0x698] sm:$0xff]
        %v987 = vld [vmem:[%s774 + $0x6a0] sm:$0xff]
        %v988 = vld [vmem:[%s774 + $0x6a8] sm:$0xff]
        %v989 = vld [vmem:[%s774 + $0x6b0] sm:$0xff]
        %v990 = vld [vmem:[%s774 + $0x6b8] sm:$0xff]
        %v991 = vld [vmem:[%s774 + $0x6c0] sm:$0xff]
        %v992 = vld [vmem:[%s774 + $0x6c8] sm:$0xff]
        %v993 = vld [vmem:[%s774 + $0x6d0] sm:$0xff]
        %v994 = vld [vmem:[%s774 + $0x6d8] sm:$0xff]
        %v995 = vld [vmem:[%s774 + $0x6e0] sm:$0xff]
        %v996 = vld [vmem:[%s774 + $0x6e8] sm:$0xff]
        %v997 = vld [vmem:[%s774 + $0x6f0] sm:$0xff]
        %v998 = vld [vmem:[%s774 + $0x6f8] sm:$0xff]
        %v999 = vld [vmem:[%s774 + $0x700] sm:$0xff]
        %v1000 = vld [vmem:[%s774 + $0x708] sm:$0xff]
        %v1001 = vld [vmem:[%s774 + $0x710] sm:$0xff]
        %v1002 = vld [vmem:[%s774 + $0x718] sm:$0xff]
        %v1003 = vld [vmem:[%s774 + $0x720] sm:$0xff]
        %v1004 = vld [vmem:[%s774 + $0x728] sm:$0xff]
        %v1005 = vld [vmem:[%s774 + $0x730] sm:$0xff]
        %v1006 = vld [vmem:[%s774 + $0x738] sm:$0xff]
        %v1007 = vld [vmem:[%s774 + $0x740] sm:$0xff]
        %v1008 = vld [vmem:[%s774 + $0x748] sm:$0xff]
        %v1009 = vld [vmem:[%s774 + $0x750] sm:$0xff]
        %v1010 = vld [vmem:[%s774 + $0x758] sm:$0xff]
        %v1011 = vld [vmem:[%s774 + $0x760] sm:$0xff]
        %v1012 = vld [vmem:[%s774 + $0x768] sm:$0xff]
        %v1013 = vld [vmem:[%s774 + $0x770] sm:$0xff]
        %v1014 = vld [vmem:[%s774 + $0x778] sm:$0xff]
        %v1015 = vld [vmem:[%s774 + $0x780] sm:$0xff]
        %v1016 = vld [vmem:[%s774 + $0x788] sm:$0xff]
        %v1017 = vld [vmem:[%s774 + $0x790] sm:$0xff]
        %v1018 = vld [vmem:[%s774 + $0x798] sm:$0xff]
        %v1019 = vld [vmem:[%s774 + $0x7a0] sm:$0xff]
        %v1020 = vld [vmem:[%s774 + $0x7a8] sm:$0xff]
        %v1021 = vld [vmem:[%s774 + $0x7b0] sm:$0xff]
        %v1022 = vld [vmem:[%s774 + $0x7b8] sm:$0xff]
        %v1023 = vld [vmem:[%s774 + $0x7c0] sm:$0xff]
        %v1024 = vld [vmem:[%s774 + $0x7c8] sm:$0xff]
        %v1025 = vld [vmem:[%s774 + $0x7d0] sm:$0xff]
        %v1026 = vld [vmem:[%s774 + $0x7d8] sm:$0xff]
        %v1027 = vld [vmem:[%s774 + $0x7e0] sm:$0xff]
        %v1028 = vld [vmem:[%s774 + $0x7e8] sm:$0xff]
        %v1029 = vld [vmem:[%s774 + $0x7f0] sm:$0xff]
        %v1030 = vld [vmem:[%s774 + $0x7f8] sm:$0xff]
        %s1031 = sld [smem:[#allocation7 + $0x80]]
        %v1032 = vstv %s1031
        %v1033 = vmul.f32 %v775, %v1032
        %v1034 = vmul.f32 %v776, %v1032
        %v1035 = vmul.f32 %v777, %v1032
        %v1036 = vmul.f32 %v778, %v1032
        %v1037 = vmul.f32 %v779, %v1032
        %v1038 = vmul.f32 %v780, %v1032
        %v1039 = vmul.f32 %v781, %v1032
        %v1040 = vmul.f32 %v782, %v1032
        %v1041 = vmul.f32 %v783, %v1032
        %v1042 = vmul.f32 %v784, %v1032
        %v1043 = vmul.f32 %v785, %v1032
        %v1044 = vmul.f32 %v786, %v1032
        %v1045 = vmul.f32 %v787, %v1032
        %v1046 = vmul.f32 %v788, %v1032
        %v1047 = vmul.f32 %v789, %v1032
        %v1048 = vmul.f32 %v790, %v1032
        %v1049 = vmul.f32 %v791, %v1032
        %v1050 = vmul.f32 %v792, %v1032
        %v1051 = vmul.f32 %v793, %v1032
        %v1052 = vmul.f32 %v794, %v1032
        %v1053 = vmul.f32 %v795, %v1032
        %v1054 = vmul.f32 %v796, %v1032
        %v1055 = vmul.f32 %v797, %v1032
        %v1056 = vmul.f32 %v798, %v1032
        %v1057 = vmul.f32 %v799, %v1032
        %v1058 = vmul.f32 %v800, %v1032
        %v1059 = vmul.f32 %v801, %v1032
        %v1060 = vmul.f32 %v802, %v1032
        %v1061 = vmul.f32 %v803, %v1032
        %v1062 = vmul.f32 %v804, %v1032
        %v1063 = vmul.f32 %v805, %v1032
        %v1064 = vmul.f32 %v806, %v1032
        %v1065 = vmul.f32 %v807, %v1032
        %v1066 = vmul.f32 %v808, %v1032
        %v1067 = vmul.f32 %v809, %v1032
        %v1068 = vmul.f32 %v810, %v1032
        %v1069 = vmul.f32 %v811, %v1032
        %v1070 = vmul.f32 %v812, %v1032
        %v1071 = vmul.f32 %v813, %v1032
        %v1072 = vmul.f32 %v814, %v1032
        %v1073 = vmul.f32 %v815, %v1032
        %v1074 = vmul.f32 %v816, %v1032
        %v1075 = vmul.f32 %v817, %v1032
        %v1076 = vmul.f32 %v818, %v1032
        %v1077 = vmul.f32 %v819, %v1032
        %v1078 = vmul.f32 %v820, %v1032
        %v1079 = vmul.f32 %v821, %v1032
        %v1080 = vmul.f32 %v822, %v1032
        %v1081 = vmul.f32 %v823, %v1032
        %v1082 = vmul.f32 %v824, %v1032
        %v1083 = vmul.f32 %v825, %v1032
        %v1084 = vmul.f32 %v826, %v1032
        %v1085 = vmul.f32 %v827, %v1032
        %v1086 = vmul.f32 %v828, %v1032
        %v1087 = vmul.f32 %v829, %v1032
        %v1088 = vmul.f32 %v830, %v1032
        %v1089 = vmul.f32 %v831, %v1032
        %v1090 = vmul.f32 %v832, %v1032
        %v1091 = vmul.f32 %v833, %v1032
        %v1092 = vmul.f32 %v834, %v1032
        %v1093 = vmul.f32 %v835, %v1032
        %v1094 = vmul.f32 %v836, %v1032
        %v1095 = vmul.f32 %v837, %v1032
        %v1096 = vmul.f32 %v838, %v1032
        %v1097 = vmul.f32 %v839, %v1032
        %v1098 = vmul.f32 %v840, %v1032
        %v1099 = vmul.f32 %v841, %v1032
        %v1100 = vmul.f32 %v842, %v1032
        %v1101 = vmul.f32 %v843, %v1032
        %v1102 = vmul.f32 %v844, %v1032
        %v1103 = vmul.f32 %v845, %v1032
        %v1104 = vmul.f32 %v846, %v1032
        %v1105 = vmul.f32 %v847, %v1032
        %v1106 = vmul.f32 %v848, %v1032
        %v1107 = vmul.f32 %v849, %v1032
        %v1108 = vmul.f32 %v850, %v1032
        %v1109 = vmul.f32 %v851, %v1032
        %v1110 = vmul.f32 %v852, %v1032
        %v1111 = vmul.f32 %v853, %v1032
        %v1112 = vmul.f32 %v854, %v1032
        %v1113 = vmul.f32 %v855, %v1032
        %v1114 = vmul.f32 %v856, %v1032
        %v1115 = vmul.f32 %v857, %v1032
        %v1116 = vmul.f32 %v858, %v1032
        %v1117 = vmul.f32 %v859, %v1032
        %v1118 = vmul.f32 %v860, %v1032
        %v1119 = vmul.f32 %v861, %v1032
        %v1120 = vmul.f32 %v862, %v1032
        %v1121 = vmul.f32 %v863, %v1032
        %v1122 = vmul.f32 %v864, %v1032
        %v1123 = vmul.f32 %v865, %v1032
        %v1124 = vmul.f32 %v866, %v1032
        %v1125 = vmul.f32 %v867, %v1032
        %v1126 = vmul.f32 %v868, %v1032
        %v1127 = vmul.f32 %v869, %v1032
        %v1128 = vmul.f32 %v870, %v1032
        %v1129 = vmul.f32 %v871, %v1032
        %v1130 = vmul.f32 %v872, %v1032
        %v1131 = vmul.f32 %v873, %v1032
        %v1132 = vmul.f32 %v874, %v1032
        %v1133 = vmul.f32 %v875, %v1032
        %v1134 = vmul.f32 %v876, %v1032
        %v1135 = vmul.f32 %v877, %v1032
        %v1136 = vmul.f32 %v878, %v1032
        %v1137 = vmul.f32 %v879, %v1032
        %v1138 = vmul.f32 %v880, %v1032
        %v1139 = vmul.f32 %v881, %v1032
        %v1140 = vmul.f32 %v882, %v1032
        %v1141 = vmul.f32 %v883, %v1032
        %v1142 = vmul.f32 %v884, %v1032
        %v1143 = vmul.f32 %v885, %v1032
        %v1144 = vmul.f32 %v886, %v1032
        %v1145 = vmul.f32 %v887, %v1032
        %v1146 = vmul.f32 %v888, %v1032
        %v1147 = vmul.f32 %v889, %v1032
        %v1148 = vmul.f32 %v890, %v1032
        %v1149 = vmul.f32 %v891, %v1032
        %v1150 = vmul.f32 %v892, %v1032
        %v1151 = vmul.f32 %v893, %v1032
        %v1152 = vmul.f32 %v894, %v1032
        %v1153 = vmul.f32 %v895, %v1032
        %v1154 = vmul.f32 %v896, %v1032
        %v1155 = vmul.f32 %v897, %v1032
        %v1156 = vmul.f32 %v898, %v1032
        %v1157 = vmul.f32 %v899, %v1032
        %v1158 = vmul.f32 %v900, %v1032
        %v1159 = vmul.f32 %v901, %v1032
        %v1160 = vmul.f32 %v902, %v1032
        %v1161 = vmul.f32 %v903, %v1032
        %v1162 = vmul.f32 %v904, %v1032
        %v1163 = vmul.f32 %v905, %v1032
        %v1164 = vmul.f32 %v906, %v1032
        %v1165 = vmul.f32 %v907, %v1032
        %v1166 = vmul.f32 %v908, %v1032
        %v1167 = vmul.f32 %v909, %v1032
        %v1168 = vmul.f32 %v910, %v1032
        %v1169 = vmul.f32 %v911, %v1032
        %v1170 = vmul.f32 %v912, %v1032
        %v1171 = vmul.f32 %v913, %v1032
        %v1172 = vmul.f32 %v914, %v1032
        %v1173 = vmul.f32 %v915, %v1032
        %v1174 = vmul.f32 %v916, %v1032
        %v1175 = vmul.f32 %v917, %v1032
        %v1176 = vmul.f32 %v918, %v1032
        %v1177 = vmul.f32 %v919, %v1032
        %v1178 = vmul.f32 %v920, %v1032
        %v1179 = vmul.f32 %v921, %v1032
        %v1180 = vmul.f32 %v922, %v1032
        %v1181 = vmul.f32 %v923, %v1032
        %v1182 = vmul.f32 %v924, %v1032
        %v1183 = vmul.f32 %v925, %v1032
        %v1184 = vmul.f32 %v926, %v1032
        %v1185 = vmul.f32 %v927, %v1032
        %v1186 = vmul.f32 %v928, %v1032
        %v1187 = vmul.f32 %v929, %v1032
        %v1188 = vmul.f32 %v930, %v1032
        %v1189 = vmul.f32 %v931, %v1032
        %v1190 = vmul.f32 %v932, %v1032
        %v1191 = vmul.f32 %v933, %v1032
        %v1192 = vmul.f32 %v934, %v1032
        %v1193 = vmul.f32 %v935, %v1032
        %v1194 = vmul.f32 %v936, %v1032
        %v1195 = vmul.f32 %v937, %v1032
        %v1196 = vmul.f32 %v938, %v1032
        %v1197 = vmul.f32 %v939, %v1032
        %v1198 = vmul.f32 %v940, %v1032
        %v1199 = vmul.f32 %v941, %v1032
        %v1200 = vmul.f32 %v942, %v1032
        %v1201 = vmul.f32 %v943, %v1032
        %v1202 = vmul.f32 %v944, %v1032
        %v1203 = vmul.f32 %v945, %v1032
        %v1204 = vmul.f32 %v946, %v1032
        %v1205 = vmul.f32 %v947, %v1032
        %v1206 = vmul.f32 %v948, %v1032
        %v1207 = vmul.f32 %v949, %v1032
        %v1208 = vmul.f32 %v950, %v1032
        %v1209 = vmul.f32 %v951, %v1032
        %v1210 = vmul.f32 %v952, %v1032
        %v1211 = vmul.f32 %v953, %v1032
        %v1212 = vmul.f32 %v954, %v1032
        %v1213 = vmul.f32 %v955, %v1032
        %v1214 = vmul.f32 %v956, %v1032
        %v1215 = vmul.f32 %v957, %v1032
        %v1216 = vmul.f32 %v958, %v1032
        %v1217 = vmul.f32 %v959, %v1032
        %v1218 = vmul.f32 %v960, %v1032
        %v1219 = vmul.f32 %v961, %v1032
        %v1220 = vmul.f32 %v962, %v1032
        %v1221 = vmul.f32 %v963, %v1032
        %v1222 = vmul.f32 %v964, %v1032
        %v1223 = vmul.f32 %v965, %v1032
        %v1224 = vmul.f32 %v966, %v1032
        %v1225 = vmul.f32 %v967, %v1032
        %v1226 = vmul.f32 %v968, %v1032
        %v1227 = vmul.f32 %v969, %v1032
        %v1228 = vmul.f32 %v970, %v1032
        %v1229 = vmul.f32 %v971, %v1032
        %v1230 = vmul.f32 %v972, %v1032
        %v1231 = vmul.f32 %v973, %v1032
        %v1232 = vmul.f32 %v974, %v1032
        %v1233 = vmul.f32 %v975, %v1032
        %v1234 = vmul.f32 %v976, %v1032
        %v1235 = vmul.f32 %v977, %v1032
        %v1236 = vmul.f32 %v978, %v1032
        %v1237 = vmul.f32 %v979, %v1032
        %v1238 = vmul.f32 %v980, %v1032
        %v1239 = vmul.f32 %v981, %v1032
        %v1240 = vmul.f32 %v982, %v1032
        %v1241 = vmul.f32 %v983, %v1032
        %v1242 = vmul.f32 %v984, %v1032
        %v1243 = vmul.f32 %v985, %v1032
        %v1244 = vmul.f32 %v986, %v1032
        %v1245 = vmul.f32 %v987, %v1032
        %v1246 = vmul.f32 %v988, %v1032
        %v1247 = vmul.f32 %v989, %v1032
        %v1248 = vmul.f32 %v990, %v1032
        %v1249 = vmul.f32 %v991, %v1032
        %v1250 = vmul.f32 %v992, %v1032
        %v1251 = vmul.f32 %v993, %v1032
        %v1252 = vmul.f32 %v994, %v1032
        %v1253 = vmul.f32 %v995, %v1032
        %v1254 = vmul.f32 %v996, %v1032
        %v1255 = vmul.f32 %v997, %v1032
        %v1256 = vmul.f32 %v998, %v1032
        %v1257 = vmul.f32 %v999, %v1032
        %v1258 = vmul.f32 %v1000, %v1032
        %v1259 = vmul.f32 %v1001, %v1032
        %v1260 = vmul.f32 %v1002, %v1032
        %v1261 = vmul.f32 %v1003, %v1032
        %v1262 = vmul.f32 %v1004, %v1032
        %v1263 = vmul.f32 %v1005, %v1032
        %v1264 = vmul.f32 %v1006, %v1032
        %v1265 = vmul.f32 %v1007, %v1032
        %v1266 = vmul.f32 %v1008, %v1032
        %v1267 = vmul.f32 %v1009, %v1032
        %v1268 = vmul.f32 %v1010, %v1032
        %v1269 = vmul.f32 %v1011, %v1032
        %v1270 = vmul.f32 %v1012, %v1032
        %v1271 = vmul.f32 %v1013, %v1032
        %v1272 = vmul.f32 %v1014, %v1032
        %v1273 = vmul.f32 %v1015, %v1032
        %v1274 = vmul.f32 %v1016, %v1032
        %v1275 = vmul.f32 %v1017, %v1032
        %v1276 = vmul.f32 %v1018, %v1032
        %v1277 = vmul.f32 %v1019, %v1032
        %v1278 = vmul.f32 %v1020, %v1032
        %v1279 = vmul.f32 %v1021, %v1032
        %v1280 = vmul.f32 %v1022, %v1032
        %v1281 = vmul.f32 %v1023, %v1032
        %v1282 = vmul.f32 %v1024, %v1032
        %v1283 = vmul.f32 %v1025, %v1032
        %v1284 = vmul.f32 %v1026, %v1032
        %v1285 = vmul.f32 %v1027, %v1032
        %v1286 = vmul.f32 %v1028, %v1032
        %v1287 = vmul.f32 %v1029, %v1032
        %v1288 = vmul.f32 %v1030, %v1032
        %v1289 = vadd.f32 %v518, %v1033
        %v1290 = vadd.f32 %v519, %v1034
        %v1291 = vadd.f32 %v520, %v1035
        %v1292 = vadd.f32 %v521, %v1036
        %v1293 = vadd.f32 %v522, %v1037
        %v1294 = vadd.f32 %v523, %v1038
        %v1295 = vadd.f32 %v524, %v1039
        %v1296 = vadd.f32 %v525, %v1040
        %v1297 = vadd.f32 %v526, %v1041
        %v1298 = vadd.f32 %v527, %v1042
        %v1299 = vadd.f32 %v528, %v1043
        %v1300 = vadd.f32 %v529, %v1044
        %v1301 = vadd.f32 %v530, %v1045
        %v1302 = vadd.f32 %v531, %v1046
        %v1303 = vadd.f32 %v532, %v1047
        %v1304 = vadd.f32 %v533, %v1048
        %v1305 = vadd.f32 %v534, %v1049
        %v1306 = vadd.f32 %v535, %v1050
        %v1307 = vadd.f32 %v536, %v1051
        %v1308 = vadd.f32 %v537, %v1052
        %v1309 = vadd.f32 %v538, %v1053
        %v1310 = vadd.f32 %v539, %v1054
        %v1311 = vadd.f32 %v540, %v1055
        %v1312 = vadd.f32 %v541, %v1056
        %v1313 = vadd.f32 %v542, %v1057
        %v1314 = vadd.f32 %v543, %v1058
        %v1315 = vadd.f32 %v544, %v1059
        %v1316 = vadd.f32 %v545, %v1060
        %v1317 = vadd.f32 %v546, %v1061
        %v1318 = vadd.f32 %v547, %v1062
        %v1319 = vadd.f32 %v548, %v1063
        %v1320 = vadd.f32 %v549, %v1064
        %v1321 = vadd.f32 %v550, %v1065
        %v1322 = vadd.f32 %v551, %v1066
        %v1323 = vadd.f32 %v552, %v1067
        %v1324 = vadd.f32 %v553, %v1068
        %v1325 = vadd.f32 %v554, %v1069
        %v1326 = vadd.f32 %v555, %v1070
        %v1327 = vadd.f32 %v556, %v1071
        %v1328 = vadd.f32 %v557, %v1072
        %v1329 = vadd.f32 %v558, %v1073
        %v1330 = vadd.f32 %v559, %v1074
        %v1331 = vadd.f32 %v560, %v1075
        %v1332 = vadd.f32 %v561, %v1076
        %v1333 = vadd.f32 %v562, %v1077
        %v1334 = vadd.f32 %v563, %v1078
        %v1335 = vadd.f32 %v564, %v1079
        %v1336 = vadd.f32 %v565, %v1080
        %v1337 = vadd.f32 %v566, %v1081
        %v1338 = vadd.f32 %v567, %v1082
        %v1339 = vadd.f32 %v568, %v1083
        %v1340 = vadd.f32 %v569, %v1084
        %v1341 = vadd.f32 %v570, %v1085
        %v1342 = vadd.f32 %v571, %v1086
        %v1343 = vadd.f32 %v572, %v1087
        %v1344 = vadd.f32 %v573, %v1088
        %v1345 = vadd.f32 %v574, %v1089
        %v1346 = vadd.f32 %v575, %v1090
        %v1347 = vadd.f32 %v576, %v1091
        %v1348 = vadd.f32 %v577, %v1092
        %v1349 = vadd.f32 %v578, %v1093
        %v1350 = vadd.f32 %v579, %v1094
        %v1351 = vadd.f32 %v580, %v1095
        %v1352 = vadd.f32 %v581, %v1096
        %v1353 = vadd.f32 %v582, %v1097
        %v1354 = vadd.f32 %v583, %v1098
        %v1355 = vadd.f32 %v584, %v1099
        %v1356 = vadd.f32 %v585, %v1100
        %v1357 = vadd.f32 %v586, %v1101
        %v1358 = vadd.f32 %v587, %v1102
        %v1359 = vadd.f32 %v588, %v1103
        %v1360 = vadd.f32 %v589, %v1104
        %v1361 = vadd.f32 %v590, %v1105
        %v1362 = vadd.f32 %v591, %v1106
        %v1363 = vadd.f32 %v592, %v1107
        %v1364 = vadd.f32 %v593, %v1108
        %v1365 = vadd.f32 %v594, %v1109
        %v1366 = vadd.f32 %v595, %v1110
        %v1367 = vadd.f32 %v596, %v1111
        %v1368 = vadd.f32 %v597, %v1112
        %v1369 = vadd.f32 %v598, %v1113
        %v1370 = vadd.f32 %v599, %v1114
        %v1371 = vadd.f32 %v600, %v1115
        %v1372 = vadd.f32 %v601, %v1116
        %v1373 = vadd.f32 %v602, %v1117
        %v1374 = vadd.f32 %v603, %v1118
        %v1375 = vadd.f32 %v604, %v1119
        %v1376 = vadd.f32 %v605, %v1120
        %v1377 = vadd.f32 %v606, %v1121
        %v1378 = vadd.f32 %v607, %v1122
        %v1379 = vadd.f32 %v608, %v1123
        %v1380 = vadd.f32 %v609, %v1124
        %v1381 = vadd.f32 %v610, %v1125
        %v1382 = vadd.f32 %v611, %v1126
        %v1383 = vadd.f32 %v612, %v1127
        %v1384 = vadd.f32 %v613, %v1128
        %v1385 = vadd.f32 %v614, %v1129
        %v1386 = vadd.f32 %v615, %v1130
        %v1387 = vadd.f32 %v616, %v1131
        %v1388 = vadd.f32 %v617, %v1132
        %v1389 = vadd.f32 %v618, %v1133
        %v1390 = vadd.f32 %v619, %v1134
        %v1391 = vadd.f32 %v620, %v1135
        %v1392 = vadd.f32 %v621, %v1136
        %v1393 = vadd.f32 %v622, %v1137
        %v1394 = vadd.f32 %v623, %v1138
        %v1395 = vadd.f32 %v624, %v1139
        %v1396 = vadd.f32 %v625, %v1140
        %v1397 = vadd.f32 %v626, %v1141
        %v1398 = vadd.f32 %v627, %v1142
        %v1399 = vadd.f32 %v628, %v1143
        %v1400 = vadd.f32 %v629, %v1144
        %v1401 = vadd.f32 %v630, %v1145
        %v1402 = vadd.f32 %v631, %v1146
        %v1403 = vadd.f32 %v632, %v1147
        %v1404 = vadd.f32 %v633, %v1148
        %v1405 = vadd.f32 %v634, %v1149
        %v1406 = vadd.f32 %v635, %v1150
        %v1407 = vadd.f32 %v636, %v1151
        %v1408 = vadd.f32 %v637, %v1152
        %v1409 = vadd.f32 %v638, %v1153
        %v1410 = vadd.f32 %v639, %v1154
        %v1411 = vadd.f32 %v640, %v1155
        %v1412 = vadd.f32 %v641, %v1156
        %v1413 = vadd.f32 %v642, %v1157
        %v1414 = vadd.f32 %v643, %v1158
        %v1415 = vadd.f32 %v644, %v1159
        %v1416 = vadd.f32 %v645, %v1160
        %v1417 = vadd.f32 %v646, %v1161
        %v1418 = vadd.f32 %v647, %v1162
        %v1419 = vadd.f32 %v648, %v1163
        %v1420 = vadd.f32 %v649, %v1164
        %v1421 = vadd.f32 %v650, %v1165
        %v1422 = vadd.f32 %v651, %v1166
        %v1423 = vadd.f32 %v652, %v1167
        %v1424 = vadd.f32 %v653, %v1168
        %v1425 = vadd.f32 %v654, %v1169
        %v1426 = vadd.f32 %v655, %v1170
        %v1427 = vadd.f32 %v656, %v1171
        %v1428 = vadd.f32 %v657, %v1172
        %v1429 = vadd.f32 %v658, %v1173
        %v1430 = vadd.f32 %v659, %v1174
        %v1431 = vadd.f32 %v660, %v1175
        %v1432 = vadd.f32 %v661, %v1176
        %v1433 = vadd.f32 %v662, %v1177
        %v1434 = vadd.f32 %v663, %v1178
        %v1435 = vadd.f32 %v664, %v1179
        %v1436 = vadd.f32 %v665, %v1180
        %v1437 = vadd.f32 %v666, %v1181
        %v1438 = vadd.f32 %v667, %v1182
        %v1439 = vadd.f32 %v668, %v1183
        %v1440 = vadd.f32 %v669, %v1184
        %v1441 = vadd.f32 %v670, %v1185
        %v1442 = vadd.f32 %v671, %v1186
        %v1443 = vadd.f32 %v672, %v1187
        %v1444 = vadd.f32 %v673, %v1188
        %v1445 = vadd.f32 %v674, %v1189
        %v1446 = vadd.f32 %v675, %v1190
        %v1447 = vadd.f32 %v676, %v1191
        %v1448 = vadd.f32 %v677, %v1192
        %v1449 = vadd.f32 %v678, %v1193
        %v1450 = vadd.f32 %v679, %v1194
        %v1451 = vadd.f32 %v680, %v1195
        %v1452 = vadd.f32 %v681, %v1196
        %v1453 = vadd.f32 %v682, %v1197
        %v1454 = vadd.f32 %v683, %v1198
        %v1455 = vadd.f32 %v684, %v1199
        %v1456 = vadd.f32 %v685, %v1200
        %v1457 = vadd.f32 %v686, %v1201
        %v1458 = vadd.f32 %v687, %v1202
        %v1459 = vadd.f32 %v688, %v1203
        %v1460 = vadd.f32 %v689, %v1204
        %v1461 = vadd.f32 %v690, %v1205
        %v1462 = vadd.f32 %v691, %v1206
        %v1463 = vadd.f32 %v692, %v1207
        %v1464 = vadd.f32 %v693, %v1208
        %v1465 = vadd.f32 %v694, %v1209
        %v1466 = vadd.f32 %v695, %v1210
        %v1467 = vadd.f32 %v696, %v1211
        %v1468 = vadd.f32 %v697, %v1212
        %v1469 = vadd.f32 %v698, %v1213
        %v1470 = vadd.f32 %v699, %v1214
        %v1471 = vadd.f32 %v700, %v1215
        %v1472 = vadd.f32 %v701, %v1216
        %v1473 = vadd.f32 %v702, %v1217
        %v1474 = vadd.f32 %v703, %v1218
        %v1475 = vadd.f32 %v704, %v1219
        %v1476 = vadd.f32 %v705, %v1220
        %v1477 = vadd.f32 %v706, %v1221
        %v1478 = vadd.f32 %v707, %v1222
        %v1479 = vadd.f32 %v708, %v1223
        %v1480 = vadd.f32 %v709, %v1224
        %v1481 = vadd.f32 %v710, %v1225
        %v1482 = vadd.f32 %v711, %v1226
        %v1483 = vadd.f32 %v712, %v1227
        %v1484 = vadd.f32 %v713, %v1228
        %v1485 = vadd.f32 %v714, %v1229
        %v1486 = vadd.f32 %v715, %v1230
        %v1487 = vadd.f32 %v716, %v1231
        %v1488 = vadd.f32 %v717, %v1232
        %v1489 = vadd.f32 %v718, %v1233
        %v1490 = vadd.f32 %v719, %v1234
        %v1491 = vadd.f32 %v720, %v1235
        %v1492 = vadd.f32 %v721, %v1236
        %v1493 = vadd.f32 %v722, %v1237
        %v1494 = vadd.f32 %v723, %v1238
        %v1495 = vadd.f32 %v724, %v1239
        %v1496 = vadd.f32 %v725, %v1240
        %v1497 = vadd.f32 %v726, %v1241
        %v1498 = vadd.f32 %v727, %v1242
        %v1499 = vadd.f32 %v728, %v1243
        %v1500 = vadd.f32 %v729, %v1244
        %v1501 = vadd.f32 %v730, %v1245
        %v1502 = vadd.f32 %v731, %v1246
        %v1503 = vadd.f32 %v732, %v1247
        %v1504 = vadd.f32 %v733, %v1248
        %v1505 = vadd.f32 %v734, %v1249
        %v1506 = vadd.f32 %v735, %v1250
        %v1507 = vadd.f32 %v736, %v1251
        %v1508 = vadd.f32 %v737, %v1252
        %v1509 = vadd.f32 %v738, %v1253
        %v1510 = vadd.f32 %v739, %v1254
        %v1511 = vadd.f32 %v740, %v1255
        %v1512 = vadd.f32 %v741, %v1256
        %v1513 = vadd.f32 %v742, %v1257
        %v1514 = vadd.f32 %v743, %v1258
        %v1515 = vadd.f32 %v744, %v1259
        %v1516 = vadd.f32 %v745, %v1260
        %v1517 = vadd.f32 %v746, %v1261
        %v1518 = vadd.f32 %v747, %v1262
        %v1519 = vadd.f32 %v748, %v1263
        %v1520 = vadd.f32 %v749, %v1264
        %v1521 = vadd.f32 %v750, %v1265
        %v1522 = vadd.f32 %v751, %v1266
        %v1523 = vadd.f32 %v752, %v1267
        %v1524 = vadd.f32 %v753, %v1268
        %v1525 = vadd.f32 %v754, %v1269
        %v1526 = vadd.f32 %v755, %v1270
        %v1527 = vadd.f32 %v756, %v1271
        %v1528 = vadd.f32 %v757, %v1272
        %v1529 = vadd.f32 %v758, %v1273
        %v1530 = vadd.f32 %v759, %v1274
        %v1531 = vadd.f32 %v760, %v1275
        %v1532 = vadd.f32 %v761, %v1276
        %v1533 = vadd.f32 %v762, %v1277
        %v1534 = vadd.f32 %v763, %v1278
        %v1535 = vadd.f32 %v764, %v1279
        %v1536 = vadd.f32 %v765, %v1280
        %v1537 = vadd.f32 %v766, %v1281
        %v1538 = vadd.f32 %v767, %v1282
        %v1539 = vadd.f32 %v768, %v1283
        %v1540 = vadd.f32 %v769, %v1284
        %v1541 = vadd.f32 %v770, %v1285
        %v1542 = vadd.f32 %v771, %v1286
        %v1543 = vadd.f32 %v772, %v1287
        %v1544 = vadd.f32 %v773, %v1288
        %s1545 = scalar_lea.vmem %s226, 4096 [#allocation2]
        %v1546 = vld [vmem:[%s1545] sm:$0xff]
        %v1547 = vld [vmem:[%s1545 + $0x8] sm:$0xff]
        %v1548 = vld [vmem:[%s1545 + $0x10] sm:$0xff]
        %v1549 = vld [vmem:[%s1545 + $0x18] sm:$0xff]
        %v1550 = vld [vmem:[%s1545 + $0x20] sm:$0xff]
        %v1551 = vld [vmem:[%s1545 + $0x28] sm:$0xff]
        %v1552 = vld [vmem:[%s1545 + $0x30] sm:$0xff]
        %v1553 = vld [vmem:[%s1545 + $0x38] sm:$0xff]
        %v1554 = vld [vmem:[%s1545 + $0x40] sm:$0xff]
        %v1555 = vld [vmem:[%s1545 + $0x48] sm:$0xff]
        %v1556 = vld [vmem:[%s1545 + $0x50] sm:$0xff]
        %v1557 = vld [vmem:[%s1545 + $0x58] sm:$0xff]
        %v1558 = vld [vmem:[%s1545 + $0x60] sm:$0xff]
        %v1559 = vld [vmem:[%s1545 + $0x68] sm:$0xff]
        %v1560 = vld [vmem:[%s1545 + $0x70] sm:$0xff]
        %v1561 = vld [vmem:[%s1545 + $0x78] sm:$0xff]
        %v1562 = vld [vmem:[%s1545 + $0x80] sm:$0xff]
        %v1563 = vld [vmem:[%s1545 + $0x88] sm:$0xff]
        %v1564 = vld [vmem:[%s1545 + $0x90] sm:$0xff]
        %v1565 = vld [vmem:[%s1545 + $0x98] sm:$0xff]
        %v1566 = vld [vmem:[%s1545 + $0xa0] sm:$0xff]
        %v1567 = vld [vmem:[%s1545 + $0xa8] sm:$0xff]
        %v1568 = vld [vmem:[%s1545 + $0xb0] sm:$0xff]
        %v1569 = vld [vmem:[%s1545 + $0xb8] sm:$0xff]
        %v1570 = vld [vmem:[%s1545 + $0xc0] sm:$0xff]
        %v1571 = vld [vmem:[%s1545 + $0xc8] sm:$0xff]
        %v1572 = vld [vmem:[%s1545 + $0xd0] sm:$0xff]
        %v1573 = vld [vmem:[%s1545 + $0xd8] sm:$0xff]
        %v1574 = vld [vmem:[%s1545 + $0xe0] sm:$0xff]
        %v1575 = vld [vmem:[%s1545 + $0xe8] sm:$0xff]
        %v1576 = vld [vmem:[%s1545 + $0xf0] sm:$0xff]
        %v1577 = vld [vmem:[%s1545 + $0xf8] sm:$0xff]
        %v1578 = vld [vmem:[%s1545 + $0x100] sm:$0xff]
        %v1579 = vld [vmem:[%s1545 + $0x108] sm:$0xff]
        %v1580 = vld [vmem:[%s1545 + $0x110] sm:$0xff]
        %v1581 = vld [vmem:[%s1545 + $0x118] sm:$0xff]
        %v1582 = vld [vmem:[%s1545 + $0x120] sm:$0xff]
        %v1583 = vld [vmem:[%s1545 + $0x128] sm:$0xff]
        %v1584 = vld [vmem:[%s1545 + $0x130] sm:$0xff]
        %v1585 = vld [vmem:[%s1545 + $0x138] sm:$0xff]
        %v1586 = vld [vmem:[%s1545 + $0x140] sm:$0xff]
        %v1587 = vld [vmem:[%s1545 + $0x148] sm:$0xff]
        %v1588 = vld [vmem:[%s1545 + $0x150] sm:$0xff]
        %v1589 = vld [vmem:[%s1545 + $0x158] sm:$0xff]
        %v1590 = vld [vmem:[%s1545 + $0x160] sm:$0xff]
        %v1591 = vld [vmem:[%s1545 + $0x168] sm:$0xff]
        %v1592 = vld [vmem:[%s1545 + $0x170] sm:$0xff]
        %v1593 = vld [vmem:[%s1545 + $0x178] sm:$0xff]
        %v1594 = vld [vmem:[%s1545 + $0x180] sm:$0xff]
        %v1595 = vld [vmem:[%s1545 + $0x188] sm:$0xff]
        %v1596 = vld [vmem:[%s1545 + $0x190] sm:$0xff]
        %v1597 = vld [vmem:[%s1545 + $0x198] sm:$0xff]
        %v1598 = vld [vmem:[%s1545 + $0x1a0] sm:$0xff]
        %v1599 = vld [vmem:[%s1545 + $0x1a8] sm:$0xff]
        %v1600 = vld [vmem:[%s1545 + $0x1b0] sm:$0xff]
        %v1601 = vld [vmem:[%s1545 + $0x1b8] sm:$0xff]
        %v1602 = vld [vmem:[%s1545 + $0x1c0] sm:$0xff]
        %v1603 = vld [vmem:[%s1545 + $0x1c8] sm:$0xff]
        %v1604 = vld [vmem:[%s1545 + $0x1d0] sm:$0xff]
        %v1605 = vld [vmem:[%s1545 + $0x1d8] sm:$0xff]
        %v1606 = vld [vmem:[%s1545 + $0x1e0] sm:$0xff]
        %v1607 = vld [vmem:[%s1545 + $0x1e8] sm:$0xff]
        %v1608 = vld [vmem:[%s1545 + $0x1f0] sm:$0xff]
        %v1609 = vld [vmem:[%s1545 + $0x1f8] sm:$0xff]
        %v1610 = vld [vmem:[%s1545 + $0x200] sm:$0xff]
        %v1611 = vld [vmem:[%s1545 + $0x208] sm:$0xff]
        %v1612 = vld [vmem:[%s1545 + $0x210] sm:$0xff]
        %v1613 = vld [vmem:[%s1545 + $0x218] sm:$0xff]
        %v1614 = vld [vmem:[%s1545 + $0x220] sm:$0xff]
        %v1615 = vld [vmem:[%s1545 + $0x228] sm:$0xff]
        %v1616 = vld [vmem:[%s1545 + $0x230] sm:$0xff]
        %v1617 = vld [vmem:[%s1545 + $0x238] sm:$0xff]
        %v1618 = vld [vmem:[%s1545 + $0x240] sm:$0xff]
        %v1619 = vld [vmem:[%s1545 + $0x248] sm:$0xff]
        %v1620 = vld [vmem:[%s1545 + $0x250] sm:$0xff]
        %v1621 = vld [vmem:[%s1545 + $0x258] sm:$0xff]
        %v1622 = vld [vmem:[%s1545 + $0x260] sm:$0xff]
        %v1623 = vld [vmem:[%s1545 + $0x268] sm:$0xff]
        %v1624 = vld [vmem:[%s1545 + $0x270] sm:$0xff]
        %v1625 = vld [vmem:[%s1545 + $0x278] sm:$0xff]
        %v1626 = vld [vmem:[%s1545 + $0x280] sm:$0xff]
        %v1627 = vld [vmem:[%s1545 + $0x288] sm:$0xff]
        %v1628 = vld [vmem:[%s1545 + $0x290] sm:$0xff]
        %v1629 = vld [vmem:[%s1545 + $0x298] sm:$0xff]
        %v1630 = vld [vmem:[%s1545 + $0x2a0] sm:$0xff]
        %v1631 = vld [vmem:[%s1545 + $0x2a8] sm:$0xff]
        %v1632 = vld [vmem:[%s1545 + $0x2b0] sm:$0xff]
        %v1633 = vld [vmem:[%s1545 + $0x2b8] sm:$0xff]
        %v1634 = vld [vmem:[%s1545 + $0x2c0] sm:$0xff]
        %v1635 = vld [vmem:[%s1545 + $0x2c8] sm:$0xff]
        %v1636 = vld [vmem:[%s1545 + $0x2d0] sm:$0xff]
        %v1637 = vld [vmem:[%s1545 + $0x2d8] sm:$0xff]
        %v1638 = vld [vmem:[%s1545 + $0x2e0] sm:$0xff]
        %v1639 = vld [vmem:[%s1545 + $0x2e8] sm:$0xff]
        %v1640 = vld [vmem:[%s1545 + $0x2f0] sm:$0xff]
        %v1641 = vld [vmem:[%s1545 + $0x2f8] sm:$0xff]
        %v1642 = vld [vmem:[%s1545 + $0x300] sm:$0xff]
        %v1643 = vld [vmem:[%s1545 + $0x308] sm:$0xff]
        %v1644 = vld [vmem:[%s1545 + $0x310] sm:$0xff]
        %v1645 = vld [vmem:[%s1545 + $0x318] sm:$0xff]
        %v1646 = vld [vmem:[%s1545 + $0x320] sm:$0xff]
        %v1647 = vld [vmem:[%s1545 + $0x328] sm:$0xff]
        %v1648 = vld [vmem:[%s1545 + $0x330] sm:$0xff]
        %v1649 = vld [vmem:[%s1545 + $0x338] sm:$0xff]
        %v1650 = vld [vmem:[%s1545 + $0x340] sm:$0xff]
        %v1651 = vld [vmem:[%s1545 + $0x348] sm:$0xff]
        %v1652 = vld [vmem:[%s1545 + $0x350] sm:$0xff]
        %v1653 = vld [vmem:[%s1545 + $0x358] sm:$0xff]
        %v1654 = vld [vmem:[%s1545 + $0x360] sm:$0xff]
        %v1655 = vld [vmem:[%s1545 + $0x368] sm:$0xff]
        %v1656 = vld [vmem:[%s1545 + $0x370] sm:$0xff]
        %v1657 = vld [vmem:[%s1545 + $0x378] sm:$0xff]
        %v1658 = vld [vmem:[%s1545 + $0x380] sm:$0xff]
        %v1659 = vld [vmem:[%s1545 + $0x388] sm:$0xff]
        %v1660 = vld [vmem:[%s1545 + $0x390] sm:$0xff]
        %v1661 = vld [vmem:[%s1545 + $0x398] sm:$0xff]
        %v1662 = vld [vmem:[%s1545 + $0x3a0] sm:$0xff]
        %v1663 = vld [vmem:[%s1545 + $0x3a8] sm:$0xff]
        %v1664 = vld [vmem:[%s1545 + $0x3b0] sm:$0xff]
        %v1665 = vld [vmem:[%s1545 + $0x3b8] sm:$0xff]
        %v1666 = vld [vmem:[%s1545 + $0x3c0] sm:$0xff]
        %v1667 = vld [vmem:[%s1545 + $0x3c8] sm:$0xff]
        %v1668 = vld [vmem:[%s1545 + $0x3d0] sm:$0xff]
        %v1669 = vld [vmem:[%s1545 + $0x3d8] sm:$0xff]
        %v1670 = vld [vmem:[%s1545 + $0x3e0] sm:$0xff]
        %v1671 = vld [vmem:[%s1545 + $0x3e8] sm:$0xff]
        %v1672 = vld [vmem:[%s1545 + $0x3f0] sm:$0xff]
        %v1673 = vld [vmem:[%s1545 + $0x3f8] sm:$0xff]
        %v1674 = vld [vmem:[%s1545 + $0x400] sm:$0xff]
        %v1675 = vld [vmem:[%s1545 + $0x408] sm:$0xff]
        %v1676 = vld [vmem:[%s1545 + $0x410] sm:$0xff]
        %v1677 = vld [vmem:[%s1545 + $0x418] sm:$0xff]
        %v1678 = vld [vmem:[%s1545 + $0x420] sm:$0xff]
        %v1679 = vld [vmem:[%s1545 + $0x428] sm:$0xff]
        %v1680 = vld [vmem:[%s1545 + $0x430] sm:$0xff]
        %v1681 = vld [vmem:[%s1545 + $0x438] sm:$0xff]
        %v1682 = vld [vmem:[%s1545 + $0x440] sm:$0xff]
        %v1683 = vld [vmem:[%s1545 + $0x448] sm:$0xff]
        %v1684 = vld [vmem:[%s1545 + $0x450] sm:$0xff]
        %v1685 = vld [vmem:[%s1545 + $0x458] sm:$0xff]
        %v1686 = vld [vmem:[%s1545 + $0x460] sm:$0xff]
        %v1687 = vld [vmem:[%s1545 + $0x468] sm:$0xff]
        %v1688 = vld [vmem:[%s1545 + $0x470] sm:$0xff]
        %v1689 = vld [vmem:[%s1545 + $0x478] sm:$0xff]
        %v1690 = vld [vmem:[%s1545 + $0x480] sm:$0xff]
        %v1691 = vld [vmem:[%s1545 + $0x488] sm:$0xff]
        %v1692 = vld [vmem:[%s1545 + $0x490] sm:$0xff]
        %v1693 = vld [vmem:[%s1545 + $0x498] sm:$0xff]
        %v1694 = vld [vmem:[%s1545 + $0x4a0] sm:$0xff]
        %v1695 = vld [vmem:[%s1545 + $0x4a8] sm:$0xff]
        %v1696 = vld [vmem:[%s1545 + $0x4b0] sm:$0xff]
        %v1697 = vld [vmem:[%s1545 + $0x4b8] sm:$0xff]
        %v1698 = vld [vmem:[%s1545 + $0x4c0] sm:$0xff]
        %v1699 = vld [vmem:[%s1545 + $0x4c8] sm:$0xff]
        %v1700 = vld [vmem:[%s1545 + $0x4d0] sm:$0xff]
        %v1701 = vld [vmem:[%s1545 + $0x4d8] sm:$0xff]
        %v1702 = vld [vmem:[%s1545 + $0x4e0] sm:$0xff]
        %v1703 = vld [vmem:[%s1545 + $0x4e8] sm:$0xff]
        %v1704 = vld [vmem:[%s1545 + $0x4f0] sm:$0xff]
        %v1705 = vld [vmem:[%s1545 + $0x4f8] sm:$0xff]
        %v1706 = vld [vmem:[%s1545 + $0x500] sm:$0xff]
        %v1707 = vld [vmem:[%s1545 + $0x508] sm:$0xff]
        %v1708 = vld [vmem:[%s1545 + $0x510] sm:$0xff]
        %v1709 = vld [vmem:[%s1545 + $0x518] sm:$0xff]
        %v1710 = vld [vmem:[%s1545 + $0x520] sm:$0xff]
        %v1711 = vld [vmem:[%s1545 + $0x528] sm:$0xff]
        %v1712 = vld [vmem:[%s1545 + $0x530] sm:$0xff]
        %v1713 = vld [vmem:[%s1545 + $0x538] sm:$0xff]
        %v1714 = vld [vmem:[%s1545 + $0x540] sm:$0xff]
        %v1715 = vld [vmem:[%s1545 + $0x548] sm:$0xff]
        %v1716 = vld [vmem:[%s1545 + $0x550] sm:$0xff]
        %v1717 = vld [vmem:[%s1545 + $0x558] sm:$0xff]
        %v1718 = vld [vmem:[%s1545 + $0x560] sm:$0xff]
        %v1719 = vld [vmem:[%s1545 + $0x568] sm:$0xff]
        %v1720 = vld [vmem:[%s1545 + $0x570] sm:$0xff]
        %v1721 = vld [vmem:[%s1545 + $0x578] sm:$0xff]
        %v1722 = vld [vmem:[%s1545 + $0x580] sm:$0xff]
        %v1723 = vld [vmem:[%s1545 + $0x588] sm:$0xff]
        %v1724 = vld [vmem:[%s1545 + $0x590] sm:$0xff]
        %v1725 = vld [vmem:[%s1545 + $0x598] sm:$0xff]
        %v1726 = vld [vmem:[%s1545 + $0x5a0] sm:$0xff]
        %v1727 = vld [vmem:[%s1545 + $0x5a8] sm:$0xff]
        %v1728 = vld [vmem:[%s1545 + $0x5b0] sm:$0xff]
        %v1729 = vld [vmem:[%s1545 + $0x5b8] sm:$0xff]
        %v1730 = vld [vmem:[%s1545 + $0x5c0] sm:$0xff]
        %v1731 = vld [vmem:[%s1545 + $0x5c8] sm:$0xff]
        %v1732 = vld [vmem:[%s1545 + $0x5d0] sm:$0xff]
        %v1733 = vld [vmem:[%s1545 + $0x5d8] sm:$0xff]
        %v1734 = vld [vmem:[%s1545 + $0x5e0] sm:$0xff]
        %v1735 = vld [vmem:[%s1545 + $0x5e8] sm:$0xff]
        %v1736 = vld [vmem:[%s1545 + $0x5f0] sm:$0xff]
        %v1737 = vld [vmem:[%s1545 + $0x5f8] sm:$0xff]
        %v1738 = vld [vmem:[%s1545 + $0x600] sm:$0xff]
        %v1739 = vld [vmem:[%s1545 + $0x608] sm:$0xff]
        %v1740 = vld [vmem:[%s1545 + $0x610] sm:$0xff]
        %v1741 = vld [vmem:[%s1545 + $0x618] sm:$0xff]
        %v1742 = vld [vmem:[%s1545 + $0x620] sm:$0xff]
        %v1743 = vld [vmem:[%s1545 + $0x628] sm:$0xff]
        %v1744 = vld [vmem:[%s1545 + $0x630] sm:$0xff]
        %v1745 = vld [vmem:[%s1545 + $0x638] sm:$0xff]
        %v1746 = vld [vmem:[%s1545 + $0x640] sm:$0xff]
        %v1747 = vld [vmem:[%s1545 + $0x648] sm:$0xff]
        %v1748 = vld [vmem:[%s1545 + $0x650] sm:$0xff]
        %v1749 = vld [vmem:[%s1545 + $0x658] sm:$0xff]
        %v1750 = vld [vmem:[%s1545 + $0x660] sm:$0xff]
        %v1751 = vld [vmem:[%s1545 + $0x668] sm:$0xff]
        %v1752 = vld [vmem:[%s1545 + $0x670] sm:$0xff]
        %v1753 = vld [vmem:[%s1545 + $0x678] sm:$0xff]
        %v1754 = vld [vmem:[%s1545 + $0x680] sm:$0xff]
        %v1755 = vld [vmem:[%s1545 + $0x688] sm:$0xff]
        %v1756 = vld [vmem:[%s1545 + $0x690] sm:$0xff]
        %v1757 = vld [vmem:[%s1545 + $0x698] sm:$0xff]
        %v1758 = vld [vmem:[%s1545 + $0x6a0] sm:$0xff]
        %v1759 = vld [vmem:[%s1545 + $0x6a8] sm:$0xff]
        %v1760 = vld [vmem:[%s1545 + $0x6b0] sm:$0xff]
        %v1761 = vld [vmem:[%s1545 + $0x6b8] sm:$0xff]
        %v1762 = vld [vmem:[%s1545 + $0x6c0] sm:$0xff]
        %v1763 = vld [vmem:[%s1545 + $0x6c8] sm:$0xff]
        %v1764 = vld [vmem:[%s1545 + $0x6d0] sm:$0xff]
        %v1765 = vld [vmem:[%s1545 + $0x6d8] sm:$0xff]
        %v1766 = vld [vmem:[%s1545 + $0x6e0] sm:$0xff]
        %v1767 = vld [vmem:[%s1545 + $0x6e8] sm:$0xff]
        %v1768 = vld [vmem:[%s1545 + $0x6f0] sm:$0xff]
        %v1769 = vld [vmem:[%s1545 + $0x6f8] sm:$0xff]
        %v1770 = vld [vmem:[%s1545 + $0x700] sm:$0xff]
        %v1771 = vld [vmem:[%s1545 + $0x708] sm:$0xff]
        %v1772 = vld [vmem:[%s1545 + $0x710] sm:$0xff]
        %v1773 = vld [vmem:[%s1545 + $0x718] sm:$0xff]
        %v1774 = vld [vmem:[%s1545 + $0x720] sm:$0xff]
        %v1775 = vld [vmem:[%s1545 + $0x728] sm:$0xff]
        %v1776 = vld [vmem:[%s1545 + $0x730] sm:$0xff]
        %v1777 = vld [vmem:[%s1545 + $0x738] sm:$0xff]
        %v1778 = vld [vmem:[%s1545 + $0x740] sm:$0xff]
        %v1779 = vld [vmem:[%s1545 + $0x748] sm:$0xff]
        %v1780 = vld [vmem:[%s1545 + $0x750] sm:$0xff]
        %v1781 = vld [vmem:[%s1545 + $0x758] sm:$0xff]
        %v1782 = vld [vmem:[%s1545 + $0x760] sm:$0xff]
        %v1783 = vld [vmem:[%s1545 + $0x768] sm:$0xff]
        %v1784 = vld [vmem:[%s1545 + $0x770] sm:$0xff]
        %v1785 = vld [vmem:[%s1545 + $0x778] sm:$0xff]
        %v1786 = vld [vmem:[%s1545 + $0x780] sm:$0xff]
        %v1787 = vld [vmem:[%s1545 + $0x788] sm:$0xff]
        %v1788 = vld [vmem:[%s1545 + $0x790] sm:$0xff]
        %v1789 = vld [vmem:[%s1545 + $0x798] sm:$0xff]
        %v1790 = vld [vmem:[%s1545 + $0x7a0] sm:$0xff]
        %v1791 = vld [vmem:[%s1545 + $0x7a8] sm:$0xff]
        %v1792 = vld [vmem:[%s1545 + $0x7b0] sm:$0xff]
        %v1793 = vld [vmem:[%s1545 + $0x7b8] sm:$0xff]
        %v1794 = vld [vmem:[%s1545 + $0x7c0] sm:$0xff]
        %v1795 = vld [vmem:[%s1545 + $0x7c8] sm:$0xff]
        %v1796 = vld [vmem:[%s1545 + $0x7d0] sm:$0xff]
        %v1797 = vld [vmem:[%s1545 + $0x7d8] sm:$0xff]
        %v1798 = vld [vmem:[%s1545 + $0x7e0] sm:$0xff]
        %v1799 = vld [vmem:[%s1545 + $0x7e8] sm:$0xff]
        %v1800 = vld [vmem:[%s1545 + $0x7f0] sm:$0xff]
        %v1801 = vld [vmem:[%s1545 + $0x7f8] sm:$0xff]
        %s1802 = sld [smem:[#allocation7 + $0x100]]
        %v1803 = vstv %s1802
        %v1804 = vmul.f32 %v1546, %v1803
        %v1805 = vmul.f32 %v1547, %v1803
        %v1806 = vmul.f32 %v1548, %v1803
        %v1807 = vmul.f32 %v1549, %v1803
        %v1808 = vmul.f32 %v1550, %v1803
        %v1809 = vmul.f32 %v1551, %v1803
        %v1810 = vmul.f32 %v1552, %v1803
        %v1811 = vmul.f32 %v1553, %v1803
        %v1812 = vmul.f32 %v1554, %v1803
        %v1813 = vmul.f32 %v1555, %v1803
        %v1814 = vmul.f32 %v1556, %v1803
        %v1815 = vmul.f32 %v1557, %v1803
        %v1816 = vmul.f32 %v1558, %v1803
        %v1817 = vmul.f32 %v1559, %v1803
        %v1818 = vmul.f32 %v1560, %v1803
        %v1819 = vmul.f32 %v1561, %v1803
        %v1820 = vmul.f32 %v1562, %v1803
        %v1821 = vmul.f32 %v1563, %v1803
        %v1822 = vmul.f32 %v1564, %v1803
        %v1823 = vmul.f32 %v1565, %v1803
        %v1824 = vmul.f32 %v1566, %v1803
        %v1825 = vmul.f32 %v1567, %v1803
        %v1826 = vmul.f32 %v1568, %v1803
        %v1827 = vmul.f32 %v1569, %v1803
        %v1828 = vmul.f32 %v1570, %v1803
        %v1829 = vmul.f32 %v1571, %v1803
        %v1830 = vmul.f32 %v1572, %v1803
        %v1831 = vmul.f32 %v1573, %v1803
        %v1832 = vmul.f32 %v1574, %v1803
        %v1833 = vmul.f32 %v1575, %v1803
        %v1834 = vmul.f32 %v1576, %v1803
        %v1835 = vmul.f32 %v1577, %v1803
        %v1836 = vmul.f32 %v1578, %v1803
        %v1837 = vmul.f32 %v1579, %v1803
        %v1838 = vmul.f32 %v1580, %v1803
        %v1839 = vmul.f32 %v1581, %v1803
        %v1840 = vmul.f32 %v1582, %v1803
        %v1841 = vmul.f32 %v1583, %v1803
        %v1842 = vmul.f32 %v1584, %v1803
        %v1843 = vmul.f32 %v1585, %v1803
        %v1844 = vmul.f32 %v1586, %v1803
        %v1845 = vmul.f32 %v1587, %v1803
        %v1846 = vmul.f32 %v1588, %v1803
        %v1847 = vmul.f32 %v1589, %v1803
        %v1848 = vmul.f32 %v1590, %v1803
        %v1849 = vmul.f32 %v1591, %v1803
        %v1850 = vmul.f32 %v1592, %v1803
        %v1851 = vmul.f32 %v1593, %v1803
        %v1852 = vmul.f32 %v1594, %v1803
        %v1853 = vmul.f32 %v1595, %v1803
        %v1854 = vmul.f32 %v1596, %v1803
        %v1855 = vmul.f32 %v1597, %v1803
        %v1856 = vmul.f32 %v1598, %v1803
        %v1857 = vmul.f32 %v1599, %v1803
        %v1858 = vmul.f32 %v1600, %v1803
        %v1859 = vmul.f32 %v1601, %v1803
        %v1860 = vmul.f32 %v1602, %v1803
        %v1861 = vmul.f32 %v1603, %v1803
        %v1862 = vmul.f32 %v1604, %v1803
        %v1863 = vmul.f32 %v1605, %v1803
        %v1864 = vmul.f32 %v1606, %v1803
        %v1865 = vmul.f32 %v1607, %v1803
        %v1866 = vmul.f32 %v1608, %v1803
        %v1867 = vmul.f32 %v1609, %v1803
        %v1868 = vmul.f32 %v1610, %v1803
        %v1869 = vmul.f32 %v1611, %v1803
        %v1870 = vmul.f32 %v1612, %v1803
        %v1871 = vmul.f32 %v1613, %v1803
        %v1872 = vmul.f32 %v1614, %v1803
        %v1873 = vmul.f32 %v1615, %v1803
        %v1874 = vmul.f32 %v1616, %v1803
        %v1875 = vmul.f32 %v1617, %v1803
        %v1876 = vmul.f32 %v1618, %v1803
        %v1877 = vmul.f32 %v1619, %v1803
        %v1878 = vmul.f32 %v1620, %v1803
        %v1879 = vmul.f32 %v1621, %v1803
        %v1880 = vmul.f32 %v1622, %v1803
        %v1881 = vmul.f32 %v1623, %v1803
        %v1882 = vmul.f32 %v1624, %v1803
        %v1883 = vmul.f32 %v1625, %v1803
        %v1884 = vmul.f32 %v1626, %v1803
        %v1885 = vmul.f32 %v1627, %v1803
        %v1886 = vmul.f32 %v1628, %v1803
        %v1887 = vmul.f32 %v1629, %v1803
        %v1888 = vmul.f32 %v1630, %v1803
        %v1889 = vmul.f32 %v1631, %v1803
        %v1890 = vmul.f32 %v1632, %v1803
        %v1891 = vmul.f32 %v1633, %v1803
        %v1892 = vmul.f32 %v1634, %v1803
        %v1893 = vmul.f32 %v1635, %v1803
        %v1894 = vmul.f32 %v1636, %v1803
        %v1895 = vmul.f32 %v1637, %v1803
        %v1896 = vmul.f32 %v1638, %v1803
        %v1897 = vmul.f32 %v1639, %v1803
        %v1898 = vmul.f32 %v1640, %v1803
        %v1899 = vmul.f32 %v1641, %v1803
        %v1900 = vmul.f32 %v1642, %v1803
        %v1901 = vmul.f32 %v1643, %v1803
        %v1902 = vmul.f32 %v1644, %v1803
        %v1903 = vmul.f32 %v1645, %v1803
        %v1904 = vmul.f32 %v1646, %v1803
        %v1905 = vmul.f32 %v1647, %v1803
        %v1906 = vmul.f32 %v1648, %v1803
        %v1907 = vmul.f32 %v1649, %v1803
        %v1908 = vmul.f32 %v1650, %v1803
        %v1909 = vmul.f32 %v1651, %v1803
        %v1910 = vmul.f32 %v1652, %v1803
        %v1911 = vmul.f32 %v1653, %v1803
        %v1912 = vmul.f32 %v1654, %v1803
        %v1913 = vmul.f32 %v1655, %v1803
        %v1914 = vmul.f32 %v1656, %v1803
        %v1915 = vmul.f32 %v1657, %v1803
        %v1916 = vmul.f32 %v1658, %v1803
        %v1917 = vmul.f32 %v1659, %v1803
        %v1918 = vmul.f32 %v1660, %v1803
        %v1919 = vmul.f32 %v1661, %v1803
        %v1920 = vmul.f32 %v1662, %v1803
        %v1921 = vmul.f32 %v1663, %v1803
        %v1922 = vmul.f32 %v1664, %v1803
        %v1923 = vmul.f32 %v1665, %v1803
        %v1924 = vmul.f32 %v1666, %v1803
        %v1925 = vmul.f32 %v1667, %v1803
        %v1926 = vmul.f32 %v1668, %v1803
        %v1927 = vmul.f32 %v1669, %v1803
        %v1928 = vmul.f32 %v1670, %v1803
        %v1929 = vmul.f32 %v1671, %v1803
        %v1930 = vmul.f32 %v1672, %v1803
        %v1931 = vmul.f32 %v1673, %v1803
        %v1932 = vmul.f32 %v1674, %v1803
        %v1933 = vmul.f32 %v1675, %v1803
        %v1934 = vmul.f32 %v1676, %v1803
        %v1935 = vmul.f32 %v1677, %v1803
        %v1936 = vmul.f32 %v1678, %v1803
        %v1937 = vmul.f32 %v1679, %v1803
        %v1938 = vmul.f32 %v1680, %v1803
        %v1939 = vmul.f32 %v1681, %v1803
        %v1940 = vmul.f32 %v1682, %v1803
        %v1941 = vmul.f32 %v1683, %v1803
        %v1942 = vmul.f32 %v1684, %v1803
        %v1943 = vmul.f32 %v1685, %v1803
        %v1944 = vmul.f32 %v1686, %v1803
        %v1945 = vmul.f32 %v1687, %v1803
        %v1946 = vmul.f32 %v1688, %v1803
        %v1947 = vmul.f32 %v1689, %v1803
        %v1948 = vmul.f32 %v1690, %v1803
        %v1949 = vmul.f32 %v1691, %v1803
        %v1950 = vmul.f32 %v1692, %v1803
        %v1951 = vmul.f32 %v1693, %v1803
        %v1952 = vmul.f32 %v1694, %v1803
        %v1953 = vmul.f32 %v1695, %v1803
        %v1954 = vmul.f32 %v1696, %v1803
        %v1955 = vmul.f32 %v1697, %v1803
        %v1956 = vmul.f32 %v1698, %v1803
        %v1957 = vmul.f32 %v1699, %v1803
        %v1958 = vmul.f32 %v1700, %v1803
        %v1959 = vmul.f32 %v1701, %v1803
        %v1960 = vmul.f32 %v1702, %v1803
        %v1961 = vmul.f32 %v1703, %v1803
        %v1962 = vmul.f32 %v1704, %v1803
        %v1963 = vmul.f32 %v1705, %v1803
        %v1964 = vmul.f32 %v1706, %v1803
        %v1965 = vmul.f32 %v1707, %v1803
        %v1966 = vmul.f32 %v1708, %v1803
        %v1967 = vmul.f32 %v1709, %v1803
        %v1968 = vmul.f32 %v1710, %v1803
        %v1969 = vmul.f32 %v1711, %v1803
        %v1970 = vmul.f32 %v1712, %v1803
        %v1971 = vmul.f32 %v1713, %v1803
        %v1972 = vmul.f32 %v1714, %v1803
        %v1973 = vmul.f32 %v1715, %v1803
        %v1974 = vmul.f32 %v1716, %v1803
        %v1975 = vmul.f32 %v1717, %v1803
        %v1976 = vmul.f32 %v1718, %v1803
        %v1977 = vmul.f32 %v1719, %v1803
        %v1978 = vmul.f32 %v1720, %v1803
        %v1979 = vmul.f32 %v1721, %v1803
        %v1980 = vmul.f32 %v1722, %v1803
        %v1981 = vmul.f32 %v1723, %v1803
        %v1982 = vmul.f32 %v1724, %v1803
        %v1983 = vmul.f32 %v1725, %v1803
        %v1984 = vmul.f32 %v1726, %v1803
        %v1985 = vmul.f32 %v1727, %v1803
        %v1986 = vmul.f32 %v1728, %v1803
        %v1987 = vmul.f32 %v1729, %v1803
        %v1988 = vmul.f32 %v1730, %v1803
        %v1989 = vmul.f32 %v1731, %v1803
        %v1990 = vmul.f32 %v1732, %v1803
        %v1991 = vmul.f32 %v1733, %v1803
        %v1992 = vmul.f32 %v1734, %v1803
        %v1993 = vmul.f32 %v1735, %v1803
        %v1994 = vmul.f32 %v1736, %v1803
        %v1995 = vmul.f32 %v1737, %v1803
        %v1996 = vmul.f32 %v1738, %v1803
        %v1997 = vmul.f32 %v1739, %v1803
        %v1998 = vmul.f32 %v1740, %v1803
        %v1999 = vmul.f32 %v1741, %v1803
        %v2000 = vmul.f32 %v1742, %v1803
        %v2001 = vmul.f32 %v1743, %v1803
        %v2002 = vmul.f32 %v1744, %v1803
        %v2003 = vmul.f32 %v1745, %v1803
        %v2004 = vmul.f32 %v1746, %v1803
        %v2005 = vmul.f32 %v1747, %v1803
        %v2006 = vmul.f32 %v1748, %v1803
        %v2007 = vmul.f32 %v1749, %v1803
        %v2008 = vmul.f32 %v1750, %v1803
        %v2009 = vmul.f32 %v1751, %v1803
        %v2010 = vmul.f32 %v1752, %v1803
        %v2011 = vmul.f32 %v1753, %v1803
        %v2012 = vmul.f32 %v1754, %v1803
        %v2013 = vmul.f32 %v1755, %v1803
        %v2014 = vmul.f32 %v1756, %v1803
        %v2015 = vmul.f32 %v1757, %v1803
        %v2016 = vmul.f32 %v1758, %v1803
        %v2017 = vmul.f32 %v1759, %v1803
        %v2018 = vmul.f32 %v1760, %v1803
        %v2019 = vmul.f32 %v1761, %v1803
        %v2020 = vmul.f32 %v1762, %v1803
        %v2021 = vmul.f32 %v1763, %v1803
        %v2022 = vmul.f32 %v1764, %v1803
        %v2023 = vmul.f32 %v1765, %v1803
        %v2024 = vmul.f32 %v1766, %v1803
        %v2025 = vmul.f32 %v1767, %v1803
        %v2026 = vmul.f32 %v1768, %v1803
        %v2027 = vmul.f32 %v1769, %v1803
        %v2028 = vmul.f32 %v1770, %v1803
        %v2029 = vmul.f32 %v1771, %v1803
        %v2030 = vmul.f32 %v1772, %v1803
        %v2031 = vmul.f32 %v1773, %v1803
        %v2032 = vmul.f32 %v1774, %v1803
        %v2033 = vmul.f32 %v1775, %v1803
        %v2034 = vmul.f32 %v1776, %v1803
        %v2035 = vmul.f32 %v1777, %v1803
        %v2036 = vmul.f32 %v1778, %v1803
        %v2037 = vmul.f32 %v1779, %v1803
        %v2038 = vmul.f32 %v1780, %v1803
        %v2039 = vmul.f32 %v1781, %v1803
        %v2040 = vmul.f32 %v1782, %v1803
        %v2041 = vmul.f32 %v1783, %v1803
        %v2042 = vmul.f32 %v1784, %v1803
        %v2043 = vmul.f32 %v1785, %v1803
        %v2044 = vmul.f32 %v1786, %v1803
        %v2045 = vmul.f32 %v1787, %v1803
        %v2046 = vmul.f32 %v1788, %v1803
        %v2047 = vmul.f32 %v1789, %v1803
        %v2048 = vmul.f32 %v1790, %v1803
        %v2049 = vmul.f32 %v1791, %v1803
        %v2050 = vmul.f32 %v1792, %v1803
        %v2051 = vmul.f32 %v1793, %v1803
        %v2052 = vmul.f32 %v1794, %v1803
        %v2053 = vmul.f32 %v1795, %v1803
        %v2054 = vmul.f32 %v1796, %v1803
        %v2055 = vmul.f32 %v1797, %v1803
        %v2056 = vmul.f32 %v1798, %v1803
        %v2057 = vmul.f32 %v1799, %v1803
        %v2058 = vmul.f32 %v1800, %v1803
        %v2059 = vmul.f32 %v1801, %v1803
        %v2060 = vadd.f32 %v1289, %v1804
        %v2061 = vadd.f32 %v1290, %v1805
        %v2062 = vadd.f32 %v1291, %v1806
        %v2063 = vadd.f32 %v1292, %v1807
        %v2064 = vadd.f32 %v1293, %v1808
        %v2065 = vadd.f32 %v1294, %v1809
        %v2066 = vadd.f32 %v1295, %v1810
        %v2067 = vadd.f32 %v1296, %v1811
        %v2068 = vadd.f32 %v1297, %v1812
        %v2069 = vadd.f32 %v1298, %v1813
        %v2070 = vadd.f32 %v1299, %v1814
        %v2071 = vadd.f32 %v1300, %v1815
        %v2072 = vadd.f32 %v1301, %v1816
        %v2073 = vadd.f32 %v1302, %v1817
        %v2074 = vadd.f32 %v1303, %v1818
        %v2075 = vadd.f32 %v1304, %v1819
        %v2076 = vadd.f32 %v1305, %v1820
        %v2077 = vadd.f32 %v1306, %v1821
        %v2078 = vadd.f32 %v1307, %v1822
        %v2079 = vadd.f32 %v1308, %v1823
        %v2080 = vadd.f32 %v1309, %v1824
        %v2081 = vadd.f32 %v1310, %v1825
        %v2082 = vadd.f32 %v1311, %v1826
        %v2083 = vadd.f32 %v1312, %v1827
        %v2084 = vadd.f32 %v1313, %v1828
        %v2085 = vadd.f32 %v1314, %v1829
        %v2086 = vadd.f32 %v1315, %v1830
        %v2087 = vadd.f32 %v1316, %v1831
        %v2088 = vadd.f32 %v1317, %v1832
        %v2089 = vadd.f32 %v1318, %v1833
        %v2090 = vadd.f32 %v1319, %v1834
        %v2091 = vadd.f32 %v1320, %v1835
        %v2092 = vadd.f32 %v1321, %v1836
        %v2093 = vadd.f32 %v1322, %v1837
        %v2094 = vadd.f32 %v1323, %v1838
        %v2095 = vadd.f32 %v1324, %v1839
        %v2096 = vadd.f32 %v1325, %v1840
        %v2097 = vadd.f32 %v1326, %v1841
        %v2098 = vadd.f32 %v1327, %v1842
        %v2099 = vadd.f32 %v1328, %v1843
        %v2100 = vadd.f32 %v1329, %v1844
        %v2101 = vadd.f32 %v1330, %v1845
        %v2102 = vadd.f32 %v1331, %v1846
        %v2103 = vadd.f32 %v1332, %v1847
        %v2104 = vadd.f32 %v1333, %v1848
        %v2105 = vadd.f32 %v1334, %v1849
        %v2106 = vadd.f32 %v1335, %v1850
        %v2107 = vadd.f32 %v1336, %v1851
        %v2108 = vadd.f32 %v1337, %v1852
        %v2109 = vadd.f32 %v1338, %v1853
        %v2110 = vadd.f32 %v1339, %v1854
        %v2111 = vadd.f32 %v1340, %v1855
        %v2112 = vadd.f32 %v1341, %v1856
        %v2113 = vadd.f32 %v1342, %v1857
        %v2114 = vadd.f32 %v1343, %v1858
        %v2115 = vadd.f32 %v1344, %v1859
        %v2116 = vadd.f32 %v1345, %v1860
        %v2117 = vadd.f32 %v1346, %v1861
        %v2118 = vadd.f32 %v1347, %v1862
        %v2119 = vadd.f32 %v1348, %v1863
        %v2120 = vadd.f32 %v1349, %v1864
        %v2121 = vadd.f32 %v1350, %v1865
        %v2122 = vadd.f32 %v1351, %v1866
        %v2123 = vadd.f32 %v1352, %v1867
        %v2124 = vadd.f32 %v1353, %v1868
        %v2125 = vadd.f32 %v1354, %v1869
        %v2126 = vadd.f32 %v1355, %v1870
        %v2127 = vadd.f32 %v1356, %v1871
        %v2128 = vadd.f32 %v1357, %v1872
        %v2129 = vadd.f32 %v1358, %v1873
        %v2130 = vadd.f32 %v1359, %v1874
        %v2131 = vadd.f32 %v1360, %v1875
        %v2132 = vadd.f32 %v1361, %v1876
        %v2133 = vadd.f32 %v1362, %v1877
        %v2134 = vadd.f32 %v1363, %v1878
        %v2135 = vadd.f32 %v1364, %v1879
        %v2136 = vadd.f32 %v1365, %v1880
        %v2137 = vadd.f32 %v1366, %v1881
        %v2138 = vadd.f32 %v1367, %v1882
        %v2139 = vadd.f32 %v1368, %v1883
        %v2140 = vadd.f32 %v1369, %v1884
        %v2141 = vadd.f32 %v1370, %v1885
        %v2142 = vadd.f32 %v1371, %v1886
        %v2143 = vadd.f32 %v1372, %v1887
        %v2144 = vadd.f32 %v1373, %v1888
        %v2145 = vadd.f32 %v1374, %v1889
        %v2146 = vadd.f32 %v1375, %v1890
        %v2147 = vadd.f32 %v1376, %v1891
        %v2148 = vadd.f32 %v1377, %v1892
        %v2149 = vadd.f32 %v1378, %v1893
        %v2150 = vadd.f32 %v1379, %v1894
        %v2151 = vadd.f32 %v1380, %v1895
        %v2152 = vadd.f32 %v1381, %v1896
        %v2153 = vadd.f32 %v1382, %v1897
        %v2154 = vadd.f32 %v1383, %v1898
        %v2155 = vadd.f32 %v1384, %v1899
        %v2156 = vadd.f32 %v1385, %v1900
        %v2157 = vadd.f32 %v1386, %v1901
        %v2158 = vadd.f32 %v1387, %v1902
        %v2159 = vadd.f32 %v1388, %v1903
        %v2160 = vadd.f32 %v1389, %v1904
        %v2161 = vadd.f32 %v1390, %v1905
        %v2162 = vadd.f32 %v1391, %v1906
        %v2163 = vadd.f32 %v1392, %v1907
        %v2164 = vadd.f32 %v1393, %v1908
        %v2165 = vadd.f32 %v1394, %v1909
        %v2166 = vadd.f32 %v1395, %v1910
        %v2167 = vadd.f32 %v1396, %v1911
        %v2168 = vadd.f32 %v1397, %v1912
        %v2169 = vadd.f32 %v1398, %v1913
        %v2170 = vadd.f32 %v1399, %v1914
        %v2171 = vadd.f32 %v1400, %v1915
        %v2172 = vadd.f32 %v1401, %v1916
        %v2173 = vadd.f32 %v1402, %v1917
        %v2174 = vadd.f32 %v1403, %v1918
        %v2175 = vadd.f32 %v1404, %v1919
        %v2176 = vadd.f32 %v1405, %v1920
        %v2177 = vadd.f32 %v1406, %v1921
        %v2178 = vadd.f32 %v1407, %v1922
        %v2179 = vadd.f32 %v1408, %v1923
        %v2180 = vadd.f32 %v1409, %v1924
        %v2181 = vadd.f32 %v1410, %v1925
        %v2182 = vadd.f32 %v1411, %v1926
        %v2183 = vadd.f32 %v1412, %v1927
        %v2184 = vadd.f32 %v1413, %v1928
        %v2185 = vadd.f32 %v1414, %v1929
        %v2186 = vadd.f32 %v1415, %v1930
        %v2187 = vadd.f32 %v1416, %v1931
        %v2188 = vadd.f32 %v1417, %v1932
        %v2189 = vadd.f32 %v1418, %v1933
        %v2190 = vadd.f32 %v1419, %v1934
        %v2191 = vadd.f32 %v1420, %v1935
        %v2192 = vadd.f32 %v1421, %v1936
        %v2193 = vadd.f32 %v1422, %v1937
        %v2194 = vadd.f32 %v1423, %v1938
        %v2195 = vadd.f32 %v1424, %v1939
        %v2196 = vadd.f32 %v1425, %v1940
        %v2197 = vadd.f32 %v1426, %v1941
        %v2198 = vadd.f32 %v1427, %v1942
        %v2199 = vadd.f32 %v1428, %v1943
        %v2200 = vadd.f32 %v1429, %v1944
        %v2201 = vadd.f32 %v1430, %v1945
        %v2202 = vadd.f32 %v1431, %v1946
        %v2203 = vadd.f32 %v1432, %v1947
        %v2204 = vadd.f32 %v1433, %v1948
        %v2205 = vadd.f32 %v1434, %v1949
        %v2206 = vadd.f32 %v1435, %v1950
        %v2207 = vadd.f32 %v1436, %v1951
        %v2208 = vadd.f32 %v1437, %v1952
        %v2209 = vadd.f32 %v1438, %v1953
        %v2210 = vadd.f32 %v1439, %v1954
        %v2211 = vadd.f32 %v1440, %v1955
        %v2212 = vadd.f32 %v1441, %v1956
        %v2213 = vadd.f32 %v1442, %v1957
        %v2214 = vadd.f32 %v1443, %v1958
        %v2215 = vadd.f32 %v1444, %v1959
        %v2216 = vadd.f32 %v1445, %v1960
        %v2217 = vadd.f32 %v1446, %v1961
        %v2218 = vadd.f32 %v1447, %v1962
        %v2219 = vadd.f32 %v1448, %v1963
        %v2220 = vadd.f32 %v1449, %v1964
        %v2221 = vadd.f32 %v1450, %v1965
        %v2222 = vadd.f32 %v1451, %v1966
        %v2223 = vadd.f32 %v1452, %v1967
        %v2224 = vadd.f32 %v1453, %v1968
        %v2225 = vadd.f32 %v1454, %v1969
        %v2226 = vadd.f32 %v1455, %v1970
        %v2227 = vadd.f32 %v1456, %v1971
        %v2228 = vadd.f32 %v1457, %v1972
        %v2229 = vadd.f32 %v1458, %v1973
        %v2230 = vadd.f32 %v1459, %v1974
        %v2231 = vadd.f32 %v1460, %v1975
        %v2232 = vadd.f32 %v1461, %v1976
        %v2233 = vadd.f32 %v1462, %v1977
        %v2234 = vadd.f32 %v1463, %v1978
        %v2235 = vadd.f32 %v1464, %v1979
        %v2236 = vadd.f32 %v1465, %v1980
        %v2237 = vadd.f32 %v1466, %v1981
        %v2238 = vadd.f32 %v1467, %v1982
        %v2239 = vadd.f32 %v1468, %v1983
        %v2240 = vadd.f32 %v1469, %v1984
        %v2241 = vadd.f32 %v1470, %v1985
        %v2242 = vadd.f32 %v1471, %v1986
        %v2243 = vadd.f32 %v1472, %v1987
        %v2244 = vadd.f32 %v1473, %v1988
        %v2245 = vadd.f32 %v1474, %v1989
        %v2246 = vadd.f32 %v1475, %v1990
        %v2247 = vadd.f32 %v1476, %v1991
        %v2248 = vadd.f32 %v1477, %v1992
        %v2249 = vadd.f32 %v1478, %v1993
        %v2250 = vadd.f32 %v1479, %v1994
        %v2251 = vadd.f32 %v1480, %v1995
        %v2252 = vadd.f32 %v1481, %v1996
        %v2253 = vadd.f32 %v1482, %v1997
        %v2254 = vadd.f32 %v1483, %v1998
        %v2255 = vadd.f32 %v1484, %v1999
        %v2256 = vadd.f32 %v1485, %v2000
        %v2257 = vadd.f32 %v1486, %v2001
        %v2258 = vadd.f32 %v1487, %v2002
        %v2259 = vadd.f32 %v1488, %v2003
        %v2260 = vadd.f32 %v1489, %v2004
        %v2261 = vadd.f32 %v1490, %v2005
        %v2262 = vadd.f32 %v1491, %v2006
        %v2263 = vadd.f32 %v1492, %v2007
        %v2264 = vadd.f32 %v1493, %v2008
        %v2265 = vadd.f32 %v1494, %v2009
        %v2266 = vadd.f32 %v1495, %v2010
        %v2267 = vadd.f32 %v1496, %v2011
        %v2268 = vadd.f32 %v1497, %v2012
        %v2269 = vadd.f32 %v1498, %v2013
        %v2270 = vadd.f32 %v1499, %v2014
        %v2271 = vadd.f32 %v1500, %v2015
        %v2272 = vadd.f32 %v1501, %v2016
        %v2273 = vadd.f32 %v1502, %v2017
        %v2274 = vadd.f32 %v1503, %v2018
        %v2275 = vadd.f32 %v1504, %v2019
        %v2276 = vadd.f32 %v1505, %v2020
        %v2277 = vadd.f32 %v1506, %v2021
        %v2278 = vadd.f32 %v1507, %v2022
        %v2279 = vadd.f32 %v1508, %v2023
        %v2280 = vadd.f32 %v1509, %v2024
        %v2281 = vadd.f32 %v1510, %v2025
        %v2282 = vadd.f32 %v1511, %v2026
        %v2283 = vadd.f32 %v1512, %v2027
        %v2284 = vadd.f32 %v1513, %v2028
        %v2285 = vadd.f32 %v1514, %v2029
        %v2286 = vadd.f32 %v1515, %v2030
        %v2287 = vadd.f32 %v1516, %v2031
        %v2288 = vadd.f32 %v1517, %v2032
        %v2289 = vadd.f32 %v1518, %v2033
        %v2290 = vadd.f32 %v1519, %v2034
        %v2291 = vadd.f32 %v1520, %v2035
        %v2292 = vadd.f32 %v1521, %v2036
        %v2293 = vadd.f32 %v1522, %v2037
        %v2294 = vadd.f32 %v1523, %v2038
        %v2295 = vadd.f32 %v1524, %v2039
        %v2296 = vadd.f32 %v1525, %v2040
        %v2297 = vadd.f32 %v1526, %v2041
        %v2298 = vadd.f32 %v1527, %v2042
        %v2299 = vadd.f32 %v1528, %v2043
        %v2300 = vadd.f32 %v1529, %v2044
        %v2301 = vadd.f32 %v1530, %v2045
        %v2302 = vadd.f32 %v1531, %v2046
        %v2303 = vadd.f32 %v1532, %v2047
        %v2304 = vadd.f32 %v1533, %v2048
        %v2305 = vadd.f32 %v1534, %v2049
        %v2306 = vadd.f32 %v1535, %v2050
        %v2307 = vadd.f32 %v1536, %v2051
        %v2308 = vadd.f32 %v1537, %v2052
        %v2309 = vadd.f32 %v1538, %v2053
        %v2310 = vadd.f32 %v1539, %v2054
        %v2311 = vadd.f32 %v1540, %v2055
        %v2312 = vadd.f32 %v1541, %v2056
        %v2313 = vadd.f32 %v1542, %v2057
        %v2314 = vadd.f32 %v1543, %v2058
        %v2315 = vadd.f32 %v1544, %v2059
        %s2316 = sld [smem:[#allocation8]]
        %v2317 = vstv %s2316
        %v2318 = vadd.f32 %v2060, %v2317
        %v2319 = vadd.f32 %v2061, %v2317
        %v2320 = vadd.f32 %v2062, %v2317
        %v2321 = vadd.f32 %v2063, %v2317
        %v2322 = vadd.f32 %v2064, %v2317
        %v2323 = vadd.f32 %v2065, %v2317
        %v2324 = vadd.f32 %v2066, %v2317
        %v2325 = vadd.f32 %v2067, %v2317
        %v2326 = vadd.f32 %v2068, %v2317
        %v2327 = vadd.f32 %v2069, %v2317
        %v2328 = vadd.f32 %v2070, %v2317
        %v2329 = vadd.f32 %v2071, %v2317
        %v2330 = vadd.f32 %v2072, %v2317
        %v2331 = vadd.f32 %v2073, %v2317
        %v2332 = vadd.f32 %v2074, %v2317
        %v2333 = vadd.f32 %v2075, %v2317
        %v2334 = vadd.f32 %v2076, %v2317
        %v2335 = vadd.f32 %v2077, %v2317
        %v2336 = vadd.f32 %v2078, %v2317
        %v2337 = vadd.f32 %v2079, %v2317
        %v2338 = vadd.f32 %v2080, %v2317
        %v2339 = vadd.f32 %v2081, %v2317
        %v2340 = vadd.f32 %v2082, %v2317
        %v2341 = vadd.f32 %v2083, %v2317
        %v2342 = vadd.f32 %v2084, %v2317
        %v2343 = vadd.f32 %v2085, %v2317
        %v2344 = vadd.f32 %v2086, %v2317
        %v2345 = vadd.f32 %v2087, %v2317
        %v2346 = vadd.f32 %v2088, %v2317
        %v2347 = vadd.f32 %v2089, %v2317
        %v2348 = vadd.f32 %v2090, %v2317
        %v2349 = vadd.f32 %v2091, %v2317
        %v2350 = vadd.f32 %v2092, %v2317
        %v2351 = vadd.f32 %v2093, %v2317
        %v2352 = vadd.f32 %v2094, %v2317
        %v2353 = vadd.f32 %v2095, %v2317
        %v2354 = vadd.f32 %v2096, %v2317
        %v2355 = vadd.f32 %v2097, %v2317
        %v2356 = vadd.f32 %v2098, %v2317
        %v2357 = vadd.f32 %v2099, %v2317
        %v2358 = vadd.f32 %v2100, %v2317
        %v2359 = vadd.f32 %v2101, %v2317
        %v2360 = vadd.f32 %v2102, %v2317
        %v2361 = vadd.f32 %v2103, %v2317
        %v2362 = vadd.f32 %v2104, %v2317
        %v2363 = vadd.f32 %v2105, %v2317
        %v2364 = vadd.f32 %v2106, %v2317
        %v2365 = vadd.f32 %v2107, %v2317
        %v2366 = vadd.f32 %v2108, %v2317
        %v2367 = vadd.f32 %v2109, %v2317
        %v2368 = vadd.f32 %v2110, %v2317
        %v2369 = vadd.f32 %v2111, %v2317
        %v2370 = vadd.f32 %v2112, %v2317
        %v2371 = vadd.f32 %v2113, %v2317
        %v2372 = vadd.f32 %v2114, %v2317
        %v2373 = vadd.f32 %v2115, %v2317
        %v2374 = vadd.f32 %v2116, %v2317
        %v2375 = vadd.f32 %v2117, %v2317
        %v2376 = vadd.f32 %v2118, %v2317
        %v2377 = vadd.f32 %v2119, %v2317
        %v2378 = vadd.f32 %v2120, %v2317
        %v2379 = vadd.f32 %v2121, %v2317
        %v2380 = vadd.f32 %v2122, %v2317
        %v2381 = vadd.f32 %v2123, %v2317
        %v2382 = vadd.f32 %v2124, %v2317
        %v2383 = vadd.f32 %v2125, %v2317
        %v2384 = vadd.f32 %v2126, %v2317
        %v2385 = vadd.f32 %v2127, %v2317
        %v2386 = vadd.f32 %v2128, %v2317
        %v2387 = vadd.f32 %v2129, %v2317
        %v2388 = vadd.f32 %v2130, %v2317
        %v2389 = vadd.f32 %v2131, %v2317
        %v2390 = vadd.f32 %v2132, %v2317
        %v2391 = vadd.f32 %v2133, %v2317
        %v2392 = vadd.f32 %v2134, %v2317
        %v2393 = vadd.f32 %v2135, %v2317
        %v2394 = vadd.f32 %v2136, %v2317
        %v2395 = vadd.f32 %v2137, %v2317
        %v2396 = vadd.f32 %v2138, %v2317
        %v2397 = vadd.f32 %v2139, %v2317
        %v2398 = vadd.f32 %v2140, %v2317
        %v2399 = vadd.f32 %v2141, %v2317
        %v2400 = vadd.f32 %v2142, %v2317
        %v2401 = vadd.f32 %v2143, %v2317
        %v2402 = vadd.f32 %v2144, %v2317
        %v2403 = vadd.f32 %v2145, %v2317
        %v2404 = vadd.f32 %v2146, %v2317
        %v2405 = vadd.f32 %v2147, %v2317
        %v2406 = vadd.f32 %v2148, %v2317
        %v2407 = vadd.f32 %v2149, %v2317
        %v2408 = vadd.f32 %v2150, %v2317
        %v2409 = vadd.f32 %v2151, %v2317
        %v2410 = vadd.f32 %v2152, %v2317
        %v2411 = vadd.f32 %v2153, %v2317
        %v2412 = vadd.f32 %v2154, %v2317
        %v2413 = vadd.f32 %v2155, %v2317
        %v2414 = vadd.f32 %v2156, %v2317
        %v2415 = vadd.f32 %v2157, %v2317
        %v2416 = vadd.f32 %v2158, %v2317
        %v2417 = vadd.f32 %v2159, %v2317
        %v2418 = vadd.f32 %v2160, %v2317
        %v2419 = vadd.f32 %v2161, %v2317
        %v2420 = vadd.f32 %v2162, %v2317
        %v2421 = vadd.f32 %v2163, %v2317
        %v2422 = vadd.f32 %v2164, %v2317
        %v2423 = vadd.f32 %v2165, %v2317
        %v2424 = vadd.f32 %v2166, %v2317
        %v2425 = vadd.f32 %v2167, %v2317
        %v2426 = vadd.f32 %v2168, %v2317
        %v2427 = vadd.f32 %v2169, %v2317
        %v2428 = vadd.f32 %v2170, %v2317
        %v2429 = vadd.f32 %v2171, %v2317
        %v2430 = vadd.f32 %v2172, %v2317
        %v2431 = vadd.f32 %v2173, %v2317
        %v2432 = vadd.f32 %v2174, %v2317
        %v2433 = vadd.f32 %v2175, %v2317
        %v2434 = vadd.f32 %v2176, %v2317
        %v2435 = vadd.f32 %v2177, %v2317
        %v2436 = vadd.f32 %v2178, %v2317
        %v2437 = vadd.f32 %v2179, %v2317
        %v2438 = vadd.f32 %v2180, %v2317
        %v2439 = vadd.f32 %v2181, %v2317
        %v2440 = vadd.f32 %v2182, %v2317
        %v2441 = vadd.f32 %v2183, %v2317
        %v2442 = vadd.f32 %v2184, %v2317
        %v2443 = vadd.f32 %v2185, %v2317
        %v2444 = vadd.f32 %v2186, %v2317
        %v2445 = vadd.f32 %v2187, %v2317
        %v2446 = vadd.f32 %v2188, %v2317
        %v2447 = vadd.f32 %v2189, %v2317
        %v2448 = vadd.f32 %v2190, %v2317
        %v2449 = vadd.f32 %v2191, %v2317
        %v2450 = vadd.f32 %v2192, %v2317
        %v2451 = vadd.f32 %v2193, %v2317
        %v2452 = vadd.f32 %v2194, %v2317
        %v2453 = vadd.f32 %v2195, %v2317
        %v2454 = vadd.f32 %v2196, %v2317
        %v2455 = vadd.f32 %v2197, %v2317
        %v2456 = vadd.f32 %v2198, %v2317
        %v2457 = vadd.f32 %v2199, %v2317
        %v2458 = vadd.f32 %v2200, %v2317
        %v2459 = vadd.f32 %v2201, %v2317
        %v2460 = vadd.f32 %v2202, %v2317
        %v2461 = vadd.f32 %v2203, %v2317
        %v2462 = vadd.f32 %v2204, %v2317
        %v2463 = vadd.f32 %v2205, %v2317
        %v2464 = vadd.f32 %v2206, %v2317
        %v2465 = vadd.f32 %v2207, %v2317
        %v2466 = vadd.f32 %v2208, %v2317
        %v2467 = vadd.f32 %v2209, %v2317
        %v2468 = vadd.f32 %v2210, %v2317
        %v2469 = vadd.f32 %v2211, %v2317
        %v2470 = vadd.f32 %v2212, %v2317
        %v2471 = vadd.f32 %v2213, %v2317
        %v2472 = vadd.f32 %v2214, %v2317
        %v2473 = vadd.f32 %v2215, %v2317
        %v2474 = vadd.f32 %v2216, %v2317
        %v2475 = vadd.f32 %v2217, %v2317
        %v2476 = vadd.f32 %v2218, %v2317
        %v2477 = vadd.f32 %v2219, %v2317
        %v2478 = vadd.f32 %v2220, %v2317
        %v2479 = vadd.f32 %v2221, %v2317
        %v2480 = vadd.f32 %v2222, %v2317
        %v2481 = vadd.f32 %v2223, %v2317
        %v2482 = vadd.f32 %v2224, %v2317
        %v2483 = vadd.f32 %v2225, %v2317
        %v2484 = vadd.f32 %v2226, %v2317
        %v2485 = vadd.f32 %v2227, %v2317
        %v2486 = vadd.f32 %v2228, %v2317
        %v2487 = vadd.f32 %v2229, %v2317
        %v2488 = vadd.f32 %v2230, %v2317
        %v2489 = vadd.f32 %v2231, %v2317
        %v2490 = vadd.f32 %v2232, %v2317
        %v2491 = vadd.f32 %v2233, %v2317
        %v2492 = vadd.f32 %v2234, %v2317
        %v2493 = vadd.f32 %v2235, %v2317
        %v2494 = vadd.f32 %v2236, %v2317
        %v2495 = vadd.f32 %v2237, %v2317
        %v2496 = vadd.f32 %v2238, %v2317
        %v2497 = vadd.f32 %v2239, %v2317
        %v2498 = vadd.f32 %v2240, %v2317
        %v2499 = vadd.f32 %v2241, %v2317
        %v2500 = vadd.f32 %v2242, %v2317
        %v2501 = vadd.f32 %v2243, %v2317
        %v2502 = vadd.f32 %v2244, %v2317
        %v2503 = vadd.f32 %v2245, %v2317
        %v2504 = vadd.f32 %v2246, %v2317
        %v2505 = vadd.f32 %v2247, %v2317
        %v2506 = vadd.f32 %v2248, %v2317
        %v2507 = vadd.f32 %v2249, %v2317
        %v2508 = vadd.f32 %v2250, %v2317
        %v2509 = vadd.f32 %v2251, %v2317
        %v2510 = vadd.f32 %v2252, %v2317
        %v2511 = vadd.f32 %v2253, %v2317
        %v2512 = vadd.f32 %v2254, %v2317
        %v2513 = vadd.f32 %v2255, %v2317
        %v2514 = vadd.f32 %v2256, %v2317
        %v2515 = vadd.f32 %v2257, %v2317
        %v2516 = vadd.f32 %v2258, %v2317
        %v2517 = vadd.f32 %v2259, %v2317
        %v2518 = vadd.f32 %v2260, %v2317
        %v2519 = vadd.f32 %v2261, %v2317
        %v2520 = vadd.f32 %v2262, %v2317
        %v2521 = vadd.f32 %v2263, %v2317
        %v2522 = vadd.f32 %v2264, %v2317
        %v2523 = vadd.f32 %v2265, %v2317
        %v2524 = vadd.f32 %v2266, %v2317
        %v2525 = vadd.f32 %v2267, %v2317
        %v2526 = vadd.f32 %v2268, %v2317
        %v2527 = vadd.f32 %v2269, %v2317
        %v2528 = vadd.f32 %v2270, %v2317
        %v2529 = vadd.f32 %v2271, %v2317
        %v2530 = vadd.f32 %v2272, %v2317
        %v2531 = vadd.f32 %v2273, %v2317
        %v2532 = vadd.f32 %v2274, %v2317
        %v2533 = vadd.f32 %v2275, %v2317
        %v2534 = vadd.f32 %v2276, %v2317
        %v2535 = vadd.f32 %v2277, %v2317
        %v2536 = vadd.f32 %v2278, %v2317
        %v2537 = vadd.f32 %v2279, %v2317
        %v2538 = vadd.f32 %v2280, %v2317
        %v2539 = vadd.f32 %v2281, %v2317
        %v2540 = vadd.f32 %v2282, %v2317
        %v2541 = vadd.f32 %v2283, %v2317
        %v2542 = vadd.f32 %v2284, %v2317
        %v2543 = vadd.f32 %v2285, %v2317
        %v2544 = vadd.f32 %v2286, %v2317
        %v2545 = vadd.f32 %v2287, %v2317
        %v2546 = vadd.f32 %v2288, %v2317
        %v2547 = vadd.f32 %v2289, %v2317
        %v2548 = vadd.f32 %v2290, %v2317
        %v2549 = vadd.f32 %v2291, %v2317
        %v2550 = vadd.f32 %v2292, %v2317
        %v2551 = vadd.f32 %v2293, %v2317
        %v2552 = vadd.f32 %v2294, %v2317
        %v2553 = vadd.f32 %v2295, %v2317
        %v2554 = vadd.f32 %v2296, %v2317
        %v2555 = vadd.f32 %v2297, %v2317
        %v2556 = vadd.f32 %v2298, %v2317
        %v2557 = vadd.f32 %v2299, %v2317
        %v2558 = vadd.f32 %v2300, %v2317
        %v2559 = vadd.f32 %v2301, %v2317
        %v2560 = vadd.f32 %v2302, %v2317
        %v2561 = vadd.f32 %v2303, %v2317
        %v2562 = vadd.f32 %v2304, %v2317
        %v2563 = vadd.f32 %v2305, %v2317
        %v2564 = vadd.f32 %v2306, %v2317
        %v2565 = vadd.f32 %v2307, %v2317
        %v2566 = vadd.f32 %v2308, %v2317
        %v2567 = vadd.f32 %v2309, %v2317
        %v2568 = vadd.f32 %v2310, %v2317
        %v2569 = vadd.f32 %v2311, %v2317
        %v2570 = vadd.f32 %v2312, %v2317
        %v2571 = vadd.f32 %v2313, %v2317
        %v2572 = vadd.f32 %v2314, %v2317
        %v2573 = vadd.f32 %v2315, %v2317
        %v2574 = vtanh.pop %v2318
        %v2575 = vtanh.pop %v2319
        %v2576 = vtanh.pop %v2320
        %v2577 = vtanh.pop %v2321
        %v2578 = vtanh.pop %v2322
        %v2579 = vtanh.pop %v2323
        %v2580 = vtanh.pop %v2324
        %v2581 = vtanh.pop %v2325
        %v2582 = vtanh.pop %v2326
        %v2583 = vtanh.pop %v2327
        %v2584 = vtanh.pop %v2328
        %v2585 = vtanh.pop %v2329
        %v2586 = vtanh.pop %v2330
        %v2587 = vtanh.pop %v2331
        %v2588 = vtanh.pop %v2332
        %v2589 = vtanh.pop %v2333
        %v2590 = vtanh.pop %v2334
        %v2591 = vtanh.pop %v2335
        %v2592 = vtanh.pop %v2336
        %v2593 = vtanh.pop %v2337
        %v2594 = vtanh.pop %v2338
        %v2595 = vtanh.pop %v2339
        %v2596 = vtanh.pop %v2340
        %v2597 = vtanh.pop %v2341
        %v2598 = vtanh.pop %v2342
        %v2599 = vtanh.pop %v2343
        %v2600 = vtanh.pop %v2344
        %v2601 = vtanh.pop %v2345
        %v2602 = vtanh.pop %v2346
        %v2603 = vtanh.pop %v2347
        %v2604 = vtanh.pop %v2348
        %v2605 = vtanh.pop %v2349
        %v2606 = vtanh.pop %v2350
        %v2607 = vtanh.pop %v2351
        %v2608 = vtanh.pop %v2352
        %v2609 = vtanh.pop %v2353
        %v2610 = vtanh.pop %v2354
        %v2611 = vtanh.pop %v2355
        %v2612 = vtanh.pop %v2356
        %v2613 = vtanh.pop %v2357
        %v2614 = vtanh.pop %v2358
        %v2615 = vtanh.pop %v2359
        %v2616 = vtanh.pop %v2360
        %v2617 = vtanh.pop %v2361
        %v2618 = vtanh.pop %v2362
        %v2619 = vtanh.pop %v2363
        %v2620 = vtanh.pop %v2364
        %v2621 = vtanh.pop %v2365
        %v2622 = vtanh.pop %v2366
        %v2623 = vtanh.pop %v2367
        %v2624 = vtanh.pop %v2368
        %v2625 = vtanh.pop %v2369
        %v2626 = vtanh.pop %v2370
        %v2627 = vtanh.pop %v2371
        %v2628 = vtanh.pop %v2372
        %v2629 = vtanh.pop %v2373
        %v2630 = vtanh.pop %v2374
        %v2631 = vtanh.pop %v2375
        %v2632 = vtanh.pop %v2376
        %v2633 = vtanh.pop %v2377
        %v2634 = vtanh.pop %v2378
        %v2635 = vtanh.pop %v2379
        %v2636 = vtanh.pop %v2380
        %v2637 = vtanh.pop %v2381
        %v2638 = vtanh.pop %v2382
        %v2639 = vtanh.pop %v2383
        %v2640 = vtanh.pop %v2384
        %v2641 = vtanh.pop %v2385
        %v2642 = vtanh.pop %v2386
        %v2643 = vtanh.pop %v2387
        %v2644 = vtanh.pop %v2388
        %v2645 = vtanh.pop %v2389
        %v2646 = vtanh.pop %v2390
        %v2647 = vtanh.pop %v2391
        %v2648 = vtanh.pop %v2392
        %v2649 = vtanh.pop %v2393
        %v2650 = vtanh.pop %v2394
        %v2651 = vtanh.pop %v2395
        %v2652 = vtanh.pop %v2396
        %v2653 = vtanh.pop %v2397
        %v2654 = vtanh.pop %v2398
        %v2655 = vtanh.pop %v2399
        %v2656 = vtanh.pop %v2400
        %v2657 = vtanh.pop %v2401
        %v2658 = vtanh.pop %v2402
        %v2659 = vtanh.pop %v2403
        %v2660 = vtanh.pop %v2404
        %v2661 = vtanh.pop %v2405
        %v2662 = vtanh.pop %v2406
        %v2663 = vtanh.pop %v2407
        %v2664 = vtanh.pop %v2408
        %v2665 = vtanh.pop %v2409
        %v2666 = vtanh.pop %v2410
        %v2667 = vtanh.pop %v2411
        %v2668 = vtanh.pop %v2412
        %v2669 = vtanh.pop %v2413
        %v2670 = vtanh.pop %v2414
        %v2671 = vtanh.pop %v2415
        %v2672 = vtanh.pop %v2416
        %v2673 = vtanh.pop %v2417
        %v2674 = vtanh.pop %v2418
        %v2675 = vtanh.pop %v2419
        %v2676 = vtanh.pop %v2420
        %v2677 = vtanh.pop %v2421
        %v2678 = vtanh.pop %v2422
        %v2679 = vtanh.pop %v2423
        %v2680 = vtanh.pop %v2424
        %v2681 = vtanh.pop %v2425
        %v2682 = vtanh.pop %v2426
        %v2683 = vtanh.pop %v2427
        %v2684 = vtanh.pop %v2428
        %v2685 = vtanh.pop %v2429
        %v2686 = vtanh.pop %v2430
        %v2687 = vtanh.pop %v2431
        %v2688 = vtanh.pop %v2432
        %v2689 = vtanh.pop %v2433
        %v2690 = vtanh.pop %v2434
        %v2691 = vtanh.pop %v2435
        %v2692 = vtanh.pop %v2436
        %v2693 = vtanh.pop %v2437
        %v2694 = vtanh.pop %v2438
        %v2695 = vtanh.pop %v2439
        %v2696 = vtanh.pop %v2440
        %v2697 = vtanh.pop %v2441
        %v2698 = vtanh.pop %v2442
        %v2699 = vtanh.pop %v2443
        %v2700 = vtanh.pop %v2444
        %v2701 = vtanh.pop %v2445
        %v2702 = vtanh.pop %v2446
        %v2703 = vtanh.pop %v2447
        %v2704 = vtanh.pop %v2448
        %v2705 = vtanh.pop %v2449
        %v2706 = vtanh.pop %v2450
        %v2707 = vtanh.pop %v2451
        %v2708 = vtanh.pop %v2452
        %v2709 = vtanh.pop %v2453
        %v2710 = vtanh.pop %v2454
        %v2711 = vtanh.pop %v2455
        %v2712 = vtanh.pop %v2456
        %v2713 = vtanh.pop %v2457
        %v2714 = vtanh.pop %v2458
        %v2715 = vtanh.pop %v2459
        %v2716 = vtanh.pop %v2460
        %v2717 = vtanh.pop %v2461
        %v2718 = vtanh.pop %v2462
        %v2719 = vtanh.pop %v2463
        %v2720 = vtanh.pop %v2464
        %v2721 = vtanh.pop %v2465
        %v2722 = vtanh.pop %v2466
        %v2723 = vtanh.pop %v2467
        %v2724 = vtanh.pop %v2468
        %v2725 = vtanh.pop %v2469
        %v2726 = vtanh.pop %v2470
        %v2727 = vtanh.pop %v2471
        %v2728 = vtanh.pop %v2472
        %v2729 = vtanh.pop %v2473
        %v2730 = vtanh.pop %v2474
        %v2731 = vtanh.pop %v2475
        %v2732 = vtanh.pop %v2476
        %v2733 = vtanh.pop %v2477
        %v2734 = vtanh.pop %v2478
        %v2735 = vtanh.pop %v2479
        %v2736 = vtanh.pop %v2480
        %v2737 = vtanh.pop %v2481
        %v2738 = vtanh.pop %v2482
        %v2739 = vtanh.pop %v2483
        %v2740 = vtanh.pop %v2484
        %v2741 = vtanh.pop %v2485
        %v2742 = vtanh.pop %v2486
        %v2743 = vtanh.pop %v2487
        %v2744 = vtanh.pop %v2488
        %v2745 = vtanh.pop %v2489
        %v2746 = vtanh.pop %v2490
        %v2747 = vtanh.pop %v2491
        %v2748 = vtanh.pop %v2492
        %v2749 = vtanh.pop %v2493
        %v2750 = vtanh.pop %v2494
        %v2751 = vtanh.pop %v2495
        %v2752 = vtanh.pop %v2496
        %v2753 = vtanh.pop %v2497
        %v2754 = vtanh.pop %v2498
        %v2755 = vtanh.pop %v2499
        %v2756 = vtanh.pop %v2500
        %v2757 = vtanh.pop %v2501
        %v2758 = vtanh.pop %v2502
        %v2759 = vtanh.pop %v2503
        %v2760 = vtanh.pop %v2504
        %v2761 = vtanh.pop %v2505
        %v2762 = vtanh.pop %v2506
        %v2763 = vtanh.pop %v2507
        %v2764 = vtanh.pop %v2508
        %v2765 = vtanh.pop %v2509
        %v2766 = vtanh.pop %v2510
        %v2767 = vtanh.pop %v2511
        %v2768 = vtanh.pop %v2512
        %v2769 = vtanh.pop %v2513
        %v2770 = vtanh.pop %v2514
        %v2771 = vtanh.pop %v2515
        %v2772 = vtanh.pop %v2516
        %v2773 = vtanh.pop %v2517
        %v2774 = vtanh.pop %v2518
        %v2775 = vtanh.pop %v2519
        %v2776 = vtanh.pop %v2520
        %v2777 = vtanh.pop %v2521
        %v2778 = vtanh.pop %v2522
        %v2779 = vtanh.pop %v2523
        %v2780 = vtanh.pop %v2524
        %v2781 = vtanh.pop %v2525
        %v2782 = vtanh.pop %v2526
        %v2783 = vtanh.pop %v2527
        %v2784 = vtanh.pop %v2528
        %v2785 = vtanh.pop %v2529
        %v2786 = vtanh.pop %v2530
        %v2787 = vtanh.pop %v2531
        %v2788 = vtanh.pop %v2532
        %v2789 = vtanh.pop %v2533
        %v2790 = vtanh.pop %v2534
        %v2791 = vtanh.pop %v2535
        %v2792 = vtanh.pop %v2536
        %v2793 = vtanh.pop %v2537
        %v2794 = vtanh.pop %v2538
        %v2795 = vtanh.pop %v2539
        %v2796 = vtanh.pop %v2540
        %v2797 = vtanh.pop %v2541
        %v2798 = vtanh.pop %v2542
        %v2799 = vtanh.pop %v2543
        %v2800 = vtanh.pop %v2544
        %v2801 = vtanh.pop %v2545
        %v2802 = vtanh.pop %v2546
        %v2803 = vtanh.pop %v2547
        %v2804 = vtanh.pop %v2548
        %v2805 = vtanh.pop %v2549
        %v2806 = vtanh.pop %v2550
        %v2807 = vtanh.pop %v2551
        %v2808 = vtanh.pop %v2552
        %v2809 = vtanh.pop %v2553
        %v2810 = vtanh.pop %v2554
        %v2811 = vtanh.pop %v2555
        %v2812 = vtanh.pop %v2556
        %v2813 = vtanh.pop %v2557
        %v2814 = vtanh.pop %v2558
        %v2815 = vtanh.pop %v2559
        %v2816 = vtanh.pop %v2560
        %v2817 = vtanh.pop %v2561
        %v2818 = vtanh.pop %v2562
        %v2819 = vtanh.pop %v2563
        %v2820 = vtanh.pop %v2564
        %v2821 = vtanh.pop %v2565
        %v2822 = vtanh.pop %v2566
        %v2823 = vtanh.pop %v2567
        %v2824 = vtanh.pop %v2568
        %v2825 = vtanh.pop %v2569
        %v2826 = vtanh.pop %v2570
        %v2827 = vtanh.pop %v2571
        %v2828 = vtanh.pop %v2572
        %v2829 = vtanh.pop %v2573
        %2830 = vst [vmem:[%s257] sm:$0xff] %v2574
        %2831 = vst [vmem:[%s257 + $0x8] sm:$0xff] %v2575
        %2832 = vst [vmem:[%s257 + $0x10] sm:$0xff] %v2576
        %2833 = vst [vmem:[%s257 + $0x18] sm:$0xff] %v2577
        %2834 = vst [vmem:[%s257 + $0x20] sm:$0xff] %v2578
        %2835 = vst [vmem:[%s257 + $0x28] sm:$0xff] %v2579
        %2836 = vst [vmem:[%s257 + $0x30] sm:$0xff] %v2580
        %2837 = vst [vmem:[%s257 + $0x38] sm:$0xff] %v2581
        %2838 = vst [vmem:[%s257 + $0x40] sm:$0xff] %v2582
        %2839 = vst [vmem:[%s257 + $0x48] sm:$0xff] %v2583
        %2840 = vst [vmem:[%s257 + $0x50] sm:$0xff] %v2584
        %2841 = vst [vmem:[%s257 + $0x58] sm:$0xff] %v2585
        %2842 = vst [vmem:[%s257 + $0x60] sm:$0xff] %v2586
        %2843 = vst [vmem:[%s257 + $0x68] sm:$0xff] %v2587
        %2844 = vst [vmem:[%s257 + $0x70] sm:$0xff] %v2588
        %2845 = vst [vmem:[%s257 + $0x78] sm:$0xff] %v2589
        %2846 = vst [vmem:[%s257 + $0x80] sm:$0xff] %v2590
        %2847 = vst [vmem:[%s257 + $0x88] sm:$0xff] %v2591
        %2848 = vst [vmem:[%s257 + $0x90] sm:$0xff] %v2592
        %2849 = vst [vmem:[%s257 + $0x98] sm:$0xff] %v2593
        %2850 = vst [vmem:[%s257 + $0xa0] sm:$0xff] %v2594
        %2851 = vst [vmem:[%s257 + $0xa8] sm:$0xff] %v2595
        %2852 = vst [vmem:[%s257 + $0xb0] sm:$0xff] %v2596
        %2853 = vst [vmem:[%s257 + $0xb8] sm:$0xff] %v2597
        %2854 = vst [vmem:[%s257 + $0xc0] sm:$0xff] %v2598
        %2855 = vst [vmem:[%s257 + $0xc8] sm:$0xff] %v2599
        %2856 = vst [vmem:[%s257 + $0xd0] sm:$0xff] %v2600
        %2857 = vst [vmem:[%s257 + $0xd8] sm:$0xff] %v2601
        %2858 = vst [vmem:[%s257 + $0xe0] sm:$0xff] %v2602
        %2859 = vst [vmem:[%s257 + $0xe8] sm:$0xff] %v2603
        %2860 = vst [vmem:[%s257 + $0xf0] sm:$0xff] %v2604
        %2861 = vst [vmem:[%s257 + $0xf8] sm:$0xff] %v2605
        %2862 = vst [vmem:[%s257 + $0x100] sm:$0xff] %v2606
        %2863 = vst [vmem:[%s257 + $0x108] sm:$0xff] %v2607
        %2864 = vst [vmem:[%s257 + $0x110] sm:$0xff] %v2608
        %2865 = vst [vmem:[%s257 + $0x118] sm:$0xff] %v2609
        %2866 = vst [vmem:[%s257 + $0x120] sm:$0xff] %v2610
        %2867 = vst [vmem:[%s257 + $0x128] sm:$0xff] %v2611
        %2868 = vst [vmem:[%s257 + $0x130] sm:$0xff] %v2612
        %2869 = vst [vmem:[%s257 + $0x138] sm:$0xff] %v2613
        %2870 = vst [vmem:[%s257 + $0x140] sm:$0xff] %v2614
        %2871 = vst [vmem:[%s257 + $0x148] sm:$0xff] %v2615
        %2872 = vst [vmem:[%s257 + $0x150] sm:$0xff] %v2616
        %2873 = vst [vmem:[%s257 + $0x158] sm:$0xff] %v2617
        %2874 = vst [vmem:[%s257 + $0x160] sm:$0xff] %v2618
        %2875 = vst [vmem:[%s257 + $0x168] sm:$0xff] %v2619
        %2876 = vst [vmem:[%s257 + $0x170] sm:$0xff] %v2620
        %2877 = vst [vmem:[%s257 + $0x178] sm:$0xff] %v2621
        %2878 = vst [vmem:[%s257 + $0x180] sm:$0xff] %v2622
        %2879 = vst [vmem:[%s257 + $0x188] sm:$0xff] %v2623
        %2880 = vst [vmem:[%s257 + $0x190] sm:$0xff] %v2624
        %2881 = vst [vmem:[%s257 + $0x198] sm:$0xff] %v2625
        %2882 = vst [vmem:[%s257 + $0x1a0] sm:$0xff] %v2626
        %2883 = vst [vmem:[%s257 + $0x1a8] sm:$0xff] %v2627
        %2884 = vst [vmem:[%s257 + $0x1b0] sm:$0xff] %v2628
        %2885 = vst [vmem:[%s257 + $0x1b8] sm:$0xff] %v2629
        %2886 = vst [vmem:[%s257 + $0x1c0] sm:$0xff] %v2630
        %2887 = vst [vmem:[%s257 + $0x1c8] sm:$0xff] %v2631
        %2888 = vst [vmem:[%s257 + $0x1d0] sm:$0xff] %v2632
        %2889 = vst [vmem:[%s257 + $0x1d8] sm:$0xff] %v2633
        %2890 = vst [vmem:[%s257 + $0x1e0] sm:$0xff] %v2634
        %2891 = vst [vmem:[%s257 + $0x1e8] sm:$0xff] %v2635
        %2892 = vst [vmem:[%s257 + $0x1f0] sm:$0xff] %v2636
        %2893 = vst [vmem:[%s257 + $0x1f8] sm:$0xff] %v2637
        %2894 = vst [vmem:[%s257 + $0x200] sm:$0xff] %v2638
        %2895 = vst [vmem:[%s257 + $0x208] sm:$0xff] %v2639
        %2896 = vst [vmem:[%s257 + $0x210] sm:$0xff] %v2640
        %2897 = vst [vmem:[%s257 + $0x218] sm:$0xff] %v2641
        %2898 = vst [vmem:[%s257 + $0x220] sm:$0xff] %v2642
        %2899 = vst [vmem:[%s257 + $0x228] sm:$0xff] %v2643
        %2900 = vst [vmem:[%s257 + $0x230] sm:$0xff] %v2644
        %2901 = vst [vmem:[%s257 + $0x238] sm:$0xff] %v2645
        %2902 = vst [vmem:[%s257 + $0x240] sm:$0xff] %v2646
        %2903 = vst [vmem:[%s257 + $0x248] sm:$0xff] %v2647
        %2904 = vst [vmem:[%s257 + $0x250] sm:$0xff] %v2648
        %2905 = vst [vmem:[%s257 + $0x258] sm:$0xff] %v2649
        %2906 = vst [vmem:[%s257 + $0x260] sm:$0xff] %v2650
        %2907 = vst [vmem:[%s257 + $0x268] sm:$0xff] %v2651
        %2908 = vst [vmem:[%s257 + $0x270] sm:$0xff] %v2652
        %2909 = vst [vmem:[%s257 + $0x278] sm:$0xff] %v2653
        %2910 = vst [vmem:[%s257 + $0x280] sm:$0xff] %v2654
        %2911 = vst [vmem:[%s257 + $0x288] sm:$0xff] %v2655
        %2912 = vst [vmem:[%s257 + $0x290] sm:$0xff] %v2656
        %2913 = vst [vmem:[%s257 + $0x298] sm:$0xff] %v2657
        %2914 = vst [vmem:[%s257 + $0x2a0] sm:$0xff] %v2658
        %2915 = vst [vmem:[%s257 + $0x2a8] sm:$0xff] %v2659
        %2916 = vst [vmem:[%s257 + $0x2b0] sm:$0xff] %v2660
        %2917 = vst [vmem:[%s257 + $0x2b8] sm:$0xff] %v2661
        %2918 = vst [vmem:[%s257 + $0x2c0] sm:$0xff] %v2662
        %2919 = vst [vmem:[%s257 + $0x2c8] sm:$0xff] %v2663
        %2920 = vst [vmem:[%s257 + $0x2d0] sm:$0xff] %v2664
        %2921 = vst [vmem:[%s257 + $0x2d8] sm:$0xff] %v2665
        %2922 = vst [vmem:[%s257 + $0x2e0] sm:$0xff] %v2666
        %2923 = vst [vmem:[%s257 + $0x2e8] sm:$0xff] %v2667
        %2924 = vst [vmem:[%s257 + $0x2f0] sm:$0xff] %v2668
        %2925 = vst [vmem:[%s257 + $0x2f8] sm:$0xff] %v2669
        %2926 = vst [vmem:[%s257 + $0x300] sm:$0xff] %v2670
        %2927 = vst [vmem:[%s257 + $0x308] sm:$0xff] %v2671
        %2928 = vst [vmem:[%s257 + $0x310] sm:$0xff] %v2672
        %2929 = vst [vmem:[%s257 + $0x318] sm:$0xff] %v2673
        %2930 = vst [vmem:[%s257 + $0x320] sm:$0xff] %v2674
        %2931 = vst [vmem:[%s257 + $0x328] sm:$0xff] %v2675
        %2932 = vst [vmem:[%s257 + $0x330] sm:$0xff] %v2676
        %2933 = vst [vmem:[%s257 + $0x338] sm:$0xff] %v2677
        %2934 = vst [vmem:[%s257 + $0x340] sm:$0xff] %v2678
        %2935 = vst [vmem:[%s257 + $0x348] sm:$0xff] %v2679
        %2936 = vst [vmem:[%s257 + $0x350] sm:$0xff] %v2680
        %2937 = vst [vmem:[%s257 + $0x358] sm:$0xff] %v2681
        %2938 = vst [vmem:[%s257 + $0x360] sm:$0xff] %v2682
        %2939 = vst [vmem:[%s257 + $0x368] sm:$0xff] %v2683
        %2940 = vst [vmem:[%s257 + $0x370] sm:$0xff] %v2684
        %2941 = vst [vmem:[%s257 + $0x378] sm:$0xff] %v2685
        %2942 = vst [vmem:[%s257 + $0x380] sm:$0xff] %v2686
        %2943 = vst [vmem:[%s257 + $0x388] sm:$0xff] %v2687
        %2944 = vst [vmem:[%s257 + $0x390] sm:$0xff] %v2688
        %2945 = vst [vmem:[%s257 + $0x398] sm:$0xff] %v2689
        %2946 = vst [vmem:[%s257 + $0x3a0] sm:$0xff] %v2690
        %2947 = vst [vmem:[%s257 + $0x3a8] sm:$0xff] %v2691
        %2948 = vst [vmem:[%s257 + $0x3b0] sm:$0xff] %v2692
        %2949 = vst [vmem:[%s257 + $0x3b8] sm:$0xff] %v2693
        %2950 = vst [vmem:[%s257 + $0x3c0] sm:$0xff] %v2694
        %2951 = vst [vmem:[%s257 + $0x3c8] sm:$0xff] %v2695
        %2952 = vst [vmem:[%s257 + $0x3d0] sm:$0xff] %v2696
        %2953 = vst [vmem:[%s257 + $0x3d8] sm:$0xff] %v2697
        %2954 = vst [vmem:[%s257 + $0x3e0] sm:$0xff] %v2698
        %2955 = vst [vmem:[%s257 + $0x3e8] sm:$0xff] %v2699
        %2956 = vst [vmem:[%s257 + $0x3f0] sm:$0xff] %v2700
        %2957 = vst [vmem:[%s257 + $0x3f8] sm:$0xff] %v2701
        %2958 = vst [vmem:[%s257 + $0x400] sm:$0xff] %v2702
        %2959 = vst [vmem:[%s257 + $0x408] sm:$0xff] %v2703
        %2960 = vst [vmem:[%s257 + $0x410] sm:$0xff] %v2704
        %2961 = vst [vmem:[%s257 + $0x418] sm:$0xff] %v2705
        %2962 = vst [vmem:[%s257 + $0x420] sm:$0xff] %v2706
        %2963 = vst [vmem:[%s257 + $0x428] sm:$0xff] %v2707
        %2964 = vst [vmem:[%s257 + $0x430] sm:$0xff] %v2708
        %2965 = vst [vmem:[%s257 + $0x438] sm:$0xff] %v2709
        %2966 = vst [vmem:[%s257 + $0x440] sm:$0xff] %v2710
        %2967 = vst [vmem:[%s257 + $0x448] sm:$0xff] %v2711
        %2968 = vst [vmem:[%s257 + $0x450] sm:$0xff] %v2712
        %2969 = vst [vmem:[%s257 + $0x458] sm:$0xff] %v2713
        %2970 = vst [vmem:[%s257 + $0x460] sm:$0xff] %v2714
        %2971 = vst [vmem:[%s257 + $0x468] sm:$0xff] %v2715
        %2972 = vst [vmem:[%s257 + $0x470] sm:$0xff] %v2716
        %2973 = vst [vmem:[%s257 + $0x478] sm:$0xff] %v2717
        %2974 = vst [vmem:[%s257 + $0x480] sm:$0xff] %v2718
        %2975 = vst [vmem:[%s257 + $0x488] sm:$0xff] %v2719
        %2976 = vst [vmem:[%s257 + $0x490] sm:$0xff] %v2720
        %2977 = vst [vmem:[%s257 + $0x498] sm:$0xff] %v2721
        %2978 = vst [vmem:[%s257 + $0x4a0] sm:$0xff] %v2722
        %2979 = vst [vmem:[%s257 + $0x4a8] sm:$0xff] %v2723
        %2980 = vst [vmem:[%s257 + $0x4b0] sm:$0xff] %v2724
        %2981 = vst [vmem:[%s257 + $0x4b8] sm:$0xff] %v2725
        %2982 = vst [vmem:[%s257 + $0x4c0] sm:$0xff] %v2726
        %2983 = vst [vmem:[%s257 + $0x4c8] sm:$0xff] %v2727
        %2984 = vst [vmem:[%s257 + $0x4d0] sm:$0xff] %v2728
        %2985 = vst [vmem:[%s257 + $0x4d8] sm:$0xff] %v2729
        %2986 = vst [vmem:[%s257 + $0x4e0] sm:$0xff] %v2730
        %2987 = vst [vmem:[%s257 + $0x4e8] sm:$0xff] %v2731
        %2988 = vst [vmem:[%s257 + $0x4f0] sm:$0xff] %v2732
        %2989 = vst [vmem:[%s257 + $0x4f8] sm:$0xff] %v2733
        %2990 = vst [vmem:[%s257 + $0x500] sm:$0xff] %v2734
        %2991 = vst [vmem:[%s257 + $0x508] sm:$0xff] %v2735
        %2992 = vst [vmem:[%s257 + $0x510] sm:$0xff] %v2736
        %2993 = vst [vmem:[%s257 + $0x518] sm:$0xff] %v2737
        %2994 = vst [vmem:[%s257 + $0x520] sm:$0xff] %v2738
        %2995 = vst [vmem:[%s257 + $0x528] sm:$0xff] %v2739
        %2996 = vst [vmem:[%s257 + $0x530] sm:$0xff] %v2740
        %2997 = vst [vmem:[%s257 + $0x538] sm:$0xff] %v2741
        %2998 = vst [vmem:[%s257 + $0x540] sm:$0xff] %v2742
        %2999 = vst [vmem:[%s257 + $0x548] sm:$0xff] %v2743
        %3000 = vst [vmem:[%s257 + $0x550] sm:$0xff] %v2744
        %3001 = vst [vmem:[%s257 + $0x558] sm:$0xff] %v2745
        %3002 = vst [vmem:[%s257 + $0x560] sm:$0xff] %v2746
        %3003 = vst [vmem:[%s257 + $0x568] sm:$0xff] %v2747
        %3004 = vst [vmem:[%s257 + $0x570] sm:$0xff] %v2748
        %3005 = vst [vmem:[%s257 + $0x578] sm:$0xff] %v2749
        %3006 = vst [vmem:[%s257 + $0x580] sm:$0xff] %v2750
        %3007 = vst [vmem:[%s257 + $0x588] sm:$0xff] %v2751
        %3008 = vst [vmem:[%s257 + $0x590] sm:$0xff] %v2752
        %3009 = vst [vmem:[%s257 + $0x598] sm:$0xff] %v2753
        %3010 = vst [vmem:[%s257 + $0x5a0] sm:$0xff] %v2754
        %3011 = vst [vmem:[%s257 + $0x5a8] sm:$0xff] %v2755
        %3012 = vst [vmem:[%s257 + $0x5b0] sm:$0xff] %v2756
        %3013 = vst [vmem:[%s257 + $0x5b8] sm:$0xff] %v2757
        %3014 = vst [vmem:[%s257 + $0x5c0] sm:$0xff] %v2758
        %3015 = vst [vmem:[%s257 + $0x5c8] sm:$0xff] %v2759
        %3016 = vst [vmem:[%s257 + $0x5d0] sm:$0xff] %v2760
        %3017 = vst [vmem:[%s257 + $0x5d8] sm:$0xff] %v2761
        %3018 = vst [vmem:[%s257 + $0x5e0] sm:$0xff] %v2762
        %3019 = vst [vmem:[%s257 + $0x5e8] sm:$0xff] %v2763
        %3020 = vst [vmem:[%s257 + $0x5f0] sm:$0xff] %v2764
        %3021 = vst [vmem:[%s257 + $0x5f8] sm:$0xff] %v2765
        %3022 = vst [vmem:[%s257 + $0x600] sm:$0xff] %v2766
        %3023 = vst [vmem:[%s257 + $0x608] sm:$0xff] %v2767
        %3024 = vst [vmem:[%s257 + $0x610] sm:$0xff] %v2768
        %3025 = vst [vmem:[%s257 + $0x618] sm:$0xff] %v2769
        %3026 = vst [vmem:[%s257 + $0x620] sm:$0xff] %v2770
        %3027 = vst [vmem:[%s257 + $0x628] sm:$0xff] %v2771
        %3028 = vst [vmem:[%s257 + $0x630] sm:$0xff] %v2772
        %3029 = vst [vmem:[%s257 + $0x638] sm:$0xff] %v2773
        %3030 = vst [vmem:[%s257 + $0x640] sm:$0xff] %v2774
        %3031 = vst [vmem:[%s257 + $0x648] sm:$0xff] %v2775
        %3032 = vst [vmem:[%s257 + $0x650] sm:$0xff] %v2776
        %3033 = vst [vmem:[%s257 + $0x658] sm:$0xff] %v2777
        %3034 = vst [vmem:[%s257 + $0x660] sm:$0xff] %v2778
        %3035 = vst [vmem:[%s257 + $0x668] sm:$0xff] %v2779
        %3036 = vst [vmem:[%s257 + $0x670] sm:$0xff] %v2780
        %3037 = vst [vmem:[%s257 + $0x678] sm:$0xff] %v2781
        %3038 = vst [vmem:[%s257 + $0x680] sm:$0xff] %v2782
        %3039 = vst [vmem:[%s257 + $0x688] sm:$0xff] %v2783
        %3040 = vst [vmem:[%s257 + $0x690] sm:$0xff] %v2784
        %3041 = vst [vmem:[%s257 + $0x698] sm:$0xff] %v2785
        %3042 = vst [vmem:[%s257 + $0x6a0] sm:$0xff] %v2786
        %3043 = vst [vmem:[%s257 + $0x6a8] sm:$0xff] %v2787
        %3044 = vst [vmem:[%s257 + $0x6b0] sm:$0xff] %v2788
        %3045 = vst [vmem:[%s257 + $0x6b8] sm:$0xff] %v2789
        %3046 = vst [vmem:[%s257 + $0x6c0] sm:$0xff] %v2790
        %3047 = vst [vmem:[%s257 + $0x6c8] sm:$0xff] %v2791
        %3048 = vst [vmem:[%s257 + $0x6d0] sm:$0xff] %v2792
        %3049 = vst [vmem:[%s257 + $0x6d8] sm:$0xff] %v2793
        %3050 = vst [vmem:[%s257 + $0x6e0] sm:$0xff] %v2794
        %3051 = vst [vmem:[%s257 + $0x6e8] sm:$0xff] %v2795
        %3052 = vst [vmem:[%s257 + $0x6f0] sm:$0xff] %v2796
        %3053 = vst [vmem:[%s257 + $0x6f8] sm:$0xff] %v2797
        %3054 = vst [vmem:[%s257 + $0x700] sm:$0xff] %v2798
        %3055 = vst [vmem:[%s257 + $0x708] sm:$0xff] %v2799
        %3056 = vst [vmem:[%s257 + $0x710] sm:$0xff] %v2800
        %3057 = vst [vmem:[%s257 + $0x718] sm:$0xff] %v2801
        %3058 = vst [vmem:[%s257 + $0x720] sm:$0xff] %v2802
        %3059 = vst [vmem:[%s257 + $0x728] sm:$0xff] %v2803
        %3060 = vst [vmem:[%s257 + $0x730] sm:$0xff] %v2804
        %3061 = vst [vmem:[%s257 + $0x738] sm:$0xff] %v2805
        %3062 = vst [vmem:[%s257 + $0x740] sm:$0xff] %v2806
        %3063 = vst [vmem:[%s257 + $0x748] sm:$0xff] %v2807
        %3064 = vst [vmem:[%s257 + $0x750] sm:$0xff] %v2808
        %3065 = vst [vmem:[%s257 + $0x758] sm:$0xff] %v2809
        %3066 = vst [vmem:[%s257 + $0x760] sm:$0xff] %v2810
        %3067 = vst [vmem:[%s257 + $0x768] sm:$0xff] %v2811
        %3068 = vst [vmem:[%s257 + $0x770] sm:$0xff] %v2812
        %3069 = vst [vmem:[%s257 + $0x778] sm:$0xff] %v2813
        %3070 = vst [vmem:[%s257 + $0x780] sm:$0xff] %v2814
        %3071 = vst [vmem:[%s257 + $0x788] sm:$0xff] %v2815
        %3072 = vst [vmem:[%s257 + $0x790] sm:$0xff] %v2816
        %3073 = vst [vmem:[%s257 + $0x798] sm:$0xff] %v2817
        %3074 = vst [vmem:[%s257 + $0x7a0] sm:$0xff] %v2818
        %3075 = vst [vmem:[%s257 + $0x7a8] sm:$0xff] %v2819
        %3076 = vst [vmem:[%s257 + $0x7b0] sm:$0xff] %v2820
        %3077 = vst [vmem:[%s257 + $0x7b8] sm:$0xff] %v2821
        %3078 = vst [vmem:[%s257 + $0x7c0] sm:$0xff] %v2822
        %3079 = vst [vmem:[%s257 + $0x7c8] sm:$0xff] %v2823
        %3080 = vst [vmem:[%s257 + $0x7d0] sm:$0xff] %v2824
        %3081 = vst [vmem:[%s257 + $0x7d8] sm:$0xff] %v2825
        %3082 = vst [vmem:[%s257 + $0x7e0] sm:$0xff] %v2826
        %3083 = vst [vmem:[%s257 + $0x7e8] sm:$0xff] %v2827
        %3084 = vst [vmem:[%s257 + $0x7f0] sm:$0xff] %v2828
        %3085 = vst [vmem:[%s257 + $0x7f8] sm:$0xff] %v2829
        %v3086 = vld [vmem:[%s226] sm:$0xff]
        %v3087 = vld [vmem:[%s226 + $0x8] sm:$0xff]
        %v3088 = vld [vmem:[%s226 + $0x10] sm:$0xff]
        %v3089 = vld [vmem:[%s226 + $0x18] sm:$0xff]
        %v3090 = vld [vmem:[%s226 + $0x20] sm:$0xff]
        %v3091 = vld [vmem:[%s226 + $0x28] sm:$0xff]
        %v3092 = vld [vmem:[%s226 + $0x30] sm:$0xff]
        %v3093 = vld [vmem:[%s226 + $0x38] sm:$0xff]
        %v3094 = vld [vmem:[%s226 + $0x40] sm:$0xff]
        %v3095 = vld [vmem:[%s226 + $0x48] sm:$0xff]
        %v3096 = vld [vmem:[%s226 + $0x50] sm:$0xff]
        %v3097 = vld [vmem:[%s226 + $0x58] sm:$0xff]
        %v3098 = vld [vmem:[%s226 + $0x60] sm:$0xff]
        %v3099 = vld [vmem:[%s226 + $0x68] sm:$0xff]
        %v3100 = vld [vmem:[%s226 + $0x70] sm:$0xff]
        %v3101 = vld [vmem:[%s226 + $0x78] sm:$0xff]
        %v3102 = vld [vmem:[%s226 + $0x80] sm:$0xff]
        %v3103 = vld [vmem:[%s226 + $0x88] sm:$0xff]
        %v3104 = vld [vmem:[%s226 + $0x90] sm:$0xff]
        %v3105 = vld [vmem:[%s226 + $0x98] sm:$0xff]
        %v3106 = vld [vmem:[%s226 + $0xa0] sm:$0xff]
        %v3107 = vld [vmem:[%s226 + $0xa8] sm:$0xff]
        %v3108 = vld [vmem:[%s226 + $0xb0] sm:$0xff]
        %v3109 = vld [vmem:[%s226 + $0xb8] sm:$0xff]
        %v3110 = vld [vmem:[%s226 + $0xc0] sm:$0xff]
        %v3111 = vld [vmem:[%s226 + $0xc8] sm:$0xff]
        %v3112 = vld [vmem:[%s226 + $0xd0] sm:$0xff]
        %v3113 = vld [vmem:[%s226 + $0xd8] sm:$0xff]
        %v3114 = vld [vmem:[%s226 + $0xe0] sm:$0xff]
        %v3115 = vld [vmem:[%s226 + $0xe8] sm:$0xff]
        %v3116 = vld [vmem:[%s226 + $0xf0] sm:$0xff]
        %v3117 = vld [vmem:[%s226 + $0xf8] sm:$0xff]
        %v3118 = vld [vmem:[%s226 + $0x100] sm:$0xff]
        %v3119 = vld [vmem:[%s226 + $0x108] sm:$0xff]
        %v3120 = vld [vmem:[%s226 + $0x110] sm:$0xff]
        %v3121 = vld [vmem:[%s226 + $0x118] sm:$0xff]
        %v3122 = vld [vmem:[%s226 + $0x120] sm:$0xff]
        %v3123 = vld [vmem:[%s226 + $0x128] sm:$0xff]
        %v3124 = vld [vmem:[%s226 + $0x130] sm:$0xff]
        %v3125 = vld [vmem:[%s226 + $0x138] sm:$0xff]
        %v3126 = vld [vmem:[%s226 + $0x140] sm:$0xff]
        %v3127 = vld [vmem:[%s226 + $0x148] sm:$0xff]
        %v3128 = vld [vmem:[%s226 + $0x150] sm:$0xff]
        %v3129 = vld [vmem:[%s226 + $0x158] sm:$0xff]
        %v3130 = vld [vmem:[%s226 + $0x160] sm:$0xff]
        %v3131 = vld [vmem:[%s226 + $0x168] sm:$0xff]
        %v3132 = vld [vmem:[%s226 + $0x170] sm:$0xff]
        %v3133 = vld [vmem:[%s226 + $0x178] sm:$0xff]
        %v3134 = vld [vmem:[%s226 + $0x180] sm:$0xff]
        %v3135 = vld [vmem:[%s226 + $0x188] sm:$0xff]
        %v3136 = vld [vmem:[%s226 + $0x190] sm:$0xff]
        %v3137 = vld [vmem:[%s226 + $0x198] sm:$0xff]
        %v3138 = vld [vmem:[%s226 + $0x1a0] sm:$0xff]
        %v3139 = vld [vmem:[%s226 + $0x1a8] sm:$0xff]
        %v3140 = vld [vmem:[%s226 + $0x1b0] sm:$0xff]
        %v3141 = vld [vmem:[%s226 + $0x1b8] sm:$0xff]
        %v3142 = vld [vmem:[%s226 + $0x1c0] sm:$0xff]
        %v3143 = vld [vmem:[%s226 + $0x1c8] sm:$0xff]
        %v3144 = vld [vmem:[%s226 + $0x1d0] sm:$0xff]
        %v3145 = vld [vmem:[%s226 + $0x1d8] sm:$0xff]
        %v3146 = vld [vmem:[%s226 + $0x1e0] sm:$0xff]
        %v3147 = vld [vmem:[%s226 + $0x1e8] sm:$0xff]
        %v3148 = vld [vmem:[%s226 + $0x1f0] sm:$0xff]
        %v3149 = vld [vmem:[%s226 + $0x1f8] sm:$0xff]
        %v3150 = vld [vmem:[%s226 + $0x200] sm:$0xff]
        %v3151 = vld [vmem:[%s226 + $0x208] sm:$0xff]
        %v3152 = vld [vmem:[%s226 + $0x210] sm:$0xff]
        %v3153 = vld [vmem:[%s226 + $0x218] sm:$0xff]
        %v3154 = vld [vmem:[%s226 + $0x220] sm:$0xff]
        %v3155 = vld [vmem:[%s226 + $0x228] sm:$0xff]
        %v3156 = vld [vmem:[%s226 + $0x230] sm:$0xff]
        %v3157 = vld [vmem:[%s226 + $0x238] sm:$0xff]
        %v3158 = vld [vmem:[%s226 + $0x240] sm:$0xff]
        %v3159 = vld [vmem:[%s226 + $0x248] sm:$0xff]
        %v3160 = vld [vmem:[%s226 + $0x250] sm:$0xff]
        %v3161 = vld [vmem:[%s226 + $0x258] sm:$0xff]
        %v3162 = vld [vmem:[%s226 + $0x260] sm:$0xff]
        %v3163 = vld [vmem:[%s226 + $0x268] sm:$0xff]
        %v3164 = vld [vmem:[%s226 + $0x270] sm:$0xff]
        %v3165 = vld [vmem:[%s226 + $0x278] sm:$0xff]
        %v3166 = vld [vmem:[%s226 + $0x280] sm:$0xff]
        %v3167 = vld [vmem:[%s226 + $0x288] sm:$0xff]
        %v3168 = vld [vmem:[%s226 + $0x290] sm:$0xff]
        %v3169 = vld [vmem:[%s226 + $0x298] sm:$0xff]
        %v3170 = vld [vmem:[%s226 + $0x2a0] sm:$0xff]
        %v3171 = vld [vmem:[%s226 + $0x2a8] sm:$0xff]
        %v3172 = vld [vmem:[%s226 + $0x2b0] sm:$0xff]
        %v3173 = vld [vmem:[%s226 + $0x2b8] sm:$0xff]
        %v3174 = vld [vmem:[%s226 + $0x2c0] sm:$0xff]
        %v3175 = vld [vmem:[%s226 + $0x2c8] sm:$0xff]
        %v3176 = vld [vmem:[%s226 + $0x2d0] sm:$0xff]
        %v3177 = vld [vmem:[%s226 + $0x2d8] sm:$0xff]
        %v3178 = vld [vmem:[%s226 + $0x2e0] sm:$0xff]
        %v3179 = vld [vmem:[%s226 + $0x2e8] sm:$0xff]
        %v3180 = vld [vmem:[%s226 + $0x2f0] sm:$0xff]
        %v3181 = vld [vmem:[%s226 + $0x2f8] sm:$0xff]
        %v3182 = vld [vmem:[%s226 + $0x300] sm:$0xff]
        %v3183 = vld [vmem:[%s226 + $0x308] sm:$0xff]
        %v3184 = vld [vmem:[%s226 + $0x310] sm:$0xff]
        %v3185 = vld [vmem:[%s226 + $0x318] sm:$0xff]
        %v3186 = vld [vmem:[%s226 + $0x320] sm:$0xff]
        %v3187 = vld [vmem:[%s226 + $0x328] sm:$0xff]
        %v3188 = vld [vmem:[%s226 + $0x330] sm:$0xff]
        %v3189 = vld [vmem:[%s226 + $0x338] sm:$0xff]
        %v3190 = vld [vmem:[%s226 + $0x340] sm:$0xff]
        %v3191 = vld [vmem:[%s226 + $0x348] sm:$0xff]
        %v3192 = vld [vmem:[%s226 + $0x350] sm:$0xff]
        %v3193 = vld [vmem:[%s226 + $0x358] sm:$0xff]
        %v3194 = vld [vmem:[%s226 + $0x360] sm:$0xff]
        %v3195 = vld [vmem:[%s226 + $0x368] sm:$0xff]
        %v3196 = vld [vmem:[%s226 + $0x370] sm:$0xff]
        %v3197 = vld [vmem:[%s226 + $0x378] sm:$0xff]
        %v3198 = vld [vmem:[%s226 + $0x380] sm:$0xff]
        %v3199 = vld [vmem:[%s226 + $0x388] sm:$0xff]
        %v3200 = vld [vmem:[%s226 + $0x390] sm:$0xff]
        %v3201 = vld [vmem:[%s226 + $0x398] sm:$0xff]
        %v3202 = vld [vmem:[%s226 + $0x3a0] sm:$0xff]
        %v3203 = vld [vmem:[%s226 + $0x3a8] sm:$0xff]
        %v3204 = vld [vmem:[%s226 + $0x3b0] sm:$0xff]
        %v3205 = vld [vmem:[%s226 + $0x3b8] sm:$0xff]
        %v3206 = vld [vmem:[%s226 + $0x3c0] sm:$0xff]
        %v3207 = vld [vmem:[%s226 + $0x3c8] sm:$0xff]
        %v3208 = vld [vmem:[%s226 + $0x3d0] sm:$0xff]
        %v3209 = vld [vmem:[%s226 + $0x3d8] sm:$0xff]
        %v3210 = vld [vmem:[%s226 + $0x3e0] sm:$0xff]
        %v3211 = vld [vmem:[%s226 + $0x3e8] sm:$0xff]
        %v3212 = vld [vmem:[%s226 + $0x3f0] sm:$0xff]
        %v3213 = vld [vmem:[%s226 + $0x3f8] sm:$0xff]
        %v3214 = vld [vmem:[%s226 + $0x400] sm:$0xff]
        %v3215 = vld [vmem:[%s226 + $0x408] sm:$0xff]
        %v3216 = vld [vmem:[%s226 + $0x410] sm:$0xff]
        %v3217 = vld [vmem:[%s226 + $0x418] sm:$0xff]
        %v3218 = vld [vmem:[%s226 + $0x420] sm:$0xff]
        %v3219 = vld [vmem:[%s226 + $0x428] sm:$0xff]
        %v3220 = vld [vmem:[%s226 + $0x430] sm:$0xff]
        %v3221 = vld [vmem:[%s226 + $0x438] sm:$0xff]
        %v3222 = vld [vmem:[%s226 + $0x440] sm:$0xff]
        %v3223 = vld [vmem:[%s226 + $0x448] sm:$0xff]
        %v3224 = vld [vmem:[%s226 + $0x450] sm:$0xff]
        %v3225 = vld [vmem:[%s226 + $0x458] sm:$0xff]
        %v3226 = vld [vmem:[%s226 + $0x460] sm:$0xff]
        %v3227 = vld [vmem:[%s226 + $0x468] sm:$0xff]
        %v3228 = vld [vmem:[%s226 + $0x470] sm:$0xff]
        %v3229 = vld [vmem:[%s226 + $0x478] sm:$0xff]
        %v3230 = vld [vmem:[%s226 + $0x480] sm:$0xff]
        %v3231 = vld [vmem:[%s226 + $0x488] sm:$0xff]
        %v3232 = vld [vmem:[%s226 + $0x490] sm:$0xff]
        %v3233 = vld [vmem:[%s226 + $0x498] sm:$0xff]
        %v3234 = vld [vmem:[%s226 + $0x4a0] sm:$0xff]
        %v3235 = vld [vmem:[%s226 + $0x4a8] sm:$0xff]
        %v3236 = vld [vmem:[%s226 + $0x4b0] sm:$0xff]
        %v3237 = vld [vmem:[%s226 + $0x4b8] sm:$0xff]
        %v3238 = vld [vmem:[%s226 + $0x4c0] sm:$0xff]
        %v3239 = vld [vmem:[%s226 + $0x4c8] sm:$0xff]
        %v3240 = vld [vmem:[%s226 + $0x4d0] sm:$0xff]
        %v3241 = vld [vmem:[%s226 + $0x4d8] sm:$0xff]
        %v3242 = vld [vmem:[%s226 + $0x4e0] sm:$0xff]
        %v3243 = vld [vmem:[%s226 + $0x4e8] sm:$0xff]
        %v3244 = vld [vmem:[%s226 + $0x4f0] sm:$0xff]
        %v3245 = vld [vmem:[%s226 + $0x4f8] sm:$0xff]
        %v3246 = vld [vmem:[%s226 + $0x500] sm:$0xff]
        %v3247 = vld [vmem:[%s226 + $0x508] sm:$0xff]
        %v3248 = vld [vmem:[%s226 + $0x510] sm:$0xff]
        %v3249 = vld [vmem:[%s226 + $0x518] sm:$0xff]
        %v3250 = vld [vmem:[%s226 + $0x520] sm:$0xff]
        %v3251 = vld [vmem:[%s226 + $0x528] sm:$0xff]
        %v3252 = vld [vmem:[%s226 + $0x530] sm:$0xff]
        %v3253 = vld [vmem:[%s226 + $0x538] sm:$0xff]
        %v3254 = vld [vmem:[%s226 + $0x540] sm:$0xff]
        %v3255 = vld [vmem:[%s226 + $0x548] sm:$0xff]
        %v3256 = vld [vmem:[%s226 + $0x550] sm:$0xff]
        %v3257 = vld [vmem:[%s226 + $0x558] sm:$0xff]
        %v3258 = vld [vmem:[%s226 + $0x560] sm:$0xff]
        %v3259 = vld [vmem:[%s226 + $0x568] sm:$0xff]
        %v3260 = vld [vmem:[%s226 + $0x570] sm:$0xff]
        %v3261 = vld [vmem:[%s226 + $0x578] sm:$0xff]
        %v3262 = vld [vmem:[%s226 + $0x580] sm:$0xff]
        %v3263 = vld [vmem:[%s226 + $0x588] sm:$0xff]
        %v3264 = vld [vmem:[%s226 + $0x590] sm:$0xff]
        %v3265 = vld [vmem:[%s226 + $0x598] sm:$0xff]
        %v3266 = vld [vmem:[%s226 + $0x5a0] sm:$0xff]
        %v3267 = vld [vmem:[%s226 + $0x5a8] sm:$0xff]
        %v3268 = vld [vmem:[%s226 + $0x5b0] sm:$0xff]
        %v3269 = vld [vmem:[%s226 + $0x5b8] sm:$0xff]
        %v3270 = vld [vmem:[%s226 + $0x5c0] sm:$0xff]
        %v3271 = vld [vmem:[%s226 + $0x5c8] sm:$0xff]
        %v3272 = vld [vmem:[%s226 + $0x5d0] sm:$0xff]
        %v3273 = vld [vmem:[%s226 + $0x5d8] sm:$0xff]
        %v3274 = vld [vmem:[%s226 + $0x5e0] sm:$0xff]
        %v3275 = vld [vmem:[%s226 + $0x5e8] sm:$0xff]
        %v3276 = vld [vmem:[%s226 + $0x5f0] sm:$0xff]
        %v3277 = vld [vmem:[%s226 + $0x5f8] sm:$0xff]
        %v3278 = vld [vmem:[%s226 + $0x600] sm:$0xff]
        %v3279 = vld [vmem:[%s226 + $0x608] sm:$0xff]
        %v3280 = vld [vmem:[%s226 + $0x610] sm:$0xff]
        %v3281 = vld [vmem:[%s226 + $0x618] sm:$0xff]
        %v3282 = vld [vmem:[%s226 + $0x620] sm:$0xff]
        %v3283 = vld [vmem:[%s226 + $0x628] sm:$0xff]
        %v3284 = vld [vmem:[%s226 + $0x630] sm:$0xff]
        %v3285 = vld [vmem:[%s226 + $0x638] sm:$0xff]
        %v3286 = vld [vmem:[%s226 + $0x640] sm:$0xff]
        %v3287 = vld [vmem:[%s226 + $0x648] sm:$0xff]
        %v3288 = vld [vmem:[%s226 + $0x650] sm:$0xff]
        %v3289 = vld [vmem:[%s226 + $0x658] sm:$0xff]
        %v3290 = vld [vmem:[%s226 + $0x660] sm:$0xff]
        %v3291 = vld [vmem:[%s226 + $0x668] sm:$0xff]
        %v3292 = vld [vmem:[%s226 + $0x670] sm:$0xff]
        %v3293 = vld [vmem:[%s226 + $0x678] sm:$0xff]
        %v3294 = vld [vmem:[%s226 + $0x680] sm:$0xff]
        %v3295 = vld [vmem:[%s226 + $0x688] sm:$0xff]
        %v3296 = vld [vmem:[%s226 + $0x690] sm:$0xff]
        %v3297 = vld [vmem:[%s226 + $0x698] sm:$0xff]
        %v3298 = vld [vmem:[%s226 + $0x6a0] sm:$0xff]
        %v3299 = vld [vmem:[%s226 + $0x6a8] sm:$0xff]
        %v3300 = vld [vmem:[%s226 + $0x6b0] sm:$0xff]
        %v3301 = vld [vmem:[%s226 + $0x6b8] sm:$0xff]
        %v3302 = vld [vmem:[%s226 + $0x6c0] sm:$0xff]
        %v3303 = vld [vmem:[%s226 + $0x6c8] sm:$0xff]
        %v3304 = vld [vmem:[%s226 + $0x6d0] sm:$0xff]
        %v3305 = vld [vmem:[%s226 + $0x6d8] sm:$0xff]
        %v3306 = vld [vmem:[%s226 + $0x6e0] sm:$0xff]
        %v3307 = vld [vmem:[%s226 + $0x6e8] sm:$0xff]
        %v3308 = vld [vmem:[%s226 + $0x6f0] sm:$0xff]
        %v3309 = vld [vmem:[%s226 + $0x6f8] sm:$0xff]
        %v3310 = vld [vmem:[%s226 + $0x700] sm:$0xff]
        %v3311 = vld [vmem:[%s226 + $0x708] sm:$0xff]
        %v3312 = vld [vmem:[%s226 + $0x710] sm:$0xff]
        %v3313 = vld [vmem:[%s226 + $0x718] sm:$0xff]
        %v3314 = vld [vmem:[%s226 + $0x720] sm:$0xff]
        %v3315 = vld [vmem:[%s226 + $0x728] sm:$0xff]
        %v3316 = vld [vmem:[%s226 + $0x730] sm:$0xff]
        %v3317 = vld [vmem:[%s226 + $0x738] sm:$0xff]
        %v3318 = vld [vmem:[%s226 + $0x740] sm:$0xff]
        %v3319 = vld [vmem:[%s226 + $0x748] sm:$0xff]
        %v3320 = vld [vmem:[%s226 + $0x750] sm:$0xff]
        %v3321 = vld [vmem:[%s226 + $0x758] sm:$0xff]
        %v3322 = vld [vmem:[%s226 + $0x760] sm:$0xff]
        %v3323 = vld [vmem:[%s226 + $0x768] sm:$0xff]
        %v3324 = vld [vmem:[%s226 + $0x770] sm:$0xff]
        %v3325 = vld [vmem:[%s226 + $0x778] sm:$0xff]
        %v3326 = vld [vmem:[%s226 + $0x780] sm:$0xff]
        %v3327 = vld [vmem:[%s226 + $0x788] sm:$0xff]
        %v3328 = vld [vmem:[%s226 + $0x790] sm:$0xff]
        %v3329 = vld [vmem:[%s226 + $0x798] sm:$0xff]
        %v3330 = vld [vmem:[%s226 + $0x7a0] sm:$0xff]
        %v3331 = vld [vmem:[%s226 + $0x7a8] sm:$0xff]
        %v3332 = vld [vmem:[%s226 + $0x7b0] sm:$0xff]
        %v3333 = vld [vmem:[%s226 + $0x7b8] sm:$0xff]
        %v3334 = vld [vmem:[%s226 + $0x7c0] sm:$0xff]
        %v3335 = vld [vmem:[%s226 + $0x7c8] sm:$0xff]
        %v3336 = vld [vmem:[%s226 + $0x7d0] sm:$0xff]
        %v3337 = vld [vmem:[%s226 + $0x7d8] sm:$0xff]
        %v3338 = vld [vmem:[%s226 + $0x7e0] sm:$0xff]
        %v3339 = vld [vmem:[%s226 + $0x7e8] sm:$0xff]
        %v3340 = vld [vmem:[%s226 + $0x7f0] sm:$0xff]
        %v3341 = vld [vmem:[%s226 + $0x7f8] sm:$0xff]
        %s3342 = sld [smem:[#allocation7 + $0x1]]
        %v3343 = vstv %s3342
        %v3344 = vmul.f32 %v3086, %v3343
        %v3345 = vmul.f32 %v3087, %v3343
        %v3346 = vmul.f32 %v3088, %v3343
        %v3347 = vmul.f32 %v3089, %v3343
        %v3348 = vmul.f32 %v3090, %v3343
        %v3349 = vmul.f32 %v3091, %v3343
        %v3350 = vmul.f32 %v3092, %v3343
        %v3351 = vmul.f32 %v3093, %v3343
        %v3352 = vmul.f32 %v3094, %v3343
        %v3353 = vmul.f32 %v3095, %v3343
        %v3354 = vmul.f32 %v3096, %v3343
        %v3355 = vmul.f32 %v3097, %v3343
        %v3356 = vmul.f32 %v3098, %v3343
        %v3357 = vmul.f32 %v3099, %v3343
        %v3358 = vmul.f32 %v3100, %v3343
        %v3359 = vmul.f32 %v3101, %v3343
        %v3360 = vmul.f32 %v3102, %v3343
        %v3361 = vmul.f32 %v3103, %v3343
        %v3362 = vmul.f32 %v3104, %v3343
        %v3363 = vmul.f32 %v3105, %v3343
        %v3364 = vmul.f32 %v3106, %v3343
        %v3365 = vmul.f32 %v3107, %v3343
        %v3366 = vmul.f32 %v3108, %v3343
        %v3367 = vmul.f32 %v3109, %v3343
        %v3368 = vmul.f32 %v3110, %v3343
        %v3369 = vmul.f32 %v3111, %v3343
        %v3370 = vmul.f32 %v3112, %v3343
        %v3371 = vmul.f32 %v3113, %v3343
        %v3372 = vmul.f32 %v3114, %v3343
        %v3373 = vmul.f32 %v3115, %v3343
        %v3374 = vmul.f32 %v3116, %v3343
        %v3375 = vmul.f32 %v3117, %v3343
        %v3376 = vmul.f32 %v3118, %v3343
        %v3377 = vmul.f32 %v3119, %v3343
        %v3378 = vmul.f32 %v3120, %v3343
        %v3379 = vmul.f32 %v3121, %v3343
        %v3380 = vmul.f32 %v3122, %v3343
        %v3381 = vmul.f32 %v3123, %v3343
        %v3382 = vmul.f32 %v3124, %v3343
        %v3383 = vmul.f32 %v3125, %v3343
        %v3384 = vmul.f32 %v3126, %v3343
        %v3385 = vmul.f32 %v3127, %v3343
        %v3386 = vmul.f32 %v3128, %v3343
        %v3387 = vmul.f32 %v3129, %v3343
        %v3388 = vmul.f32 %v3130, %v3343
        %v3389 = vmul.f32 %v3131, %v3343
        %v3390 = vmul.f32 %v3132, %v3343
        %v3391 = vmul.f32 %v3133, %v3343
        %v3392 = vmul.f32 %v3134, %v3343
        %v3393 = vmul.f32 %v3135, %v3343
        %v3394 = vmul.f32 %v3136, %v3343
        %v3395 = vmul.f32 %v3137, %v3343
        %v3396 = vmul.f32 %v3138, %v3343
        %v3397 = vmul.f32 %v3139, %v3343
        %v3398 = vmul.f32 %v3140, %v3343
        %v3399 = vmul.f32 %v3141, %v3343
        %v3400 = vmul.f32 %v3142, %v3343
        %v3401 = vmul.f32 %v3143, %v3343
        %v3402 = vmul.f32 %v3144, %v3343
        %v3403 = vmul.f32 %v3145, %v3343
        %v3404 = vmul.f32 %v3146, %v3343
        %v3405 = vmul.f32 %v3147, %v3343
        %v3406 = vmul.f32 %v3148, %v3343
        %v3407 = vmul.f32 %v3149, %v3343
        %v3408 = vmul.f32 %v3150, %v3343
        %v3409 = vmul.f32 %v3151, %v3343
        %v3410 = vmul.f32 %v3152, %v3343
        %v3411 = vmul.f32 %v3153, %v3343
        %v3412 = vmul.f32 %v3154, %v3343
        %v3413 = vmul.f32 %v3155, %v3343
        %v3414 = vmul.f32 %v3156, %v3343
        %v3415 = vmul.f32 %v3157, %v3343
        %v3416 = vmul.f32 %v3158, %v3343
        %v3417 = vmul.f32 %v3159, %v3343
        %v3418 = vmul.f32 %v3160, %v3343
        %v3419 = vmul.f32 %v3161, %v3343
        %v3420 = vmul.f32 %v3162, %v3343
        %v3421 = vmul.f32 %v3163, %v3343
        %v3422 = vmul.f32 %v3164, %v3343
        %v3423 = vmul.f32 %v3165, %v3343
        %v3424 = vmul.f32 %v3166, %v3343
        %v3425 = vmul.f32 %v3167, %v3343
        %v3426 = vmul.f32 %v3168, %v3343
        %v3427 = vmul.f32 %v3169, %v3343
        %v3428 = vmul.f32 %v3170, %v3343
        %v3429 = vmul.f32 %v3171, %v3343
        %v3430 = vmul.f32 %v3172, %v3343
        %v3431 = vmul.f32 %v3173, %v3343
        %v3432 = vmul.f32 %v3174, %v3343
        %v3433 = vmul.f32 %v3175, %v3343
        %v3434 = vmul.f32 %v3176, %v3343
        %v3435 = vmul.f32 %v3177, %v3343
        %v3436 = vmul.f32 %v3178, %v3343
        %v3437 = vmul.f32 %v3179, %v3343
        %v3438 = vmul.f32 %v3180, %v3343
        %v3439 = vmul.f32 %v3181, %v3343
        %v3440 = vmul.f32 %v3182, %v3343
        %v3441 = vmul.f32 %v3183, %v3343
        %v3442 = vmul.f32 %v3184, %v3343
        %v3443 = vmul.f32 %v3185, %v3343
        %v3444 = vmul.f32 %v3186, %v3343
        %v3445 = vmul.f32 %v3187, %v3343
        %v3446 = vmul.f32 %v3188, %v3343
        %v3447 = vmul.f32 %v3189, %v3343
        %v3448 = vmul.f32 %v3190, %v3343
        %v3449 = vmul.f32 %v3191, %v3343
        %v3450 = vmul.f32 %v3192, %v3343
        %v3451 = vmul.f32 %v3193, %v3343
        %v3452 = vmul.f32 %v3194, %v3343
        %v3453 = vmul.f32 %v3195, %v3343
        %v3454 = vmul.f32 %v3196, %v3343
        %v3455 = vmul.f32 %v3197, %v3343
        %v3456 = vmul.f32 %v3198, %v3343
        %v3457 = vmul.f32 %v3199, %v3343
        %v3458 = vmul.f32 %v3200, %v3343
        %v3459 = vmul.f32 %v3201, %v3343
        %v3460 = vmul.f32 %v3202, %v3343
        %v3461 = vmul.f32 %v3203, %v3343
        %v3462 = vmul.f32 %v3204, %v3343
        %v3463 = vmul.f32 %v3205, %v3343
        %v3464 = vmul.f32 %v3206, %v3343
        %v3465 = vmul.f32 %v3207, %v3343
        %v3466 = vmul.f32 %v3208, %v3343
        %v3467 = vmul.f32 %v3209, %v3343
        %v3468 = vmul.f32 %v3210, %v3343
        %v3469 = vmul.f32 %v3211, %v3343
        %v3470 = vmul.f32 %v3212, %v3343
        %v3471 = vmul.f32 %v3213, %v3343
        %v3472 = vmul.f32 %v3214, %v3343
        %v3473 = vmul.f32 %v3215, %v3343
        %v3474 = vmul.f32 %v3216, %v3343
        %v3475 = vmul.f32 %v3217, %v3343
        %v3476 = vmul.f32 %v3218, %v3343
        %v3477 = vmul.f32 %v3219, %v3343
        %v3478 = vmul.f32 %v3220, %v3343
        %v3479 = vmul.f32 %v3221, %v3343
        %v3480 = vmul.f32 %v3222, %v3343
        %v3481 = vmul.f32 %v3223, %v3343
        %v3482 = vmul.f32 %v3224, %v3343
        %v3483 = vmul.f32 %v3225, %v3343
        %v3484 = vmul.f32 %v3226, %v3343
        %v3485 = vmul.f32 %v3227, %v3343
        %v3486 = vmul.f32 %v3228, %v3343
        %v3487 = vmul.f32 %v3229, %v3343
        %v3488 = vmul.f32 %v3230, %v3343
        %v3489 = vmul.f32 %v3231, %v3343
        %v3490 = vmul.f32 %v3232, %v3343
        %v3491 = vmul.f32 %v3233, %v3343
        %v3492 = vmul.f32 %v3234, %v3343
        %v3493 = vmul.f32 %v3235, %v3343
        %v3494 = vmul.f32 %v3236, %v3343
        %v3495 = vmul.f32 %v3237, %v3343
        %v3496 = vmul.f32 %v3238, %v3343
        %v3497 = vmul.f32 %v3239, %v3343
        %v3498 = vmul.f32 %v3240, %v3343
        %v3499 = vmul.f32 %v3241, %v3343
        %v3500 = vmul.f32 %v3242, %v3343
        %v3501 = vmul.f32 %v3243, %v3343
        %v3502 = vmul.f32 %v3244, %v3343
        %v3503 = vmul.f32 %v3245, %v3343
        %v3504 = vmul.f32 %v3246, %v3343
        %v3505 = vmul.f32 %v3247, %v3343
        %v3506 = vmul.f32 %v3248, %v3343
        %v3507 = vmul.f32 %v3249, %v3343
        %v3508 = vmul.f32 %v3250, %v3343
        %v3509 = vmul.f32 %v3251, %v3343
        %v3510 = vmul.f32 %v3252, %v3343
        %v3511 = vmul.f32 %v3253, %v3343
        %v3512 = vmul.f32 %v3254, %v3343
        %v3513 = vmul.f32 %v3255, %v3343
        %v3514 = vmul.f32 %v3256, %v3343
        %v3515 = vmul.f32 %v3257, %v3343
        %v3516 = vmul.f32 %v3258, %v3343
        %v3517 = vmul.f32 %v3259, %v3343
        %v3518 = vmul.f32 %v3260, %v3343
        %v3519 = vmul.f32 %v3261, %v3343
        %v3520 = vmul.f32 %v3262, %v3343
        %v3521 = vmul.f32 %v3263, %v3343
        %v3522 = vmul.f32 %v3264, %v3343
        %v3523 = vmul.f32 %v3265, %v3343
        %v3524 = vmul.f32 %v3266, %v3343
        %v3525 = vmul.f32 %v3267, %v3343
        %v3526 = vmul.f32 %v3268, %v3343
        %v3527 = vmul.f32 %v3269, %v3343
        %v3528 = vmul.f32 %v3270, %v3343
        %v3529 = vmul.f32 %v3271, %v3343
        %v3530 = vmul.f32 %v3272, %v3343
        %v3531 = vmul.f32 %v3273, %v3343
        %v3532 = vmul.f32 %v3274, %v3343
        %v3533 = vmul.f32 %v3275, %v3343
        %v3534 = vmul.f32 %v3276, %v3343
        %v3535 = vmul.f32 %v3277, %v3343
        %v3536 = vmul.f32 %v3278, %v3343
        %v3537 = vmul.f32 %v3279, %v3343
        %v3538 = vmul.f32 %v3280, %v3343
        %v3539 = vmul.f32 %v3281, %v3343
        %v3540 = vmul.f32 %v3282, %v3343
        %v3541 = vmul.f32 %v3283, %v3343
        %v3542 = vmul.f32 %v3284, %v3343
        %v3543 = vmul.f32 %v3285, %v3343
        %v3544 = vmul.f32 %v3286, %v3343
        %v3545 = vmul.f32 %v3287, %v3343
        %v3546 = vmul.f32 %v3288, %v3343
        %v3547 = vmul.f32 %v3289, %v3343
        %v3548 = vmul.f32 %v3290, %v3343
        %v3549 = vmul.f32 %v3291, %v3343
        %v3550 = vmul.f32 %v3292, %v3343
        %v3551 = vmul.f32 %v3293, %v3343
        %v3552 = vmul.f32 %v3294, %v3343
        %v3553 = vmul.f32 %v3295, %v3343
        %v3554 = vmul.f32 %v3296, %v3343
        %v3555 = vmul.f32 %v3297, %v3343
        %v3556 = vmul.f32 %v3298, %v3343
        %v3557 = vmul.f32 %v3299, %v3343
        %v3558 = vmul.f32 %v3300, %v3343
        %v3559 = vmul.f32 %v3301, %v3343
        %v3560 = vmul.f32 %v3302, %v3343
        %v3561 = vmul.f32 %v3303, %v3343
        %v3562 = vmul.f32 %v3304, %v3343
        %v3563 = vmul.f32 %v3305, %v3343
        %v3564 = vmul.f32 %v3306, %v3343
        %v3565 = vmul.f32 %v3307, %v3343
        %v3566 = vmul.f32 %v3308, %v3343
        %v3567 = vmul.f32 %v3309, %v3343
        %v3568 = vmul.f32 %v3310, %v3343
        %v3569 = vmul.f32 %v3311, %v3343
        %v3570 = vmul.f32 %v3312, %v3343
        %v3571 = vmul.f32 %v3313, %v3343
        %v3572 = vmul.f32 %v3314, %v3343
        %v3573 = vmul.f32 %v3315, %v3343
        %v3574 = vmul.f32 %v3316, %v3343
        %v3575 = vmul.f32 %v3317, %v3343
        %v3576 = vmul.f32 %v3318, %v3343
        %v3577 = vmul.f32 %v3319, %v3343
        %v3578 = vmul.f32 %v3320, %v3343
        %v3579 = vmul.f32 %v3321, %v3343
        %v3580 = vmul.f32 %v3322, %v3343
        %v3581 = vmul.f32 %v3323, %v3343
        %v3582 = vmul.f32 %v3324, %v3343
        %v3583 = vmul.f32 %v3325, %v3343
        %v3584 = vmul.f32 %v3326, %v3343
        %v3585 = vmul.f32 %v3327, %v3343
        %v3586 = vmul.f32 %v3328, %v3343
        %v3587 = vmul.f32 %v3329, %v3343
        %v3588 = vmul.f32 %v3330, %v3343
        %v3589 = vmul.f32 %v3331, %v3343
        %v3590 = vmul.f32 %v3332, %v3343
        %v3591 = vmul.f32 %v3333, %v3343
        %v3592 = vmul.f32 %v3334, %v3343
        %v3593 = vmul.f32 %v3335, %v3343
        %v3594 = vmul.f32 %v3336, %v3343
        %v3595 = vmul.f32 %v3337, %v3343
        %v3596 = vmul.f32 %v3338, %v3343
        %v3597 = vmul.f32 %v3339, %v3343
        %v3598 = vmul.f32 %v3340, %v3343
        %v3599 = vmul.f32 %v3341, %v3343
        %v3600 = vld [vmem:[%s774] sm:$0xff]
        %v3601 = vld [vmem:[%s774 + $0x8] sm:$0xff]
        %v3602 = vld [vmem:[%s774 + $0x10] sm:$0xff]
        %v3603 = vld [vmem:[%s774 + $0x18] sm:$0xff]
        %v3604 = vld [vmem:[%s774 + $0x20] sm:$0xff]
        %v3605 = vld [vmem:[%s774 + $0x28] sm:$0xff]
        %v3606 = vld [vmem:[%s774 + $0x30] sm:$0xff]
        %v3607 = vld [vmem:[%s774 + $0x38] sm:$0xff]
        %v3608 = vld [vmem:[%s774 + $0x40] sm:$0xff]
        %v3609 = vld [vmem:[%s774 + $0x48] sm:$0xff]
        %v3610 = vld [vmem:[%s774 + $0x50] sm:$0xff]
        %v3611 = vld [vmem:[%s774 + $0x58] sm:$0xff]
        %v3612 = vld [vmem:[%s774 + $0x60] sm:$0xff]
        %v3613 = vld [vmem:[%s774 + $0x68] sm:$0xff]
        %v3614 = vld [vmem:[%s774 + $0x70] sm:$0xff]
        %v3615 = vld [vmem:[%s774 + $0x78] sm:$0xff]
        %v3616 = vld [vmem:[%s774 + $0x80] sm:$0xff]
        %v3617 = vld [vmem:[%s774 + $0x88] sm:$0xff]
        %v3618 = vld [vmem:[%s774 + $0x90] sm:$0xff]
        %v3619 = vld [vmem:[%s774 + $0x98] sm:$0xff]
        %v3620 = vld [vmem:[%s774 + $0xa0] sm:$0xff]
        %v3621 = vld [vmem:[%s774 + $0xa8] sm:$0xff]
        %v3622 = vld [vmem:[%s774 + $0xb0] sm:$0xff]
        %v3623 = vld [vmem:[%s774 + $0xb8] sm:$0xff]
        %v3624 = vld [vmem:[%s774 + $0xc0] sm:$0xff]
        %v3625 = vld [vmem:[%s774 + $0xc8] sm:$0xff]
        %v3626 = vld [vmem:[%s774 + $0xd0] sm:$0xff]
        %v3627 = vld [vmem:[%s774 + $0xd8] sm:$0xff]
        %v3628 = vld [vmem:[%s774 + $0xe0] sm:$0xff]
        %v3629 = vld [vmem:[%s774 + $0xe8] sm:$0xff]
        %v3630 = vld [vmem:[%s774 + $0xf0] sm:$0xff]
        %v3631 = vld [vmem:[%s774 + $0xf8] sm:$0xff]
        %v3632 = vld [vmem:[%s774 + $0x100] sm:$0xff]
        %v3633 = vld [vmem:[%s774 + $0x108] sm:$0xff]
        %v3634 = vld [vmem:[%s774 + $0x110] sm:$0xff]
        %v3635 = vld [vmem:[%s774 + $0x118] sm:$0xff]
        %v3636 = vld [vmem:[%s774 + $0x120] sm:$0xff]
        %v3637 = vld [vmem:[%s774 + $0x128] sm:$0xff]
        %v3638 = vld [vmem:[%s774 + $0x130] sm:$0xff]
        %v3639 = vld [vmem:[%s774 + $0x138] sm:$0xff]
        %v3640 = vld [vmem:[%s774 + $0x140] sm:$0xff]
        %v3641 = vld [vmem:[%s774 + $0x148] sm:$0xff]
        %v3642 = vld [vmem:[%s774 + $0x150] sm:$0xff]
        %v3643 = vld [vmem:[%s774 + $0x158] sm:$0xff]
        %v3644 = vld [vmem:[%s774 + $0x160] sm:$0xff]
        %v3645 = vld [vmem:[%s774 + $0x168] sm:$0xff]
        %v3646 = vld [vmem:[%s774 + $0x170] sm:$0xff]
        %v3647 = vld [vmem:[%s774 + $0x178] sm:$0xff]
        %v3648 = vld [vmem:[%s774 + $0x180] sm:$0xff]
        %v3649 = vld [vmem:[%s774 + $0x188] sm:$0xff]
        %v3650 = vld [vmem:[%s774 + $0x190] sm:$0xff]
        %v3651 = vld [vmem:[%s774 + $0x198] sm:$0xff]
        %v3652 = vld [vmem:[%s774 + $0x1a0] sm:$0xff]
        %v3653 = vld [vmem:[%s774 + $0x1a8] sm:$0xff]
        %v3654 = vld [vmem:[%s774 + $0x1b0] sm:$0xff]
        %v3655 = vld [vmem:[%s774 + $0x1b8] sm:$0xff]
        %v3656 = vld [vmem:[%s774 + $0x1c0] sm:$0xff]
        %v3657 = vld [vmem:[%s774 + $0x1c8] sm:$0xff]
        %v3658 = vld [vmem:[%s774 + $0x1d0] sm:$0xff]
        %v3659 = vld [vmem:[%s774 + $0x1d8] sm:$0xff]
        %v3660 = vld [vmem:[%s774 + $0x1e0] sm:$0xff]
        %v3661 = vld [vmem:[%s774 + $0x1e8] sm:$0xff]
        %v3662 = vld [vmem:[%s774 + $0x1f0] sm:$0xff]
        %v3663 = vld [vmem:[%s774 + $0x1f8] sm:$0xff]
        %v3664 = vld [vmem:[%s774 + $0x200] sm:$0xff]
        %v3665 = vld [vmem:[%s774 + $0x208] sm:$0xff]
        %v3666 = vld [vmem:[%s774 + $0x210] sm:$0xff]
        %v3667 = vld [vmem:[%s774 + $0x218] sm:$0xff]
        %v3668 = vld [vmem:[%s774 + $0x220] sm:$0xff]
        %v3669 = vld [vmem:[%s774 + $0x228] sm:$0xff]
        %v3670 = vld [vmem:[%s774 + $0x230] sm:$0xff]
        %v3671 = vld [vmem:[%s774 + $0x238] sm:$0xff]
        %v3672 = vld [vmem:[%s774 + $0x240] sm:$0xff]
        %v3673 = vld [vmem:[%s774 + $0x248] sm:$0xff]
        %v3674 = vld [vmem:[%s774 + $0x250] sm:$0xff]
        %v3675 = vld [vmem:[%s774 + $0x258] sm:$0xff]
        %v3676 = vld [vmem:[%s774 + $0x260] sm:$0xff]
        %v3677 = vld [vmem:[%s774 + $0x268] sm:$0xff]
        %v3678 = vld [vmem:[%s774 + $0x270] sm:$0xff]
        %v3679 = vld [vmem:[%s774 + $0x278] sm:$0xff]
        %v3680 = vld [vmem:[%s774 + $0x280] sm:$0xff]
        %v3681 = vld [vmem:[%s774 + $0x288] sm:$0xff]
        %v3682 = vld [vmem:[%s774 + $0x290] sm:$0xff]
        %v3683 = vld [vmem:[%s774 + $0x298] sm:$0xff]
        %v3684 = vld [vmem:[%s774 + $0x2a0] sm:$0xff]
        %v3685 = vld [vmem:[%s774 + $0x2a8] sm:$0xff]
        %v3686 = vld [vmem:[%s774 + $0x2b0] sm:$0xff]
        %v3687 = vld [vmem:[%s774 + $0x2b8] sm:$0xff]
        %v3688 = vld [vmem:[%s774 + $0x2c0] sm:$0xff]
        %v3689 = vld [vmem:[%s774 + $0x2c8] sm:$0xff]
        %v3690 = vld [vmem:[%s774 + $0x2d0] sm:$0xff]
        %v3691 = vld [vmem:[%s774 + $0x2d8] sm:$0xff]
        %v3692 = vld [vmem:[%s774 + $0x2e0] sm:$0xff]
        %v3693 = vld [vmem:[%s774 + $0x2e8] sm:$0xff]
        %v3694 = vld [vmem:[%s774 + $0x2f0] sm:$0xff]
        %v3695 = vld [vmem:[%s774 + $0x2f8] sm:$0xff]
        %v3696 = vld [vmem:[%s774 + $0x300] sm:$0xff]
        %v3697 = vld [vmem:[%s774 + $0x308] sm:$0xff]
        %v3698 = vld [vmem:[%s774 + $0x310] sm:$0xff]
        %v3699 = vld [vmem:[%s774 + $0x318] sm:$0xff]
        %v3700 = vld [vmem:[%s774 + $0x320] sm:$0xff]
        %v3701 = vld [vmem:[%s774 + $0x328] sm:$0xff]
        %v3702 = vld [vmem:[%s774 + $0x330] sm:$0xff]
        %v3703 = vld [vmem:[%s774 + $0x338] sm:$0xff]
        %v3704 = vld [vmem:[%s774 + $0x340] sm:$0xff]
        %v3705 = vld [vmem:[%s774 + $0x348] sm:$0xff]
        %v3706 = vld [vmem:[%s774 + $0x350] sm:$0xff]
        %v3707 = vld [vmem:[%s774 + $0x358] sm:$0xff]
        %v3708 = vld [vmem:[%s774 + $0x360] sm:$0xff]
        %v3709 = vld [vmem:[%s774 + $0x368] sm:$0xff]
        %v3710 = vld [vmem:[%s774 + $0x370] sm:$0xff]
        %v3711 = vld [vmem:[%s774 + $0x378] sm:$0xff]
        %v3712 = vld [vmem:[%s774 + $0x380] sm:$0xff]
        %v3713 = vld [vmem:[%s774 + $0x388] sm:$0xff]
        %v3714 = vld [vmem:[%s774 + $0x390] sm:$0xff]
        %v3715 = vld [vmem:[%s774 + $0x398] sm:$0xff]
        %v3716 = vld [vmem:[%s774 + $0x3a0] sm:$0xff]
        %v3717 = vld [vmem:[%s774 + $0x3a8] sm:$0xff]
        %v3718 = vld [vmem:[%s774 + $0x3b0] sm:$0xff]
        %v3719 = vld [vmem:[%s774 + $0x3b8] sm:$0xff]
        %v3720 = vld [vmem:[%s774 + $0x3c0] sm:$0xff]
        %v3721 = vld [vmem:[%s774 + $0x3c8] sm:$0xff]
        %v3722 = vld [vmem:[%s774 + $0x3d0] sm:$0xff]
        %v3723 = vld [vmem:[%s774 + $0x3d8] sm:$0xff]
        %v3724 = vld [vmem:[%s774 + $0x3e0] sm:$0xff]
        %v3725 = vld [vmem:[%s774 + $0x3e8] sm:$0xff]
        %v3726 = vld [vmem:[%s774 + $0x3f0] sm:$0xff]
        %v3727 = vld [vmem:[%s774 + $0x3f8] sm:$0xff]
        %v3728 = vld [vmem:[%s774 + $0x400] sm:$0xff]
        %v3729 = vld [vmem:[%s774 + $0x408] sm:$0xff]
        %v3730 = vld [vmem:[%s774 + $0x410] sm:$0xff]
        %v3731 = vld [vmem:[%s774 + $0x418] sm:$0xff]
        %v3732 = vld [vmem:[%s774 + $0x420] sm:$0xff]
        %v3733 = vld [vmem:[%s774 + $0x428] sm:$0xff]
        %v3734 = vld [vmem:[%s774 + $0x430] sm:$0xff]
        %v3735 = vld [vmem:[%s774 + $0x438] sm:$0xff]
        %v3736 = vld [vmem:[%s774 + $0x440] sm:$0xff]
        %v3737 = vld [vmem:[%s774 + $0x448] sm:$0xff]
        %v3738 = vld [vmem:[%s774 + $0x450] sm:$0xff]
        %v3739 = vld [vmem:[%s774 + $0x458] sm:$0xff]
        %v3740 = vld [vmem:[%s774 + $0x460] sm:$0xff]
        %v3741 = vld [vmem:[%s774 + $0x468] sm:$0xff]
        %v3742 = vld [vmem:[%s774 + $0x470] sm:$0xff]
        %v3743 = vld [vmem:[%s774 + $0x478] sm:$0xff]
        %v3744 = vld [vmem:[%s774 + $0x480] sm:$0xff]
        %v3745 = vld [vmem:[%s774 + $0x488] sm:$0xff]
        %v3746 = vld [vmem:[%s774 + $0x490] sm:$0xff]
        %v3747 = vld [vmem:[%s774 + $0x498] sm:$0xff]
        %v3748 = vld [vmem:[%s774 + $0x4a0] sm:$0xff]
        %v3749 = vld [vmem:[%s774 + $0x4a8] sm:$0xff]
        %v3750 = vld [vmem:[%s774 + $0x4b0] sm:$0xff]
        %v3751 = vld [vmem:[%s774 + $0x4b8] sm:$0xff]
        %v3752 = vld [vmem:[%s774 + $0x4c0] sm:$0xff]
        %v3753 = vld [vmem:[%s774 + $0x4c8] sm:$0xff]
        %v3754 = vld [vmem:[%s774 + $0x4d0] sm:$0xff]
        %v3755 = vld [vmem:[%s774 + $0x4d8] sm:$0xff]
        %v3756 = vld [vmem:[%s774 + $0x4e0] sm:$0xff]
        %v3757 = vld [vmem:[%s774 + $0x4e8] sm:$0xff]
        %v3758 = vld [vmem:[%s774 + $0x4f0] sm:$0xff]
        %v3759 = vld [vmem:[%s774 + $0x4f8] sm:$0xff]
        %v3760 = vld [vmem:[%s774 + $0x500] sm:$0xff]
        %v3761 = vld [vmem:[%s774 + $0x508] sm:$0xff]
        %v3762 = vld [vmem:[%s774 + $0x510] sm:$0xff]
        %v3763 = vld [vmem:[%s774 + $0x518] sm:$0xff]
        %v3764 = vld [vmem:[%s774 + $0x520] sm:$0xff]
        %v3765 = vld [vmem:[%s774 + $0x528] sm:$0xff]
        %v3766 = vld [vmem:[%s774 + $0x530] sm:$0xff]
        %v3767 = vld [vmem:[%s774 + $0x538] sm:$0xff]
        %v3768 = vld [vmem:[%s774 + $0x540] sm:$0xff]
        %v3769 = vld [vmem:[%s774 + $0x548] sm:$0xff]
        %v3770 = vld [vmem:[%s774 + $0x550] sm:$0xff]
        %v3771 = vld [vmem:[%s774 + $0x558] sm:$0xff]
        %v3772 = vld [vmem:[%s774 + $0x560] sm:$0xff]
        %v3773 = vld [vmem:[%s774 + $0x568] sm:$0xff]
        %v3774 = vld [vmem:[%s774 + $0x570] sm:$0xff]
        %v3775 = vld [vmem:[%s774 + $0x578] sm:$0xff]
        %v3776 = vld [vmem:[%s774 + $0x580] sm:$0xff]
        %v3777 = vld [vmem:[%s774 + $0x588] sm:$0xff]
        %v3778 = vld [vmem:[%s774 + $0x590] sm:$0xff]
        %v3779 = vld [vmem:[%s774 + $0x598] sm:$0xff]
        %v3780 = vld [vmem:[%s774 + $0x5a0] sm:$0xff]
        %v3781 = vld [vmem:[%s774 + $0x5a8] sm:$0xff]
        %v3782 = vld [vmem:[%s774 + $0x5b0] sm:$0xff]
        %v3783 = vld [vmem:[%s774 + $0x5b8] sm:$0xff]
        %v3784 = vld [vmem:[%s774 + $0x5c0] sm:$0xff]
        %v3785 = vld [vmem:[%s774 + $0x5c8] sm:$0xff]
        %v3786 = vld [vmem:[%s774 + $0x5d0] sm:$0xff]
        %v3787 = vld [vmem:[%s774 + $0x5d8] sm:$0xff]
        %v3788 = vld [vmem:[%s774 + $0x5e0] sm:$0xff]
        %v3789 = vld [vmem:[%s774 + $0x5e8] sm:$0xff]
        %v3790 = vld [vmem:[%s774 + $0x5f0] sm:$0xff]
        %v3791 = vld [vmem:[%s774 + $0x5f8] sm:$0xff]
        %v3792 = vld [vmem:[%s774 + $0x600] sm:$0xff]
        %v3793 = vld [vmem:[%s774 + $0x608] sm:$0xff]
        %v3794 = vld [vmem:[%s774 + $0x610] sm:$0xff]
        %v3795 = vld [vmem:[%s774 + $0x618] sm:$0xff]
        %v3796 = vld [vmem:[%s774 + $0x620] sm:$0xff]
        %v3797 = vld [vmem:[%s774 + $0x628] sm:$0xff]
        %v3798 = vld [vmem:[%s774 + $0x630] sm:$0xff]
        %v3799 = vld [vmem:[%s774 + $0x638] sm:$0xff]
        %v3800 = vld [vmem:[%s774 + $0x640] sm:$0xff]
        %v3801 = vld [vmem:[%s774 + $0x648] sm:$0xff]
        %v3802 = vld [vmem:[%s774 + $0x650] sm:$0xff]
        %v3803 = vld [vmem:[%s774 + $0x658] sm:$0xff]
        %v3804 = vld [vmem:[%s774 + $0x660] sm:$0xff]
        %v3805 = vld [vmem:[%s774 + $0x668] sm:$0xff]
        %v3806 = vld [vmem:[%s774 + $0x670] sm:$0xff]
        %v3807 = vld [vmem:[%s774 + $0x678] sm:$0xff]
        %v3808 = vld [vmem:[%s774 + $0x680] sm:$0xff]
        %v3809 = vld [vmem:[%s774 + $0x688] sm:$0xff]
        %v3810 = vld [vmem:[%s774 + $0x690] sm:$0xff]
        %v3811 = vld [vmem:[%s774 + $0x698] sm:$0xff]
        %v3812 = vld [vmem:[%s774 + $0x6a0] sm:$0xff]
        %v3813 = vld [vmem:[%s774 + $0x6a8] sm:$0xff]
        %v3814 = vld [vmem:[%s774 + $0x6b0] sm:$0xff]
        %v3815 = vld [vmem:[%s774 + $0x6b8] sm:$0xff]
        %v3816 = vld [vmem:[%s774 + $0x6c0] sm:$0xff]
        %v3817 = vld [vmem:[%s774 + $0x6c8] sm:$0xff]
        %v3818 = vld [vmem:[%s774 + $0x6d0] sm:$0xff]
        %v3819 = vld [vmem:[%s774 + $0x6d8] sm:$0xff]
        %v3820 = vld [vmem:[%s774 + $0x6e0] sm:$0xff]
        %v3821 = vld [vmem:[%s774 + $0x6e8] sm:$0xff]
        %v3822 = vld [vmem:[%s774 + $0x6f0] sm:$0xff]
        %v3823 = vld [vmem:[%s774 + $0x6f8] sm:$0xff]
        %v3824 = vld [vmem:[%s774 + $0x700] sm:$0xff]
        %v3825 = vld [vmem:[%s774 + $0x708] sm:$0xff]
        %v3826 = vld [vmem:[%s774 + $0x710] sm:$0xff]
        %v3827 = vld [vmem:[%s774 + $0x718] sm:$0xff]
        %v3828 = vld [vmem:[%s774 + $0x720] sm:$0xff]
        %v3829 = vld [vmem:[%s774 + $0x728] sm:$0xff]
        %v3830 = vld [vmem:[%s774 + $0x730] sm:$0xff]
        %v3831 = vld [vmem:[%s774 + $0x738] sm:$0xff]
        %v3832 = vld [vmem:[%s774 + $0x740] sm:$0xff]
        %v3833 = vld [vmem:[%s774 + $0x748] sm:$0xff]
        %v3834 = vld [vmem:[%s774 + $0x750] sm:$0xff]
        %v3835 = vld [vmem:[%s774 + $0x758] sm:$0xff]
        %v3836 = vld [vmem:[%s774 + $0x760] sm:$0xff]
        %v3837 = vld [vmem:[%s774 + $0x768] sm:$0xff]
        %v3838 = vld [vmem:[%s774 + $0x770] sm:$0xff]
        %v3839 = vld [vmem:[%s774 + $0x778] sm:$0xff]
        %v3840 = vld [vmem:[%s774 + $0x780] sm:$0xff]
        %v3841 = vld [vmem:[%s774 + $0x788] sm:$0xff]
        %v3842 = vld [vmem:[%s774 + $0x790] sm:$0xff]
        %v3843 = vld [vmem:[%s774 + $0x798] sm:$0xff]
        %v3844 = vld [vmem:[%s774 + $0x7a0] sm:$0xff]
        %v3845 = vld [vmem:[%s774 + $0x7a8] sm:$0xff]
        %v3846 = vld [vmem:[%s774 + $0x7b0] sm:$0xff]
        %v3847 = vld [vmem:[%s774 + $0x7b8] sm:$0xff]
        %v3848 = vld [vmem:[%s774 + $0x7c0] sm:$0xff]
        %v3849 = vld [vmem:[%s774 + $0x7c8] sm:$0xff]
        %v3850 = vld [vmem:[%s774 + $0x7d0] sm:$0xff]
        %v3851 = vld [vmem:[%s774 + $0x7d8] sm:$0xff]
        %v3852 = vld [vmem:[%s774 + $0x7e0] sm:$0xff]
        %v3853 = vld [vmem:[%s774 + $0x7e8] sm:$0xff]
        %v3854 = vld [vmem:[%s774 + $0x7f0] sm:$0xff]
        %v3855 = vld [vmem:[%s774 + $0x7f8] sm:$0xff]
        %s3856 = sld [smem:[#allocation7 + $0x81]]
        %v3857 = vstv %s3856
        %v3858 = vmul.f32 %v3600, %v3857
        %v3859 = vmul.f32 %v3601, %v3857
        %v3860 = vmul.f32 %v3602, %v3857
        %v3861 = vmul.f32 %v3603, %v3857
        %v3862 = vmul.f32 %v3604, %v3857
        %v3863 = vmul.f32 %v3605, %v3857
        %v3864 = vmul.f32 %v3606, %v3857
        %v3865 = vmul.f32 %v3607, %v3857
        %v3866 = vmul.f32 %v3608, %v3857
        %v3867 = vmul.f32 %v3609, %v3857
        %v3868 = vmul.f32 %v3610, %v3857
        %v3869 = vmul.f32 %v3611, %v3857
        %v3870 = vmul.f32 %v3612, %v3857
        %v3871 = vmul.f32 %v3613, %v3857
        %v3872 = vmul.f32 %v3614, %v3857
        %v3873 = vmul.f32 %v3615, %v3857
        %v3874 = vmul.f32 %v3616, %v3857
        %v3875 = vmul.f32 %v3617, %v3857
        %v3876 = vmul.f32 %v3618, %v3857
        %v3877 = vmul.f32 %v3619, %v3857
        %v3878 = vmul.f32 %v3620, %v3857
        %v3879 = vmul.f32 %v3621, %v3857
        %v3880 = vmul.f32 %v3622, %v3857
        %v3881 = vmul.f32 %v3623, %v3857
        %v3882 = vmul.f32 %v3624, %v3857
        %v3883 = vmul.f32 %v3625, %v3857
        %v3884 = vmul.f32 %v3626, %v3857
        %v3885 = vmul.f32 %v3627, %v3857
        %v3886 = vmul.f32 %v3628, %v3857
        %v3887 = vmul.f32 %v3629, %v3857
        %v3888 = vmul.f32 %v3630, %v3857
        %v3889 = vmul.f32 %v3631, %v3857
        %v3890 = vmul.f32 %v3632, %v3857
        %v3891 = vmul.f32 %v3633, %v3857
        %v3892 = vmul.f32 %v3634, %v3857
        %v3893 = vmul.f32 %v3635, %v3857
        %v3894 = vmul.f32 %v3636, %v3857
        %v3895 = vmul.f32 %v3637, %v3857
        %v3896 = vmul.f32 %v3638, %v3857
        %v3897 = vmul.f32 %v3639, %v3857
        %v3898 = vmul.f32 %v3640, %v3857
        %v3899 = vmul.f32 %v3641, %v3857
        %v3900 = vmul.f32 %v3642, %v3857
        %v3901 = vmul.f32 %v3643, %v3857
        %v3902 = vmul.f32 %v3644, %v3857
        %v3903 = vmul.f32 %v3645, %v3857
        %v3904 = vmul.f32 %v3646, %v3857
        %v3905 = vmul.f32 %v3647, %v3857
        %v3906 = vmul.f32 %v3648, %v3857
        %v3907 = vmul.f32 %v3649, %v3857
        %v3908 = vmul.f32 %v3650, %v3857
        %v3909 = vmul.f32 %v3651, %v3857
        %v3910 = vmul.f32 %v3652, %v3857
        %v3911 = vmul.f32 %v3653, %v3857
        %v3912 = vmul.f32 %v3654, %v3857
        %v3913 = vmul.f32 %v3655, %v3857
        %v3914 = vmul.f32 %v3656, %v3857
        %v3915 = vmul.f32 %v3657, %v3857
        %v3916 = vmul.f32 %v3658, %v3857
        %v3917 = vmul.f32 %v3659, %v3857
        %v3918 = vmul.f32 %v3660, %v3857
        %v3919 = vmul.f32 %v3661, %v3857
        %v3920 = vmul.f32 %v3662, %v3857
        %v3921 = vmul.f32 %v3663, %v3857
        %v3922 = vmul.f32 %v3664, %v3857
        %v3923 = vmul.f32 %v3665, %v3857
        %v3924 = vmul.f32 %v3666, %v3857
        %v3925 = vmul.f32 %v3667, %v3857
        %v3926 = vmul.f32 %v3668, %v3857
        %v3927 = vmul.f32 %v3669, %v3857
        %v3928 = vmul.f32 %v3670, %v3857
        %v3929 = vmul.f32 %v3671, %v3857
        %v3930 = vmul.f32 %v3672, %v3857
        %v3931 = vmul.f32 %v3673, %v3857
        %v3932 = vmul.f32 %v3674, %v3857
        %v3933 = vmul.f32 %v3675, %v3857
        %v3934 = vmul.f32 %v3676, %v3857
        %v3935 = vmul.f32 %v3677, %v3857
        %v3936 = vmul.f32 %v3678, %v3857
        %v3937 = vmul.f32 %v3679, %v3857
        %v3938 = vmul.f32 %v3680, %v3857
        %v3939 = vmul.f32 %v3681, %v3857
        %v3940 = vmul.f32 %v3682, %v3857
        %v3941 = vmul.f32 %v3683, %v3857
        %v3942 = vmul.f32 %v3684, %v3857
        %v3943 = vmul.f32 %v3685, %v3857
        %v3944 = vmul.f32 %v3686, %v3857
        %v3945 = vmul.f32 %v3687, %v3857
        %v3946 = vmul.f32 %v3688, %v3857
        %v3947 = vmul.f32 %v3689, %v3857
        %v3948 = vmul.f32 %v3690, %v3857
        %v3949 = vmul.f32 %v3691, %v3857
        %v3950 = vmul.f32 %v3692, %v3857
        %v3951 = vmul.f32 %v3693, %v3857
        %v3952 = vmul.f32 %v3694, %v3857
        %v3953 = vmul.f32 %v3695, %v3857
        %v3954 = vmul.f32 %v3696, %v3857
        %v3955 = vmul.f32 %v3697, %v3857
        %v3956 = vmul.f32 %v3698, %v3857
        %v3957 = vmul.f32 %v3699, %v3857
        %v3958 = vmul.f32 %v3700, %v3857
        %v3959 = vmul.f32 %v3701, %v3857
        %v3960 = vmul.f32 %v3702, %v3857
        %v3961 = vmul.f32 %v3703, %v3857
        %v3962 = vmul.f32 %v3704, %v3857
        %v3963 = vmul.f32 %v3705, %v3857
        %v3964 = vmul.f32 %v3706, %v3857
        %v3965 = vmul.f32 %v3707, %v3857
        %v3966 = vmul.f32 %v3708, %v3857
        %v3967 = vmul.f32 %v3709, %v3857
        %v3968 = vmul.f32 %v3710, %v3857
        %v3969 = vmul.f32 %v3711, %v3857
        %v3970 = vmul.f32 %v3712, %v3857
        %v3971 = vmul.f32 %v3713, %v3857
        %v3972 = vmul.f32 %v3714, %v3857
        %v3973 = vmul.f32 %v3715, %v3857
        %v3974 = vmul.f32 %v3716, %v3857
        %v3975 = vmul.f32 %v3717, %v3857
        %v3976 = vmul.f32 %v3718, %v3857
        %v3977 = vmul.f32 %v3719, %v3857
        %v3978 = vmul.f32 %v3720, %v3857
        %v3979 = vmul.f32 %v3721, %v3857
        %v3980 = vmul.f32 %v3722, %v3857
        %v3981 = vmul.f32 %v3723, %v3857
        %v3982 = vmul.f32 %v3724, %v3857
        %v3983 = vmul.f32 %v3725, %v3857
        %v3984 = vmul.f32 %v3726, %v3857
        %v3985 = vmul.f32 %v3727, %v3857
        %v3986 = vmul.f32 %v3728, %v3857
        %v3987 = vmul.f32 %v3729, %v3857
        %v3988 = vmul.f32 %v3730, %v3857
        %v3989 = vmul.f32 %v3731, %v3857
        %v3990 = vmul.f32 %v3732, %v3857
        %v3991 = vmul.f32 %v3733, %v3857
        %v3992 = vmul.f32 %v3734, %v3857
        %v3993 = vmul.f32 %v3735, %v3857
        %v3994 = vmul.f32 %v3736, %v3857
        %v3995 = vmul.f32 %v3737, %v3857
        %v3996 = vmul.f32 %v3738, %v3857
        %v3997 = vmul.f32 %v3739, %v3857
        %v3998 = vmul.f32 %v3740, %v3857
        %v3999 = vmul.f32 %v3741, %v3857
        %v4000 = vmul.f32 %v3742, %v3857
        %v4001 = vmul.f32 %v3743, %v3857
        %v4002 = vmul.f32 %v3744, %v3857
        %v4003 = vmul.f32 %v3745, %v3857
        %v4004 = vmul.f32 %v3746, %v3857
        %v4005 = vmul.f32 %v3747, %v3857
        %v4006 = vmul.f32 %v3748, %v3857
        %v4007 = vmul.f32 %v3749, %v3857
        %v4008 = vmul.f32 %v3750, %v3857
        %v4009 = vmul.f32 %v3751, %v3857
        %v4010 = vmul.f32 %v3752, %v3857
        %v4011 = vmul.f32 %v3753, %v3857
        %v4012 = vmul.f32 %v3754, %v3857
        %v4013 = vmul.f32 %v3755, %v3857
        %v4014 = vmul.f32 %v3756, %v3857
        %v4015 = vmul.f32 %v3757, %v3857
        %v4016 = vmul.f32 %v3758, %v3857
        %v4017 = vmul.f32 %v3759, %v3857
        %v4018 = vmul.f32 %v3760, %v3857
        %v4019 = vmul.f32 %v3761, %v3857
        %v4020 = vmul.f32 %v3762, %v3857
        %v4021 = vmul.f32 %v3763, %v3857
        %v4022 = vmul.f32 %v3764, %v3857
        %v4023 = vmul.f32 %v3765, %v3857
        %v4024 = vmul.f32 %v3766, %v3857
        %v4025 = vmul.f32 %v3767, %v3857
        %v4026 = vmul.f32 %v3768, %v3857
        %v4027 = vmul.f32 %v3769, %v3857
        %v4028 = vmul.f32 %v3770, %v3857
        %v4029 = vmul.f32 %v3771, %v3857
        %v4030 = vmul.f32 %v3772, %v3857
        %v4031 = vmul.f32 %v3773, %v3857
        %v4032 = vmul.f32 %v3774, %v3857
        %v4033 = vmul.f32 %v3775, %v3857
        %v4034 = vmul.f32 %v3776, %v3857
        %v4035 = vmul.f32 %v3777, %v3857
        %v4036 = vmul.f32 %v3778, %v3857
        %v4037 = vmul.f32 %v3779, %v3857
        %v4038 = vmul.f32 %v3780, %v3857
        %v4039 = vmul.f32 %v3781, %v3857
        %v4040 = vmul.f32 %v3782, %v3857
        %v4041 = vmul.f32 %v3783, %v3857
        %v4042 = vmul.f32 %v3784, %v3857
        %v4043 = vmul.f32 %v3785, %v3857
        %v4044 = vmul.f32 %v3786, %v3857
        %v4045 = vmul.f32 %v3787, %v3857
        %v4046 = vmul.f32 %v3788, %v3857
        %v4047 = vmul.f32 %v3789, %v3857
        %v4048 = vmul.f32 %v3790, %v3857
        %v4049 = vmul.f32 %v3791, %v3857
        %v4050 = vmul.f32 %v3792, %v3857
        %v4051 = vmul.f32 %v3793, %v3857
        %v4052 = vmul.f32 %v3794, %v3857
        %v4053 = vmul.f32 %v3795, %v3857
        %v4054 = vmul.f32 %v3796, %v3857
        %v4055 = vmul.f32 %v3797, %v3857
        %v4056 = vmul.f32 %v3798, %v3857
        %v4057 = vmul.f32 %v3799, %v3857
        %v4058 = vmul.f32 %v3800, %v3857
        %v4059 = vmul.f32 %v3801, %v3857
        %v4060 = vmul.f32 %v3802, %v3857
        %v4061 = vmul.f32 %v3803, %v3857
        %v4062 = vmul.f32 %v3804, %v3857
        %v4063 = vmul.f32 %v3805, %v3857
        %v4064 = vmul.f32 %v3806, %v3857
        %v4065 = vmul.f32 %v3807, %v3857
        %v4066 = vmul.f32 %v3808, %v3857
        %v4067 = vmul.f32 %v3809, %v3857
        %v4068 = vmul.f32 %v3810, %v3857
        %v4069 = vmul.f32 %v3811, %v3857
        %v4070 = vmul.f32 %v3812, %v3857
        %v4071 = vmul.f32 %v3813, %v3857
        %v4072 = vmul.f32 %v3814, %v3857
        %v4073 = vmul.f32 %v3815, %v3857
        %v4074 = vmul.f32 %v3816, %v3857
        %v4075 = vmul.f32 %v3817, %v3857
        %v4076 = vmul.f32 %v3818, %v3857
        %v4077 = vmul.f32 %v3819, %v3857
        %v4078 = vmul.f32 %v3820, %v3857
        %v4079 = vmul.f32 %v3821, %v3857
        %v4080 = vmul.f32 %v3822, %v3857
        %v4081 = vmul.f32 %v3823, %v3857
        %v4082 = vmul.f32 %v3824, %v3857
        %v4083 = vmul.f32 %v3825, %v3857
        %v4084 = vmul.f32 %v3826, %v3857
        %v4085 = vmul.f32 %v3827, %v3857
        %v4086 = vmul.f32 %v3828, %v3857
        %v4087 = vmul.f32 %v3829, %v3857
        %v4088 = vmul.f32 %v3830, %v3857
        %v4089 = vmul.f32 %v3831, %v3857
        %v4090 = vmul.f32 %v3832, %v3857
        %v4091 = vmul.f32 %v3833, %v3857
        %v4092 = vmul.f32 %v3834, %v3857
        %v4093 = vmul.f32 %v3835, %v3857
        %v4094 = vmul.f32 %v3836, %v3857
        %v4095 = vmul.f32 %v3837, %v3857
        %v4096 = vmul.f32 %v3838, %v3857
        %v4097 = vmul.f32 %v3839, %v3857
        %v4098 = vmul.f32 %v3840, %v3857
        %v4099 = vmul.f32 %v3841, %v3857
        %v4100 = vmul.f32 %v3842, %v3857
        %v4101 = vmul.f32 %v3843, %v3857
        %v4102 = vmul.f32 %v3844, %v3857
        %v4103 = vmul.f32 %v3845, %v3857
        %v4104 = vmul.f32 %v3846, %v3857
        %v4105 = vmul.f32 %v3847, %v3857
        %v4106 = vmul.f32 %v3848, %v3857
        %v4107 = vmul.f32 %v3849, %v3857
        %v4108 = vmul.f32 %v3850, %v3857
        %v4109 = vmul.f32 %v3851, %v3857
        %v4110 = vmul.f32 %v3852, %v3857
        %v4111 = vmul.f32 %v3853, %v3857
        %v4112 = vmul.f32 %v3854, %v3857
        %v4113 = vmul.f32 %v3855, %v3857
        %v4114 = vadd.f32 %v3344, %v3858
        %v4115 = vadd.f32 %v3345, %v3859
        %v4116 = vadd.f32 %v3346, %v3860
        %v4117 = vadd.f32 %v3347, %v3861
        %v4118 = vadd.f32 %v3348, %v3862
        %v4119 = vadd.f32 %v3349, %v3863
        %v4120 = vadd.f32 %v3350, %v3864
        %v4121 = vadd.f32 %v3351, %v3865
        %v4122 = vadd.f32 %v3352, %v3866
        %v4123 = vadd.f32 %v3353, %v3867
        %v4124 = vadd.f32 %v3354, %v3868
        %v4125 = vadd.f32 %v3355, %v3869
        %v4126 = vadd.f32 %v3356, %v3870
        %v4127 = vadd.f32 %v3357, %v3871
        %v4128 = vadd.f32 %v3358, %v3872
        %v4129 = vadd.f32 %v3359, %v3873
        %v4130 = vadd.f32 %v3360, %v3874
        %v4131 = vadd.f32 %v3361, %v3875
        %v4132 = vadd.f32 %v3362, %v3876
        %v4133 = vadd.f32 %v3363, %v3877
        %v4134 = vadd.f32 %v3364, %v3878
        %v4135 = vadd.f32 %v3365, %v3879
        %v4136 = vadd.f32 %v3366, %v3880
        %v4137 = vadd.f32 %v3367, %v3881
        %v4138 = vadd.f32 %v3368, %v3882
        %v4139 = vadd.f32 %v3369, %v3883
        %v4140 = vadd.f32 %v3370, %v3884
        %v4141 = vadd.f32 %v3371, %v3885
        %v4142 = vadd.f32 %v3372, %v3886
        %v4143 = vadd.f32 %v3373, %v3887
        %v4144 = vadd.f32 %v3374, %v3888
        %v4145 = vadd.f32 %v3375, %v3889
        %v4146 = vadd.f32 %v3376, %v3890
        %v4147 = vadd.f32 %v3377, %v3891
        %v4148 = vadd.f32 %v3378, %v3892
        %v4149 = vadd.f32 %v3379, %v3893
        %v4150 = vadd.f32 %v3380, %v3894
        %v4151 = vadd.f32 %v3381, %v3895
        %v4152 = vadd.f32 %v3382, %v3896
        %v4153 = vadd.f32 %v3383, %v3897
        %v4154 = vadd.f32 %v3384, %v3898
        %v4155 = vadd.f32 %v3385, %v3899
        %v4156 = vadd.f32 %v3386, %v3900
        %v4157 = vadd.f32 %v3387, %v3901
        %v4158 = vadd.f32 %v3388, %v3902
        %v4159 = vadd.f32 %v3389, %v3903
        %v4160 = vadd.f32 %v3390, %v3904
        %v4161 = vadd.f32 %v3391, %v3905
        %v4162 = vadd.f32 %v3392, %v3906
        %v4163 = vadd.f32 %v3393, %v3907
        %v4164 = vadd.f32 %v3394, %v3908
        %v4165 = vadd.f32 %v3395, %v3909
        %v4166 = vadd.f32 %v3396, %v3910
        %v4167 = vadd.f32 %v3397, %v3911
        %v4168 = vadd.f32 %v3398, %v3912
        %v4169 = vadd.f32 %v3399, %v3913
        %v4170 = vadd.f32 %v3400, %v3914
        %v4171 = vadd.f32 %v3401, %v3915
        %v4172 = vadd.f32 %v3402, %v3916
        %v4173 = vadd.f32 %v3403, %v3917
        %v4174 = vadd.f32 %v3404, %v3918
        %v4175 = vadd.f32 %v3405, %v3919
        %v4176 = vadd.f32 %v3406, %v3920
        %v4177 = vadd.f32 %v3407, %v3921
        %v4178 = vadd.f32 %v3408, %v3922
        %v4179 = vadd.f32 %v3409, %v3923
        %v4180 = vadd.f32 %v3410, %v3924
        %v4181 = vadd.f32 %v3411, %v3925
        %v4182 = vadd.f32 %v3412, %v3926
        %v4183 = vadd.f32 %v3413, %v3927
        %v4184 = vadd.f32 %v3414, %v3928
        %v4185 = vadd.f32 %v3415, %v3929
        %v4186 = vadd.f32 %v3416, %v3930
        %v4187 = vadd.f32 %v3417, %v3931
        %v4188 = vadd.f32 %v3418, %v3932
        %v4189 = vadd.f32 %v3419, %v3933
        %v4190 = vadd.f32 %v3420, %v3934
        %v4191 = vadd.f32 %v3421, %v3935
        %v4192 = vadd.f32 %v3422, %v3936
        %v4193 = vadd.f32 %v3423, %v3937
        %v4194 = vadd.f32 %v3424, %v3938
        %v4195 = vadd.f32 %v3425, %v3939
        %v4196 = vadd.f32 %v3426, %v3940
        %v4197 = vadd.f32 %v3427, %v3941
        %v4198 = vadd.f32 %v3428, %v3942
        %v4199 = vadd.f32 %v3429, %v3943
        %v4200 = vadd.f32 %v3430, %v3944
        %v4201 = vadd.f32 %v3431, %v3945
        %v4202 = vadd.f32 %v3432, %v3946
        %v4203 = vadd.f32 %v3433, %v3947
        %v4204 = vadd.f32 %v3434, %v3948
        %v4205 = vadd.f32 %v3435, %v3949
        %v4206 = vadd.f32 %v3436, %v3950
        %v4207 = vadd.f32 %v3437, %v3951
        %v4208 = vadd.f32 %v3438, %v3952
        %v4209 = vadd.f32 %v3439, %v3953
        %v4210 = vadd.f32 %v3440, %v3954
        %v4211 = vadd.f32 %v3441, %v3955
        %v4212 = vadd.f32 %v3442, %v3956
        %v4213 = vadd.f32 %v3443, %v3957
        %v4214 = vadd.f32 %v3444, %v3958
        %v4215 = vadd.f32 %v3445, %v3959
        %v4216 = vadd.f32 %v3446, %v3960
        %v4217 = vadd.f32 %v3447, %v3961
        %v4218 = vadd.f32 %v3448, %v3962
        %v4219 = vadd.f32 %v3449, %v3963
        %v4220 = vadd.f32 %v3450, %v3964
        %v4221 = vadd.f32 %v3451, %v3965
        %v4222 = vadd.f32 %v3452, %v3966
        %v4223 = vadd.f32 %v3453, %v3967
        %v4224 = vadd.f32 %v3454, %v3968
        %v4225 = vadd.f32 %v3455, %v3969
        %v4226 = vadd.f32 %v3456, %v3970
        %v4227 = vadd.f32 %v3457, %v3971
        %v4228 = vadd.f32 %v3458, %v3972
        %v4229 = vadd.f32 %v3459, %v3973
        %v4230 = vadd.f32 %v3460, %v3974
        %v4231 = vadd.f32 %v3461, %v3975
        %v4232 = vadd.f32 %v3462, %v3976
        %v4233 = vadd.f32 %v3463, %v3977
        %v4234 = vadd.f32 %v3464, %v3978
        %v4235 = vadd.f32 %v3465, %v3979
        %v4236 = vadd.f32 %v3466, %v3980
        %v4237 = vadd.f32 %v3467, %v3981
        %v4238 = vadd.f32 %v3468, %v3982
        %v4239 = vadd.f32 %v3469, %v3983
        %v4240 = vadd.f32 %v3470, %v3984
        %v4241 = vadd.f32 %v3471, %v3985
        %v4242 = vadd.f32 %v3472, %v3986
        %v4243 = vadd.f32 %v3473, %v3987
        %v4244 = vadd.f32 %v3474, %v3988
        %v4245 = vadd.f32 %v3475, %v3989
        %v4246 = vadd.f32 %v3476, %v3990
        %v4247 = vadd.f32 %v3477, %v3991
        %v4248 = vadd.f32 %v3478, %v3992
        %v4249 = vadd.f32 %v3479, %v3993
        %v4250 = vadd.f32 %v3480, %v3994
        %v4251 = vadd.f32 %v3481, %v3995
        %v4252 = vadd.f32 %v3482, %v3996
        %v4253 = vadd.f32 %v3483, %v3997
        %v4254 = vadd.f32 %v3484, %v3998
        %v4255 = vadd.f32 %v3485, %v3999
        %v4256 = vadd.f32 %v3486, %v4000
        %v4257 = vadd.f32 %v3487, %v4001
        %v4258 = vadd.f32 %v3488, %v4002
        %v4259 = vadd.f32 %v3489, %v4003
        %v4260 = vadd.f32 %v3490, %v4004
        %v4261 = vadd.f32 %v3491, %v4005
        %v4262 = vadd.f32 %v3492, %v4006
        %v4263 = vadd.f32 %v3493, %v4007
        %v4264 = vadd.f32 %v3494, %v4008
        %v4265 = vadd.f32 %v3495, %v4009
        %v4266 = vadd.f32 %v3496, %v4010
        %v4267 = vadd.f32 %v3497, %v4011
        %v4268 = vadd.f32 %v3498, %v4012
        %v4269 = vadd.f32 %v3499, %v4013
        %v4270 = vadd.f32 %v3500, %v4014
        %v4271 = vadd.f32 %v3501, %v4015
        %v4272 = vadd.f32 %v3502, %v4016
        %v4273 = vadd.f32 %v3503, %v4017
        %v4274 = vadd.f32 %v3504, %v4018
        %v4275 = vadd.f32 %v3505, %v4019
        %v4276 = vadd.f32 %v3506, %v4020
        %v4277 = vadd.f32 %v3507, %v4021
        %v4278 = vadd.f32 %v3508, %v4022
        %v4279 = vadd.f32 %v3509, %v4023
        %v4280 = vadd.f32 %v3510, %v4024
        %v4281 = vadd.f32 %v3511, %v4025
        %v4282 = vadd.f32 %v3512, %v4026
        %v4283 = vadd.f32 %v3513, %v4027
        %v4284 = vadd.f32 %v3514, %v4028
        %v4285 = vadd.f32 %v3515, %v4029
        %v4286 = vadd.f32 %v3516, %v4030
        %v4287 = vadd.f32 %v3517, %v4031
        %v4288 = vadd.f32 %v3518, %v4032
        %v4289 = vadd.f32 %v3519, %v4033
        %v4290 = vadd.f32 %v3520, %v4034
        %v4291 = vadd.f32 %v3521, %v4035
        %v4292 = vadd.f32 %v3522, %v4036
        %v4293 = vadd.f32 %v3523, %v4037
        %v4294 = vadd.f32 %v3524, %v4038
        %v4295 = vadd.f32 %v3525, %v4039
        %v4296 = vadd.f32 %v3526, %v4040
        %v4297 = vadd.f32 %v3527, %v4041
        %v4298 = vadd.f32 %v3528, %v4042
        %v4299 = vadd.f32 %v3529, %v4043
        %v4300 = vadd.f32 %v3530, %v4044
        %v4301 = vadd.f32 %v3531, %v4045
        %v4302 = vadd.f32 %v3532, %v4046
        %v4303 = vadd.f32 %v3533, %v4047
        %v4304 = vadd.f32 %v3534, %v4048
        %v4305 = vadd.f32 %v3535, %v4049
        %v4306 = vadd.f32 %v3536, %v4050
        %v4307 = vadd.f32 %v3537, %v4051
        %v4308 = vadd.f32 %v3538, %v4052
        %v4309 = vadd.f32 %v3539, %v4053
        %v4310 = vadd.f32 %v3540, %v4054
        %v4311 = vadd.f32 %v3541, %v4055
        %v4312 = vadd.f32 %v3542, %v4056
        %v4313 = vadd.f32 %v3543, %v4057
        %v4314 = vadd.f32 %v3544, %v4058
        %v4315 = vadd.f32 %v3545, %v4059
        %v4316 = vadd.f32 %v3546, %v4060
        %v4317 = vadd.f32 %v3547, %v4061
        %v4318 = vadd.f32 %v3548, %v4062
        %v4319 = vadd.f32 %v3549, %v4063
        %v4320 = vadd.f32 %v3550, %v4064
        %v4321 = vadd.f32 %v3551, %v4065
        %v4322 = vadd.f32 %v3552, %v4066
        %v4323 = vadd.f32 %v3553, %v4067
        %v4324 = vadd.f32 %v3554, %v4068
        %v4325 = vadd.f32 %v3555, %v4069
        %v4326 = vadd.f32 %v3556, %v4070
        %v4327 = vadd.f32 %v3557, %v4071
        %v4328 = vadd.f32 %v3558, %v4072
        %v4329 = vadd.f32 %v3559, %v4073
        %v4330 = vadd.f32 %v3560, %v4074
        %v4331 = vadd.f32 %v3561, %v4075
        %v4332 = vadd.f32 %v3562, %v4076
        %v4333 = vadd.f32 %v3563, %v4077
        %v4334 = vadd.f32 %v3564, %v4078
        %v4335 = vadd.f32 %v3565, %v4079
        %v4336 = vadd.f32 %v3566, %v4080
        %v4337 = vadd.f32 %v3567, %v4081
        %v4338 = vadd.f32 %v3568, %v4082
        %v4339 = vadd.f32 %v3569, %v4083
        %v4340 = vadd.f32 %v3570, %v4084
        %v4341 = vadd.f32 %v3571, %v4085
        %v4342 = vadd.f32 %v3572, %v4086
        %v4343 = vadd.f32 %v3573, %v4087
        %v4344 = vadd.f32 %v3574, %v4088
        %v4345 = vadd.f32 %v3575, %v4089
        %v4346 = vadd.f32 %v3576, %v4090
        %v4347 = vadd.f32 %v3577, %v4091
        %v4348 = vadd.f32 %v3578, %v4092
        %v4349 = vadd.f32 %v3579, %v4093
        %v4350 = vadd.f32 %v3580, %v4094
        %v4351 = vadd.f32 %v3581, %v4095
        %v4352 = vadd.f32 %v3582, %v4096
        %v4353 = vadd.f32 %v3583, %v4097
        %v4354 = vadd.f32 %v3584, %v4098
        %v4355 = vadd.f32 %v3585, %v4099
        %v4356 = vadd.f32 %v3586, %v4100
        %v4357 = vadd.f32 %v3587, %v4101
        %v4358 = vadd.f32 %v3588, %v4102
        %v4359 = vadd.f32 %v3589, %v4103
        %v4360 = vadd.f32 %v3590, %v4104
        %v4361 = vadd.f32 %v3591, %v4105
        %v4362 = vadd.f32 %v3592, %v4106
        %v4363 = vadd.f32 %v3593, %v4107
        %v4364 = vadd.f32 %v3594, %v4108
        %v4365 = vadd.f32 %v3595, %v4109
        %v4366 = vadd.f32 %v3596, %v4110
        %v4367 = vadd.f32 %v3597, %v4111
        %v4368 = vadd.f32 %v3598, %v4112
        %v4369 = vadd.f32 %v3599, %v4113
        %v4370 = vld [vmem:[%s1545] sm:$0xff]
        %v4371 = vld [vmem:[%s1545 + $0x8] sm:$0xff]
        %v4372 = vld [vmem:[%s1545 + $0x10] sm:$0xff]
        %v4373 = vld [vmem:[%s1545 + $0x18] sm:$0xff]
        %v4374 = vld [vmem:[%s1545 + $0x20] sm:$0xff]
        %v4375 = vld [vmem:[%s1545 + $0x28] sm:$0xff]
        %v4376 = vld [vmem:[%s1545 + $0x30] sm:$0xff]
        %v4377 = vld [vmem:[%s1545 + $0x38] sm:$0xff]
        %v4378 = vld [vmem:[%s1545 + $0x40] sm:$0xff]
        %v4379 = vld [vmem:[%s1545 + $0x48] sm:$0xff]
        %v4380 = vld [vmem:[%s1545 + $0x50] sm:$0xff]
        %v4381 = vld [vmem:[%s1545 + $0x58] sm:$0xff]
        %v4382 = vld [vmem:[%s1545 + $0x60] sm:$0xff]
        %v4383 = vld [vmem:[%s1545 + $0x68] sm:$0xff]
        %v4384 = vld [vmem:[%s1545 + $0x70] sm:$0xff]
        %v4385 = vld [vmem:[%s1545 + $0x78] sm:$0xff]
        %v4386 = vld [vmem:[%s1545 + $0x80] sm:$0xff]
        %v4387 = vld [vmem:[%s1545 + $0x88] sm:$0xff]
        %v4388 = vld [vmem:[%s1545 + $0x90] sm:$0xff]
        %v4389 = vld [vmem:[%s1545 + $0x98] sm:$0xff]
        %v4390 = vld [vmem:[%s1545 + $0xa0] sm:$0xff]
        %v4391 = vld [vmem:[%s1545 + $0xa8] sm:$0xff]
        %v4392 = vld [vmem:[%s1545 + $0xb0] sm:$0xff]
        %v4393 = vld [vmem:[%s1545 + $0xb8] sm:$0xff]
        %v4394 = vld [vmem:[%s1545 + $0xc0] sm:$0xff]
        %v4395 = vld [vmem:[%s1545 + $0xc8] sm:$0xff]
        %v4396 = vld [vmem:[%s1545 + $0xd0] sm:$0xff]
        %v4397 = vld [vmem:[%s1545 + $0xd8] sm:$0xff]
        %v4398 = vld [vmem:[%s1545 + $0xe0] sm:$0xff]
        %v4399 = vld [vmem:[%s1545 + $0xe8] sm:$0xff]
        %v4400 = vld [vmem:[%s1545 + $0xf0] sm:$0xff]
        %v4401 = vld [vmem:[%s1545 + $0xf8] sm:$0xff]
        %v4402 = vld [vmem:[%s1545 + $0x100] sm:$0xff]
        %v4403 = vld [vmem:[%s1545 + $0x108] sm:$0xff]
        %v4404 = vld [vmem:[%s1545 + $0x110] sm:$0xff]
        %v4405 = vld [vmem:[%s1545 + $0x118] sm:$0xff]
        %v4406 = vld [vmem:[%s1545 + $0x120] sm:$0xff]
        %v4407 = vld [vmem:[%s1545 + $0x128] sm:$0xff]
        %v4408 = vld [vmem:[%s1545 + $0x130] sm:$0xff]
        %v4409 = vld [vmem:[%s1545 + $0x138] sm:$0xff]
        %v4410 = vld [vmem:[%s1545 + $0x140] sm:$0xff]
        %v4411 = vld [vmem:[%s1545 + $0x148] sm:$0xff]
        %v4412 = vld [vmem:[%s1545 + $0x150] sm:$0xff]
        %v4413 = vld [vmem:[%s1545 + $0x158] sm:$0xff]
        %v4414 = vld [vmem:[%s1545 + $0x160] sm:$0xff]
        %v4415 = vld [vmem:[%s1545 + $0x168] sm:$0xff]
        %v4416 = vld [vmem:[%s1545 + $0x170] sm:$0xff]
        %v4417 = vld [vmem:[%s1545 + $0x178] sm:$0xff]
        %v4418 = vld [vmem:[%s1545 + $0x180] sm:$0xff]
        %v4419 = vld [vmem:[%s1545 + $0x188] sm:$0xff]
        %v4420 = vld [vmem:[%s1545 + $0x190] sm:$0xff]
        %v4421 = vld [vmem:[%s1545 + $0x198] sm:$0xff]
        %v4422 = vld [vmem:[%s1545 + $0x1a0] sm:$0xff]
        %v4423 = vld [vmem:[%s1545 + $0x1a8] sm:$0xff]
        %v4424 = vld [vmem:[%s1545 + $0x1b0] sm:$0xff]
        %v4425 = vld [vmem:[%s1545 + $0x1b8] sm:$0xff]
        %v4426 = vld [vmem:[%s1545 + $0x1c0] sm:$0xff]
        %v4427 = vld [vmem:[%s1545 + $0x1c8] sm:$0xff]
        %v4428 = vld [vmem:[%s1545 + $0x1d0] sm:$0xff]
        %v4429 = vld [vmem:[%s1545 + $0x1d8] sm:$0xff]
        %v4430 = vld [vmem:[%s1545 + $0x1e0] sm:$0xff]
        %v4431 = vld [vmem:[%s1545 + $0x1e8] sm:$0xff]
        %v4432 = vld [vmem:[%s1545 + $0x1f0] sm:$0xff]
        %v4433 = vld [vmem:[%s1545 + $0x1f8] sm:$0xff]
        %v4434 = vld [vmem:[%s1545 + $0x200] sm:$0xff]
        %v4435 = vld [vmem:[%s1545 + $0x208] sm:$0xff]
        %v4436 = vld [vmem:[%s1545 + $0x210] sm:$0xff]
        %v4437 = vld [vmem:[%s1545 + $0x218] sm:$0xff]
        %v4438 = vld [vmem:[%s1545 + $0x220] sm:$0xff]
        %v4439 = vld [vmem:[%s1545 + $0x228] sm:$0xff]
        %v4440 = vld [vmem:[%s1545 + $0x230] sm:$0xff]
        %v4441 = vld [vmem:[%s1545 + $0x238] sm:$0xff]
        %v4442 = vld [vmem:[%s1545 + $0x240] sm:$0xff]
        %v4443 = vld [vmem:[%s1545 + $0x248] sm:$0xff]
        %v4444 = vld [vmem:[%s1545 + $0x250] sm:$0xff]
        %v4445 = vld [vmem:[%s1545 + $0x258] sm:$0xff]
        %v4446 = vld [vmem:[%s1545 + $0x260] sm:$0xff]
        %v4447 = vld [vmem:[%s1545 + $0x268] sm:$0xff]
        %v4448 = vld [vmem:[%s1545 + $0x270] sm:$0xff]
        %v4449 = vld [vmem:[%s1545 + $0x278] sm:$0xff]
        %v4450 = vld [vmem:[%s1545 + $0x280] sm:$0xff]
        %v4451 = vld [vmem:[%s1545 + $0x288] sm:$0xff]
        %v4452 = vld [vmem:[%s1545 + $0x290] sm:$0xff]
        %v4453 = vld [vmem:[%s1545 + $0x298] sm:$0xff]
        %v4454 = vld [vmem:[%s1545 + $0x2a0] sm:$0xff]
        %v4455 = vld [vmem:[%s1545 + $0x2a8] sm:$0xff]
        %v4456 = vld [vmem:[%s1545 + $0x2b0] sm:$0xff]
        %v4457 = vld [vmem:[%s1545 + $0x2b8] sm:$0xff]
        %v4458 = vld [vmem:[%s1545 + $0x2c0] sm:$0xff]
        %v4459 = vld [vmem:[%s1545 + $0x2c8] sm:$0xff]
        %v4460 = vld [vmem:[%s1545 + $0x2d0] sm:$0xff]
        %v4461 = vld [vmem:[%s1545 + $0x2d8] sm:$0xff]
        %v4462 = vld [vmem:[%s1545 + $0x2e0] sm:$0xff]
        %v4463 = vld [vmem:[%s1545 + $0x2e8] sm:$0xff]
        %v4464 = vld [vmem:[%s1545 + $0x2f0] sm:$0xff]
        %v4465 = vld [vmem:[%s1545 + $0x2f8] sm:$0xff]
        %v4466 = vld [vmem:[%s1545 + $0x300] sm:$0xff]
        %v4467 = vld [vmem:[%s1545 + $0x308] sm:$0xff]
        %v4468 = vld [vmem:[%s1545 + $0x310] sm:$0xff]
        %v4469 = vld [vmem:[%s1545 + $0x318] sm:$0xff]
        %v4470 = vld [vmem:[%s1545 + $0x320] sm:$0xff]
        %v4471 = vld [vmem:[%s1545 + $0x328] sm:$0xff]
        %v4472 = vld [vmem:[%s1545 + $0x330] sm:$0xff]
        %v4473 = vld [vmem:[%s1545 + $0x338] sm:$0xff]
        %v4474 = vld [vmem:[%s1545 + $0x340] sm:$0xff]
        %v4475 = vld [vmem:[%s1545 + $0x348] sm:$0xff]
        %v4476 = vld [vmem:[%s1545 + $0x350] sm:$0xff]
        %v4477 = vld [vmem:[%s1545 + $0x358] sm:$0xff]
        %v4478 = vld [vmem:[%s1545 + $0x360] sm:$0xff]
        %v4479 = vld [vmem:[%s1545 + $0x368] sm:$0xff]
        %v4480 = vld [vmem:[%s1545 + $0x370] sm:$0xff]
        %v4481 = vld [vmem:[%s1545 + $0x378] sm:$0xff]
        %v4482 = vld [vmem:[%s1545 + $0x380] sm:$0xff]
        %v4483 = vld [vmem:[%s1545 + $0x388] sm:$0xff]
        %v4484 = vld [vmem:[%s1545 + $0x390] sm:$0xff]
        %v4485 = vld [vmem:[%s1545 + $0x398] sm:$0xff]
        %v4486 = vld [vmem:[%s1545 + $0x3a0] sm:$0xff]
        %v4487 = vld [vmem:[%s1545 + $0x3a8] sm:$0xff]
        %v4488 = vld [vmem:[%s1545 + $0x3b0] sm:$0xff]
        %v4489 = vld [vmem:[%s1545 + $0x3b8] sm:$0xff]
        %v4490 = vld [vmem:[%s1545 + $0x3c0] sm:$0xff]
        %v4491 = vld [vmem:[%s1545 + $0x3c8] sm:$0xff]
        %v4492 = vld [vmem:[%s1545 + $0x3d0] sm:$0xff]
        %v4493 = vld [vmem:[%s1545 + $0x3d8] sm:$0xff]
        %v4494 = vld [vmem:[%s1545 + $0x3e0] sm:$0xff]
        %v4495 = vld [vmem:[%s1545 + $0x3e8] sm:$0xff]
        %v4496 = vld [vmem:[%s1545 + $0x3f0] sm:$0xff]
        %v4497 = vld [vmem:[%s1545 + $0x3f8] sm:$0xff]
        %v4498 = vld [vmem:[%s1545 + $0x400] sm:$0xff]
        %v4499 = vld [vmem:[%s1545 + $0x408] sm:$0xff]
        %v4500 = vld [vmem:[%s1545 + $0x410] sm:$0xff]
        %v4501 = vld [vmem:[%s1545 + $0x418] sm:$0xff]
        %v4502 = vld [vmem:[%s1545 + $0x420] sm:$0xff]
        %v4503 = vld [vmem:[%s1545 + $0x428] sm:$0xff]
        %v4504 = vld [vmem:[%s1545 + $0x430] sm:$0xff]
        %v4505 = vld [vmem:[%s1545 + $0x438] sm:$0xff]
        %v4506 = vld [vmem:[%s1545 + $0x440] sm:$0xff]
        %v4507 = vld [vmem:[%s1545 + $0x448] sm:$0xff]
        %v4508 = vld [vmem:[%s1545 + $0x450] sm:$0xff]
        %v4509 = vld [vmem:[%s1545 + $0x458] sm:$0xff]
        %v4510 = vld [vmem:[%s1545 + $0x460] sm:$0xff]
        %v4511 = vld [vmem:[%s1545 + $0x468] sm:$0xff]
        %v4512 = vld [vmem:[%s1545 + $0x470] sm:$0xff]
        %v4513 = vld [vmem:[%s1545 + $0x478] sm:$0xff]
        %v4514 = vld [vmem:[%s1545 + $0x480] sm:$0xff]
        %v4515 = vld [vmem:[%s1545 + $0x488] sm:$0xff]
        %v4516 = vld [vmem:[%s1545 + $0x490] sm:$0xff]
        %v4517 = vld [vmem:[%s1545 + $0x498] sm:$0xff]
        %v4518 = vld [vmem:[%s1545 + $0x4a0] sm:$0xff]
        %v4519 = vld [vmem:[%s1545 + $0x4a8] sm:$0xff]
        %v4520 = vld [vmem:[%s1545 + $0x4b0] sm:$0xff]
        %v4521 = vld [vmem:[%s1545 + $0x4b8] sm:$0xff]
        %v4522 = vld [vmem:[%s1545 + $0x4c0] sm:$0xff]
        %v4523 = vld [vmem:[%s1545 + $0x4c8] sm:$0xff]
        %v4524 = vld [vmem:[%s1545 + $0x4d0] sm:$0xff]
        %v4525 = vld [vmem:[%s1545 + $0x4d8] sm:$0xff]
        %v4526 = vld [vmem:[%s1545 + $0x4e0] sm:$0xff]
        %v4527 = vld [vmem:[%s1545 + $0x4e8] sm:$0xff]
        %v4528 = vld [vmem:[%s1545 + $0x4f0] sm:$0xff]
        %v4529 = vld [vmem:[%s1545 + $0x4f8] sm:$0xff]
        %v4530 = vld [vmem:[%s1545 + $0x500] sm:$0xff]
        %v4531 = vld [vmem:[%s1545 + $0x508] sm:$0xff]
        %v4532 = vld [vmem:[%s1545 + $0x510] sm:$0xff]
        %v4533 = vld [vmem:[%s1545 + $0x518] sm:$0xff]
        %v4534 = vld [vmem:[%s1545 + $0x520] sm:$0xff]
        %v4535 = vld [vmem:[%s1545 + $0x528] sm:$0xff]
        %v4536 = vld [vmem:[%s1545 + $0x530] sm:$0xff]
        %v4537 = vld [vmem:[%s1545 + $0x538] sm:$0xff]
        %v4538 = vld [vmem:[%s1545 + $0x540] sm:$0xff]
        %v4539 = vld [vmem:[%s1545 + $0x548] sm:$0xff]
        %v4540 = vld [vmem:[%s1545 + $0x550] sm:$0xff]
        %v4541 = vld [vmem:[%s1545 + $0x558] sm:$0xff]
        %v4542 = vld [vmem:[%s1545 + $0x560] sm:$0xff]
        %v4543 = vld [vmem:[%s1545 + $0x568] sm:$0xff]
        %v4544 = vld [vmem:[%s1545 + $0x570] sm:$0xff]
        %v4545 = vld [vmem:[%s1545 + $0x578] sm:$0xff]
        %v4546 = vld [vmem:[%s1545 + $0x580] sm:$0xff]
        %v4547 = vld [vmem:[%s1545 + $0x588] sm:$0xff]
        %v4548 = vld [vmem:[%s1545 + $0x590] sm:$0xff]
        %v4549 = vld [vmem:[%s1545 + $0x598] sm:$0xff]
        %v4550 = vld [vmem:[%s1545 + $0x5a0] sm:$0xff]
        %v4551 = vld [vmem:[%s1545 + $0x5a8] sm:$0xff]
        %v4552 = vld [vmem:[%s1545 + $0x5b0] sm:$0xff]
        %v4553 = vld [vmem:[%s1545 + $0x5b8] sm:$0xff]
        %v4554 = vld [vmem:[%s1545 + $0x5c0] sm:$0xff]
        %v4555 = vld [vmem:[%s1545 + $0x5c8] sm:$0xff]
        %v4556 = vld [vmem:[%s1545 + $0x5d0] sm:$0xff]
        %v4557 = vld [vmem:[%s1545 + $0x5d8] sm:$0xff]
        %v4558 = vld [vmem:[%s1545 + $0x5e0] sm:$0xff]
        %v4559 = vld [vmem:[%s1545 + $0x5e8] sm:$0xff]
        %v4560 = vld [vmem:[%s1545 + $0x5f0] sm:$0xff]
        %v4561 = vld [vmem:[%s1545 + $0x5f8] sm:$0xff]
        %v4562 = vld [vmem:[%s1545 + $0x600] sm:$0xff]
        %v4563 = vld [vmem:[%s1545 + $0x608] sm:$0xff]
        %v4564 = vld [vmem:[%s1545 + $0x610] sm:$0xff]
        %v4565 = vld [vmem:[%s1545 + $0x618] sm:$0xff]
        %v4566 = vld [vmem:[%s1545 + $0x620] sm:$0xff]
        %v4567 = vld [vmem:[%s1545 + $0x628] sm:$0xff]
        %v4568 = vld [vmem:[%s1545 + $0x630] sm:$0xff]
        %v4569 = vld [vmem:[%s1545 + $0x638] sm:$0xff]
        %v4570 = vld [vmem:[%s1545 + $0x640] sm:$0xff]
        %v4571 = vld [vmem:[%s1545 + $0x648] sm:$0xff]
        %v4572 = vld [vmem:[%s1545 + $0x650] sm:$0xff]
        %v4573 = vld [vmem:[%s1545 + $0x658] sm:$0xff]
        %v4574 = vld [vmem:[%s1545 + $0x660] sm:$0xff]
        %v4575 = vld [vmem:[%s1545 + $0x668] sm:$0xff]
        %v4576 = vld [vmem:[%s1545 + $0x670] sm:$0xff]
        %v4577 = vld [vmem:[%s1545 + $0x678] sm:$0xff]
        %v4578 = vld [vmem:[%s1545 + $0x680] sm:$0xff]
        %v4579 = vld [vmem:[%s1545 + $0x688] sm:$0xff]
        %v4580 = vld [vmem:[%s1545 + $0x690] sm:$0xff]
        %v4581 = vld [vmem:[%s1545 + $0x698] sm:$0xff]
        %v4582 = vld [vmem:[%s1545 + $0x6a0] sm:$0xff]
        %v4583 = vld [vmem:[%s1545 + $0x6a8] sm:$0xff]
        %v4584 = vld [vmem:[%s1545 + $0x6b0] sm:$0xff]
        %v4585 = vld [vmem:[%s1545 + $0x6b8] sm:$0xff]
        %v4586 = vld [vmem:[%s1545 + $0x6c0] sm:$0xff]
        %v4587 = vld [vmem:[%s1545 + $0x6c8] sm:$0xff]
        %v4588 = vld [vmem:[%s1545 + $0x6d0] sm:$0xff]
        %v4589 = vld [vmem:[%s1545 + $0x6d8] sm:$0xff]
        %v4590 = vld [vmem:[%s1545 + $0x6e0] sm:$0xff]
        %v4591 = vld [vmem:[%s1545 + $0x6e8] sm:$0xff]
        %v4592 = vld [vmem:[%s1545 + $0x6f0] sm:$0xff]
        %v4593 = vld [vmem:[%s1545 + $0x6f8] sm:$0xff]
        %v4594 = vld [vmem:[%s1545 + $0x700] sm:$0xff]
        %v4595 = vld [vmem:[%s1545 + $0x708] sm:$0xff]
        %v4596 = vld [vmem:[%s1545 + $0x710] sm:$0xff]
        %v4597 = vld [vmem:[%s1545 + $0x718] sm:$0xff]
        %v4598 = vld [vmem:[%s1545 + $0x720] sm:$0xff]
        %v4599 = vld [vmem:[%s1545 + $0x728] sm:$0xff]
        %v4600 = vld [vmem:[%s1545 + $0x730] sm:$0xff]
        %v4601 = vld [vmem:[%s1545 + $0x738] sm:$0xff]
        %v4602 = vld [vmem:[%s1545 + $0x740] sm:$0xff]
        %v4603 = vld [vmem:[%s1545 + $0x748] sm:$0xff]
        %v4604 = vld [vmem:[%s1545 + $0x750] sm:$0xff]
        %v4605 = vld [vmem:[%s1545 + $0x758] sm:$0xff]
        %v4606 = vld [vmem:[%s1545 + $0x760] sm:$0xff]
        %v4607 = vld [vmem:[%s1545 + $0x768] sm:$0xff]
        %v4608 = vld [vmem:[%s1545 + $0x770] sm:$0xff]
        %v4609 = vld [vmem:[%s1545 + $0x778] sm:$0xff]
        %v4610 = vld [vmem:[%s1545 + $0x780] sm:$0xff]
        %v4611 = vld [vmem:[%s1545 + $0x788] sm:$0xff]
        %v4612 = vld [vmem:[%s1545 + $0x790] sm:$0xff]
        %v4613 = vld [vmem:[%s1545 + $0x798] sm:$0xff]
        %v4614 = vld [vmem:[%s1545 + $0x7a0] sm:$0xff]
        %v4615 = vld [vmem:[%s1545 + $0x7a8] sm:$0xff]
        %v4616 = vld [vmem:[%s1545 + $0x7b0] sm:$0xff]
        %v4617 = vld [vmem:[%s1545 + $0x7b8] sm:$0xff]
        %v4618 = vld [vmem:[%s1545 + $0x7c0] sm:$0xff]
        %v4619 = vld [vmem:[%s1545 + $0x7c8] sm:$0xff]
        %v4620 = vld [vmem:[%s1545 + $0x7d0] sm:$0xff]
        %v4621 = vld [vmem:[%s1545 + $0x7d8] sm:$0xff]
        %v4622 = vld [vmem:[%s1545 + $0x7e0] sm:$0xff]
        %v4623 = vld [vmem:[%s1545 + $0x7e8] sm:$0xff]
        %v4624 = vld [vmem:[%s1545 + $0x7f0] sm:$0xff]
        %v4625 = vld [vmem:[%s1545 + $0x7f8] sm:$0xff]
        %s4626 = sld [smem:[#allocation7 + $0x101]]
        %v4627 = vstv %s4626
        %v4628 = vmul.f32 %v4370, %v4627
        %v4629 = vmul.f32 %v4371, %v4627
        %v4630 = vmul.f32 %v4372, %v4627
        %v4631 = vmul.f32 %v4373, %v4627
        %v4632 = vmul.f32 %v4374, %v4627
        %v4633 = vmul.f32 %v4375, %v4627
        %v4634 = vmul.f32 %v4376, %v4627
        %v4635 = vmul.f32 %v4377, %v4627
        %v4636 = vmul.f32 %v4378, %v4627
        %v4637 = vmul.f32 %v4379, %v4627
        %v4638 = vmul.f32 %v4380, %v4627
        %v4639 = vmul.f32 %v4381, %v4627
        %v4640 = vmul.f32 %v4382, %v4627
        %v4641 = vmul.f32 %v4383, %v4627
        %v4642 = vmul.f32 %v4384, %v4627
        %v4643 = vmul.f32 %v4385, %v4627
        %v4644 = vmul.f32 %v4386, %v4627
        %v4645 = vmul.f32 %v4387, %v4627
        %v4646 = vmul.f32 %v4388, %v4627
        %v4647 = vmul.f32 %v4389, %v4627
        %v4648 = vmul.f32 %v4390, %v4627
        %v4649 = vmul.f32 %v4391, %v4627
        %v4650 = vmul.f32 %v4392, %v4627
        %v4651 = vmul.f32 %v4393, %v4627
        %v4652 = vmul.f32 %v4394, %v4627
        %v4653 = vmul.f32 %v4395, %v4627
        %v4654 = vmul.f32 %v4396, %v4627
        %v4655 = vmul.f32 %v4397, %v4627
        %v4656 = vmul.f32 %v4398, %v4627
        %v4657 = vmul.f32 %v4399, %v4627
        %v4658 = vmul.f32 %v4400, %v4627
        %v4659 = vmul.f32 %v4401, %v4627
        %v4660 = vmul.f32 %v4402, %v4627
        %v4661 = vmul.f32 %v4403, %v4627
        %v4662 = vmul.f32 %v4404, %v4627
        %v4663 = vmul.f32 %v4405, %v4627
        %v4664 = vmul.f32 %v4406, %v4627
        %v4665 = vmul.f32 %v4407, %v4627
        %v4666 = vmul.f32 %v4408, %v4627
        %v4667 = vmul.f32 %v4409, %v4627
        %v4668 = vmul.f32 %v4410, %v4627
        %v4669 = vmul.f32 %v4411, %v4627
        %v4670 = vmul.f32 %v4412, %v4627
        %v4671 = vmul.f32 %v4413, %v4627
        %v4672 = vmul.f32 %v4414, %v4627
        %v4673 = vmul.f32 %v4415, %v4627
        %v4674 = vmul.f32 %v4416, %v4627
        %v4675 = vmul.f32 %v4417, %v4627
        %v4676 = vmul.f32 %v4418, %v4627
        %v4677 = vmul.f32 %v4419, %v4627
        %v4678 = vmul.f32 %v4420, %v4627
        %v4679 = vmul.f32 %v4421, %v4627
        %v4680 = vmul.f32 %v4422, %v4627
        %v4681 = vmul.f32 %v4423, %v4627
        %v4682 = vmul.f32 %v4424, %v4627
        %v4683 = vmul.f32 %v4425, %v4627
        %v4684 = vmul.f32 %v4426, %v4627
        %v4685 = vmul.f32 %v4427, %v4627
        %v4686 = vmul.f32 %v4428, %v4627
        %v4687 = vmul.f32 %v4429, %v4627
        %v4688 = vmul.f32 %v4430, %v4627
        %v4689 = vmul.f32 %v4431, %v4627
        %v4690 = vmul.f32 %v4432, %v4627
        %v4691 = vmul.f32 %v4433, %v4627
        %v4692 = vmul.f32 %v4434, %v4627
        %v4693 = vmul.f32 %v4435, %v4627
        %v4694 = vmul.f32 %v4436, %v4627
        %v4695 = vmul.f32 %v4437, %v4627
        %v4696 = vmul.f32 %v4438, %v4627
        %v4697 = vmul.f32 %v4439, %v4627
        %v4698 = vmul.f32 %v4440, %v4627
        %v4699 = vmul.f32 %v4441, %v4627
        %v4700 = vmul.f32 %v4442, %v4627
        %v4701 = vmul.f32 %v4443, %v4627
        %v4702 = vmul.f32 %v4444, %v4627
        %v4703 = vmul.f32 %v4445, %v4627
        %v4704 = vmul.f32 %v4446, %v4627
        %v4705 = vmul.f32 %v4447, %v4627
        %v4706 = vmul.f32 %v4448, %v4627
        %v4707 = vmul.f32 %v4449, %v4627
        %v4708 = vmul.f32 %v4450, %v4627
        %v4709 = vmul.f32 %v4451, %v4627
        %v4710 = vmul.f32 %v4452, %v4627
        %v4711 = vmul.f32 %v4453, %v4627
        %v4712 = vmul.f32 %v4454, %v4627
        %v4713 = vmul.f32 %v4455, %v4627
        %v4714 = vmul.f32 %v4456, %v4627
        %v4715 = vmul.f32 %v4457, %v4627
        %v4716 = vmul.f32 %v4458, %v4627
        %v4717 = vmul.f32 %v4459, %v4627
        %v4718 = vmul.f32 %v4460, %v4627
        %v4719 = vmul.f32 %v4461, %v4627
        %v4720 = vmul.f32 %v4462, %v4627
        %v4721 = vmul.f32 %v4463, %v4627
        %v4722 = vmul.f32 %v4464, %v4627
        %v4723 = vmul.f32 %v4465, %v4627
        %v4724 = vmul.f32 %v4466, %v4627
        %v4725 = vmul.f32 %v4467, %v4627
        %v4726 = vmul.f32 %v4468, %v4627
        %v4727 = vmul.f32 %v4469, %v4627
        %v4728 = vmul.f32 %v4470, %v4627
        %v4729 = vmul.f32 %v4471, %v4627
        %v4730 = vmul.f32 %v4472, %v4627
        %v4731 = vmul.f32 %v4473, %v4627
        %v4732 = vmul.f32 %v4474, %v4627
        %v4733 = vmul.f32 %v4475, %v4627
        %v4734 = vmul.f32 %v4476, %v4627
        %v4735 = vmul.f32 %v4477, %v4627
        %v4736 = vmul.f32 %v4478, %v4627
        %v4737 = vmul.f32 %v4479, %v4627
        %v4738 = vmul.f32 %v4480, %v4627
        %v4739 = vmul.f32 %v4481, %v4627
        %v4740 = vmul.f32 %v4482, %v4627
        %v4741 = vmul.f32 %v4483, %v4627
        %v4742 = vmul.f32 %v4484, %v4627
        %v4743 = vmul.f32 %v4485, %v4627
        %v4744 = vmul.f32 %v4486, %v4627
        %v4745 = vmul.f32 %v4487, %v4627
        %v4746 = vmul.f32 %v4488, %v4627
        %v4747 = vmul.f32 %v4489, %v4627
        %v4748 = vmul.f32 %v4490, %v4627
        %v4749 = vmul.f32 %v4491, %v4627
        %v4750 = vmul.f32 %v4492, %v4627
        %v4751 = vmul.f32 %v4493, %v4627
        %v4752 = vmul.f32 %v4494, %v4627
        %v4753 = vmul.f32 %v4495, %v4627
        %v4754 = vmul.f32 %v4496, %v4627
        %v4755 = vmul.f32 %v4497, %v4627
        %v4756 = vmul.f32 %v4498, %v4627
        %v4757 = vmul.f32 %v4499, %v4627
        %v4758 = vmul.f32 %v4500, %v4627
        %v4759 = vmul.f32 %v4501, %v4627
        %v4760 = vmul.f32 %v4502, %v4627
        %v4761 = vmul.f32 %v4503, %v4627
        %v4762 = vmul.f32 %v4504, %v4627
        %v4763 = vmul.f32 %v4505, %v4627
        %v4764 = vmul.f32 %v4506, %v4627
        %v4765 = vmul.f32 %v4507, %v4627
        %v4766 = vmul.f32 %v4508, %v4627
        %v4767 = vmul.f32 %v4509, %v4627
        %v4768 = vmul.f32 %v4510, %v4627
        %v4769 = vmul.f32 %v4511, %v4627
        %v4770 = vmul.f32 %v4512, %v4627
        %v4771 = vmul.f32 %v4513, %v4627
        %v4772 = vmul.f32 %v4514, %v4627
        %v4773 = vmul.f32 %v4515, %v4627
        %v4774 = vmul.f32 %v4516, %v4627
        %v4775 = vmul.f32 %v4517, %v4627
        %v4776 = vmul.f32 %v4518, %v4627
        %v4777 = vmul.f32 %v4519, %v4627
        %v4778 = vmul.f32 %v4520, %v4627
        %v4779 = vmul.f32 %v4521, %v4627
        %v4780 = vmul.f32 %v4522, %v4627
        %v4781 = vmul.f32 %v4523, %v4627
        %v4782 = vmul.f32 %v4524, %v4627
        %v4783 = vmul.f32 %v4525, %v4627
        %v4784 = vmul.f32 %v4526, %v4627
        %v4785 = vmul.f32 %v4527, %v4627
        %v4786 = vmul.f32 %v4528, %v4627
        %v4787 = vmul.f32 %v4529, %v4627
        %v4788 = vmul.f32 %v4530, %v4627
        %v4789 = vmul.f32 %v4531, %v4627
        %v4790 = vmul.f32 %v4532, %v4627
        %v4791 = vmul.f32 %v4533, %v4627
        %v4792 = vmul.f32 %v4534, %v4627
        %v4793 = vmul.f32 %v4535, %v4627
        %v4794 = vmul.f32 %v4536, %v4627
        %v4795 = vmul.f32 %v4537, %v4627
        %v4796 = vmul.f32 %v4538, %v4627
        %v4797 = vmul.f32 %v4539, %v4627
        %v4798 = vmul.f32 %v4540, %v4627
        %v4799 = vmul.f32 %v4541, %v4627
        %v4800 = vmul.f32 %v4542, %v4627
        %v4801 = vmul.f32 %v4543, %v4627
        %v4802 = vmul.f32 %v4544, %v4627
        %v4803 = vmul.f32 %v4545, %v4627
        %v4804 = vmul.f32 %v4546, %v4627
        %v4805 = vmul.f32 %v4547, %v4627
        %v4806 = vmul.f32 %v4548, %v4627
        %v4807 = vmul.f32 %v4549, %v4627
        %v4808 = vmul.f32 %v4550, %v4627
        %v4809 = vmul.f32 %v4551, %v4627
        %v4810 = vmul.f32 %v4552, %v4627
        %v4811 = vmul.f32 %v4553, %v4627
        %v4812 = vmul.f32 %v4554, %v4627
        %v4813 = vmul.f32 %v4555, %v4627
        %v4814 = vmul.f32 %v4556, %v4627
        %v4815 = vmul.f32 %v4557, %v4627
        %v4816 = vmul.f32 %v4558, %v4627
        %v4817 = vmul.f32 %v4559, %v4627
        %v4818 = vmul.f32 %v4560, %v4627
        %v4819 = vmul.f32 %v4561, %v4627
        %v4820 = vmul.f32 %v4562, %v4627
        %v4821 = vmul.f32 %v4563, %v4627
        %v4822 = vmul.f32 %v4564, %v4627
        %v4823 = vmul.f32 %v4565, %v4627
        %v4824 = vmul.f32 %v4566, %v4627
        %v4825 = vmul.f32 %v4567, %v4627
        %v4826 = vmul.f32 %v4568, %v4627
        %v4827 = vmul.f32 %v4569, %v4627
        %v4828 = vmul.f32 %v4570, %v4627
        %v4829 = vmul.f32 %v4571, %v4627
        %v4830 = vmul.f32 %v4572, %v4627
        %v4831 = vmul.f32 %v4573, %v4627
        %v4832 = vmul.f32 %v4574, %v4627
        %v4833 = vmul.f32 %v4575, %v4627
        %v4834 = vmul.f32 %v4576, %v4627
        %v4835 = vmul.f32 %v4577, %v4627
        %v4836 = vmul.f32 %v4578, %v4627
        %v4837 = vmul.f32 %v4579, %v4627
        %v4838 = vmul.f32 %v4580, %v4627
        %v4839 = vmul.f32 %v4581, %v4627
        %v4840 = vmul.f32 %v4582, %v4627
        %v4841 = vmul.f32 %v4583, %v4627
        %v4842 = vmul.f32 %v4584, %v4627
        %v4843 = vmul.f32 %v4585, %v4627
        %v4844 = vmul.f32 %v4586, %v4627
        %v4845 = vmul.f32 %v4587, %v4627
        %v4846 = vmul.f32 %v4588, %v4627
        %v4847 = vmul.f32 %v4589, %v4627
        %v4848 = vmul.f32 %v4590, %v4627
        %v4849 = vmul.f32 %v4591, %v4627
        %v4850 = vmul.f32 %v4592, %v4627
        %v4851 = vmul.f32 %v4593, %v4627
        %v4852 = vmul.f32 %v4594, %v4627
        %v4853 = vmul.f32 %v4595, %v4627
        %v4854 = vmul.f32 %v4596, %v4627
        %v4855 = vmul.f32 %v4597, %v4627
        %v4856 = vmul.f32 %v4598, %v4627
        %v4857 = vmul.f32 %v4599, %v4627
        %v4858 = vmul.f32 %v4600, %v4627
        %v4859 = vmul.f32 %v4601, %v4627
        %v4860 = vmul.f32 %v4602, %v4627
        %v4861 = vmul.f32 %v4603, %v4627
        %v4862 = vmul.f32 %v4604, %v4627
        %v4863 = vmul.f32 %v4605, %v4627
        %v4864 = vmul.f32 %v4606, %v4627
        %v4865 = vmul.f32 %v4607, %v4627
        %v4866 = vmul.f32 %v4608, %v4627
        %v4867 = vmul.f32 %v4609, %v4627
        %v4868 = vmul.f32 %v4610, %v4627
        %v4869 = vmul.f32 %v4611, %v4627
        %v4870 = vmul.f32 %v4612, %v4627
        %v4871 = vmul.f32 %v4613, %v4627
        %v4872 = vmul.f32 %v4614, %v4627
        %v4873 = vmul.f32 %v4615, %v4627
        %v4874 = vmul.f32 %v4616, %v4627
        %v4875 = vmul.f32 %v4617, %v4627
        %v4876 = vmul.f32 %v4618, %v4627
        %v4877 = vmul.f32 %v4619, %v4627
        %v4878 = vmul.f32 %v4620, %v4627
        %v4879 = vmul.f32 %v4621, %v4627
        %v4880 = vmul.f32 %v4622, %v4627
        %v4881 = vmul.f32 %v4623, %v4627
        %v4882 = vmul.f32 %v4624, %v4627
        %v4883 = vmul.f32 %v4625, %v4627
        %v4884 = vadd.f32 %v4114, %v4628
        %v4885 = vadd.f32 %v4115, %v4629
        %v4886 = vadd.f32 %v4116, %v4630
        %v4887 = vadd.f32 %v4117, %v4631
        %v4888 = vadd.f32 %v4118, %v4632
        %v4889 = vadd.f32 %v4119, %v4633
        %v4890 = vadd.f32 %v4120, %v4634
        %v4891 = vadd.f32 %v4121, %v4635
        %v4892 = vadd.f32 %v4122, %v4636
        %v4893 = vadd.f32 %v4123, %v4637
        %v4894 = vadd.f32 %v4124, %v4638
        %v4895 = vadd.f32 %v4125, %v4639
        %v4896 = vadd.f32 %v4126, %v4640
        %v4897 = vadd.f32 %v4127, %v4641
        %v4898 = vadd.f32 %v4128, %v4642
        %v4899 = vadd.f32 %v4129, %v4643
        %v4900 = vadd.f32 %v4130, %v4644
        %v4901 = vadd.f32 %v4131, %v4645
        %v4902 = vadd.f32 %v4132, %v4646
        %v4903 = vadd.f32 %v4133, %v4647
        %v4904 = vadd.f32 %v4134, %v4648
        %v4905 = vadd.f32 %v4135, %v4649
        %v4906 = vadd.f32 %v4136, %v4650
        %v4907 = vadd.f32 %v4137, %v4651
        %v4908 = vadd.f32 %v4138, %v4652
        %v4909 = vadd.f32 %v4139, %v4653
        %v4910 = vadd.f32 %v4140, %v4654
        %v4911 = vadd.f32 %v4141, %v4655
        %v4912 = vadd.f32 %v4142, %v4656
        %v4913 = vadd.f32 %v4143, %v4657
        %v4914 = vadd.f32 %v4144, %v4658
        %v4915 = vadd.f32 %v4145, %v4659
        %v4916 = vadd.f32 %v4146, %v4660
        %v4917 = vadd.f32 %v4147, %v4661
        %v4918 = vadd.f32 %v4148, %v4662
        %v4919 = vadd.f32 %v4149, %v4663
        %v4920 = vadd.f32 %v4150, %v4664
        %v4921 = vadd.f32 %v4151, %v4665
        %v4922 = vadd.f32 %v4152, %v4666
        %v4923 = vadd.f32 %v4153, %v4667
        %v4924 = vadd.f32 %v4154, %v4668
        %v4925 = vadd.f32 %v4155, %v4669
        %v4926 = vadd.f32 %v4156, %v4670
        %v4927 = vadd.f32 %v4157, %v4671
        %v4928 = vadd.f32 %v4158, %v4672
        %v4929 = vadd.f32 %v4159, %v4673
        %v4930 = vadd.f32 %v4160, %v4674
        %v4931 = vadd.f32 %v4161, %v4675
        %v4932 = vadd.f32 %v4162, %v4676
        %v4933 = vadd.f32 %v4163, %v4677
        %v4934 = vadd.f32 %v4164, %v4678
        %v4935 = vadd.f32 %v4165, %v4679
        %v4936 = vadd.f32 %v4166, %v4680
        %v4937 = vadd.f32 %v4167, %v4681
        %v4938 = vadd.f32 %v4168, %v4682
        %v4939 = vadd.f32 %v4169, %v4683
        %v4940 = vadd.f32 %v4170, %v4684
        %v4941 = vadd.f32 %v4171, %v4685
        %v4942 = vadd.f32 %v4172, %v4686
        %v4943 = vadd.f32 %v4173, %v4687
        %v4944 = vadd.f32 %v4174, %v4688
        %v4945 = vadd.f32 %v4175, %v4689
        %v4946 = vadd.f32 %v4176, %v4690
        %v4947 = vadd.f32 %v4177, %v4691
        %v4948 = vadd.f32 %v4178, %v4692
        %v4949 = vadd.f32 %v4179, %v4693
        %v4950 = vadd.f32 %v4180, %v4694
        %v4951 = vadd.f32 %v4181, %v4695
        %v4952 = vadd.f32 %v4182, %v4696
        %v4953 = vadd.f32 %v4183, %v4697
        %v4954 = vadd.f32 %v4184, %v4698
        %v4955 = vadd.f32 %v4185, %v4699
        %v4956 = vadd.f32 %v4186, %v4700
        %v4957 = vadd.f32 %v4187, %v4701
        %v4958 = vadd.f32 %v4188, %v4702
        %v4959 = vadd.f32 %v4189, %v4703
        %v4960 = vadd.f32 %v4190, %v4704
        %v4961 = vadd.f32 %v4191, %v4705
        %v4962 = vadd.f32 %v4192, %v4706
        %v4963 = vadd.f32 %v4193, %v4707
        %v4964 = vadd.f32 %v4194, %v4708
        %v4965 = vadd.f32 %v4195, %v4709
        %v4966 = vadd.f32 %v4196, %v4710
        %v4967 = vadd.f32 %v4197, %v4711
        %v4968 = vadd.f32 %v4198, %v4712
        %v4969 = vadd.f32 %v4199, %v4713
        %v4970 = vadd.f32 %v4200, %v4714
        %v4971 = vadd.f32 %v4201, %v4715
        %v4972 = vadd.f32 %v4202, %v4716
        %v4973 = vadd.f32 %v4203, %v4717
        %v4974 = vadd.f32 %v4204, %v4718
        %v4975 = vadd.f32 %v4205, %v4719
        %v4976 = vadd.f32 %v4206, %v4720
        %v4977 = vadd.f32 %v4207, %v4721
        %v4978 = vadd.f32 %v4208, %v4722
        %v4979 = vadd.f32 %v4209, %v4723
        %v4980 = vadd.f32 %v4210, %v4724
        %v4981 = vadd.f32 %v4211, %v4725
        %v4982 = vadd.f32 %v4212, %v4726
        %v4983 = vadd.f32 %v4213, %v4727
        %v4984 = vadd.f32 %v4214, %v4728
        %v4985 = vadd.f32 %v4215, %v4729
        %v4986 = vadd.f32 %v4216, %v4730
        %v4987 = vadd.f32 %v4217, %v4731
        %v4988 = vadd.f32 %v4218, %v4732
        %v4989 = vadd.f32 %v4219, %v4733
        %v4990 = vadd.f32 %v4220, %v4734
        %v4991 = vadd.f32 %v4221, %v4735
        %v4992 = vadd.f32 %v4222, %v4736
        %v4993 = vadd.f32 %v4223, %v4737
        %v4994 = vadd.f32 %v4224, %v4738
        %v4995 = vadd.f32 %v4225, %v4739
        %v4996 = vadd.f32 %v4226, %v4740
        %v4997 = vadd.f32 %v4227, %v4741
        %v4998 = vadd.f32 %v4228, %v4742
        %v4999 = vadd.f32 %v4229, %v4743
        %v5000 = vadd.f32 %v4230, %v4744
        %v5001 = vadd.f32 %v4231, %v4745
        %v5002 = vadd.f32 %v4232, %v4746
        %v5003 = vadd.f32 %v4233, %v4747
        %v5004 = vadd.f32 %v4234, %v4748
        %v5005 = vadd.f32 %v4235, %v4749
        %v5006 = vadd.f32 %v4236, %v4750
        %v5007 = vadd.f32 %v4237, %v4751
        %v5008 = vadd.f32 %v4238, %v4752
        %v5009 = vadd.f32 %v4239, %v4753
        %v5010 = vadd.f32 %v4240, %v4754
        %v5011 = vadd.f32 %v4241, %v4755
        %v5012 = vadd.f32 %v4242, %v4756
        %v5013 = vadd.f32 %v4243, %v4757
        %v5014 = vadd.f32 %v4244, %v4758
        %v5015 = vadd.f32 %v4245, %v4759
        %v5016 = vadd.f32 %v4246, %v4760
        %v5017 = vadd.f32 %v4247, %v4761
        %v5018 = vadd.f32 %v4248, %v4762
        %v5019 = vadd.f32 %v4249, %v4763
        %v5020 = vadd.f32 %v4250, %v4764
        %v5021 = vadd.f32 %v4251, %v4765
        %v5022 = vadd.f32 %v4252, %v4766
        %v5023 = vadd.f32 %v4253, %v4767
        %v5024 = vadd.f32 %v4254, %v4768
        %v5025 = vadd.f32 %v4255, %v4769
        %v5026 = vadd.f32 %v4256, %v4770
        %v5027 = vadd.f32 %v4257, %v4771
        %v5028 = vadd.f32 %v4258, %v4772
        %v5029 = vadd.f32 %v4259, %v4773
        %v5030 = vadd.f32 %v4260, %v4774
        %v5031 = vadd.f32 %v4261, %v4775
        %v5032 = vadd.f32 %v4262, %v4776
        %v5033 = vadd.f32 %v4263, %v4777
        %v5034 = vadd.f32 %v4264, %v4778
        %v5035 = vadd.f32 %v4265, %v4779
        %v5036 = vadd.f32 %v4266, %v4780
        %v5037 = vadd.f32 %v4267, %v4781
        %v5038 = vadd.f32 %v4268, %v4782
        %v5039 = vadd.f32 %v4269, %v4783
        %v5040 = vadd.f32 %v4270, %v4784
        %v5041 = vadd.f32 %v4271, %v4785
        %v5042 = vadd.f32 %v4272, %v4786
        %v5043 = vadd.f32 %v4273, %v4787
        %v5044 = vadd.f32 %v4274, %v4788
        %v5045 = vadd.f32 %v4275, %v4789
        %v5046 = vadd.f32 %v4276, %v4790
        %v5047 = vadd.f32 %v4277, %v4791
        %v5048 = vadd.f32 %v4278, %v4792
        %v5049 = vadd.f32 %v4279, %v4793
        %v5050 = vadd.f32 %v4280, %v4794
        %v5051 = vadd.f32 %v4281, %v4795
        %v5052 = vadd.f32 %v4282, %v4796
        %v5053 = vadd.f32 %v4283, %v4797
        %v5054 = vadd.f32 %v4284, %v4798
        %v5055 = vadd.f32 %v4285, %v4799
        %v5056 = vadd.f32 %v4286, %v4800
        %v5057 = vadd.f32 %v4287, %v4801
        %v5058 = vadd.f32 %v4288, %v4802
        %v5059 = vadd.f32 %v4289, %v4803
        %v5060 = vadd.f32 %v4290, %v4804
        %v5061 = vadd.f32 %v4291, %v4805
        %v5062 = vadd.f32 %v4292, %v4806
        %v5063 = vadd.f32 %v4293, %v4807
        %v5064 = vadd.f32 %v4294, %v4808
        %v5065 = vadd.f32 %v4295, %v4809
        %v5066 = vadd.f32 %v4296, %v4810
        %v5067 = vadd.f32 %v4297, %v4811
        %v5068 = vadd.f32 %v4298, %v4812
        %v5069 = vadd.f32 %v4299, %v4813
        %v5070 = vadd.f32 %v4300, %v4814
        %v5071 = vadd.f32 %v4301, %v4815
        %v5072 = vadd.f32 %v4302, %v4816
        %v5073 = vadd.f32 %v4303, %v4817
        %v5074 = vadd.f32 %v4304, %v4818
        %v5075 = vadd.f32 %v4305, %v4819
        %v5076 = vadd.f32 %v4306, %v4820
        %v5077 = vadd.f32 %v4307, %v4821
        %v5078 = vadd.f32 %v4308, %v4822
        %v5079 = vadd.f32 %v4309, %v4823
        %v5080 = vadd.f32 %v4310, %v4824
        %v5081 = vadd.f32 %v4311, %v4825
        %v5082 = vadd.f32 %v4312, %v4826
        %v5083 = vadd.f32 %v4313, %v4827
        %v5084 = vadd.f32 %v4314, %v4828
        %v5085 = vadd.f32 %v4315, %v4829
        %v5086 = vadd.f32 %v4316, %v4830
        %v5087 = vadd.f32 %v4317, %v4831
        %v5088 = vadd.f32 %v4318, %v4832
        %v5089 = vadd.f32 %v4319, %v4833
        %v5090 = vadd.f32 %v4320, %v4834
        %v5091 = vadd.f32 %v4321, %v4835
        %v5092 = vadd.f32 %v4322, %v4836
        %v5093 = vadd.f32 %v4323, %v4837
        %v5094 = vadd.f32 %v4324, %v4838
        %v5095 = vadd.f32 %v4325, %v4839
        %v5096 = vadd.f32 %v4326, %v4840
        %v5097 = vadd.f32 %v4327, %v4841
        %v5098 = vadd.f32 %v4328, %v4842
        %v5099 = vadd.f32 %v4329, %v4843
        %v5100 = vadd.f32 %v4330, %v4844
        %v5101 = vadd.f32 %v4331, %v4845
        %v5102 = vadd.f32 %v4332, %v4846
        %v5103 = vadd.f32 %v4333, %v4847
        %v5104 = vadd.f32 %v4334, %v4848
        %v5105 = vadd.f32 %v4335, %v4849
        %v5106 = vadd.f32 %v4336, %v4850
        %v5107 = vadd.f32 %v4337, %v4851
        %v5108 = vadd.f32 %v4338, %v4852
        %v5109 = vadd.f32 %v4339, %v4853
        %v5110 = vadd.f32 %v4340, %v4854
        %v5111 = vadd.f32 %v4341, %v4855
        %v5112 = vadd.f32 %v4342, %v4856
        %v5113 = vadd.f32 %v4343, %v4857
        %v5114 = vadd.f32 %v4344, %v4858
        %v5115 = vadd.f32 %v4345, %v4859
        %v5116 = vadd.f32 %v4346, %v4860
        %v5117 = vadd.f32 %v4347, %v4861
        %v5118 = vadd.f32 %v4348, %v4862
        %v5119 = vadd.f32 %v4349, %v4863
        %v5120 = vadd.f32 %v4350, %v4864
        %v5121 = vadd.f32 %v4351, %v4865
        %v5122 = vadd.f32 %v4352, %v4866
        %v5123 = vadd.f32 %v4353, %v4867
        %v5124 = vadd.f32 %v4354, %v4868
        %v5125 = vadd.f32 %v4355, %v4869
        %v5126 = vadd.f32 %v4356, %v4870
        %v5127 = vadd.f32 %v4357, %v4871
        %v5128 = vadd.f32 %v4358, %v4872
        %v5129 = vadd.f32 %v4359, %v4873
        %v5130 = vadd.f32 %v4360, %v4874
        %v5131 = vadd.f32 %v4361, %v4875
        %v5132 = vadd.f32 %v4362, %v4876
        %v5133 = vadd.f32 %v4363, %v4877
        %v5134 = vadd.f32 %v4364, %v4878
        %v5135 = vadd.f32 %v4365, %v4879
        %v5136 = vadd.f32 %v4366, %v4880
        %v5137 = vadd.f32 %v4367, %v4881
        %v5138 = vadd.f32 %v4368, %v4882
        %v5139 = vadd.f32 %v4369, %v4883
        %s5140 = sld [smem:[#allocation8 + $0x1]]
        %v5141 = vstv %s5140
        %v5142 = vadd.f32 %v4884, %v5141
        %v5143 = vadd.f32 %v4885, %v5141
        %v5144 = vadd.f32 %v4886, %v5141
        %v5145 = vadd.f32 %v4887, %v5141
        %v5146 = vadd.f32 %v4888, %v5141
        %v5147 = vadd.f32 %v4889, %v5141
        %v5148 = vadd.f32 %v4890, %v5141
        %v5149 = vadd.f32 %v4891, %v5141
        %v5150 = vadd.f32 %v4892, %v5141
        %v5151 = vadd.f32 %v4893, %v5141
        %v5152 = vadd.f32 %v4894, %v5141
        %v5153 = vadd.f32 %v4895, %v5141
        %v5154 = vadd.f32 %v4896, %v5141
        %v5155 = vadd.f32 %v4897, %v5141
        %v5156 = vadd.f32 %v4898, %v5141
        %v5157 = vadd.f32 %v4899, %v5141
        %v5158 = vadd.f32 %v4900, %v5141
        %v5159 = vadd.f32 %v4901, %v5141
        %v5160 = vadd.f32 %v4902, %v5141
        %v5161 = vadd.f32 %v4903, %v5141
        %v5162 = vadd.f32 %v4904, %v5141
        %v5163 = vadd.f32 %v4905, %v5141
        %v5164 = vadd.f32 %v4906, %v5141
        %v5165 = vadd.f32 %v4907, %v5141
        %v5166 = vadd.f32 %v4908, %v5141
        %v5167 = vadd.f32 %v4909, %v5141
        %v5168 = vadd.f32 %v4910, %v5141
        %v5169 = vadd.f32 %v4911, %v5141
        %v5170 = vadd.f32 %v4912, %v5141
        %v5171 = vadd.f32 %v4913, %v5141
        %v5172 = vadd.f32 %v4914, %v5141
        %v5173 = vadd.f32 %v4915, %v5141
        %v5174 = vadd.f32 %v4916, %v5141
        %v5175 = vadd.f32 %v4917, %v5141
        %v5176 = vadd.f32 %v4918, %v5141
        %v5177 = vadd.f32 %v4919, %v5141
        %v5178 = vadd.f32 %v4920, %v5141
        %v5179 = vadd.f32 %v4921, %v5141
        %v5180 = vadd.f32 %v4922, %v5141
        %v5181 = vadd.f32 %v4923, %v5141
        %v5182 = vadd.f32 %v4924, %v5141
        %v5183 = vadd.f32 %v4925, %v5141
        %v5184 = vadd.f32 %v4926, %v5141
        %v5185 = vadd.f32 %v4927, %v5141
        %v5186 = vadd.f32 %v4928, %v5141
        %v5187 = vadd.f32 %v4929, %v5141
        %v5188 = vadd.f32 %v4930, %v5141
        %v5189 = vadd.f32 %v4931, %v5141
        %v5190 = vadd.f32 %v4932, %v5141
        %v5191 = vadd.f32 %v4933, %v5141
        %v5192 = vadd.f32 %v4934, %v5141
        %v5193 = vadd.f32 %v4935, %v5141
        %v5194 = vadd.f32 %v4936, %v5141
        %v5195 = vadd.f32 %v4937, %v5141
        %v5196 = vadd.f32 %v4938, %v5141
        %v5197 = vadd.f32 %v4939, %v5141
        %v5198 = vadd.f32 %v4940, %v5141
        %v5199 = vadd.f32 %v4941, %v5141
        %v5200 = vadd.f32 %v4942, %v5141
        %v5201 = vadd.f32 %v4943, %v5141
        %v5202 = vadd.f32 %v4944, %v5141
        %v5203 = vadd.f32 %v4945, %v5141
        %v5204 = vadd.f32 %v4946, %v5141
        %v5205 = vadd.f32 %v4947, %v5141
        %v5206 = vadd.f32 %v4948, %v5141
        %v5207 = vadd.f32 %v4949, %v5141
        %v5208 = vadd.f32 %v4950, %v5141
        %v5209 = vadd.f32 %v4951, %v5141
        %v5210 = vadd.f32 %v4952, %v5141
        %v5211 = vadd.f32 %v4953, %v5141
        %v5212 = vadd.f32 %v4954, %v5141
        %v5213 = vadd.f32 %v4955, %v5141
        %v5214 = vadd.f32 %v4956, %v5141
        %v5215 = vadd.f32 %v4957, %v5141
        %v5216 = vadd.f32 %v4958, %v5141
        %v5217 = vadd.f32 %v4959, %v5141
        %v5218 = vadd.f32 %v4960, %v5141
        %v5219 = vadd.f32 %v4961, %v5141
        %v5220 = vadd.f32 %v4962, %v5141
        %v5221 = vadd.f32 %v4963, %v5141
        %v5222 = vadd.f32 %v4964, %v5141
        %v5223 = vadd.f32 %v4965, %v5141
        %v5224 = vadd.f32 %v4966, %v5141
        %v5225 = vadd.f32 %v4967, %v5141
        %v5226 = vadd.f32 %v4968, %v5141
        %v5227 = vadd.f32 %v4969, %v5141
        %v5228 = vadd.f32 %v4970, %v5141
        %v5229 = vadd.f32 %v4971, %v5141
        %v5230 = vadd.f32 %v4972, %v5141
        %v5231 = vadd.f32 %v4973, %v5141
        %v5232 = vadd.f32 %v4974, %v5141
        %v5233 = vadd.f32 %v4975, %v5141
        %v5234 = vadd.f32 %v4976, %v5141
        %v5235 = vadd.f32 %v4977, %v5141
        %v5236 = vadd.f32 %v4978, %v5141
        %v5237 = vadd.f32 %v4979, %v5141
        %v5238 = vadd.f32 %v4980, %v5141
        %v5239 = vadd.f32 %v4981, %v5141
        %v5240 = vadd.f32 %v4982, %v5141
        %v5241 = vadd.f32 %v4983, %v5141
        %v5242 = vadd.f32 %v4984, %v5141
        %v5243 = vadd.f32 %v4985, %v5141
        %v5244 = vadd.f32 %v4986, %v5141
        %v5245 = vadd.f32 %v4987, %v5141
        %v5246 = vadd.f32 %v4988, %v5141
        %v5247 = vadd.f32 %v4989, %v5141
        %v5248 = vadd.f32 %v4990, %v5141
        %v5249 = vadd.f32 %v4991, %v5141
        %v5250 = vadd.f32 %v4992, %v5141
        %v5251 = vadd.f32 %v4993, %v5141
        %v5252 = vadd.f32 %v4994, %v5141
        %v5253 = vadd.f32 %v4995, %v5141
        %v5254 = vadd.f32 %v4996, %v5141
        %v5255 = vadd.f32 %v4997, %v5141
        %v5256 = vadd.f32 %v4998, %v5141
        %v5257 = vadd.f32 %v4999, %v5141
        %v5258 = vadd.f32 %v5000, %v5141
        %v5259 = vadd.f32 %v5001, %v5141
        %v5260 = vadd.f32 %v5002, %v5141
        %v5261 = vadd.f32 %v5003, %v5141
        %v5262 = vadd.f32 %v5004, %v5141
        %v5263 = vadd.f32 %v5005, %v5141
        %v5264 = vadd.f32 %v5006, %v5141
        %v5265 = vadd.f32 %v5007, %v5141
        %v5266 = vadd.f32 %v5008, %v5141
        %v5267 = vadd.f32 %v5009, %v5141
        %v5268 = vadd.f32 %v5010, %v5141
        %v5269 = vadd.f32 %v5011, %v5141
        %v5270 = vadd.f32 %v5012, %v5141
        %v5271 = vadd.f32 %v5013, %v5141
        %v5272 = vadd.f32 %v5014, %v5141
        %v5273 = vadd.f32 %v5015, %v5141
        %v5274 = vadd.f32 %v5016, %v5141
        %v5275 = vadd.f32 %v5017, %v5141
        %v5276 = vadd.f32 %v5018, %v5141
        %v5277 = vadd.f32 %v5019, %v5141
        %v5278 = vadd.f32 %v5020, %v5141
        %v5279 = vadd.f32 %v5021, %v5141
        %v5280 = vadd.f32 %v5022, %v5141
        %v5281 = vadd.f32 %v5023, %v5141
        %v5282 = vadd.f32 %v5024, %v5141
        %v5283 = vadd.f32 %v5025, %v5141
        %v5284 = vadd.f32 %v5026, %v5141
        %v5285 = vadd.f32 %v5027, %v5141
        %v5286 = vadd.f32 %v5028, %v5141
        %v5287 = vadd.f32 %v5029, %v5141
        %v5288 = vadd.f32 %v5030, %v5141
        %v5289 = vadd.f32 %v5031, %v5141
        %v5290 = vadd.f32 %v5032, %v5141
        %v5291 = vadd.f32 %v5033, %v5141
        %v5292 = vadd.f32 %v5034, %v5141
        %v5293 = vadd.f32 %v5035, %v5141
        %v5294 = vadd.f32 %v5036, %v5141
        %v5295 = vadd.f32 %v5037, %v5141
        %v5296 = vadd.f32 %v5038, %v5141
        %v5297 = vadd.f32 %v5039, %v5141
        %v5298 = vadd.f32 %v5040, %v5141
        %v5299 = vadd.f32 %v5041, %v5141
        %v5300 = vadd.f32 %v5042, %v5141
        %v5301 = vadd.f32 %v5043, %v5141
        %v5302 = vadd.f32 %v5044, %v5141
        %v5303 = vadd.f32 %v5045, %v5141
        %v5304 = vadd.f32 %v5046, %v5141
        %v5305 = vadd.f32 %v5047, %v5141
        %v5306 = vadd.f32 %v5048, %v5141
        %v5307 = vadd.f32 %v5049, %v5141
        %v5308 = vadd.f32 %v5050, %v5141
        %v5309 = vadd.f32 %v5051, %v5141
        %v5310 = vadd.f32 %v5052, %v5141
        %v5311 = vadd.f32 %v5053, %v5141
        %v5312 = vadd.f32 %v5054, %v5141
        %v5313 = vadd.f32 %v5055, %v5141
        %v5314 = vadd.f32 %v5056, %v5141
        %v5315 = vadd.f32 %v5057, %v5141
        %v5316 = vadd.f32 %v5058, %v5141
        %v5317 = vadd.f32 %v5059, %v5141
        %v5318 = vadd.f32 %v5060, %v5141
        %v5319 = vadd.f32 %v5061, %v5141
        %v5320 = vadd.f32 %v5062, %v5141
        %v5321 = vadd.f32 %v5063, %v5141
        %v5322 = vadd.f32 %v5064, %v5141
        %v5323 = vadd.f32 %v5065, %v5141
        %v5324 = vadd.f32 %v5066, %v5141
        %v5325 = vadd.f32 %v5067, %v5141
        %v5326 = vadd.f32 %v5068, %v5141
        %v5327 = vadd.f32 %v5069, %v5141
        %v5328 = vadd.f32 %v5070, %v5141
        %v5329 = vadd.f32 %v5071, %v5141
        %v5330 = vadd.f32 %v5072, %v5141
        %v5331 = vadd.f32 %v5073, %v5141
        %v5332 = vadd.f32 %v5074, %v5141
        %v5333 = vadd.f32 %v5075, %v5141
        %v5334 = vadd.f32 %v5076, %v5141
        %v5335 = vadd.f32 %v5077, %v5141
        %v5336 = vadd.f32 %v5078, %v5141
        %v5337 = vadd.f32 %v5079, %v5141
        %v5338 = vadd.f32 %v5080, %v5141
        %v5339 = vadd.f32 %v5081, %v5141
        %v5340 = vadd.f32 %v5082, %v5141
        %v5341 = vadd.f32 %v5083, %v5141
        %v5342 = vadd.f32 %v5084, %v5141
        %v5343 = vadd.f32 %v5085, %v5141
        %v5344 = vadd.f32 %v5086, %v5141
        %v5345 = vadd.f32 %v5087, %v5141
        %v5346 = vadd.f32 %v5088, %v5141
        %v5347 = vadd.f32 %v5089, %v5141
        %v5348 = vadd.f32 %v5090, %v5141
        %v5349 = vadd.f32 %v5091, %v5141
        %v5350 = vadd.f32 %v5092, %v5141
        %v5351 = vadd.f32 %v5093, %v5141
        %v5352 = vadd.f32 %v5094, %v5141
        %v5353 = vadd.f32 %v5095, %v5141
        %v5354 = vadd.f32 %v5096, %v5141
        %v5355 = vadd.f32 %v5097, %v5141
        %v5356 = vadd.f32 %v5098, %v5141
        %v5357 = vadd.f32 %v5099, %v5141
        %v5358 = vadd.f32 %v5100, %v5141
        %v5359 = vadd.f32 %v5101, %v5141
        %v5360 = vadd.f32 %v5102, %v5141
        %v5361 = vadd.f32 %v5103, %v5141
        %v5362 = vadd.f32 %v5104, %v5141
        %v5363 = vadd.f32 %v5105, %v5141
        %v5364 = vadd.f32 %v5106, %v5141
        %v5365 = vadd.f32 %v5107, %v5141
        %v5366 = vadd.f32 %v5108, %v5141
        %v5367 = vadd.f32 %v5109, %v5141
        %v5368 = vadd.f32 %v5110, %v5141
        %v5369 = vadd.f32 %v5111, %v5141
        %v5370 = vadd.f32 %v5112, %v5141
        %v5371 = vadd.f32 %v5113, %v5141
        %v5372 = vadd.f32 %v5114, %v5141
        %v5373 = vadd.f32 %v5115, %v5141
        %v5374 = vadd.f32 %v5116, %v5141
        %v5375 = vadd.f32 %v5117, %v5141
        %v5376 = vadd.f32 %v5118, %v5141
        %v5377 = vadd.f32 %v5119, %v5141
        %v5378 = vadd.f32 %v5120, %v5141
        %v5379 = vadd.f32 %v5121, %v5141
        %v5380 = vadd.f32 %v5122, %v5141
        %v5381 = vadd.f32 %v5123, %v5141
        %v5382 = vadd.f32 %v5124, %v5141
        %v5383 = vadd.f32 %v5125, %v5141
        %v5384 = vadd.f32 %v5126, %v5141
        %v5385 = vadd.f32 %v5127, %v5141
        %v5386 = vadd.f32 %v5128, %v5141
        %v5387 = vadd.f32 %v5129, %v5141
        %v5388 = vadd.f32 %v5130, %v5141
        %v5389 = vadd.f32 %v5131, %v5141
        %v5390 = vadd.f32 %v5132, %v5141
        %v5391 = vadd.f32 %v5133, %v5141
        %v5392 = vadd.f32 %v5134, %v5141
        %v5393 = vadd.f32 %v5135, %v5141
        %v5394 = vadd.f32 %v5136, %v5141
        %v5395 = vadd.f32 %v5137, %v5141
        %v5396 = vadd.f32 %v5138, %v5141
        %v5397 = vadd.f32 %v5139, %v5141
        %v5398 = vtanh.pop %v5142
        %v5399 = vtanh.pop %v5143
        %v5400 = vtanh.pop %v5144
        %v5401 = vtanh.pop %v5145
        %v5402 = vtanh.pop %v5146
        %v5403 = vtanh.pop %v5147
        %v5404 = vtanh.pop %v5148
        %v5405 = vtanh.pop %v5149
        %v5406 = vtanh.pop %v5150
        %v5407 = vtanh.pop %v5151
        %v5408 = vtanh.pop %v5152
        %v5409 = vtanh.pop %v5153
        %v5410 = vtanh.pop %v5154
        %v5411 = vtanh.pop %v5155
        %v5412 = vtanh.pop %v5156
        %v5413 = vtanh.pop %v5157
        %v5414 = vtanh.pop %v5158
        %v5415 = vtanh.pop %v5159
        %v5416 = vtanh.pop %v5160
        %v5417 = vtanh.pop %v5161
        %v5418 = vtanh.pop %v5162
        %v5419 = vtanh.pop %v5163
        %v5420 = vtanh.pop %v5164
        %v5421 = vtanh.pop %v5165
        %v5422 = vtanh.pop %v5166
        %v5423 = vtanh.pop %v5167
        %v5424 = vtanh.pop %v5168
        %v5425 = vtanh.pop %v5169
        %v5426 = vtanh.pop %v5170
        %v5427 = vtanh.pop %v5171
        %v5428 = vtanh.pop %v5172
        %v5429 = vtanh.pop %v5173
        %v5430 = vtanh.pop %v5174
        %v5431 = vtanh.pop %v5175
        %v5432 = vtanh.pop %v5176
        %v5433 = vtanh.pop %v5177
        %v5434 = vtanh.pop %v5178
        %v5435 = vtanh.pop %v5179
        %v5436 = vtanh.pop %v5180
        %v5437 = vtanh.pop %v5181
        %v5438 = vtanh.pop %v5182
        %v5439 = vtanh.pop %v5183
        %v5440 = vtanh.pop %v5184
        %v5441 = vtanh.pop %v5185
        %v5442 = vtanh.pop %v5186
        %v5443 = vtanh.pop %v5187
        %v5444 = vtanh.pop %v5188
        %v5445 = vtanh.pop %v5189
        %v5446 = vtanh.pop %v5190
        %v5447 = vtanh.pop %v5191
        %v5448 = vtanh.pop %v5192
        %v5449 = vtanh.pop %v5193
        %v5450 = vtanh.pop %v5194
        %v5451 = vtanh.pop %v5195
        %v5452 = vtanh.pop %v5196
        %v5453 = vtanh.pop %v5197
        %v5454 = vtanh.pop %v5198
        %v5455 = vtanh.pop %v5199
        %v5456 = vtanh.pop %v5200
        %v5457 = vtanh.pop %v5201
        %v5458 = vtanh.pop %v5202
        %v5459 = vtanh.pop %v5203
        %v5460 = vtanh.pop %v5204
        %v5461 = vtanh.pop %v5205
        %v5462 = vtanh.pop %v5206
        %v5463 = vtanh.pop %v5207
        %v5464 = vtanh.pop %v5208
        %v5465 = vtanh.pop %v5209
        %v5466 = vtanh.pop %v5210
        %v5467 = vtanh.pop %v5211
        %v5468 = vtanh.pop %v5212
        %v5469 = vtanh.pop %v5213
        %v5470 = vtanh.pop %v5214
        %v5471 = vtanh.pop %v5215
        %v5472 = vtanh.pop %v5216
        %v5473 = vtanh.pop %v5217
        %v5474 = vtanh.pop %v5218
        %v5475 = vtanh.pop %v5219
        %v5476 = vtanh.pop %v5220
        %v5477 = vtanh.pop %v5221
        %v5478 = vtanh.pop %v5222
        %v5479 = vtanh.pop %v5223
        %v5480 = vtanh.pop %v5224
        %v5481 = vtanh.pop %v5225
        %v5482 = vtanh.pop %v5226
        %v5483 = vtanh.pop %v5227
        %v5484 = vtanh.pop %v5228
        %v5485 = vtanh.pop %v5229
        %v5486 = vtanh.pop %v5230
        %v5487 = vtanh.pop %v5231
        %v5488 = vtanh.pop %v5232
        %v5489 = vtanh.pop %v5233
        %v5490 = vtanh.pop %v5234
        %v5491 = vtanh.pop %v5235
        %v5492 = vtanh.pop %v5236
        %v5493 = vtanh.pop %v5237
        %v5494 = vtanh.pop %v5238
        %v5495 = vtanh.pop %v5239
        %v5496 = vtanh.pop %v5240
        %v5497 = vtanh.pop %v5241
        %v5498 = vtanh.pop %v5242
        %v5499 = vtanh.pop %v5243
        %v5500 = vtanh.pop %v5244
        %v5501 = vtanh.pop %v5245
        %v5502 = vtanh.pop %v5246
        %v5503 = vtanh.pop %v5247
        %v5504 = vtanh.pop %v5248
        %v5505 = vtanh.pop %v5249
        %v5506 = vtanh.pop %v5250
        %v5507 = vtanh.pop %v5251
        %v5508 = vtanh.pop %v5252
        %v5509 = vtanh.pop %v5253
        %v5510 = vtanh.pop %v5254
        %v5511 = vtanh.pop %v5255
        %v5512 = vtanh.pop %v5256
        %v5513 = vtanh.pop %v5257
        %v5514 = vtanh.pop %v5258
        %v5515 = vtanh.pop %v5259
        %v5516 = vtanh.pop %v5260
        %v5517 = vtanh.pop %v5261
        %v5518 = vtanh.pop %v5262
        %v5519 = vtanh.pop %v5263
        %v5520 = vtanh.pop %v5264
        %v5521 = vtanh.pop %v5265
        %v5522 = vtanh.pop %v5266
        %v5523 = vtanh.pop %v5267
        %v5524 = vtanh.pop %v5268
        %v5525 = vtanh.pop %v5269
        %v5526 = vtanh.pop %v5270
        %v5527 = vtanh.pop %v5271
        %v5528 = vtanh.pop %v5272
        %v5529 = vtanh.pop %v5273
        %v5530 = vtanh.pop %v5274
        %v5531 = vtanh.pop %v5275
        %v5532 = vtanh.pop %v5276
        %v5533 = vtanh.pop %v5277
        %v5534 = vtanh.pop %v5278
        %v5535 = vtanh.pop %v5279
        %v5536 = vtanh.pop %v5280
        %v5537 = vtanh.pop %v5281
        %v5538 = vtanh.pop %v5282
        %v5539 = vtanh.pop %v5283
        %v5540 = vtanh.pop %v5284
        %v5541 = vtanh.pop %v5285
        %v5542 = vtanh.pop %v5286
        %v5543 = vtanh.pop %v5287
        %v5544 = vtanh.pop %v5288
        %v5545 = vtanh.pop %v5289
        %v5546 = vtanh.pop %v5290
        %v5547 = vtanh.pop %v5291
        %v5548 = vtanh.pop %v5292
        %v5549 = vtanh.pop %v5293
        %v5550 = vtanh.pop %v5294
        %v5551 = vtanh.pop %v5295
        %v5552 = vtanh.pop %v5296
        %v5553 = vtanh.pop %v5297
        %v5554 = vtanh.pop %v5298
        %v5555 = vtanh.pop %v5299
        %v5556 = vtanh.pop %v5300
        %v5557 = vtanh.pop %v5301
        %v5558 = vtanh.pop %v5302
        %v5559 = vtanh.pop %v5303
        %v5560 = vtanh.pop %v5304
        %v5561 = vtanh.pop %v5305
        %v5562 = vtanh.pop %v5306
        %v5563 = vtanh.pop %v5307
        %v5564 = vtanh.pop %v5308
        %v5565 = vtanh.pop %v5309
        %v5566 = vtanh.pop %v5310
        %v5567 = vtanh.pop %v5311
        %v5568 = vtanh.pop %v5312
        %v5569 = vtanh.pop %v5313
        %v5570 = vtanh.pop %v5314
        %v5571 = vtanh.pop %v5315
        %v5572 = vtanh.pop %v5316
        %v5573 = vtanh.pop %v5317
        %v5574 = vtanh.pop %v5318
        %v5575 = vtanh.pop %v5319
        %v5576 = vtanh.pop %v5320
        %v5577 = vtanh.pop %v5321
        %v5578 = vtanh.pop %v5322
        %v5579 = vtanh.pop %v5323
        %v5580 = vtanh.pop %v5324
        %v5581 = vtanh.pop %v5325
        %v5582 = vtanh.pop %v5326
        %v5583 = vtanh.pop %v5327
        %v5584 = vtanh.pop %v5328
        %v5585 = vtanh.pop %v5329
        %v5586 = vtanh.pop %v5330
        %v5587 = vtanh.pop %v5331
        %v5588 = vtanh.pop %v5332
        %v5589 = vtanh.pop %v5333
        %v5590 = vtanh.pop %v5334
        %v5591 = vtanh.pop %v5335
        %v5592 = vtanh.pop %v5336
        %v5593 = vtanh.pop %v5337
        %v5594 = vtanh.pop %v5338
        %v5595 = vtanh.pop %v5339
        %v5596 = vtanh.pop %v5340
        %v5597 = vtanh.pop %v5341
        %v5598 = vtanh.pop %v5342
        %v5599 = vtanh.pop %v5343
        %v5600 = vtanh.pop %v5344
        %v5601 = vtanh.pop %v5345
        %v5602 = vtanh.pop %v5346
        %v5603 = vtanh.pop %v5347
        %v5604 = vtanh.pop %v5348
        %v5605 = vtanh.pop %v5349
        %v5606 = vtanh.pop %v5350
        %v5607 = vtanh.pop %v5351
        %v5608 = vtanh.pop %v5352
        %v5609 = vtanh.pop %v5353
        %v5610 = vtanh.pop %v5354
        %v5611 = vtanh.pop %v5355
        %v5612 = vtanh.pop %v5356
        %v5613 = vtanh.pop %v5357
        %v5614 = vtanh.pop %v5358
        %v5615 = vtanh.pop %v5359
        %v5616 = vtanh.pop %v5360
        %v5617 = vtanh.pop %v5361
        %v5618 = vtanh.pop %v5362
        %v5619 = vtanh.pop %v5363
        %v5620 = vtanh.pop %v5364
        %v5621 = vtanh.pop %v5365
        %v5622 = vtanh.pop %v5366
        %v5623 = vtanh.pop %v5367
        %v5624 = vtanh.pop %v5368
        %v5625 = vtanh.pop %v5369
        %v5626 = vtanh.pop %v5370
        %v5627 = vtanh.pop %v5371
        %v5628 = vtanh.pop %v5372
        %v5629 = vtanh.pop %v5373
        %v5630 = vtanh.pop %v5374
        %v5631 = vtanh.pop %v5375
        %v5632 = vtanh.pop %v5376
        %v5633 = vtanh.pop %v5377
        %v5634 = vtanh.pop %v5378
        %v5635 = vtanh.pop %v5379
        %v5636 = vtanh.pop %v5380
        %v5637 = vtanh.pop %v5381
        %v5638 = vtanh.pop %v5382
        %v5639 = vtanh.pop %v5383
        %v5640 = vtanh.pop %v5384
        %v5641 = vtanh.pop %v5385
        %v5642 = vtanh.pop %v5386
        %v5643 = vtanh.pop %v5387
        %v5644 = vtanh.pop %v5388
        %v5645 = vtanh.pop %v5389
        %v5646 = vtanh.pop %v5390
        %v5647 = vtanh.pop %v5391
        %v5648 = vtanh.pop %v5392
        %v5649 = vtanh.pop %v5393
        %v5650 = vtanh.pop %v5394
        %v5651 = vtanh.pop %v5395
        %v5652 = vtanh.pop %v5396
        %v5653 = vtanh.pop %v5397
        %s5654 = scalar_lea.vmem %s257, 2048 [#allocation9]
        %5655 = vst [vmem:[%s5654] sm:$0xff] %v5398
        %5656 = vst [vmem:[%s5654 + $0x8] sm:$0xff] %v5399
        %5657 = vst [vmem:[%s5654 + $0x10] sm:$0xff] %v5400
        %5658 = vst [vmem:[%s5654 + $0x18] sm:$0xff] %v5401
        %5659 = vst [vmem:[%s5654 + $0x20] sm:$0xff] %v5402
        %5660 = vst [vmem:[%s5654 + $0x28] sm:$0xff] %v5403
        %5661 = vst [vmem:[%s5654 + $0x30] sm:$0xff] %v5404
        %5662 = vst [vmem:[%s5654 + $0x38] sm:$0xff] %v5405
        %5663 = vst [vmem:[%s5654 + $0x40] sm:$0xff] %v5406
        %5664 = vst [vmem:[%s5654 + $0x48] sm:$0xff] %v5407
        %5665 = vst [vmem:[%s5654 + $0x50] sm:$0xff] %v5408
        %5666 = vst [vmem:[%s5654 + $0x58] sm:$0xff] %v5409
        %5667 = vst [vmem:[%s5654 + $0x60] sm:$0xff] %v5410
        %5668 = vst [vmem:[%s5654 + $0x68] sm:$0xff] %v5411
        %5669 = vst [vmem:[%s5654 + $0x70] sm:$0xff] %v5412
        %5670 = vst [vmem:[%s5654 + $0x78] sm:$0xff] %v5413
        %5671 = vst [vmem:[%s5654 + $0x80] sm:$0xff] %v5414
        %5672 = vst [vmem:[%s5654 + $0x88] sm:$0xff] %v5415
        %5673 = vst [vmem:[%s5654 + $0x90] sm:$0xff] %v5416
        %5674 = vst [vmem:[%s5654 + $0x98] sm:$0xff] %v5417
        %5675 = vst [vmem:[%s5654 + $0xa0] sm:$0xff] %v5418
        %5676 = vst [vmem:[%s5654 + $0xa8] sm:$0xff] %v5419
        %5677 = vst [vmem:[%s5654 + $0xb0] sm:$0xff] %v5420
        %5678 = vst [vmem:[%s5654 + $0xb8] sm:$0xff] %v5421
        %5679 = vst [vmem:[%s5654 + $0xc0] sm:$0xff] %v5422
        %5680 = vst [vmem:[%s5654 + $0xc8] sm:$0xff] %v5423
        %5681 = vst [vmem:[%s5654 + $0xd0] sm:$0xff] %v5424
        %5682 = vst [vmem:[%s5654 + $0xd8] sm:$0xff] %v5425
        %5683 = vst [vmem:[%s5654 + $0xe0] sm:$0xff] %v5426
        %5684 = vst [vmem:[%s5654 + $0xe8] sm:$0xff] %v5427
        %5685 = vst [vmem:[%s5654 + $0xf0] sm:$0xff] %v5428
        %5686 = vst [vmem:[%s5654 + $0xf8] sm:$0xff] %v5429
        %5687 = vst [vmem:[%s5654 + $0x100] sm:$0xff] %v5430
        %5688 = vst [vmem:[%s5654 + $0x108] sm:$0xff] %v5431
        %5689 = vst [vmem:[%s5654 + $0x110] sm:$0xff] %v5432
        %5690 = vst [vmem:[%s5654 + $0x118] sm:$0xff] %v5433
        %5691 = vst [vmem:[%s5654 + $0x120] sm:$0xff] %v5434
        %5692 = vst [vmem:[%s5654 + $0x128] sm:$0xff] %v5435
        %5693 = vst [vmem:[%s5654 + $0x130] sm:$0xff] %v5436
        %5694 = vst [vmem:[%s5654 + $0x138] sm:$0xff] %v5437
        %5695 = vst [vmem:[%s5654 + $0x140] sm:$0xff] %v5438
        %5696 = vst [vmem:[%s5654 + $0x148] sm:$0xff] %v5439
        %5697 = vst [vmem:[%s5654 + $0x150] sm:$0xff] %v5440
        %5698 = vst [vmem:[%s5654 + $0x158] sm:$0xff] %v5441
        %5699 = vst [vmem:[%s5654 + $0x160] sm:$0xff] %v5442
        %5700 = vst [vmem:[%s5654 + $0x168] sm:$0xff] %v5443
        %5701 = vst [vmem:[%s5654 + $0x170] sm:$0xff] %v5444
        %5702 = vst [vmem:[%s5654 + $0x178] sm:$0xff] %v5445
        %5703 = vst [vmem:[%s5654 + $0x180] sm:$0xff] %v5446
        %5704 = vst [vmem:[%s5654 + $0x188] sm:$0xff] %v5447
        %5705 = vst [vmem:[%s5654 + $0x190] sm:$0xff] %v5448
        %5706 = vst [vmem:[%s5654 + $0x198] sm:$0xff] %v5449
        %5707 = vst [vmem:[%s5654 + $0x1a0] sm:$0xff] %v5450
        %5708 = vst [vmem:[%s5654 + $0x1a8] sm:$0xff] %v5451
        %5709 = vst [vmem:[%s5654 + $0x1b0] sm:$0xff] %v5452
        %5710 = vst [vmem:[%s5654 + $0x1b8] sm:$0xff] %v5453
        %5711 = vst [vmem:[%s5654 + $0x1c0] sm:$0xff] %v5454
        %5712 = vst [vmem:[%s5654 + $0x1c8] sm:$0xff] %v5455
        %5713 = vst [vmem:[%s5654 + $0x1d0] sm:$0xff] %v5456
        %5714 = vst [vmem:[%s5654 + $0x1d8] sm:$0xff] %v5457
        %5715 = vst [vmem:[%s5654 + $0x1e0] sm:$0xff] %v5458
        %5716 = vst [vmem:[%s5654 + $0x1e8] sm:$0xff] %v5459
        %5717 = vst [vmem:[%s5654 + $0x1f0] sm:$0xff] %v5460
        %5718 = vst [vmem:[%s5654 + $0x1f8] sm:$0xff] %v5461
        %5719 = vst [vmem:[%s5654 + $0x200] sm:$0xff] %v5462
        %5720 = vst [vmem:[%s5654 + $0x208] sm:$0xff] %v5463
        %5721 = vst [vmem:[%s5654 + $0x210] sm:$0xff] %v5464
        %5722 = vst [vmem:[%s5654 + $0x218] sm:$0xff] %v5465
        %5723 = vst [vmem:[%s5654 + $0x220] sm:$0xff] %v5466
        %5724 = vst [vmem:[%s5654 + $0x228] sm:$0xff] %v5467
        %5725 = vst [vmem:[%s5654 + $0x230] sm:$0xff] %v5468
        %5726 = vst [vmem:[%s5654 + $0x238] sm:$0xff] %v5469
        %5727 = vst [vmem:[%s5654 + $0x240] sm:$0xff] %v5470
        %5728 = vst [vmem:[%s5654 + $0x248] sm:$0xff] %v5471
        %5729 = vst [vmem:[%s5654 + $0x250] sm:$0xff] %v5472
        %5730 = vst [vmem:[%s5654 + $0x258] sm:$0xff] %v5473
        %5731 = vst [vmem:[%s5654 + $0x260] sm:$0xff] %v5474
        %5732 = vst [vmem:[%s5654 + $0x268] sm:$0xff] %v5475
        %5733 = vst [vmem:[%s5654 + $0x270] sm:$0xff] %v5476
        %5734 = vst [vmem:[%s5654 + $0x278] sm:$0xff] %v5477
        %5735 = vst [vmem:[%s5654 + $0x280] sm:$0xff] %v5478
        %5736 = vst [vmem:[%s5654 + $0x288] sm:$0xff] %v5479
        %5737 = vst [vmem:[%s5654 + $0x290] sm:$0xff] %v5480
        %5738 = vst [vmem:[%s5654 + $0x298] sm:$0xff] %v5481
        %5739 = vst [vmem:[%s5654 + $0x2a0] sm:$0xff] %v5482
        %5740 = vst [vmem:[%s5654 + $0x2a8] sm:$0xff] %v5483
        %5741 = vst [vmem:[%s5654 + $0x2b0] sm:$0xff] %v5484
        %5742 = vst [vmem:[%s5654 + $0x2b8] sm:$0xff] %v5485
        %5743 = vst [vmem:[%s5654 + $0x2c0] sm:$0xff] %v5486
        %5744 = vst [vmem:[%s5654 + $0x2c8] sm:$0xff] %v5487
        %5745 = vst [vmem:[%s5654 + $0x2d0] sm:$0xff] %v5488
        %5746 = vst [vmem:[%s5654 + $0x2d8] sm:$0xff] %v5489
        %5747 = vst [vmem:[%s5654 + $0x2e0] sm:$0xff] %v5490
        %5748 = vst [vmem:[%s5654 + $0x2e8] sm:$0xff] %v5491
        %5749 = vst [vmem:[%s5654 + $0x2f0] sm:$0xff] %v5492
        %5750 = vst [vmem:[%s5654 + $0x2f8] sm:$0xff] %v5493
        %5751 = vst [vmem:[%s5654 + $0x300] sm:$0xff] %v5494
        %5752 = vst [vmem:[%s5654 + $0x308] sm:$0xff] %v5495
        %5753 = vst [vmem:[%s5654 + $0x310] sm:$0xff] %v5496
        %5754 = vst [vmem:[%s5654 + $0x318] sm:$0xff] %v5497
        %5755 = vst [vmem:[%s5654 + $0x320] sm:$0xff] %v5498
        %5756 = vst [vmem:[%s5654 + $0x328] sm:$0xff] %v5499
        %5757 = vst [vmem:[%s5654 + $0x330] sm:$0xff] %v5500
        %5758 = vst [vmem:[%s5654 + $0x338] sm:$0xff] %v5501
        %5759 = vst [vmem:[%s5654 + $0x340] sm:$0xff] %v5502
        %5760 = vst [vmem:[%s5654 + $0x348] sm:$0xff] %v5503
        %5761 = vst [vmem:[%s5654 + $0x350] sm:$0xff] %v5504
        %5762 = vst [vmem:[%s5654 + $0x358] sm:$0xff] %v5505
        %5763 = vst [vmem:[%s5654 + $0x360] sm:$0xff] %v5506
        %5764 = vst [vmem:[%s5654 + $0x368] sm:$0xff] %v5507
        %5765 = vst [vmem:[%s5654 + $0x370] sm:$0xff] %v5508
        %5766 = vst [vmem:[%s5654 + $0x378] sm:$0xff] %v5509
        %5767 = vst [vmem:[%s5654 + $0x380] sm:$0xff] %v5510
        %5768 = vst [vmem:[%s5654 + $0x388] sm:$0xff] %v5511
        %5769 = vst [vmem:[%s5654 + $0x390] sm:$0xff] %v5512
        %5770 = vst [vmem:[%s5654 + $0x398] sm:$0xff] %v5513
        %5771 = vst [vmem:[%s5654 + $0x3a0] sm:$0xff] %v5514
        %5772 = vst [vmem:[%s5654 + $0x3a8] sm:$0xff] %v5515
        %5773 = vst [vmem:[%s5654 + $0x3b0] sm:$0xff] %v5516
        %5774 = vst [vmem:[%s5654 + $0x3b8] sm:$0xff] %v5517
        %5775 = vst [vmem:[%s5654 + $0x3c0] sm:$0xff] %v5518
        %5776 = vst [vmem:[%s5654 + $0x3c8] sm:$0xff] %v5519
        %5777 = vst [vmem:[%s5654 + $0x3d0] sm:$0xff] %v5520
        %5778 = vst [vmem:[%s5654 + $0x3d8] sm:$0xff] %v5521
        %5779 = vst [vmem:[%s5654 + $0x3e0] sm:$0xff] %v5522
        %5780 = vst [vmem:[%s5654 + $0x3e8] sm:$0xff] %v5523
        %5781 = vst [vmem:[%s5654 + $0x3f0] sm:$0xff] %v5524
        %5782 = vst [vmem:[%s5654 + $0x3f8] sm:$0xff] %v5525
        %5783 = vst [vmem:[%s5654 + $0x400] sm:$0xff] %v5526
        %5784 = vst [vmem:[%s5654 + $0x408] sm:$0xff] %v5527
        %5785 = vst [vmem:[%s5654 + $0x410] sm:$0xff] %v5528
        %5786 = vst [vmem:[%s5654 + $0x418] sm:$0xff] %v5529
        %5787 = vst [vmem:[%s5654 + $0x420] sm:$0xff] %v5530
        %5788 = vst [vmem:[%s5654 + $0x428] sm:$0xff] %v5531
        %5789 = vst [vmem:[%s5654 + $0x430] sm:$0xff] %v5532
        %5790 = vst [vmem:[%s5654 + $0x438] sm:$0xff] %v5533
        %5791 = vst [vmem:[%s5654 + $0x440] sm:$0xff] %v5534
        %5792 = vst [vmem:[%s5654 + $0x448] sm:$0xff] %v5535
        %5793 = vst [vmem:[%s5654 + $0x450] sm:$0xff] %v5536
        %5794 = vst [vmem:[%s5654 + $0x458] sm:$0xff] %v5537
        %5795 = vst [vmem:[%s5654 + $0x460] sm:$0xff] %v5538
        %5796 = vst [vmem:[%s5654 + $0x468] sm:$0xff] %v5539
        %5797 = vst [vmem:[%s5654 + $0x470] sm:$0xff] %v5540
        %5798 = vst [vmem:[%s5654 + $0x478] sm:$0xff] %v5541
        %5799 = vst [vmem:[%s5654 + $0x480] sm:$0xff] %v5542
        %5800 = vst [vmem:[%s5654 + $0x488] sm:$0xff] %v5543
        %5801 = vst [vmem:[%s5654 + $0x490] sm:$0xff] %v5544
        %5802 = vst [vmem:[%s5654 + $0x498] sm:$0xff] %v5545
        %5803 = vst [vmem:[%s5654 + $0x4a0] sm:$0xff] %v5546
        %5804 = vst [vmem:[%s5654 + $0x4a8] sm:$0xff] %v5547
        %5805 = vst [vmem:[%s5654 + $0x4b0] sm:$0xff] %v5548
        %5806 = vst [vmem:[%s5654 + $0x4b8] sm:$0xff] %v5549
        %5807 = vst [vmem:[%s5654 + $0x4c0] sm:$0xff] %v5550
        %5808 = vst [vmem:[%s5654 + $0x4c8] sm:$0xff] %v5551
        %5809 = vst [vmem:[%s5654 + $0x4d0] sm:$0xff] %v5552
        %5810 = vst [vmem:[%s5654 + $0x4d8] sm:$0xff] %v5553
        %5811 = vst [vmem:[%s5654 + $0x4e0] sm:$0xff] %v5554
        %5812 = vst [vmem:[%s5654 + $0x4e8] sm:$0xff] %v5555
        %5813 = vst [vmem:[%s5654 + $0x4f0] sm:$0xff] %v5556
        %5814 = vst [vmem:[%s5654 + $0x4f8] sm:$0xff] %v5557
        %5815 = vst [vmem:[%s5654 + $0x500] sm:$0xff] %v5558
        %5816 = vst [vmem:[%s5654 + $0x508] sm:$0xff] %v5559
        %5817 = vst [vmem:[%s5654 + $0x510] sm:$0xff] %v5560
        %5818 = vst [vmem:[%s5654 + $0x518] sm:$0xff] %v5561
        %5819 = vst [vmem:[%s5654 + $0x520] sm:$0xff] %v5562
        %5820 = vst [vmem:[%s5654 + $0x528] sm:$0xff] %v5563
        %5821 = vst [vmem:[%s5654 + $0x530] sm:$0xff] %v5564
        %5822 = vst [vmem:[%s5654 + $0x538] sm:$0xff] %v5565
        %5823 = vst [vmem:[%s5654 + $0x540] sm:$0xff] %v5566
        %5824 = vst [vmem:[%s5654 + $0x548] sm:$0xff] %v5567
        %5825 = vst [vmem:[%s5654 + $0x550] sm:$0xff] %v5568
        %5826 = vst [vmem:[%s5654 + $0x558] sm:$0xff] %v5569
        %5827 = vst [vmem:[%s5654 + $0x560] sm:$0xff] %v5570
        %5828 = vst [vmem:[%s5654 + $0x568] sm:$0xff] %v5571
        %5829 = vst [vmem:[%s5654 + $0x570] sm:$0xff] %v5572
        %5830 = vst [vmem:[%s5654 + $0x578] sm:$0xff] %v5573
        %5831 = vst [vmem:[%s5654 + $0x580] sm:$0xff] %v5574
        %5832 = vst [vmem:[%s5654 + $0x588] sm:$0xff] %v5575
        %5833 = vst [vmem:[%s5654 + $0x590] sm:$0xff] %v5576
        %5834 = vst [vmem:[%s5654 + $0x598] sm:$0xff] %v5577
        %5835 = vst [vmem:[%s5654 + $0x5a0] sm:$0xff] %v5578
        %5836 = vst [vmem:[%s5654 + $0x5a8] sm:$0xff] %v5579
        %5837 = vst [vmem:[%s5654 + $0x5b0] sm:$0xff] %v5580
        %5838 = vst [vmem:[%s5654 + $0x5b8] sm:$0xff] %v5581
        %5839 = vst [vmem:[%s5654 + $0x5c0] sm:$0xff] %v5582
        %5840 = vst [vmem:[%s5654 + $0x5c8] sm:$0xff] %v5583
        %5841 = vst [vmem:[%s5654 + $0x5d0] sm:$0xff] %v5584
        %5842 = vst [vmem:[%s5654 + $0x5d8] sm:$0xff] %v5585
        %5843 = vst [vmem:[%s5654 + $0x5e0] sm:$0xff] %v5586
        %5844 = vst [vmem:[%s5654 + $0x5e8] sm:$0xff] %v5587
        %5845 = vst [vmem:[%s5654 + $0x5f0] sm:$0xff] %v5588
        %5846 = vst [vmem:[%s5654 + $0x5f8] sm:$0xff] %v5589
        %5847 = vst [vmem:[%s5654 + $0x600] sm:$0xff] %v5590
        %5848 = vst [vmem:[%s5654 + $0x608] sm:$0xff] %v5591
        %5849 = vst [vmem:[%s5654 + $0x610] sm:$0xff] %v5592
        %5850 = vst [vmem:[%s5654 + $0x618] sm:$0xff] %v5593
        %5851 = vst [vmem:[%s5654 + $0x620] sm:$0xff] %v5594
        %5852 = vst [vmem:[%s5654 + $0x628] sm:$0xff] %v5595
        %5853 = vst [vmem:[%s5654 + $0x630] sm:$0xff] %v5596
        %5854 = vst [vmem:[%s5654 + $0x638] sm:$0xff] %v5597
        %5855 = vst [vmem:[%s5654 + $0x640] sm:$0xff] %v5598
        %5856 = vst [vmem:[%s5654 + $0x648] sm:$0xff] %v5599
        %5857 = vst [vmem:[%s5654 + $0x650] sm:$0xff] %v5600
        %5858 = vst [vmem:[%s5654 + $0x658] sm:$0xff] %v5601
        %5859 = vst [vmem:[%s5654 + $0x660] sm:$0xff] %v5602
        %5860 = vst [vmem:[%s5654 + $0x668] sm:$0xff] %v5603
        %5861 = vst [vmem:[%s5654 + $0x670] sm:$0xff] %v5604
        %5862 = vst [vmem:[%s5654 + $0x678] sm:$0xff] %v5605
        %5863 = vst [vmem:[%s5654 + $0x680] sm:$0xff] %v5606
        %5864 = vst [vmem:[%s5654 + $0x688] sm:$0xff] %v5607
        %5865 = vst [vmem:[%s5654 + $0x690] sm:$0xff] %v5608
        %5866 = vst [vmem:[%s5654 + $0x698] sm:$0xff] %v5609
        %5867 = vst [vmem:[%s5654 + $0x6a0] sm:$0xff] %v5610
        %5868 = vst [vmem:[%s5654 + $0x6a8] sm:$0xff] %v5611
        %5869 = vst [vmem:[%s5654 + $0x6b0] sm:$0xff] %v5612
        %5870 = vst [vmem:[%s5654 + $0x6b8] sm:$0xff] %v5613
        %5871 = vst [vmem:[%s5654 + $0x6c0] sm:$0xff] %v5614
        %5872 = vst [vmem:[%s5654 + $0x6c8] sm:$0xff] %v5615
        %5873 = vst [vmem:[%s5654 + $0x6d0] sm:$0xff] %v5616
        %5874 = vst [vmem:[%s5654 + $0x6d8] sm:$0xff] %v5617
        %5875 = vst [vmem:[%s5654 + $0x6e0] sm:$0xff] %v5618
        %5876 = vst [vmem:[%s5654 + $0x6e8] sm:$0xff] %v5619
        %5877 = vst [vmem:[%s5654 + $0x6f0] sm:$0xff] %v5620
        %5878 = vst [vmem:[%s5654 + $0x6f8] sm:$0xff] %v5621
        %5879 = vst [vmem:[%s5654 + $0x700] sm:$0xff] %v5622
        %5880 = vst [vmem:[%s5654 + $0x708] sm:$0xff] %v5623
        %5881 = vst [vmem:[%s5654 + $0x710] sm:$0xff] %v5624
        %5882 = vst [vmem:[%s5654 + $0x718] sm:$0xff] %v5625
        %5883 = vst [vmem:[%s5654 + $0x720] sm:$0xff] %v5626
        %5884 = vst [vmem:[%s5654 + $0x728] sm:$0xff] %v5627
        %5885 = vst [vmem:[%s5654 + $0x730] sm:$0xff] %v5628
        %5886 = vst [vmem:[%s5654 + $0x738] sm:$0xff] %v5629
        %5887 = vst [vmem:[%s5654 + $0x740] sm:$0xff] %v5630
        %5888 = vst [vmem:[%s5654 + $0x748] sm:$0xff] %v5631
        %5889 = vst [vmem:[%s5654 + $0x750] sm:$0xff] %v5632
        %5890 = vst [vmem:[%s5654 + $0x758] sm:$0xff] %v5633
        %5891 = vst [vmem:[%s5654 + $0x760] sm:$0xff] %v5634
        %5892 = vst [vmem:[%s5654 + $0x768] sm:$0xff] %v5635
        %5893 = vst [vmem:[%s5654 + $0x770] sm:$0xff] %v5636
        %5894 = vst [vmem:[%s5654 + $0x778] sm:$0xff] %v5637
        %5895 = vst [vmem:[%s5654 + $0x780] sm:$0xff] %v5638
        %5896 = vst [vmem:[%s5654 + $0x788] sm:$0xff] %v5639
        %5897 = vst [vmem:[%s5654 + $0x790] sm:$0xff] %v5640
        %5898 = vst [vmem:[%s5654 + $0x798] sm:$0xff] %v5641
        %5899 = vst [vmem:[%s5654 + $0x7a0] sm:$0xff] %v5642
        %5900 = vst [vmem:[%s5654 + $0x7a8] sm:$0xff] %v5643
        %5901 = vst [vmem:[%s5654 + $0x7b0] sm:$0xff] %v5644
        %5902 = vst [vmem:[%s5654 + $0x7b8] sm:$0xff] %v5645
        %5903 = vst [vmem:[%s5654 + $0x7c0] sm:$0xff] %v5646
        %5904 = vst [vmem:[%s5654 + $0x7c8] sm:$0xff] %v5647
        %5905 = vst [vmem:[%s5654 + $0x7d0] sm:$0xff] %v5648
        %5906 = vst [vmem:[%s5654 + $0x7d8] sm:$0xff] %v5649
        %5907 = vst [vmem:[%s5654 + $0x7e0] sm:$0xff] %v5650
        %5908 = vst [vmem:[%s5654 + $0x7e8] sm:$0xff] %v5651
        %5909 = vst [vmem:[%s5654 + $0x7f0] sm:$0xff] %v5652
        %5910 = vst [vmem:[%s5654 + $0x7f8] sm:$0xff] %v5653
        %v5911 = vld [vmem:[%s226] sm:$0xff]
        %v5912 = vld [vmem:[%s226 + $0x8] sm:$0xff]
        %v5913 = vld [vmem:[%s226 + $0x10] sm:$0xff]
        %v5914 = vld [vmem:[%s226 + $0x18] sm:$0xff]
        %v5915 = vld [vmem:[%s226 + $0x20] sm:$0xff]
        %v5916 = vld [vmem:[%s226 + $0x28] sm:$0xff]
        %v5917 = vld [vmem:[%s226 + $0x30] sm:$0xff]
        %v5918 = vld [vmem:[%s226 + $0x38] sm:$0xff]
        %v5919 = vld [vmem:[%s226 + $0x40] sm:$0xff]
        %v5920 = vld [vmem:[%s226 + $0x48] sm:$0xff]
        %v5921 = vld [vmem:[%s226 + $0x50] sm:$0xff]
        %v5922 = vld [vmem:[%s226 + $0x58] sm:$0xff]
        %v5923 = vld [vmem:[%s226 + $0x60] sm:$0xff]
        %v5924 = vld [vmem:[%s226 + $0x68] sm:$0xff]
        %v5925 = vld [vmem:[%s226 + $0x70] sm:$0xff]
        %v5926 = vld [vmem:[%s226 + $0x78] sm:$0xff]
        %v5927 = vld [vmem:[%s226 + $0x80] sm:$0xff]
        %v5928 = vld [vmem:[%s226 + $0x88] sm:$0xff]
        %v5929 = vld [vmem:[%s226 + $0x90] sm:$0xff]
        %v5930 = vld [vmem:[%s226 + $0x98] sm:$0xff]
        %v5931 = vld [vmem:[%s226 + $0xa0] sm:$0xff]
        %v5932 = vld [vmem:[%s226 + $0xa8] sm:$0xff]
        %v5933 = vld [vmem:[%s226 + $0xb0] sm:$0xff]
        %v5934 = vld [vmem:[%s226 + $0xb8] sm:$0xff]
        %v5935 = vld [vmem:[%s226 + $0xc0] sm:$0xff]
        %v5936 = vld [vmem:[%s226 + $0xc8] sm:$0xff]
        %v5937 = vld [vmem:[%s226 + $0xd0] sm:$0xff]
        %v5938 = vld [vmem:[%s226 + $0xd8] sm:$0xff]
        %v5939 = vld [vmem:[%s226 + $0xe0] sm:$0xff]
        %v5940 = vld [vmem:[%s226 + $0xe8] sm:$0xff]
        %v5941 = vld [vmem:[%s226 + $0xf0] sm:$0xff]
        %v5942 = vld [vmem:[%s226 + $0xf8] sm:$0xff]
        %v5943 = vld [vmem:[%s226 + $0x100] sm:$0xff]
        %v5944 = vld [vmem:[%s226 + $0x108] sm:$0xff]
        %v5945 = vld [vmem:[%s226 + $0x110] sm:$0xff]
        %v5946 = vld [vmem:[%s226 + $0x118] sm:$0xff]
        %v5947 = vld [vmem:[%s226 + $0x120] sm:$0xff]
        %v5948 = vld [vmem:[%s226 + $0x128] sm:$0xff]
        %v5949 = vld [vmem:[%s226 + $0x130] sm:$0xff]
        %v5950 = vld [vmem:[%s226 + $0x138] sm:$0xff]
        %v5951 = vld [vmem:[%s226 + $0x140] sm:$0xff]
        %v5952 = vld [vmem:[%s226 + $0x148] sm:$0xff]
        %v5953 = vld [vmem:[%s226 + $0x150] sm:$0xff]
        %v5954 = vld [vmem:[%s226 + $0x158] sm:$0xff]
        %v5955 = vld [vmem:[%s226 + $0x160] sm:$0xff]
        %v5956 = vld [vmem:[%s226 + $0x168] sm:$0xff]
        %v5957 = vld [vmem:[%s226 + $0x170] sm:$0xff]
        %v5958 = vld [vmem:[%s226 + $0x178] sm:$0xff]
        %v5959 = vld [vmem:[%s226 + $0x180] sm:$0xff]
        %v5960 = vld [vmem:[%s226 + $0x188] sm:$0xff]
        %v5961 = vld [vmem:[%s226 + $0x190] sm:$0xff]
        %v5962 = vld [vmem:[%s226 + $0x198] sm:$0xff]
        %v5963 = vld [vmem:[%s226 + $0x1a0] sm:$0xff]
        %v5964 = vld [vmem:[%s226 + $0x1a8] sm:$0xff]
        %v5965 = vld [vmem:[%s226 + $0x1b0] sm:$0xff]
        %v5966 = vld [vmem:[%s226 + $0x1b8] sm:$0xff]
        %v5967 = vld [vmem:[%s226 + $0x1c0] sm:$0xff]
        %v5968 = vld [vmem:[%s226 + $0x1c8] sm:$0xff]
        %v5969 = vld [vmem:[%s226 + $0x1d0] sm:$0xff]
        %v5970 = vld [vmem:[%s226 + $0x1d8] sm:$0xff]
        %v5971 = vld [vmem:[%s226 + $0x1e0] sm:$0xff]
        %v5972 = vld [vmem:[%s226 + $0x1e8] sm:$0xff]
        %v5973 = vld [vmem:[%s226 + $0x1f0] sm:$0xff]
        %v5974 = vld [vmem:[%s226 + $0x1f8] sm:$0xff]
        %v5975 = vld [vmem:[%s226 + $0x200] sm:$0xff]
        %v5976 = vld [vmem:[%s226 + $0x208] sm:$0xff]
        %v5977 = vld [vmem:[%s226 + $0x210] sm:$0xff]
        %v5978 = vld [vmem:[%s226 + $0x218] sm:$0xff]
        %v5979 = vld [vmem:[%s226 + $0x220] sm:$0xff]
        %v5980 = vld [vmem:[%s226 + $0x228] sm:$0xff]
        %v5981 = vld [vmem:[%s226 + $0x230] sm:$0xff]
        %v5982 = vld [vmem:[%s226 + $0x238] sm:$0xff]
        %v5983 = vld [vmem:[%s226 + $0x240] sm:$0xff]
        %v5984 = vld [vmem:[%s226 + $0x248] sm:$0xff]
        %v5985 = vld [vmem:[%s226 + $0x250] sm:$0xff]
        %v5986 = vld [vmem:[%s226 + $0x258] sm:$0xff]
        %v5987 = vld [vmem:[%s226 + $0x260] sm:$0xff]
        %v5988 = vld [vmem:[%s226 + $0x268] sm:$0xff]
        %v5989 = vld [vmem:[%s226 + $0x270] sm:$0xff]
        %v5990 = vld [vmem:[%s226 + $0x278] sm:$0xff]
        %v5991 = vld [vmem:[%s226 + $0x280] sm:$0xff]
        %v5992 = vld [vmem:[%s226 + $0x288] sm:$0xff]
        %v5993 = vld [vmem:[%s226 + $0x290] sm:$0xff]
        %v5994 = vld [vmem:[%s226 + $0x298] sm:$0xff]
        %v5995 = vld [vmem:[%s226 + $0x2a0] sm:$0xff]
        %v5996 = vld [vmem:[%s226 + $0x2a8] sm:$0xff]
        %v5997 = vld [vmem:[%s226 + $0x2b0] sm:$0xff]
        %v5998 = vld [vmem:[%s226 + $0x2b8] sm:$0xff]
        %v5999 = vld [vmem:[%s226 + $0x2c0] sm:$0xff]
        %v6000 = vld [vmem:[%s226 + $0x2c8] sm:$0xff]
        %v6001 = vld [vmem:[%s226 + $0x2d0] sm:$0xff]
        %v6002 = vld [vmem:[%s226 + $0x2d8] sm:$0xff]
        %v6003 = vld [vmem:[%s226 + $0x2e0] sm:$0xff]
        %v6004 = vld [vmem:[%s226 + $0x2e8] sm:$0xff]
        %v6005 = vld [vmem:[%s226 + $0x2f0] sm:$0xff]
        %v6006 = vld [vmem:[%s226 + $0x2f8] sm:$0xff]
        %v6007 = vld [vmem:[%s226 + $0x300] sm:$0xff]
        %v6008 = vld [vmem:[%s226 + $0x308] sm:$0xff]
        %v6009 = vld [vmem:[%s226 + $0x310] sm:$0xff]
        %v6010 = vld [vmem:[%s226 + $0x318] sm:$0xff]
        %v6011 = vld [vmem:[%s226 + $0x320] sm:$0xff]
        %v6012 = vld [vmem:[%s226 + $0x328] sm:$0xff]
        %v6013 = vld [vmem:[%s226 + $0x330] sm:$0xff]
        %v6014 = vld [vmem:[%s226 + $0x338] sm:$0xff]
        %v6015 = vld [vmem:[%s226 + $0x340] sm:$0xff]
        %v6016 = vld [vmem:[%s226 + $0x348] sm:$0xff]
        %v6017 = vld [vmem:[%s226 + $0x350] sm:$0xff]
        %v6018 = vld [vmem:[%s226 + $0x358] sm:$0xff]
        %v6019 = vld [vmem:[%s226 + $0x360] sm:$0xff]
        %v6020 = vld [vmem:[%s226 + $0x368] sm:$0xff]
        %v6021 = vld [vmem:[%s226 + $0x370] sm:$0xff]
        %v6022 = vld [vmem:[%s226 + $0x378] sm:$0xff]
        %v6023 = vld [vmem:[%s226 + $0x380] sm:$0xff]
        %v6024 = vld [vmem:[%s226 + $0x388] sm:$0xff]
        %v6025 = vld [vmem:[%s226 + $0x390] sm:$0xff]
        %v6026 = vld [vmem:[%s226 + $0x398] sm:$0xff]
        %v6027 = vld [vmem:[%s226 + $0x3a0] sm:$0xff]
        %v6028 = vld [vmem:[%s226 + $0x3a8] sm:$0xff]
        %v6029 = vld [vmem:[%s226 + $0x3b0] sm:$0xff]
        %v6030 = vld [vmem:[%s226 + $0x3b8] sm:$0xff]
        %v6031 = vld [vmem:[%s226 + $0x3c0] sm:$0xff]
        %v6032 = vld [vmem:[%s226 + $0x3c8] sm:$0xff]
        %v6033 = vld [vmem:[%s226 + $0x3d0] sm:$0xff]
        %v6034 = vld [vmem:[%s226 + $0x3d8] sm:$0xff]
        %v6035 = vld [vmem:[%s226 + $0x3e0] sm:$0xff]
        %v6036 = vld [vmem:[%s226 + $0x3e8] sm:$0xff]
        %v6037 = vld [vmem:[%s226 + $0x3f0] sm:$0xff]
        %v6038 = vld [vmem:[%s226 + $0x3f8] sm:$0xff]
        %v6039 = vld [vmem:[%s226 + $0x400] sm:$0xff]
        %v6040 = vld [vmem:[%s226 + $0x408] sm:$0xff]
        %v6041 = vld [vmem:[%s226 + $0x410] sm:$0xff]
        %v6042 = vld [vmem:[%s226 + $0x418] sm:$0xff]
        %v6043 = vld [vmem:[%s226 + $0x420] sm:$0xff]
        %v6044 = vld [vmem:[%s226 + $0x428] sm:$0xff]
        %v6045 = vld [vmem:[%s226 + $0x430] sm:$0xff]
        %v6046 = vld [vmem:[%s226 + $0x438] sm:$0xff]
        %v6047 = vld [vmem:[%s226 + $0x440] sm:$0xff]
        %v6048 = vld [vmem:[%s226 + $0x448] sm:$0xff]
        %v6049 = vld [vmem:[%s226 + $0x450] sm:$0xff]
        %v6050 = vld [vmem:[%s226 + $0x458] sm:$0xff]
        %v6051 = vld [vmem:[%s226 + $0x460] sm:$0xff]
        %v6052 = vld [vmem:[%s226 + $0x468] sm:$0xff]
        %v6053 = vld [vmem:[%s226 + $0x470] sm:$0xff]
        %v6054 = vld [vmem:[%s226 + $0x478] sm:$0xff]
        %v6055 = vld [vmem:[%s226 + $0x480] sm:$0xff]
        %v6056 = vld [vmem:[%s226 + $0x488] sm:$0xff]
        %v6057 = vld [vmem:[%s226 + $0x490] sm:$0xff]
        %v6058 = vld [vmem:[%s226 + $0x498] sm:$0xff]
        %v6059 = vld [vmem:[%s226 + $0x4a0] sm:$0xff]
        %v6060 = vld [vmem:[%s226 + $0x4a8] sm:$0xff]
        %v6061 = vld [vmem:[%s226 + $0x4b0] sm:$0xff]
        %v6062 = vld [vmem:[%s226 + $0x4b8] sm:$0xff]
        %v6063 = vld [vmem:[%s226 + $0x4c0] sm:$0xff]
        %v6064 = vld [vmem:[%s226 + $0x4c8] sm:$0xff]
        %v6065 = vld [vmem:[%s226 + $0x4d0] sm:$0xff]
        %v6066 = vld [vmem:[%s226 + $0x4d8] sm:$0xff]
        %v6067 = vld [vmem:[%s226 + $0x4e0] sm:$0xff]
        %v6068 = vld [vmem:[%s226 + $0x4e8] sm:$0xff]
        %v6069 = vld [vmem:[%s226 + $0x4f0] sm:$0xff]
        %v6070 = vld [vmem:[%s226 + $0x4f8] sm:$0xff]
        %v6071 = vld [vmem:[%s226 + $0x500] sm:$0xff]
        %v6072 = vld [vmem:[%s226 + $0x508] sm:$0xff]
        %v6073 = vld [vmem:[%s226 + $0x510] sm:$0xff]
        %v6074 = vld [vmem:[%s226 + $0x518] sm:$0xff]
        %v6075 = vld [vmem:[%s226 + $0x520] sm:$0xff]
        %v6076 = vld [vmem:[%s226 + $0x528] sm:$0xff]
        %v6077 = vld [vmem:[%s226 + $0x530] sm:$0xff]
        %v6078 = vld [vmem:[%s226 + $0x538] sm:$0xff]
        %v6079 = vld [vmem:[%s226 + $0x540] sm:$0xff]
        %v6080 = vld [vmem:[%s226 + $0x548] sm:$0xff]
        %v6081 = vld [vmem:[%s226 + $0x550] sm:$0xff]
        %v6082 = vld [vmem:[%s226 + $0x558] sm:$0xff]
        %v6083 = vld [vmem:[%s226 + $0x560] sm:$0xff]
        %v6084 = vld [vmem:[%s226 + $0x568] sm:$0xff]
        %v6085 = vld [vmem:[%s226 + $0x570] sm:$0xff]
        %v6086 = vld [vmem:[%s226 + $0x578] sm:$0xff]
        %v6087 = vld [vmem:[%s226 + $0x580] sm:$0xff]
        %v6088 = vld [vmem:[%s226 + $0x588] sm:$0xff]
        %v6089 = vld [vmem:[%s226 + $0x590] sm:$0xff]
        %v6090 = vld [vmem:[%s226 + $0x598] sm:$0xff]
        %v6091 = vld [vmem:[%s226 + $0x5a0] sm:$0xff]
        %v6092 = vld [vmem:[%s226 + $0x5a8] sm:$0xff]
        %v6093 = vld [vmem:[%s226 + $0x5b0] sm:$0xff]
        %v6094 = vld [vmem:[%s226 + $0x5b8] sm:$0xff]
        %v6095 = vld [vmem:[%s226 + $0x5c0] sm:$0xff]
        %v6096 = vld [vmem:[%s226 + $0x5c8] sm:$0xff]
        %v6097 = vld [vmem:[%s226 + $0x5d0] sm:$0xff]
        %v6098 = vld [vmem:[%s226 + $0x5d8] sm:$0xff]
        %v6099 = vld [vmem:[%s226 + $0x5e0] sm:$0xff]
        %v6100 = vld [vmem:[%s226 + $0x5e8] sm:$0xff]
        %v6101 = vld [vmem:[%s226 + $0x5f0] sm:$0xff]
        %v6102 = vld [vmem:[%s226 + $0x5f8] sm:$0xff]
        %v6103 = vld [vmem:[%s226 + $0x600] sm:$0xff]
        %v6104 = vld [vmem:[%s226 + $0x608] sm:$0xff]
        %v6105 = vld [vmem:[%s226 + $0x610] sm:$0xff]
        %v6106 = vld [vmem:[%s226 + $0x618] sm:$0xff]
        %v6107 = vld [vmem:[%s226 + $0x620] sm:$0xff]
        %v6108 = vld [vmem:[%s226 + $0x628] sm:$0xff]
        %v6109 = vld [vmem:[%s226 + $0x630] sm:$0xff]
        %v6110 = vld [vmem:[%s226 + $0x638] sm:$0xff]
        %v6111 = vld [vmem:[%s226 + $0x640] sm:$0xff]
        %v6112 = vld [vmem:[%s226 + $0x648] sm:$0xff]
        %v6113 = vld [vmem:[%s226 + $0x650] sm:$0xff]
        %v6114 = vld [vmem:[%s226 + $0x658] sm:$0xff]
        %v6115 = vld [vmem:[%s226 + $0x660] sm:$0xff]
        %v6116 = vld [vmem:[%s226 + $0x668] sm:$0xff]
        %v6117 = vld [vmem:[%s226 + $0x670] sm:$0xff]
        %v6118 = vld [vmem:[%s226 + $0x678] sm:$0xff]
        %v6119 = vld [vmem:[%s226 + $0x680] sm:$0xff]
        %v6120 = vld [vmem:[%s226 + $0x688] sm:$0xff]
        %v6121 = vld [vmem:[%s226 + $0x690] sm:$0xff]
        %v6122 = vld [vmem:[%s226 + $0x698] sm:$0xff]
        %v6123 = vld [vmem:[%s226 + $0x6a0] sm:$0xff]
        %v6124 = vld [vmem:[%s226 + $0x6a8] sm:$0xff]
        %v6125 = vld [vmem:[%s226 + $0x6b0] sm:$0xff]
        %v6126 = vld [vmem:[%s226 + $0x6b8] sm:$0xff]
        %v6127 = vld [vmem:[%s226 + $0x6c0] sm:$0xff]
        %v6128 = vld [vmem:[%s226 + $0x6c8] sm:$0xff]
        %v6129 = vld [vmem:[%s226 + $0x6d0] sm:$0xff]
        %v6130 = vld [vmem:[%s226 + $0x6d8] sm:$0xff]
        %v6131 = vld [vmem:[%s226 + $0x6e0] sm:$0xff]
        %v6132 = vld [vmem:[%s226 + $0x6e8] sm:$0xff]
        %v6133 = vld [vmem:[%s226 + $0x6f0] sm:$0xff]
        %v6134 = vld [vmem:[%s226 + $0x6f8] sm:$0xff]
        %v6135 = vld [vmem:[%s226 + $0x700] sm:$0xff]
        %v6136 = vld [vmem:[%s226 + $0x708] sm:$0xff]
        %v6137 = vld [vmem:[%s226 + $0x710] sm:$0xff]
        %v6138 = vld [vmem:[%s226 + $0x718] sm:$0xff]
        %v6139 = vld [vmem:[%s226 + $0x720] sm:$0xff]
        %v6140 = vld [vmem:[%s226 + $0x728] sm:$0xff]
        %v6141 = vld [vmem:[%s226 + $0x730] sm:$0xff]
        %v6142 = vld [vmem:[%s226 + $0x738] sm:$0xff]
        %v6143 = vld [vmem:[%s226 + $0x740] sm:$0xff]
        %v6144 = vld [vmem:[%s226 + $0x748] sm:$0xff]
        %v6145 = vld [vmem:[%s226 + $0x750] sm:$0xff]
        %v6146 = vld [vmem:[%s226 + $0x758] sm:$0xff]
        %v6147 = vld [vmem:[%s226 + $0x760] sm:$0xff]
        %v6148 = vld [vmem:[%s226 + $0x768] sm:$0xff]
        %v6149 = vld [vmem:[%s226 + $0x770] sm:$0xff]
        %v6150 = vld [vmem:[%s226 + $0x778] sm:$0xff]
        %v6151 = vld [vmem:[%s226 + $0x780] sm:$0xff]
        %v6152 = vld [vmem:[%s226 + $0x788] sm:$0xff]
        %v6153 = vld [vmem:[%s226 + $0x790] sm:$0xff]
        %v6154 = vld [vmem:[%s226 + $0x798] sm:$0xff]
        %v6155 = vld [vmem:[%s226 + $0x7a0] sm:$0xff]
        %v6156 = vld [vmem:[%s226 + $0x7a8] sm:$0xff]
        %v6157 = vld [vmem:[%s226 + $0x7b0] sm:$0xff]
        %v6158 = vld [vmem:[%s226 + $0x7b8] sm:$0xff]
        %v6159 = vld [vmem:[%s226 + $0x7c0] sm:$0xff]
        %v6160 = vld [vmem:[%s226 + $0x7c8] sm:$0xff]
        %v6161 = vld [vmem:[%s226 + $0x7d0] sm:$0xff]
        %v6162 = vld [vmem:[%s226 + $0x7d8] sm:$0xff]
        %v6163 = vld [vmem:[%s226 + $0x7e0] sm:$0xff]
        %v6164 = vld [vmem:[%s226 + $0x7e8] sm:$0xff]
        %v6165 = vld [vmem:[%s226 + $0x7f0] sm:$0xff]
        %v6166 = vld [vmem:[%s226 + $0x7f8] sm:$0xff]
        %s6167 = sld [smem:[#allocation7 + $0x2]]
        %v6168 = vstv %s6167
        %v6169 = vmul.f32 %v5911, %v6168
        %v6170 = vmul.f32 %v5912, %v6168
        %v6171 = vmul.f32 %v5913, %v6168
        %v6172 = vmul.f32 %v5914, %v6168
        %v6173 = vmul.f32 %v5915, %v6168
        %v6174 = vmul.f32 %v5916, %v6168
        %v6175 = vmul.f32 %v5917, %v6168
        %v6176 = vmul.f32 %v5918, %v6168
        %v6177 = vmul.f32 %v5919, %v6168
        %v6178 = vmul.f32 %v5920, %v6168
        %v6179 = vmul.f32 %v5921, %v6168
        %v6180 = vmul.f32 %v5922, %v6168
        %v6181 = vmul.f32 %v5923, %v6168
        %v6182 = vmul.f32 %v5924, %v6168
        %v6183 = vmul.f32 %v5925, %v6168
        %v6184 = vmul.f32 %v5926, %v6168
        %v6185 = vmul.f32 %v5927, %v6168
        %v6186 = vmul.f32 %v5928, %v6168
        %v6187 = vmul.f32 %v5929, %v6168
        %v6188 = vmul.f32 %v5930, %v6168
        %v6189 = vmul.f32 %v5931, %v6168
        %v6190 = vmul.f32 %v5932, %v6168
        %v6191 = vmul.f32 %v5933, %v6168
        %v6192 = vmul.f32 %v5934, %v6168
        %v6193 = vmul.f32 %v5935, %v6168
        %v6194 = vmul.f32 %v5936, %v6168
        %v6195 = vmul.f32 %v5937, %v6168
        %v6196 = vmul.f32 %v5938, %v6168
        %v6197 = vmul.f32 %v5939, %v6168
        %v6198 = vmul.f32 %v5940, %v6168
        %v6199 = vmul.f32 %v5941, %v6168
        %v6200 = vmul.f32 %v5942, %v6168
        %v6201 = vmul.f32 %v5943, %v6168
        %v6202 = vmul.f32 %v5944, %v6168
        %v6203 = vmul.f32 %v5945, %v6168
        %v6204 = vmul.f32 %v5946, %v6168
        %v6205 = vmul.f32 %v5947, %v6168
        %v6206 = vmul.f32 %v5948, %v6168
        %v6207 = vmul.f32 %v5949, %v6168
        %v6208 = vmul.f32 %v5950, %v6168
        %v6209 = vmul.f32 %v5951, %v6168
        %v6210 = vmul.f32 %v5952, %v6168
        %v6211 = vmul.f32 %v5953, %v6168
        %v6212 = vmul.f32 %v5954, %v6168
        %v6213 = vmul.f32 %v5955, %v6168
        %v6214 = vmul.f32 %v5956, %v6168
        %v6215 = vmul.f32 %v5957, %v6168
        %v6216 = vmul.f32 %v5958, %v6168
        %v6217 = vmul.f32 %v5959, %v6168
        %v6218 = vmul.f32 %v5960, %v6168
        %v6219 = vmul.f32 %v5961, %v6168
        %v6220 = vmul.f32 %v5962, %v6168
        %v6221 = vmul.f32 %v5963, %v6168
        %v6222 = vmul.f32 %v5964, %v6168
        %v6223 = vmul.f32 %v5965, %v6168
        %v6224 = vmul.f32 %v5966, %v6168
        %v6225 = vmul.f32 %v5967, %v6168
        %v6226 = vmul.f32 %v5968, %v6168
        %v6227 = vmul.f32 %v5969, %v6168
        %v6228 = vmul.f32 %v5970, %v6168
        %v6229 = vmul.f32 %v5971, %v6168
        %v6230 = vmul.f32 %v5972, %v6168
        %v6231 = vmul.f32 %v5973, %v6168
        %v6232 = vmul.f32 %v5974, %v6168
        %v6233 = vmul.f32 %v5975, %v6168
        %v6234 = vmul.f32 %v5976, %v6168
        %v6235 = vmul.f32 %v5977, %v6168
        %v6236 = vmul.f32 %v5978, %v6168
        %v6237 = vmul.f32 %v5979, %v6168
        %v6238 = vmul.f32 %v5980, %v6168
        %v6239 = vmul.f32 %v5981, %v6168
        %v6240 = vmul.f32 %v5982, %v6168
        %v6241 = vmul.f32 %v5983, %v6168
        %v6242 = vmul.f32 %v5984, %v6168
        %v6243 = vmul.f32 %v5985, %v6168
        %v6244 = vmul.f32 %v5986, %v6168
        %v6245 = vmul.f32 %v5987, %v6168
        %v6246 = vmul.f32 %v5988, %v6168
        %v6247 = vmul.f32 %v5989, %v6168
        %v6248 = vmul.f32 %v5990, %v6168
        %v6249 = vmul.f32 %v5991, %v6168
        %v6250 = vmul.f32 %v5992, %v6168
        %v6251 = vmul.f32 %v5993, %v6168
        %v6252 = vmul.f32 %v5994, %v6168
        %v6253 = vmul.f32 %v5995, %v6168
        %v6254 = vmul.f32 %v5996, %v6168
        %v6255 = vmul.f32 %v5997, %v6168
        %v6256 = vmul.f32 %v5998, %v6168
        %v6257 = vmul.f32 %v5999, %v6168
        %v6258 = vmul.f32 %v6000, %v6168
        %v6259 = vmul.f32 %v6001, %v6168
        %v6260 = vmul.f32 %v6002, %v6168
        %v6261 = vmul.f32 %v6003, %v6168
        %v6262 = vmul.f32 %v6004, %v6168
        %v6263 = vmul.f32 %v6005, %v6168
        %v6264 = vmul.f32 %v6006, %v6168
        %v6265 = vmul.f32 %v6007, %v6168
        %v6266 = vmul.f32 %v6008, %v6168
        %v6267 = vmul.f32 %v6009, %v6168
        %v6268 = vmul.f32 %v6010, %v6168
        %v6269 = vmul.f32 %v6011, %v6168
        %v6270 = vmul.f32 %v6012, %v6168
        %v6271 = vmul.f32 %v6013, %v6168
        %v6272 = vmul.f32 %v6014, %v6168
        %v6273 = vmul.f32 %v6015, %v6168
        %v6274 = vmul.f32 %v6016, %v6168
        %v6275 = vmul.f32 %v6017, %v6168
        %v6276 = vmul.f32 %v6018, %v6168
        %v6277 = vmul.f32 %v6019, %v6168
        %v6278 = vmul.f32 %v6020, %v6168
        %v6279 = vmul.f32 %v6021, %v6168
        %v6280 = vmul.f32 %v6022, %v6168
        %v6281 = vmul.f32 %v6023, %v6168
        %v6282 = vmul.f32 %v6024, %v6168
        %v6283 = vmul.f32 %v6025, %v6168
        %v6284 = vmul.f32 %v6026, %v6168
        %v6285 = vmul.f32 %v6027, %v6168
        %v6286 = vmul.f32 %v6028, %v6168
        %v6287 = vmul.f32 %v6029, %v6168
        %v6288 = vmul.f32 %v6030, %v6168
        %v6289 = vmul.f32 %v6031, %v6168
        %v6290 = vmul.f32 %v6032, %v6168
        %v6291 = vmul.f32 %v6033, %v6168
        %v6292 = vmul.f32 %v6034, %v6168
        %v6293 = vmul.f32 %v6035, %v6168
        %v6294 = vmul.f32 %v6036, %v6168
        %v6295 = vmul.f32 %v6037, %v6168
        %v6296 = vmul.f32 %v6038, %v6168
        %v6297 = vmul.f32 %v6039, %v6168
        %v6298 = vmul.f32 %v6040, %v6168
        %v6299 = vmul.f32 %v6041, %v6168
        %v6300 = vmul.f32 %v6042, %v6168
        %v6301 = vmul.f32 %v6043, %v6168
        %v6302 = vmul.f32 %v6044, %v6168
        %v6303 = vmul.f32 %v6045, %v6168
        %v6304 = vmul.f32 %v6046, %v6168
        %v6305 = vmul.f32 %v6047, %v6168
        %v6306 = vmul.f32 %v6048, %v6168
        %v6307 = vmul.f32 %v6049, %v6168
        %v6308 = vmul.f32 %v6050, %v6168
        %v6309 = vmul.f32 %v6051, %v6168
        %v6310 = vmul.f32 %v6052, %v6168
        %v6311 = vmul.f32 %v6053, %v6168
        %v6312 = vmul.f32 %v6054, %v6168
        %v6313 = vmul.f32 %v6055, %v6168
        %v6314 = vmul.f32 %v6056, %v6168
        %v6315 = vmul.f32 %v6057, %v6168
        %v6316 = vmul.f32 %v6058, %v6168
        %v6317 = vmul.f32 %v6059, %v6168
        %v6318 = vmul.f32 %v6060, %v6168
        %v6319 = vmul.f32 %v6061, %v6168
        %v6320 = vmul.f32 %v6062, %v6168
        %v6321 = vmul.f32 %v6063, %v6168
        %v6322 = vmul.f32 %v6064, %v6168
        %v6323 = vmul.f32 %v6065, %v6168
        %v6324 = vmul.f32 %v6066, %v6168
        %v6325 = vmul.f32 %v6067, %v6168
        %v6326 = vmul.f32 %v6068, %v6168
        %v6327 = vmul.f32 %v6069, %v6168
        %v6328 = vmul.f32 %v6070, %v6168
        %v6329 = vmul.f32 %v6071, %v6168
        %v6330 = vmul.f32 %v6072, %v6168
        %v6331 = vmul.f32 %v6073, %v6168
        %v6332 = vmul.f32 %v6074, %v6168
        %v6333 = vmul.f32 %v6075, %v6168
        %v6334 = vmul.f32 %v6076, %v6168
        %v6335 = vmul.f32 %v6077, %v6168
        %v6336 = vmul.f32 %v6078, %v6168
        %v6337 = vmul.f32 %v6079, %v6168
        %v6338 = vmul.f32 %v6080, %v6168
        %v6339 = vmul.f32 %v6081, %v6168
        %v6340 = vmul.f32 %v6082, %v6168
        %v6341 = vmul.f32 %v6083, %v6168
        %v6342 = vmul.f32 %v6084, %v6168
        %v6343 = vmul.f32 %v6085, %v6168
        %v6344 = vmul.f32 %v6086, %v6168
        %v6345 = vmul.f32 %v6087, %v6168
        %v6346 = vmul.f32 %v6088, %v6168
        %v6347 = vmul.f32 %v6089, %v6168
        %v6348 = vmul.f32 %v6090, %v6168
        %v6349 = vmul.f32 %v6091, %v6168
        %v6350 = vmul.f32 %v6092, %v6168
        %v6351 = vmul.f32 %v6093, %v6168
        %v6352 = vmul.f32 %v6094, %v6168
        %v6353 = vmul.f32 %v6095, %v6168
        %v6354 = vmul.f32 %v6096, %v6168
        %v6355 = vmul.f32 %v6097, %v6168
        %v6356 = vmul.f32 %v6098, %v6168
        %v6357 = vmul.f32 %v6099, %v6168
        %v6358 = vmul.f32 %v6100, %v6168
        %v6359 = vmul.f32 %v6101, %v6168
        %v6360 = vmul.f32 %v6102, %v6168
        %v6361 = vmul.f32 %v6103, %v6168
        %v6362 = vmul.f32 %v6104, %v6168
        %v6363 = vmul.f32 %v6105, %v6168
        %v6364 = vmul.f32 %v6106, %v6168
        %v6365 = vmul.f32 %v6107, %v6168
        %v6366 = vmul.f32 %v6108, %v6168
        %v6367 = vmul.f32 %v6109, %v6168
        %v6368 = vmul.f32 %v6110, %v6168
        %v6369 = vmul.f32 %v6111, %v6168
        %v6370 = vmul.f32 %v6112, %v6168
        %v6371 = vmul.f32 %v6113, %v6168
        %v6372 = vmul.f32 %v6114, %v6168
        %v6373 = vmul.f32 %v6115, %v6168
        %v6374 = vmul.f32 %v6116, %v6168
        %v6375 = vmul.f32 %v6117, %v6168
        %v6376 = vmul.f32 %v6118, %v6168
        %v6377 = vmul.f32 %v6119, %v6168
        %v6378 = vmul.f32 %v6120, %v6168
        %v6379 = vmul.f32 %v6121, %v6168
        %v6380 = vmul.f32 %v6122, %v6168
        %v6381 = vmul.f32 %v6123, %v6168
        %v6382 = vmul.f32 %v6124, %v6168
        %v6383 = vmul.f32 %v6125, %v6168
        %v6384 = vmul.f32 %v6126, %v6168
        %v6385 = vmul.f32 %v6127, %v6168
        %v6386 = vmul.f32 %v6128, %v6168
        %v6387 = vmul.f32 %v6129, %v6168
        %v6388 = vmul.f32 %v6130, %v6168
        %v6389 = vmul.f32 %v6131, %v6168
        %v6390 = vmul.f32 %v6132, %v6168
        %v6391 = vmul.f32 %v6133, %v6168
        %v6392 = vmul.f32 %v6134, %v6168
        %v6393 = vmul.f32 %v6135, %v6168
        %v6394 = vmul.f32 %v6136, %v6168
        %v6395 = vmul.f32 %v6137, %v6168
        %v6396 = vmul.f32 %v6138, %v6168
        %v6397 = vmul.f32 %v6139, %v6168
        %v6398 = vmul.f32 %v6140, %v6168
        %v6399 = vmul.f32 %v6141, %v6168
        %v6400 = vmul.f32 %v6142, %v6168
        %v6401 = vmul.f32 %v6143, %v6168
        %v6402 = vmul.f32 %v6144, %v6168
        %v6403 = vmul.f32 %v6145, %v6168
        %v6404 = vmul.f32 %v6146, %v6168
        %v6405 = vmul.f32 %v6147, %v6168
        %v6406 = vmul.f32 %v6148, %v6168
        %v6407 = vmul.f32 %v6149, %v6168
        %v6408 = vmul.f32 %v6150, %v6168
        %v6409 = vmul.f32 %v6151, %v6168
        %v6410 = vmul.f32 %v6152, %v6168
        %v6411 = vmul.f32 %v6153, %v6168
        %v6412 = vmul.f32 %v6154, %v6168
        %v6413 = vmul.f32 %v6155, %v6168
        %v6414 = vmul.f32 %v6156, %v6168
        %v6415 = vmul.f32 %v6157, %v6168
        %v6416 = vmul.f32 %v6158, %v6168
        %v6417 = vmul.f32 %v6159, %v6168
        %v6418 = vmul.f32 %v6160, %v6168
        %v6419 = vmul.f32 %v6161, %v6168
        %v6420 = vmul.f32 %v6162, %v6168
        %v6421 = vmul.f32 %v6163, %v6168
        %v6422 = vmul.f32 %v6164, %v6168
        %v6423 = vmul.f32 %v6165, %v6168
        %v6424 = vmul.f32 %v6166, %v6168
        %v6425 = vld [vmem:[%s774] sm:$0xff]
        %v6426 = vld [vmem:[%s774 + $0x8] sm:$0xff]
        %v6427 = vld [vmem:[%s774 + $0x10] sm:$0xff]
        %v6428 = vld [vmem:[%s774 + $0x18] sm:$0xff]
        %v6429 = vld [vmem:[%s774 + $0x20] sm:$0xff]
        %v6430 = vld [vmem:[%s774 + $0x28] sm:$0xff]
        %v6431 = vld [vmem:[%s774 + $0x30] sm:$0xff]
        %v6432 = vld [vmem:[%s774 + $0x38] sm:$0xff]
        %v6433 = vld [vmem:[%s774 + $0x40] sm:$0xff]
        %v6434 = vld [vmem:[%s774 + $0x48] sm:$0xff]
        %v6435 = vld [vmem:[%s774 + $0x50] sm:$0xff]
        %v6436 = vld [vmem:[%s774 + $0x58] sm:$0xff]
        %v6437 = vld [vmem:[%s774 + $0x60] sm:$0xff]
        %v6438 = vld [vmem:[%s774 + $0x68] sm:$0xff]
        %v6439 = vld [vmem:[%s774 + $0x70] sm:$0xff]
        %v6440 = vld [vmem:[%s774 + $0x78] sm:$0xff]
        %v6441 = vld [vmem:[%s774 + $0x80] sm:$0xff]
        %v6442 = vld [vmem:[%s774 + $0x88] sm:$0xff]
        %v6443 = vld [vmem:[%s774 + $0x90] sm:$0xff]
        %v6444 = vld [vmem:[%s774 + $0x98] sm:$0xff]
        %v6445 = vld [vmem:[%s774 + $0xa0] sm:$0xff]
        %v6446 = vld [vmem:[%s774 + $0xa8] sm:$0xff]
        %v6447 = vld [vmem:[%s774 + $0xb0] sm:$0xff]
        %v6448 = vld [vmem:[%s774 + $0xb8] sm:$0xff]
        %v6449 = vld [vmem:[%s774 + $0xc0] sm:$0xff]
        %v6450 = vld [vmem:[%s774 + $0xc8] sm:$0xff]
        %v6451 = vld [vmem:[%s774 + $0xd0] sm:$0xff]
        %v6452 = vld [vmem:[%s774 + $0xd8] sm:$0xff]
        %v6453 = vld [vmem:[%s774 + $0xe0] sm:$0xff]
        %v6454 = vld [vmem:[%s774 + $0xe8] sm:$0xff]
        %v6455 = vld [vmem:[%s774 + $0xf0] sm:$0xff]
        %v6456 = vld [vmem:[%s774 + $0xf8] sm:$0xff]
        %v6457 = vld [vmem:[%s774 + $0x100] sm:$0xff]
        %v6458 = vld [vmem:[%s774 + $0x108] sm:$0xff]
        %v6459 = vld [vmem:[%s774 + $0x110] sm:$0xff]
        %v6460 = vld [vmem:[%s774 + $0x118] sm:$0xff]
        %v6461 = vld [vmem:[%s774 + $0x120] sm:$0xff]
        %v6462 = vld [vmem:[%s774 + $0x128] sm:$0xff]
        %v6463 = vld [vmem:[%s774 + $0x130] sm:$0xff]
        %v6464 = vld [vmem:[%s774 + $0x138] sm:$0xff]
        %v6465 = vld [vmem:[%s774 + $0x140] sm:$0xff]
        %v6466 = vld [vmem:[%s774 + $0x148] sm:$0xff]
        %v6467 = vld [vmem:[%s774 + $0x150] sm:$0xff]
        %v6468 = vld [vmem:[%s774 + $0x158] sm:$0xff]
        %v6469 = vld [vmem:[%s774 + $0x160] sm:$0xff]
        %v6470 = vld [vmem:[%s774 + $0x168] sm:$0xff]
        %v6471 = vld [vmem:[%s774 + $0x170] sm:$0xff]
        %v6472 = vld [vmem:[%s774 + $0x178] sm:$0xff]
        %v6473 = vld [vmem:[%s774 + $0x180] sm:$0xff]
        %v6474 = vld [vmem:[%s774 + $0x188] sm:$0xff]
        %v6475 = vld [vmem:[%s774 + $0x190] sm:$0xff]
        %v6476 = vld [vmem:[%s774 + $0x198] sm:$0xff]
        %v6477 = vld [vmem:[%s774 + $0x1a0] sm:$0xff]
        %v6478 = vld [vmem:[%s774 + $0x1a8] sm:$0xff]
        %v6479 = vld [vmem:[%s774 + $0x1b0] sm:$0xff]
        %v6480 = vld [vmem:[%s774 + $0x1b8] sm:$0xff]
        %v6481 = vld [vmem:[%s774 + $0x1c0] sm:$0xff]
        %v6482 = vld [vmem:[%s774 + $0x1c8] sm:$0xff]
        %v6483 = vld [vmem:[%s774 + $0x1d0] sm:$0xff]
        %v6484 = vld [vmem:[%s774 + $0x1d8] sm:$0xff]
        %v6485 = vld [vmem:[%s774 + $0x1e0] sm:$0xff]
        %v6486 = vld [vmem:[%s774 + $0x1e8] sm:$0xff]
        %v6487 = vld [vmem:[%s774 + $0x1f0] sm:$0xff]
        %v6488 = vld [vmem:[%s774 + $0x1f8] sm:$0xff]
        %v6489 = vld [vmem:[%s774 + $0x200] sm:$0xff]
        %v6490 = vld [vmem:[%s774 + $0x208] sm:$0xff]
        %v6491 = vld [vmem:[%s774 + $0x210] sm:$0xff]
        %v6492 = vld [vmem:[%s774 + $0x218] sm:$0xff]
        %v6493 = vld [vmem:[%s774 + $0x220] sm:$0xff]
        %v6494 = vld [vmem:[%s774 + $0x228] sm:$0xff]
        %v6495 = vld [vmem:[%s774 + $0x230] sm:$0xff]
        %v6496 = vld [vmem:[%s774 + $0x238] sm:$0xff]
        %v6497 = vld [vmem:[%s774 + $0x240] sm:$0xff]
        %v6498 = vld [vmem:[%s774 + $0x248] sm:$0xff]
        %v6499 = vld [vmem:[%s774 + $0x250] sm:$0xff]
        %v6500 = vld [vmem:[%s774 + $0x258] sm:$0xff]
        %v6501 = vld [vmem:[%s774 + $0x260] sm:$0xff]
        %v6502 = vld [vmem:[%s774 + $0x268] sm:$0xff]
        %v6503 = vld [vmem:[%s774 + $0x270] sm:$0xff]
        %v6504 = vld [vmem:[%s774 + $0x278] sm:$0xff]
        %v6505 = vld [vmem:[%s774 + $0x280] sm:$0xff]
        %v6506 = vld [vmem:[%s774 + $0x288] sm:$0xff]
        %v6507 = vld [vmem:[%s774 + $0x290] sm:$0xff]
        %v6508 = vld [vmem:[%s774 + $0x298] sm:$0xff]
        %v6509 = vld [vmem:[%s774 + $0x2a0] sm:$0xff]
        %v6510 = vld [vmem:[%s774 + $0x2a8] sm:$0xff]
        %v6511 = vld [vmem:[%s774 + $0x2b0] sm:$0xff]
        %v6512 = vld [vmem:[%s774 + $0x2b8] sm:$0xff]
        %v6513 = vld [vmem:[%s774 + $0x2c0] sm:$0xff]
        %v6514 = vld [vmem:[%s774 + $0x2c8] sm:$0xff]
        %v6515 = vld [vmem:[%s774 + $0x2d0] sm:$0xff]
        %v6516 = vld [vmem:[%s774 + $0x2d8] sm:$0xff]
        %v6517 = vld [vmem:[%s774 + $0x2e0] sm:$0xff]
        %v6518 = vld [vmem:[%s774 + $0x2e8] sm:$0xff]
        %v6519 = vld [vmem:[%s774 + $0x2f0] sm:$0xff]
        %v6520 = vld [vmem:[%s774 + $0x2f8] sm:$0xff]
        %v6521 = vld [vmem:[%s774 + $0x300] sm:$0xff]
        %v6522 = vld [vmem:[%s774 + $0x308] sm:$0xff]
        %v6523 = vld [vmem:[%s774 + $0x310] sm:$0xff]
        %v6524 = vld [vmem:[%s774 + $0x318] sm:$0xff]
        %v6525 = vld [vmem:[%s774 + $0x320] sm:$0xff]
        %v6526 = vld [vmem:[%s774 + $0x328] sm:$0xff]
        %v6527 = vld [vmem:[%s774 + $0x330] sm:$0xff]
        %v6528 = vld [vmem:[%s774 + $0x338] sm:$0xff]
        %v6529 = vld [vmem:[%s774 + $0x340] sm:$0xff]
        %v6530 = vld [vmem:[%s774 + $0x348] sm:$0xff]
        %v6531 = vld [vmem:[%s774 + $0x350] sm:$0xff]
        %v6532 = vld [vmem:[%s774 + $0x358] sm:$0xff]
        %v6533 = vld [vmem:[%s774 + $0x360] sm:$0xff]
        %v6534 = vld [vmem:[%s774 + $0x368] sm:$0xff]
        %v6535 = vld [vmem:[%s774 + $0x370] sm:$0xff]
        %v6536 = vld [vmem:[%s774 + $0x378] sm:$0xff]
        %v6537 = vld [vmem:[%s774 + $0x380] sm:$0xff]
        %v6538 = vld [vmem:[%s774 + $0x388] sm:$0xff]
        %v6539 = vld [vmem:[%s774 + $0x390] sm:$0xff]
        %v6540 = vld [vmem:[%s774 + $0x398] sm:$0xff]
        %v6541 = vld [vmem:[%s774 + $0x3a0] sm:$0xff]
        %v6542 = vld [vmem:[%s774 + $0x3a8] sm:$0xff]
        %v6543 = vld [vmem:[%s774 + $0x3b0] sm:$0xff]
        %v6544 = vld [vmem:[%s774 + $0x3b8] sm:$0xff]
        %v6545 = vld [vmem:[%s774 + $0x3c0] sm:$0xff]
        %v6546 = vld [vmem:[%s774 + $0x3c8] sm:$0xff]
        %v6547 = vld [vmem:[%s774 + $0x3d0] sm:$0xff]
        %v6548 = vld [vmem:[%s774 + $0x3d8] sm:$0xff]
        %v6549 = vld [vmem:[%s774 + $0x3e0] sm:$0xff]
        %v6550 = vld [vmem:[%s774 + $0x3e8] sm:$0xff]
        %v6551 = vld [vmem:[%s774 + $0x3f0] sm:$0xff]
        %v6552 = vld [vmem:[%s774 + $0x3f8] sm:$0xff]
        %v6553 = vld [vmem:[%s774 + $0x400] sm:$0xff]
        %v6554 = vld [vmem:[%s774 + $0x408] sm:$0xff]
        %v6555 = vld [vmem:[%s774 + $0x410] sm:$0xff]
        %v6556 = vld [vmem:[%s774 + $0x418] sm:$0xff]
        %v6557 = vld [vmem:[%s774 + $0x420] sm:$0xff]
        %v6558 = vld [vmem:[%s774 + $0x428] sm:$0xff]
        %v6559 = vld [vmem:[%s774 + $0x430] sm:$0xff]
        %v6560 = vld [vmem:[%s774 + $0x438] sm:$0xff]
        %v6561 = vld [vmem:[%s774 + $0x440] sm:$0xff]
        %v6562 = vld [vmem:[%s774 + $0x448] sm:$0xff]
        %v6563 = vld [vmem:[%s774 + $0x450] sm:$0xff]
        %v6564 = vld [vmem:[%s774 + $0x458] sm:$0xff]
        %v6565 = vld [vmem:[%s774 + $0x460] sm:$0xff]
        %v6566 = vld [vmem:[%s774 + $0x468] sm:$0xff]
        %v6567 = vld [vmem:[%s774 + $0x470] sm:$0xff]
        %v6568 = vld [vmem:[%s774 + $0x478] sm:$0xff]
        %v6569 = vld [vmem:[%s774 + $0x480] sm:$0xff]
        %v6570 = vld [vmem:[%s774 + $0x488] sm:$0xff]
        %v6571 = vld [vmem:[%s774 + $0x490] sm:$0xff]
        %v6572 = vld [vmem:[%s774 + $0x498] sm:$0xff]
        %v6573 = vld [vmem:[%s774 + $0x4a0] sm:$0xff]
        %v6574 = vld [vmem:[%s774 + $0x4a8] sm:$0xff]
        %v6575 = vld [vmem:[%s774 + $0x4b0] sm:$0xff]
        %v6576 = vld [vmem:[%s774 + $0x4b8] sm:$0xff]
        %v6577 = vld [vmem:[%s774 + $0x4c0] sm:$0xff]
        %v6578 = vld [vmem:[%s774 + $0x4c8] sm:$0xff]
        %v6579 = vld [vmem:[%s774 + $0x4d0] sm:$0xff]
        %v6580 = vld [vmem:[%s774 + $0x4d8] sm:$0xff]
        %v6581 = vld [vmem:[%s774 + $0x4e0] sm:$0xff]
        %v6582 = vld [vmem:[%s774 + $0x4e8] sm:$0xff]
        %v6583 = vld [vmem:[%s774 + $0x4f0] sm:$0xff]
        %v6584 = vld [vmem:[%s774 + $0x4f8] sm:$0xff]
        %v6585 = vld [vmem:[%s774 + $0x500] sm:$0xff]
        %v6586 = vld [vmem:[%s774 + $0x508] sm:$0xff]
        %v6587 = vld [vmem:[%s774 + $0x510] sm:$0xff]
        %v6588 = vld [vmem:[%s774 + $0x518] sm:$0xff]
        %v6589 = vld [vmem:[%s774 + $0x520] sm:$0xff]
        %v6590 = vld [vmem:[%s774 + $0x528] sm:$0xff]
        %v6591 = vld [vmem:[%s774 + $0x530] sm:$0xff]
        %v6592 = vld [vmem:[%s774 + $0x538] sm:$0xff]
        %v6593 = vld [vmem:[%s774 + $0x540] sm:$0xff]
        %v6594 = vld [vmem:[%s774 + $0x548] sm:$0xff]
        %v6595 = vld [vmem:[%s774 + $0x550] sm:$0xff]
        %v6596 = vld [vmem:[%s774 + $0x558] sm:$0xff]
        %v6597 = vld [vmem:[%s774 + $0x560] sm:$0xff]
        %v6598 = vld [vmem:[%s774 + $0x568] sm:$0xff]
        %v6599 = vld [vmem:[%s774 + $0x570] sm:$0xff]
        %v6600 = vld [vmem:[%s774 + $0x578] sm:$0xff]
        %v6601 = vld [vmem:[%s774 + $0x580] sm:$0xff]
        %v6602 = vld [vmem:[%s774 + $0x588] sm:$0xff]
        %v6603 = vld [vmem:[%s774 + $0x590] sm:$0xff]
        %v6604 = vld [vmem:[%s774 + $0x598] sm:$0xff]
        %v6605 = vld [vmem:[%s774 + $0x5a0] sm:$0xff]
        %v6606 = vld [vmem:[%s774 + $0x5a8] sm:$0xff]
        %v6607 = vld [vmem:[%s774 + $0x5b0] sm:$0xff]
        %v6608 = vld [vmem:[%s774 + $0x5b8] sm:$0xff]
        %v6609 = vld [vmem:[%s774 + $0x5c0] sm:$0xff]
        %v6610 = vld [vmem:[%s774 + $0x5c8] sm:$0xff]
        %v6611 = vld [vmem:[%s774 + $0x5d0] sm:$0xff]
        %v6612 = vld [vmem:[%s774 + $0x5d8] sm:$0xff]
        %v6613 = vld [vmem:[%s774 + $0x5e0] sm:$0xff]
        %v6614 = vld [vmem:[%s774 + $0x5e8] sm:$0xff]
        %v6615 = vld [vmem:[%s774 + $0x5f0] sm:$0xff]
        %v6616 = vld [vmem:[%s774 + $0x5f8] sm:$0xff]
        %v6617 = vld [vmem:[%s774 + $0x600] sm:$0xff]
        %v6618 = vld [vmem:[%s774 + $0x608] sm:$0xff]
        %v6619 = vld [vmem:[%s774 + $0x610] sm:$0xff]
        %v6620 = vld [vmem:[%s774 + $0x618] sm:$0xff]
        %v6621 = vld [vmem:[%s774 + $0x620] sm:$0xff]
        %v6622 = vld [vmem:[%s774 + $0x628] sm:$0xff]
        %v6623 = vld [vmem:[%s774 + $0x630] sm:$0xff]
        %v6624 = vld [vmem:[%s774 + $0x638] sm:$0xff]
        %v6625 = vld [vmem:[%s774 + $0x640] sm:$0xff]
        %v6626 = vld [vmem:[%s774 + $0x648] sm:$0xff]
        %v6627 = vld [vmem:[%s774 + $0x650] sm:$0xff]
        %v6628 = vld [vmem:[%s774 + $0x658] sm:$0xff]
        %v6629 = vld [vmem:[%s774 + $0x660] sm:$0xff]
        %v6630 = vld [vmem:[%s774 + $0x668] sm:$0xff]
        %v6631 = vld [vmem:[%s774 + $0x670] sm:$0xff]
        %v6632 = vld [vmem:[%s774 + $0x678] sm:$0xff]
        %v6633 = vld [vmem:[%s774 + $0x680] sm:$0xff]
        %v6634 = vld [vmem:[%s774 + $0x688] sm:$0xff]
        %v6635 = vld [vmem:[%s774 + $0x690] sm:$0xff]
        %v6636 = vld [vmem:[%s774 + $0x698] sm:$0xff]
        %v6637 = vld [vmem:[%s774 + $0x6a0] sm:$0xff]
        %v6638 = vld [vmem:[%s774 + $0x6a8] sm:$0xff]
        %v6639 = vld [vmem:[%s774 + $0x6b0] sm:$0xff]
        %v6640 = vld [vmem:[%s774 + $0x6b8] sm:$0xff]
        %v6641 = vld [vmem:[%s774 + $0x6c0] sm:$0xff]
        %v6642 = vld [vmem:[%s774 + $0x6c8] sm:$0xff]
        %v6643 = vld [vmem:[%s774 + $0x6d0] sm:$0xff]
        %v6644 = vld [vmem:[%s774 + $0x6d8] sm:$0xff]
        %v6645 = vld [vmem:[%s774 + $0x6e0] sm:$0xff]
        %v6646 = vld [vmem:[%s774 + $0x6e8] sm:$0xff]
        %v6647 = vld [vmem:[%s774 + $0x6f0] sm:$0xff]
        %v6648 = vld [vmem:[%s774 + $0x6f8] sm:$0xff]
        %v6649 = vld [vmem:[%s774 + $0x700] sm:$0xff]
        %v6650 = vld [vmem:[%s774 + $0x708] sm:$0xff]
        %v6651 = vld [vmem:[%s774 + $0x710] sm:$0xff]
        %v6652 = vld [vmem:[%s774 + $0x718] sm:$0xff]
        %v6653 = vld [vmem:[%s774 + $0x720] sm:$0xff]
        %v6654 = vld [vmem:[%s774 + $0x728] sm:$0xff]
        %v6655 = vld [vmem:[%s774 + $0x730] sm:$0xff]
        %v6656 = vld [vmem:[%s774 + $0x738] sm:$0xff]
        %v6657 = vld [vmem:[%s774 + $0x740] sm:$0xff]
        %v6658 = vld [vmem:[%s774 + $0x748] sm:$0xff]
        %v6659 = vld [vmem:[%s774 + $0x750] sm:$0xff]
        %v6660 = vld [vmem:[%s774 + $0x758] sm:$0xff]
        %v6661 = vld [vmem:[%s774 + $0x760] sm:$0xff]
        %v6662 = vld [vmem:[%s774 + $0x768] sm:$0xff]
        %v6663 = vld [vmem:[%s774 + $0x770] sm:$0xff]
        %v6664 = vld [vmem:[%s774 + $0x778] sm:$0xff]
        %v6665 = vld [vmem:[%s774 + $0x780] sm:$0xff]
        %v6666 = vld [vmem:[%s774 + $0x788] sm:$0xff]
        %v6667 = vld [vmem:[%s774 + $0x790] sm:$0xff]
        %v6668 = vld [vmem:[%s774 + $0x798] sm:$0xff]
        %v6669 = vld [vmem:[%s774 + $0x7a0] sm:$0xff]
        %v6670 = vld [vmem:[%s774 + $0x7a8] sm:$0xff]
        %v6671 = vld [vmem:[%s774 + $0x7b0] sm:$0xff]
        %v6672 = vld [vmem:[%s774 + $0x7b8] sm:$0xff]
        %v6673 = vld [vmem:[%s774 + $0x7c0] sm:$0xff]
        %v6674 = vld [vmem:[%s774 + $0x7c8] sm:$0xff]
        %v6675 = vld [vmem:[%s774 + $0x7d0] sm:$0xff]
        %v6676 = vld [vmem:[%s774 + $0x7d8] sm:$0xff]
        %v6677 = vld [vmem:[%s774 + $0x7e0] sm:$0xff]
        %v6678 = vld [vmem:[%s774 + $0x7e8] sm:$0xff]
        %v6679 = vld [vmem:[%s774 + $0x7f0] sm:$0xff]
        %v6680 = vld [vmem:[%s774 + $0x7f8] sm:$0xff]
        %s6681 = sld [smem:[#allocation7 + $0x82]]
        %v6682 = vstv %s6681
        %v6683 = vmul.f32 %v6425, %v6682
        %v6684 = vmul.f32 %v6426, %v6682
        %v6685 = vmul.f32 %v6427, %v6682
        %v6686 = vmul.f32 %v6428, %v6682
        %v6687 = vmul.f32 %v6429, %v6682
        %v6688 = vmul.f32 %v6430, %v6682
        %v6689 = vmul.f32 %v6431, %v6682
        %v6690 = vmul.f32 %v6432, %v6682
        %v6691 = vmul.f32 %v6433, %v6682
        %v6692 = vmul.f32 %v6434, %v6682
        %v6693 = vmul.f32 %v6435, %v6682
        %v6694 = vmul.f32 %v6436, %v6682
        %v6695 = vmul.f32 %v6437, %v6682
        %v6696 = vmul.f32 %v6438, %v6682
        %v6697 = vmul.f32 %v6439, %v6682
        %v6698 = vmul.f32 %v6440, %v6682
        %v6699 = vmul.f32 %v6441, %v6682
        %v6700 = vmul.f32 %v6442, %v6682
        %v6701 = vmul.f32 %v6443, %v6682
        %v6702 = vmul.f32 %v6444, %v6682
        %v6703 = vmul.f32 %v6445, %v6682
        %v6704 = vmul.f32 %v6446, %v6682
        %v6705 = vmul.f32 %v6447, %v6682
        %v6706 = vmul.f32 %v6448, %v6682
        %v6707 = vmul.f32 %v6449, %v6682
        %v6708 = vmul.f32 %v6450, %v6682
        %v6709 = vmul.f32 %v6451, %v6682
        %v6710 = vmul.f32 %v6452, %v6682
        %v6711 = vmul.f32 %v6453, %v6682
        %v6712 = vmul.f32 %v6454, %v6682
        %v6713 = vmul.f32 %v6455, %v6682
        %v6714 = vmul.f32 %v6456, %v6682
        %v6715 = vmul.f32 %v6457, %v6682
        %v6716 = vmul.f32 %v6458, %v6682
        %v6717 = vmul.f32 %v6459, %v6682
        %v6718 = vmul.f32 %v6460, %v6682
        %v6719 = vmul.f32 %v6461, %v6682
        %v6720 = vmul.f32 %v6462, %v6682
        %v6721 = vmul.f32 %v6463, %v6682
        %v6722 = vmul.f32 %v6464, %v6682
        %v6723 = vmul.f32 %v6465, %v6682
        %v6724 = vmul.f32 %v6466, %v6682
        %v6725 = vmul.f32 %v6467, %v6682
        %v6726 = vmul.f32 %v6468, %v6682
        %v6727 = vmul.f32 %v6469, %v6682
        %v6728 = vmul.f32 %v6470, %v6682
        %v6729 = vmul.f32 %v6471, %v6682
        %v6730 = vmul.f32 %v6472, %v6682
        %v6731 = vmul.f32 %v6473, %v6682
        %v6732 = vmul.f32 %v6474, %v6682
        %v6733 = vmul.f32 %v6475, %v6682
        %v6734 = vmul.f32 %v6476, %v6682
        %v6735 = vmul.f32 %v6477, %v6682
        %v6736 = vmul.f32 %v6478, %v6682
        %v6737 = vmul.f32 %v6479, %v6682
        %v6738 = vmul.f32 %v6480, %v6682
        %v6739 = vmul.f32 %v6481, %v6682
        %v6740 = vmul.f32 %v6482, %v6682
        %v6741 = vmul.f32 %v6483, %v6682
        %v6742 = vmul.f32 %v6484, %v6682
        %v6743 = vmul.f32 %v6485, %v6682
        %v6744 = vmul.f32 %v6486, %v6682
        %v6745 = vmul.f32 %v6487, %v6682
        %v6746 = vmul.f32 %v6488, %v6682
        %v6747 = vmul.f32 %v6489, %v6682
        %v6748 = vmul.f32 %v6490, %v6682
        %v6749 = vmul.f32 %v6491, %v6682
        %v6750 = vmul.f32 %v6492, %v6682
        %v6751 = vmul.f32 %v6493, %v6682
        %v6752 = vmul.f32 %v6494, %v6682
        %v6753 = vmul.f32 %v6495, %v6682
        %v6754 = vmul.f32 %v6496, %v6682
        %v6755 = vmul.f32 %v6497, %v6682
        %v6756 = vmul.f32 %v6498, %v6682
        %v6757 = vmul.f32 %v6499, %v6682
        %v6758 = vmul.f32 %v6500, %v6682
        %v6759 = vmul.f32 %v6501, %v6682
        %v6760 = vmul.f32 %v6502, %v6682
        %v6761 = vmul.f32 %v6503, %v6682
        %v6762 = vmul.f32 %v6504, %v6682
        %v6763 = vmul.f32 %v6505, %v6682
        %v6764 = vmul.f32 %v6506, %v6682
        %v6765 = vmul.f32 %v6507, %v6682
        %v6766 = vmul.f32 %v6508, %v6682
        %v6767 = vmul.f32 %v6509, %v6682
        %v6768 = vmul.f32 %v6510, %v6682
        %v6769 = vmul.f32 %v6511, %v6682
        %v6770 = vmul.f32 %v6512, %v6682
        %v6771 = vmul.f32 %v6513, %v6682
        %v6772 = vmul.f32 %v6514, %v6682
        %v6773 = vmul.f32 %v6515, %v6682
        %v6774 = vmul.f32 %v6516, %v6682
        %v6775 = vmul.f32 %v6517, %v6682
        %v6776 = vmul.f32 %v6518, %v6682
        %v6777 = vmul.f32 %v6519, %v6682
        %v6778 = vmul.f32 %v6520, %v6682
        %v6779 = vmul.f32 %v6521, %v6682
        %v6780 = vmul.f32 %v6522, %v6682
        %v6781 = vmul.f32 %v6523, %v6682
        %v6782 = vmul.f32 %v6524, %v6682
        %v6783 = vmul.f32 %v6525, %v6682
        %v6784 = vmul.f32 %v6526, %v6682
        %v6785 = vmul.f32 %v6527, %v6682
        %v6786 = vmul.f32 %v6528, %v6682
        %v6787 = vmul.f32 %v6529, %v6682
        %v6788 = vmul.f32 %v6530, %v6682
        %v6789 = vmul.f32 %v6531, %v6682
        %v6790 = vmul.f32 %v6532, %v6682
        %v6791 = vmul.f32 %v6533, %v6682
        %v6792 = vmul.f32 %v6534, %v6682
        %v6793 = vmul.f32 %v6535, %v6682
        %v6794 = vmul.f32 %v6536, %v6682
        %v6795 = vmul.f32 %v6537, %v6682
        %v6796 = vmul.f32 %v6538, %v6682
        %v6797 = vmul.f32 %v6539, %v6682
        %v6798 = vmul.f32 %v6540, %v6682
        %v6799 = vmul.f32 %v6541, %v6682
        %v6800 = vmul.f32 %v6542, %v6682
        %v6801 = vmul.f32 %v6543, %v6682
        %v6802 = vmul.f32 %v6544, %v6682
        %v6803 = vmul.f32 %v6545, %v6682
        %v6804 = vmul.f32 %v6546, %v6682
        %v6805 = vmul.f32 %v6547, %v6682
        %v6806 = vmul.f32 %v6548, %v6682
        %v6807 = vmul.f32 %v6549, %v6682
        %v6808 = vmul.f32 %v6550, %v6682
        %v6809 = vmul.f32 %v6551, %v6682
        %v6810 = vmul.f32 %v6552, %v6682
        %v6811 = vmul.f32 %v6553, %v6682
        %v6812 = vmul.f32 %v6554, %v6682
        %v6813 = vmul.f32 %v6555, %v6682
        %v6814 = vmul.f32 %v6556, %v6682
        %v6815 = vmul.f32 %v6557, %v6682
        %v6816 = vmul.f32 %v6558, %v6682
        %v6817 = vmul.f32 %v6559, %v6682
        %v6818 = vmul.f32 %v6560, %v6682
        %v6819 = vmul.f32 %v6561, %v6682
        %v6820 = vmul.f32 %v6562, %v6682
        %v6821 = vmul.f32 %v6563, %v6682
        %v6822 = vmul.f32 %v6564, %v6682
        %v6823 = vmul.f32 %v6565, %v6682
        %v6824 = vmul.f32 %v6566, %v6682
        %v6825 = vmul.f32 %v6567, %v6682
        %v6826 = vmul.f32 %v6568, %v6682
        %v6827 = vmul.f32 %v6569, %v6682
        %v6828 = vmul.f32 %v6570, %v6682
        %v6829 = vmul.f32 %v6571, %v6682
        %v6830 = vmul.f32 %v6572, %v6682
        %v6831 = vmul.f32 %v6573, %v6682
        %v6832 = vmul.f32 %v6574, %v6682
        %v6833 = vmul.f32 %v6575, %v6682
        %v6834 = vmul.f32 %v6576, %v6682
        %v6835 = vmul.f32 %v6577, %v6682
        %v6836 = vmul.f32 %v6578, %v6682
        %v6837 = vmul.f32 %v6579, %v6682
        %v6838 = vmul.f32 %v6580, %v6682
        %v6839 = vmul.f32 %v6581, %v6682
        %v6840 = vmul.f32 %v6582, %v6682
        %v6841 = vmul.f32 %v6583, %v6682
        %v6842 = vmul.f32 %v6584, %v6682
        %v6843 = vmul.f32 %v6585, %v6682
        %v6844 = vmul.f32 %v6586, %v6682
        %v6845 = vmul.f32 %v6587, %v6682
        %v6846 = vmul.f32 %v6588, %v6682
        %v6847 = vmul.f32 %v6589, %v6682
        %v6848 = vmul.f32 %v6590, %v6682
        %v6849 = vmul.f32 %v6591, %v6682
        %v6850 = vmul.f32 %v6592, %v6682
        %v6851 = vmul.f32 %v6593, %v6682
        %v6852 = vmul.f32 %v6594, %v6682
        %v6853 = vmul.f32 %v6595, %v6682
        %v6854 = vmul.f32 %v6596, %v6682
        %v6855 = vmul.f32 %v6597, %v6682
        %v6856 = vmul.f32 %v6598, %v6682
        %v6857 = vmul.f32 %v6599, %v6682
        %v6858 = vmul.f32 %v6600, %v6682
        %v6859 = vmul.f32 %v6601, %v6682
        %v6860 = vmul.f32 %v6602, %v6682
        %v6861 = vmul.f32 %v6603, %v6682
        %v6862 = vmul.f32 %v6604, %v6682
        %v6863 = vmul.f32 %v6605, %v6682
        %v6864 = vmul.f32 %v6606, %v6682
        %v6865 = vmul.f32 %v6607, %v6682
        %v6866 = vmul.f32 %v6608, %v6682
        %v6867 = vmul.f32 %v6609, %v6682
        %v6868 = vmul.f32 %v6610, %v6682
        %v6869 = vmul.f32 %v6611, %v6682
        %v6870 = vmul.f32 %v6612, %v6682
        %v6871 = vmul.f32 %v6613, %v6682
        %v6872 = vmul.f32 %v6614, %v6682
        %v6873 = vmul.f32 %v6615, %v6682
        %v6874 = vmul.f32 %v6616, %v6682
        %v6875 = vmul.f32 %v6617, %v6682
        %v6876 = vmul.f32 %v6618, %v6682
        %v6877 = vmul.f32 %v6619, %v6682
        %v6878 = vmul.f32 %v6620, %v6682
        %v6879 = vmul.f32 %v6621, %v6682
        %v6880 = vmul.f32 %v6622, %v6682
        %v6881 = vmul.f32 %v6623, %v6682
        %v6882 = vmul.f32 %v6624, %v6682
        %v6883 = vmul.f32 %v6625, %v6682
        %v6884 = vmul.f32 %v6626, %v6682
        %v6885 = vmul.f32 %v6627, %v6682
        %v6886 = vmul.f32 %v6628, %v6682
        %v6887 = vmul.f32 %v6629, %v6682
        %v6888 = vmul.f32 %v6630, %v6682
        %v6889 = vmul.f32 %v6631, %v6682
        %v6890 = vmul.f32 %v6632, %v6682
        %v6891 = vmul.f32 %v6633, %v6682
        %v6892 = vmul.f32 %v6634, %v6682
        %v6893 = vmul.f32 %v6635, %v6682
        %v6894 = vmul.f32 %v6636, %v6682
        %v6895 = vmul.f32 %v6637, %v6682
        %v6896 = vmul.f32 %v6638, %v6682
        %v6897 = vmul.f32 %v6639, %v6682
        %v6898 = vmul.f32 %v6640, %v6682
        %v6899 = vmul.f32 %v6641, %v6682
        %v6900 = vmul.f32 %v6642, %v6682
        %v6901 = vmul.f32 %v6643, %v6682
        %v6902 = vmul.f32 %v6644, %v6682
        %v6903 = vmul.f32 %v6645, %v6682
        %v6904 = vmul.f32 %v6646, %v6682
        %v6905 = vmul.f32 %v6647, %v6682
        %v6906 = vmul.f32 %v6648, %v6682
        %v6907 = vmul.f32 %v6649, %v6682
        %v6908 = vmul.f32 %v6650, %v6682
        %v6909 = vmul.f32 %v6651, %v6682
        %v6910 = vmul.f32 %v6652, %v6682
        %v6911 = vmul.f32 %v6653, %v6682
        %v6912 = vmul.f32 %v6654, %v6682
        %v6913 = vmul.f32 %v6655, %v6682
        %v6914 = vmul.f32 %v6656, %v6682
        %v6915 = vmul.f32 %v6657, %v6682
        %v6916 = vmul.f32 %v6658, %v6682
        %v6917 = vmul.f32 %v6659, %v6682
        %v6918 = vmul.f32 %v6660, %v6682
        %v6919 = vmul.f32 %v6661, %v6682
        %v6920 = vmul.f32 %v6662, %v6682
        %v6921 = vmul.f32 %v6663, %v6682
        %v6922 = vmul.f32 %v6664, %v6682
        %v6923 = vmul.f32 %v6665, %v6682
        %v6924 = vmul.f32 %v6666, %v6682
        %v6925 = vmul.f32 %v6667, %v6682
        %v6926 = vmul.f32 %v6668, %v6682
        %v6927 = vmul.f32 %v6669, %v6682
        %v6928 = vmul.f32 %v6670, %v6682
        %v6929 = vmul.f32 %v6671, %v6682
        %v6930 = vmul.f32 %v6672, %v6682
        %v6931 = vmul.f32 %v6673, %v6682
        %v6932 = vmul.f32 %v6674, %v6682
        %v6933 = vmul.f32 %v6675, %v6682
        %v6934 = vmul.f32 %v6676, %v6682
        %v6935 = vmul.f32 %v6677, %v6682
        %v6936 = vmul.f32 %v6678, %v6682
        %v6937 = vmul.f32 %v6679, %v6682
        %v6938 = vmul.f32 %v6680, %v6682
        %v6939 = vadd.f32 %v6169, %v6683
        %v6940 = vadd.f32 %v6170, %v6684
        %v6941 = vadd.f32 %v6171, %v6685
        %v6942 = vadd.f32 %v6172, %v6686
        %v6943 = vadd.f32 %v6173, %v6687
        %v6944 = vadd.f32 %v6174, %v6688
        %v6945 = vadd.f32 %v6175, %v6689
        %v6946 = vadd.f32 %v6176, %v6690
        %v6947 = vadd.f32 %v6177, %v6691
        %v6948 = vadd.f32 %v6178, %v6692
        %v6949 = vadd.f32 %v6179, %v6693
        %v6950 = vadd.f32 %v6180, %v6694
        %v6951 = vadd.f32 %v6181, %v6695
        %v6952 = vadd.f32 %v6182, %v6696
        %v6953 = vadd.f32 %v6183, %v6697
        %v6954 = vadd.f32 %v6184, %v6698
        %v6955 = vadd.f32 %v6185, %v6699
        %v6956 = vadd.f32 %v6186, %v6700
        %v6957 = vadd.f32 %v6187, %v6701
        %v6958 = vadd.f32 %v6188, %v6702
        %v6959 = vadd.f32 %v6189, %v6703
        %v6960 = vadd.f32 %v6190, %v6704
        %v6961 = vadd.f32 %v6191, %v6705
        %v6962 = vadd.f32 %v6192, %v6706
        %v6963 = vadd.f32 %v6193, %v6707
        %v6964 = vadd.f32 %v6194, %v6708
        %v6965 = vadd.f32 %v6195, %v6709
        %v6966 = vadd.f32 %v6196, %v6710
        %v6967 = vadd.f32 %v6197, %v6711
        %v6968 = vadd.f32 %v6198, %v6712
        %v6969 = vadd.f32 %v6199, %v6713
        %v6970 = vadd.f32 %v6200, %v6714
        %v6971 = vadd.f32 %v6201, %v6715
        %v6972 = vadd.f32 %v6202, %v6716
        %v6973 = vadd.f32 %v6203, %v6717
        %v6974 = vadd.f32 %v6204, %v6718
        %v6975 = vadd.f32 %v6205, %v6719
        %v6976 = vadd.f32 %v6206, %v6720
        %v6977 = vadd.f32 %v6207, %v6721
        %v6978 = vadd.f32 %v6208, %v6722
        %v6979 = vadd.f32 %v6209, %v6723
        %v6980 = vadd.f32 %v6210, %v6724
        %v6981 = vadd.f32 %v6211, %v6725
        %v6982 = vadd.f32 %v6212, %v6726
        %v6983 = vadd.f32 %v6213, %v6727
        %v6984 = vadd.f32 %v6214, %v6728
        %v6985 = vadd.f32 %v6215, %v6729
        %v6986 = vadd.f32 %v6216, %v6730
        %v6987 = vadd.f32 %v6217, %v6731
        %v6988 = vadd.f32 %v6218, %v6732
        %v6989 = vadd.f32 %v6219, %v6733
        %v6990 = vadd.f32 %v6220, %v6734
        %v6991 = vadd.f32 %v6221, %v6735
        %v6992 = vadd.f32 %v6222, %v6736
        %v6993 = vadd.f32 %v6223, %v6737
        %v6994 = vadd.f32 %v6224, %v6738
        %v6995 = vadd.f32 %v6225, %v6739
        %v6996 = vadd.f32 %v6226, %v6740
        %v6997 = vadd.f32 %v6227, %v6741
        %v6998 = vadd.f32 %v6228, %v6742
        %v6999 = vadd.f32 %v6229, %v6743
        %v7000 = vadd.f32 %v6230, %v6744
        %v7001 = vadd.f32 %v6231, %v6745
        %v7002 = vadd.f32 %v6232, %v6746
        %v7003 = vadd.f32 %v6233, %v6747
        %v7004 = vadd.f32 %v6234, %v6748
        %v7005 = vadd.f32 %v6235, %v6749
        %v7006 = vadd.f32 %v6236, %v6750
        %v7007 = vadd.f32 %v6237, %v6751
        %v7008 = vadd.f32 %v6238, %v6752
        %v7009 = vadd.f32 %v6239, %v6753
        %v7010 = vadd.f32 %v6240, %v6754
        %v7011 = vadd.f32 %v6241, %v6755
        %v7012 = vadd.f32 %v6242, %v6756
        %v7013 = vadd.f32 %v6243, %v6757
        %v7014 = vadd.f32 %v6244, %v6758
        %v7015 = vadd.f32 %v6245, %v6759
        %v7016 = vadd.f32 %v6246, %v6760
        %v7017 = vadd.f32 %v6247, %v6761
        %v7018 = vadd.f32 %v6248, %v6762
        %v7019 = vadd.f32 %v6249, %v6763
        %v7020 = vadd.f32 %v6250, %v6764
        %v7021 = vadd.f32 %v6251, %v6765
        %v7022 = vadd.f32 %v6252, %v6766
        %v7023 = vadd.f32 %v6253, %v6767
        %v7024 = vadd.f32 %v6254, %v6768
        %v7025 = vadd.f32 %v6255, %v6769
        %v7026 = vadd.f32 %v6256, %v6770
        %v7027 = vadd.f32 %v6257, %v6771
        %v7028 = vadd.f32 %v6258, %v6772
        %v7029 = vadd.f32 %v6259, %v6773
        %v7030 = vadd.f32 %v6260, %v6774
        %v7031 = vadd.f32 %v6261, %v6775
        %v7032 = vadd.f32 %v6262, %v6776
        %v7033 = vadd.f32 %v6263, %v6777
        %v7034 = vadd.f32 %v6264, %v6778
        %v7035 = vadd.f32 %v6265, %v6779
        %v7036 = vadd.f32 %v6266, %v6780
        %v7037 = vadd.f32 %v6267, %v6781
        %v7038 = vadd.f32 %v6268, %v6782
        %v7039 = vadd.f32 %v6269, %v6783
        %v7040 = vadd.f32 %v6270, %v6784
        %v7041 = vadd.f32 %v6271, %v6785
        %v7042 = vadd.f32 %v6272, %v6786
        %v7043 = vadd.f32 %v6273, %v6787
        %v7044 = vadd.f32 %v6274, %v6788
        %v7045 = vadd.f32 %v6275, %v6789
        %v7046 = vadd.f32 %v6276, %v6790
        %v7047 = vadd.f32 %v6277, %v6791
        %v7048 = vadd.f32 %v6278, %v6792
        %v7049 = vadd.f32 %v6279, %v6793
        %v7050 = vadd.f32 %v6280, %v6794
        %v7051 = vadd.f32 %v6281, %v6795
        %v7052 = vadd.f32 %v6282, %v6796
        %v7053 = vadd.f32 %v6283, %v6797
        %v7054 = vadd.f32 %v6284, %v6798
        %v7055 = vadd.f32 %v6285, %v6799
        %v7056 = vadd.f32 %v6286, %v6800
        %v7057 = vadd.f32 %v6287, %v6801
        %v7058 = vadd.f32 %v6288, %v6802
        %v7059 = vadd.f32 %v6289, %v6803
        %v7060 = vadd.f32 %v6290, %v6804
        %v7061 = vadd.f32 %v6291, %v6805
        %v7062 = vadd.f32 %v6292, %v6806
        %v7063 = vadd.f32 %v6293, %v6807
        %v7064 = vadd.f32 %v6294, %v6808
        %v7065 = vadd.f32 %v6295, %v6809
        %v7066 = vadd.f32 %v6296, %v6810
        %v7067 = vadd.f32 %v6297, %v6811
        %v7068 = vadd.f32 %v6298, %v6812
        %v7069 = vadd.f32 %v6299, %v6813
        %v7070 = vadd.f32 %v6300, %v6814
        %v7071 = vadd.f32 %v6301, %v6815
        %v7072 = vadd.f32 %v6302, %v6816
        %v7073 = vadd.f32 %v6303, %v6817
        %v7074 = vadd.f32 %v6304, %v6818
        %v7075 = vadd.f32 %v6305, %v6819
        %v7076 = vadd.f32 %v6306, %v6820
        %v7077 = vadd.f32 %v6307, %v6821
        %v7078 = vadd.f32 %v6308, %v6822
        %v7079 = vadd.f32 %v6309, %v6823
        %v7080 = vadd.f32 %v6310, %v6824
        %v7081 = vadd.f32 %v6311, %v6825
        %v7082 = vadd.f32 %v6312, %v6826
        %v7083 = vadd.f32 %v6313, %v6827
        %v7084 = vadd.f32 %v6314, %v6828
        %v7085 = vadd.f32 %v6315, %v6829
        %v7086 = vadd.f32 %v6316, %v6830
        %v7087 = vadd.f32 %v6317, %v6831
        %v7088 = vadd.f32 %v6318, %v6832
        %v7089 = vadd.f32 %v6319, %v6833
        %v7090 = vadd.f32 %v6320, %v6834
        %v7091 = vadd.f32 %v6321, %v6835
        %v7092 = vadd.f32 %v6322, %v6836
        %v7093 = vadd.f32 %v6323, %v6837
        %v7094 = vadd.f32 %v6324, %v6838
        %v7095 = vadd.f32 %v6325, %v6839
        %v7096 = vadd.f32 %v6326, %v6840
        %v7097 = vadd.f32 %v6327, %v6841
        %v7098 = vadd.f32 %v6328, %v6842
        %v7099 = vadd.f32 %v6329, %v6843
        %v7100 = vadd.f32 %v6330, %v6844
        %v7101 = vadd.f32 %v6331, %v6845
        %v7102 = vadd.f32 %v6332, %v6846
        %v7103 = vadd.f32 %v6333, %v6847
        %v7104 = vadd.f32 %v6334, %v6848
        %v7105 = vadd.f32 %v6335, %v6849
        %v7106 = vadd.f32 %v6336, %v6850
        %v7107 = vadd.f32 %v6337, %v6851
        %v7108 = vadd.f32 %v6338, %v6852
        %v7109 = vadd.f32 %v6339, %v6853
        %v7110 = vadd.f32 %v6340, %v6854
        %v7111 = vadd.f32 %v6341, %v6855
        %v7112 = vadd.f32 %v6342, %v6856
        %v7113 = vadd.f32 %v6343, %v6857
        %v7114 = vadd.f32 %v6344, %v6858
        %v7115 = vadd.f32 %v6345, %v6859
        %v7116 = vadd.f32 %v6346, %v6860
        %v7117 = vadd.f32 %v6347, %v6861
        %v7118 = vadd.f32 %v6348, %v6862
        %v7119 = vadd.f32 %v6349, %v6863
        %v7120 = vadd.f32 %v6350, %v6864
        %v7121 = vadd.f32 %v6351, %v6865
        %v7122 = vadd.f32 %v6352, %v6866
        %v7123 = vadd.f32 %v6353, %v6867
        %v7124 = vadd.f32 %v6354, %v6868
        %v7125 = vadd.f32 %v6355, %v6869
        %v7126 = vadd.f32 %v6356, %v6870
        %v7127 = vadd.f32 %v6357, %v6871
        %v7128 = vadd.f32 %v6358, %v6872
        %v7129 = vadd.f32 %v6359, %v6873
        %v7130 = vadd.f32 %v6360, %v6874
        %v7131 = vadd.f32 %v6361, %v6875
        %v7132 = vadd.f32 %v6362, %v6876
        %v7133 = vadd.f32 %v6363, %v6877
        %v7134 = vadd.f32 %v6364, %v6878
        %v7135 = vadd.f32 %v6365, %v6879
        %v7136 = vadd.f32 %v6366, %v6880
        %v7137 = vadd.f32 %v6367, %v6881
        %v7138 = vadd.f32 %v6368, %v6882
        %v7139 = vadd.f32 %v6369, %v6883
        %v7140 = vadd.f32 %v6370, %v6884
        %v7141 = vadd.f32 %v6371, %v6885
        %v7142 = vadd.f32 %v6372, %v6886
        %v7143 = vadd.f32 %v6373, %v6887
        %v7144 = vadd.f32 %v6374, %v6888
        %v7145 = vadd.f32 %v6375, %v6889
        %v7146 = vadd.f32 %v6376, %v6890
        %v7147 = vadd.f32 %v6377, %v6891
        %v7148 = vadd.f32 %v6378, %v6892
        %v7149 = vadd.f32 %v6379, %v6893
        %v7150 = vadd.f32 %v6380, %v6894
        %v7151 = vadd.f32 %v6381, %v6895
        %v7152 = vadd.f32 %v6382, %v6896
        %v7153 = vadd.f32 %v6383, %v6897
        %v7154 = vadd.f32 %v6384, %v6898
        %v7155 = vadd.f32 %v6385, %v6899
        %v7156 = vadd.f32 %v6386, %v6900
        %v7157 = vadd.f32 %v6387, %v6901
        %v7158 = vadd.f32 %v6388, %v6902
        %v7159 = vadd.f32 %v6389, %v6903
        %v7160 = vadd.f32 %v6390, %v6904
        %v7161 = vadd.f32 %v6391, %v6905
        %v7162 = vadd.f32 %v6392, %v6906
        %v7163 = vadd.f32 %v6393, %v6907
        %v7164 = vadd.f32 %v6394, %v6908
        %v7165 = vadd.f32 %v6395, %v6909
        %v7166 = vadd.f32 %v6396, %v6910
        %v7167 = vadd.f32 %v6397, %v6911
        %v7168 = vadd.f32 %v6398, %v6912
        %v7169 = vadd.f32 %v6399, %v6913
        %v7170 = vadd.f32 %v6400, %v6914
        %v7171 = vadd.f32 %v6401, %v6915
        %v7172 = vadd.f32 %v6402, %v6916
        %v7173 = vadd.f32 %v6403, %v6917
        %v7174 = vadd.f32 %v6404, %v6918
        %v7175 = vadd.f32 %v6405, %v6919
        %v7176 = vadd.f32 %v6406, %v6920
        %v7177 = vadd.f32 %v6407, %v6921
        %v7178 = vadd.f32 %v6408, %v6922
        %v7179 = vadd.f32 %v6409, %v6923
        %v7180 = vadd.f32 %v6410, %v6924
        %v7181 = vadd.f32 %v6411, %v6925
        %v7182 = vadd.f32 %v6412, %v6926
        %v7183 = vadd.f32 %v6413, %v6927
        %v7184 = vadd.f32 %v6414, %v6928
        %v7185 = vadd.f32 %v6415, %v6929
        %v7186 = vadd.f32 %v6416, %v6930
        %v7187 = vadd.f32 %v6417, %v6931
        %v7188 = vadd.f32 %v6418, %v6932
        %v7189 = vadd.f32 %v6419, %v6933
        %v7190 = vadd.f32 %v6420, %v6934
        %v7191 = vadd.f32 %v6421, %v6935
        %v7192 = vadd.f32 %v6422, %v6936
        %v7193 = vadd.f32 %v6423, %v6937
        %v7194 = vadd.f32 %v6424, %v6938
        %v7195 = vld [vmem:[%s1545] sm:$0xff]
        %v7196 = vld [vmem:[%s1545 + $0x8] sm:$0xff]
        %v7197 = vld [vmem:[%s1545 + $0x10] sm:$0xff]
        %v7198 = vld [vmem:[%s1545 + $0x18] sm:$0xff]
        %v7199 = vld [vmem:[%s1545 + $0x20] sm:$0xff]
        %v7200 = vld [vmem:[%s1545 + $0x28] sm:$0xff]
        %v7201 = vld [vmem:[%s1545 + $0x30] sm:$0xff]
        %v7202 = vld [vmem:[%s1545 + $0x38] sm:$0xff]
        %v7203 = vld [vmem:[%s1545 + $0x40] sm:$0xff]
        %v7204 = vld [vmem:[%s1545 + $0x48] sm:$0xff]
        %v7205 = vld [vmem:[%s1545 + $0x50] sm:$0xff]
        %v7206 = vld [vmem:[%s1545 + $0x58] sm:$0xff]
        %v7207 = vld [vmem:[%s1545 + $0x60] sm:$0xff]
        %v7208 = vld [vmem:[%s1545 + $0x68] sm:$0xff]
        %v7209 = vld [vmem:[%s1545 + $0x70] sm:$0xff]
        %v7210 = vld [vmem:[%s1545 + $0x78] sm:$0xff]
        %v7211 = vld [vmem:[%s1545 + $0x80] sm:$0xff]
        %v7212 = vld [vmem:[%s1545 + $0x88] sm:$0xff]
        %v7213 = vld [vmem:[%s1545 + $0x90] sm:$0xff]
        %v7214 = vld [vmem:[%s1545 + $0x98] sm:$0xff]
        %v7215 = vld [vmem:[%s1545 + $0xa0] sm:$0xff]
        %v7216 = vld [vmem:[%s1545 + $0xa8] sm:$0xff]
        %v7217 = vld [vmem:[%s1545 + $0xb0] sm:$0xff]
        %v7218 = vld [vmem:[%s1545 + $0xb8] sm:$0xff]
        %v7219 = vld [vmem:[%s1545 + $0xc0] sm:$0xff]
        %v7220 = vld [vmem:[%s1545 + $0xc8] sm:$0xff]
        %v7221 = vld [vmem:[%s1545 + $0xd0] sm:$0xff]
        %v7222 = vld [vmem:[%s1545 + $0xd8] sm:$0xff]
        %v7223 = vld [vmem:[%s1545 + $0xe0] sm:$0xff]
        %v7224 = vld [vmem:[%s1545 + $0xe8] sm:$0xff]
        %v7225 = vld [vmem:[%s1545 + $0xf0] sm:$0xff]
        %v7226 = vld [vmem:[%s1545 + $0xf8] sm:$0xff]
        %v7227 = vld [vmem:[%s1545 + $0x100] sm:$0xff]
        %v7228 = vld [vmem:[%s1545 + $0x108] sm:$0xff]
        %v7229 = vld [vmem:[%s1545 + $0x110] sm:$0xff]
        %v7230 = vld [vmem:[%s1545 + $0x118] sm:$0xff]
        %v7231 = vld [vmem:[%s1545 + $0x120] sm:$0xff]
        %v7232 = vld [vmem:[%s1545 + $0x128] sm:$0xff]
        %v7233 = vld [vmem:[%s1545 + $0x130] sm:$0xff]
        %v7234 = vld [vmem:[%s1545 + $0x138] sm:$0xff]
        %v7235 = vld [vmem:[%s1545 + $0x140] sm:$0xff]
        %v7236 = vld [vmem:[%s1545 + $0x148] sm:$0xff]
        %v7237 = vld [vmem:[%s1545 + $0x150] sm:$0xff]
        %v7238 = vld [vmem:[%s1545 + $0x158] sm:$0xff]
        %v7239 = vld [vmem:[%s1545 + $0x160] sm:$0xff]
        %v7240 = vld [vmem:[%s1545 + $0x168] sm:$0xff]
        %v7241 = vld [vmem:[%s1545 + $0x170] sm:$0xff]
        %v7242 = vld [vmem:[%s1545 + $0x178] sm:$0xff]
        %v7243 = vld [vmem:[%s1545 + $0x180] sm:$0xff]
        %v7244 = vld [vmem:[%s1545 + $0x188] sm:$0xff]
        %v7245 = vld [vmem:[%s1545 + $0x190] sm:$0xff]
        %v7246 = vld [vmem:[%s1545 + $0x198] sm:$0xff]
        %v7247 = vld [vmem:[%s1545 + $0x1a0] sm:$0xff]
        %v7248 = vld [vmem:[%s1545 + $0x1a8] sm:$0xff]
        %v7249 = vld [vmem:[%s1545 + $0x1b0] sm:$0xff]
        %v7250 = vld [vmem:[%s1545 + $0x1b8] sm:$0xff]
        %v7251 = vld [vmem:[%s1545 + $0x1c0] sm:$0xff]
        %v7252 = vld [vmem:[%s1545 + $0x1c8] sm:$0xff]
        %v7253 = vld [vmem:[%s1545 + $0x1d0] sm:$0xff]
        %v7254 = vld [vmem:[%s1545 + $0x1d8] sm:$0xff]
        %v7255 = vld [vmem:[%s1545 + $0x1e0] sm:$0xff]
        %v7256 = vld [vmem:[%s1545 + $0x1e8] sm:$0xff]
        %v7257 = vld [vmem:[%s1545 + $0x1f0] sm:$0xff]
        %v7258 = vld [vmem:[%s1545 + $0x1f8] sm:$0xff]
        %v7259 = vld [vmem:[%s1545 + $0x200] sm:$0xff]
        %v7260 = vld [vmem:[%s1545 + $0x208] sm:$0xff]
        %v7261 = vld [vmem:[%s1545 + $0x210] sm:$0xff]
        %v7262 = vld [vmem:[%s1545 + $0x218] sm:$0xff]
        %v7263 = vld [vmem:[%s1545 + $0x220] sm:$0xff]
        %v7264 = vld [vmem:[%s1545 + $0x228] sm:$0xff]
        %v7265 = vld [vmem:[%s1545 + $0x230] sm:$0xff]
        %v7266 = vld [vmem:[%s1545 + $0x238] sm:$0xff]
        %v7267 = vld [vmem:[%s1545 + $0x240] sm:$0xff]
        %v7268 = vld [vmem:[%s1545 + $0x248] sm:$0xff]
        %v7269 = vld [vmem:[%s1545 + $0x250] sm:$0xff]
        %v7270 = vld [vmem:[%s1545 + $0x258] sm:$0xff]
        %v7271 = vld [vmem:[%s1545 + $0x260] sm:$0xff]
        %v7272 = vld [vmem:[%s1545 + $0x268] sm:$0xff]
        %v7273 = vld [vmem:[%s1545 + $0x270] sm:$0xff]
        %v7274 = vld [vmem:[%s1545 + $0x278] sm:$0xff]
        %v7275 = vld [vmem:[%s1545 + $0x280] sm:$0xff]
        %v7276 = vld [vmem:[%s1545 + $0x288] sm:$0xff]
        %v7277 = vld [vmem:[%s1545 + $0x290] sm:$0xff]
        %v7278 = vld [vmem:[%s1545 + $0x298] sm:$0xff]
        %v7279 = vld [vmem:[%s1545 + $0x2a0] sm:$0xff]
        %v7280 = vld [vmem:[%s1545 + $0x2a8] sm:$0xff]
        %v7281 = vld [vmem:[%s1545 + $0x2b0] sm:$0xff]
        %v7282 = vld [vmem:[%s1545 + $0x2b8] sm:$0xff]
        %v7283 = vld [vmem:[%s1545 + $0x2c0] sm:$0xff]
        %v7284 = vld [vmem:[%s1545 + $0x2c8] sm:$0xff]
        %v7285 = vld [vmem:[%s1545 + $0x2d0] sm:$0xff]
        %v7286 = vld [vmem:[%s1545 + $0x2d8] sm:$0xff]
        %v7287 = vld [vmem:[%s1545 + $0x2e0] sm:$0xff]
        %v7288 = vld [vmem:[%s1545 + $0x2e8] sm:$0xff]
        %v7289 = vld [vmem:[%s1545 + $0x2f0] sm:$0xff]
        %v7290 = vld [vmem:[%s1545 + $0x2f8] sm:$0xff]
        %v7291 = vld [vmem:[%s1545 + $0x300] sm:$0xff]
        %v7292 = vld [vmem:[%s1545 + $0x308] sm:$0xff]
        %v7293 = vld [vmem:[%s1545 + $0x310] sm:$0xff]
        %v7294 = vld [vmem:[%s1545 + $0x318] sm:$0xff]
        %v7295 = vld [vmem:[%s1545 + $0x320] sm:$0xff]
        %v7296 = vld [vmem:[%s1545 + $0x328] sm:$0xff]
        %v7297 = vld [vmem:[%s1545 + $0x330] sm:$0xff]
        %v7298 = vld [vmem:[%s1545 + $0x338] sm:$0xff]
        %v7299 = vld [vmem:[%s1545 + $0x340] sm:$0xff]
        %v7300 = vld [vmem:[%s1545 + $0x348] sm:$0xff]
        %v7301 = vld [vmem:[%s1545 + $0x350] sm:$0xff]
        %v7302 = vld [vmem:[%s1545 + $0x358] sm:$0xff]
        %v7303 = vld [vmem:[%s1545 + $0x360] sm:$0xff]
        %v7304 = vld [vmem:[%s1545 + $0x368] sm:$0xff]
        %v7305 = vld [vmem:[%s1545 + $0x370] sm:$0xff]
        %v7306 = vld [vmem:[%s1545 + $0x378] sm:$0xff]
        %v7307 = vld [vmem:[%s1545 + $0x380] sm:$0xff]
        %v7308 = vld [vmem:[%s1545 + $0x388] sm:$0xff]
        %v7309 = vld [vmem:[%s1545 + $0x390] sm:$0xff]
        %v7310 = vld [vmem:[%s1545 + $0x398] sm:$0xff]
        %v7311 = vld [vmem:[%s1545 + $0x3a0] sm:$0xff]
        %v7312 = vld [vmem:[%s1545 + $0x3a8] sm:$0xff]
        %v7313 = vld [vmem:[%s1545 + $0x3b0] sm:$0xff]
        %v7314 = vld [vmem:[%s1545 + $0x3b8] sm:$0xff]
        %v7315 = vld [vmem:[%s1545 + $0x3c0] sm:$0xff]
        %v7316 = vld [vmem:[%s1545 + $0x3c8] sm:$0xff]
        %v7317 = vld [vmem:[%s1545 + $0x3d0] sm:$0xff]
        %v7318 = vld [vmem:[%s1545 + $0x3d8] sm:$0xff]
        %v7319 = vld [vmem:[%s1545 + $0x3e0] sm:$0xff]
        %v7320 = vld [vmem:[%s1545 + $0x3e8] sm:$0xff]
        %v7321 = vld [vmem:[%s1545 + $0x3f0] sm:$0xff]
        %v7322 = vld [vmem:[%s1545 + $0x3f8] sm:$0xff]
        %v7323 = vld [vmem:[%s1545 + $0x400] sm:$0xff]
        %v7324 = vld [vmem:[%s1545 + $0x408] sm:$0xff]
        %v7325 = vld [vmem:[%s1545 + $0x410] sm:$0xff]
        %v7326 = vld [vmem:[%s1545 + $0x418] sm:$0xff]
        %v7327 = vld [vmem:[%s1545 + $0x420] sm:$0xff]
        %v7328 = vld [vmem:[%s1545 + $0x428] sm:$0xff]
        %v7329 = vld [vmem:[%s1545 + $0x430] sm:$0xff]
        %v7330 = vld [vmem:[%s1545 + $0x438] sm:$0xff]
        %v7331 = vld [vmem:[%s1545 + $0x440] sm:$0xff]
        %v7332 = vld [vmem:[%s1545 + $0x448] sm:$0xff]
        %v7333 = vld [vmem:[%s1545 + $0x450] sm:$0xff]
        %v7334 = vld [vmem:[%s1545 + $0x458] sm:$0xff]
        %v7335 = vld [vmem:[%s1545 + $0x460] sm:$0xff]
        %v7336 = vld [vmem:[%s1545 + $0x468] sm:$0xff]
        %v7337 = vld [vmem:[%s1545 + $0x470] sm:$0xff]
        %v7338 = vld [vmem:[%s1545 + $0x478] sm:$0xff]
        %v7339 = vld [vmem:[%s1545 + $0x480] sm:$0xff]
        %v7340 = vld [vmem:[%s1545 + $0x488] sm:$0xff]
        %v7341 = vld [vmem:[%s1545 + $0x490] sm:$0xff]
        %v7342 = vld [vmem:[%s1545 + $0x498] sm:$0xff]
        %v7343 = vld [vmem:[%s1545 + $0x4a0] sm:$0xff]
        %v7344 = vld [vmem:[%s1545 + $0x4a8] sm:$0xff]
        %v7345 = vld [vmem:[%s1545 + $0x4b0] sm:$0xff]
        %v7346 = vld [vmem:[%s1545 + $0x4b8] sm:$0xff]
        %v7347 = vld [vmem:[%s1545 + $0x4c0] sm:$0xff]
        %v7348 = vld [vmem:[%s1545 + $0x4c8] sm:$0xff]
        %v7349 = vld [vmem:[%s1545 + $0x4d0] sm:$0xff]
        %v7350 = vld [vmem:[%s1545 + $0x4d8] sm:$0xff]
        %v7351 = vld [vmem:[%s1545 + $0x4e0] sm:$0xff]
        %v7352 = vld [vmem:[%s1545 + $0x4e8] sm:$0xff]
        %v7353 = vld [vmem:[%s1545 + $0x4f0] sm:$0xff]
        %v7354 = vld [vmem:[%s1545 + $0x4f8] sm:$0xff]
        %v7355 = vld [vmem:[%s1545 + $0x500] sm:$0xff]
        %v7356 = vld [vmem:[%s1545 + $0x508] sm:$0xff]
        %v7357 = vld [vmem:[%s1545 + $0x510] sm:$0xff]
        %v7358 = vld [vmem:[%s1545 + $0x518] sm:$0xff]
        %v7359 = vld [vmem:[%s1545 + $0x520] sm:$0xff]
        %v7360 = vld [vmem:[%s1545 + $0x528] sm:$0xff]
        %v7361 = vld [vmem:[%s1545 + $0x530] sm:$0xff]
        %v7362 = vld [vmem:[%s1545 + $0x538] sm:$0xff]
        %v7363 = vld [vmem:[%s1545 + $0x540] sm:$0xff]
        %v7364 = vld [vmem:[%s1545 + $0x548] sm:$0xff]
        %v7365 = vld [vmem:[%s1545 + $0x550] sm:$0xff]
        %v7366 = vld [vmem:[%s1545 + $0x558] sm:$0xff]
        %v7367 = vld [vmem:[%s1545 + $0x560] sm:$0xff]
        %v7368 = vld [vmem:[%s1545 + $0x568] sm:$0xff]
        %v7369 = vld [vmem:[%s1545 + $0x570] sm:$0xff]
        %v7370 = vld [vmem:[%s1545 + $0x578] sm:$0xff]
        %v7371 = vld [vmem:[%s1545 + $0x580] sm:$0xff]
        %v7372 = vld [vmem:[%s1545 + $0x588] sm:$0xff]
        %v7373 = vld [vmem:[%s1545 + $0x590] sm:$0xff]
        %v7374 = vld [vmem:[%s1545 + $0x598] sm:$0xff]
        %v7375 = vld [vmem:[%s1545 + $0x5a0] sm:$0xff]
        %v7376 = vld [vmem:[%s1545 + $0x5a8] sm:$0xff]
        %v7377 = vld [vmem:[%s1545 + $0x5b0] sm:$0xff]
        %v7378 = vld [vmem:[%s1545 + $0x5b8] sm:$0xff]
        %v7379 = vld [vmem:[%s1545 + $0x5c0] sm:$0xff]
        %v7380 = vld [vmem:[%s1545 + $0x5c8] sm:$0xff]
        %v7381 = vld [vmem:[%s1545 + $0x5d0] sm:$0xff]
        %v7382 = vld [vmem:[%s1545 + $0x5d8] sm:$0xff]
        %v7383 = vld [vmem:[%s1545 + $0x5e0] sm:$0xff]
        %v7384 = vld [vmem:[%s1545 + $0x5e8] sm:$0xff]
        %v7385 = vld [vmem:[%s1545 + $0x5f0] sm:$0xff]
        %v7386 = vld [vmem:[%s1545 + $0x5f8] sm:$0xff]
        %v7387 = vld [vmem:[%s1545 + $0x600] sm:$0xff]
        %v7388 = vld [vmem:[%s1545 + $0x608] sm:$0xff]
        %v7389 = vld [vmem:[%s1545 + $0x610] sm:$0xff]
        %v7390 = vld [vmem:[%s1545 + $0x618] sm:$0xff]
        %v7391 = vld [vmem:[%s1545 + $0x620] sm:$0xff]
        %v7392 = vld [vmem:[%s1545 + $0x628] sm:$0xff]
        %v7393 = vld [vmem:[%s1545 + $0x630] sm:$0xff]
        %v7394 = vld [vmem:[%s1545 + $0x638] sm:$0xff]
        %v7395 = vld [vmem:[%s1545 + $0x640] sm:$0xff]
        %v7396 = vld [vmem:[%s1545 + $0x648] sm:$0xff]
        %v7397 = vld [vmem:[%s1545 + $0x650] sm:$0xff]
        %v7398 = vld [vmem:[%s1545 + $0x658] sm:$0xff]
        %v7399 = vld [vmem:[%s1545 + $0x660] sm:$0xff]
        %v7400 = vld [vmem:[%s1545 + $0x668] sm:$0xff]
        %v7401 = vld [vmem:[%s1545 + $0x670] sm:$0xff]
        %v7402 = vld [vmem:[%s1545 + $0x678] sm:$0xff]
        %v7403 = vld [vmem:[%s1545 + $0x680] sm:$0xff]
        %v7404 = vld [vmem:[%s1545 + $0x688] sm:$0xff]
        %v7405 = vld [vmem:[%s1545 + $0x690] sm:$0xff]
        %v7406 = vld [vmem:[%s1545 + $0x698] sm:$0xff]
        %v7407 = vld [vmem:[%s1545 + $0x6a0] sm:$0xff]
        %v7408 = vld [vmem:[%s1545 + $0x6a8] sm:$0xff]
        %v7409 = vld [vmem:[%s1545 + $0x6b0] sm:$0xff]
        %v7410 = vld [vmem:[%s1545 + $0x6b8] sm:$0xff]
        %v7411 = vld [vmem:[%s1545 + $0x6c0] sm:$0xff]
        %v7412 = vld [vmem:[%s1545 + $0x6c8] sm:$0xff]
        %v7413 = vld [vmem:[%s1545 + $0x6d0] sm:$0xff]
        %v7414 = vld [vmem:[%s1545 + $0x6d8] sm:$0xff]
        %v7415 = vld [vmem:[%s1545 + $0x6e0] sm:$0xff]
        %v7416 = vld [vmem:[%s1545 + $0x6e8] sm:$0xff]
        %v7417 = vld [vmem:[%s1545 + $0x6f0] sm:$0xff]
        %v7418 = vld [vmem:[%s1545 + $0x6f8] sm:$0xff]
        %v7419 = vld [vmem:[%s1545 + $0x700] sm:$0xff]
        %v7420 = vld [vmem:[%s1545 + $0x708] sm:$0xff]
        %v7421 = vld [vmem:[%s1545 + $0x710] sm:$0xff]
        %v7422 = vld [vmem:[%s1545 + $0x718] sm:$0xff]
        %v7423 = vld [vmem:[%s1545 + $0x720] sm:$0xff]
        %v7424 = vld [vmem:[%s1545 + $0x728] sm:$0xff]
        %v7425 = vld [vmem:[%s1545 + $0x730] sm:$0xff]
        %v7426 = vld [vmem:[%s1545 + $0x738] sm:$0xff]
        %v7427 = vld [vmem:[%s1545 + $0x740] sm:$0xff]
        %v7428 = vld [vmem:[%s1545 + $0x748] sm:$0xff]
        %v7429 = vld [vmem:[%s1545 + $0x750] sm:$0xff]
        %v7430 = vld [vmem:[%s1545 + $0x758] sm:$0xff]
        %v7431 = vld [vmem:[%s1545 + $0x760] sm:$0xff]
        %v7432 = vld [vmem:[%s1545 + $0x768] sm:$0xff]
        %v7433 = vld [vmem:[%s1545 + $0x770] sm:$0xff]
        %v7434 = vld [vmem:[%s1545 + $0x778] sm:$0xff]
        %v7435 = vld [vmem:[%s1545 + $0x780] sm:$0xff]
        %v7436 = vld [vmem:[%s1545 + $0x788] sm:$0xff]
        %v7437 = vld [vmem:[%s1545 + $0x790] sm:$0xff]
        %v7438 = vld [vmem:[%s1545 + $0x798] sm:$0xff]
        %v7439 = vld [vmem:[%s1545 + $0x7a0] sm:$0xff]
        %v7440 = vld [vmem:[%s1545 + $0x7a8] sm:$0xff]
        %v7441 = vld [vmem:[%s1545 + $0x7b0] sm:$0xff]
        %v7442 = vld [vmem:[%s1545 + $0x7b8] sm:$0xff]
        %v7443 = vld [vmem:[%s1545 + $0x7c0] sm:$0xff]
        %v7444 = vld [vmem:[%s1545 + $0x7c8] sm:$0xff]
        %v7445 = vld [vmem:[%s1545 + $0x7d0] sm:$0xff]
        %v7446 = vld [vmem:[%s1545 + $0x7d8] sm:$0xff]
        %v7447 = vld [vmem:[%s1545 + $0x7e0] sm:$0xff]
        %v7448 = vld [vmem:[%s1545 + $0x7e8] sm:$0xff]
        %v7449 = vld [vmem:[%s1545 + $0x7f0] sm:$0xff]
        %v7450 = vld [vmem:[%s1545 + $0x7f8] sm:$0xff]
        %s7451 = sld [smem:[#allocation7 + $0x102]]
        %v7452 = vstv %s7451
        %v7453 = vmul.f32 %v7195, %v7452
        %v7454 = vmul.f32 %v7196, %v7452
        %v7455 = vmul.f32 %v7197, %v7452
        %v7456 = vmul.f32 %v7198, %v7452
        %v7457 = vmul.f32 %v7199, %v7452
        %v7458 = vmul.f32 %v7200, %v7452
        %v7459 = vmul.f32 %v7201, %v7452
        %v7460 = vmul.f32 %v7202, %v7452
        %v7461 = vmul.f32 %v7203, %v7452
        %v7462 = vmul.f32 %v7204, %v7452
        %v7463 = vmul.f32 %v7205, %v7452
        %v7464 = vmul.f32 %v7206, %v7452
        %v7465 = vmul.f32 %v7207, %v7452
        %v7466 = vmul.f32 %v7208, %v7452
        %v7467 = vmul.f32 %v7209, %v7452
        %v7468 = vmul.f32 %v7210, %v7452
        %v7469 = vmul.f32 %v7211, %v7452
        %v7470 = vmul.f32 %v7212, %v7452
        %v7471 = vmul.f32 %v7213, %v7452
        %v7472 = vmul.f32 %v7214, %v7452
        %v7473 = vmul.f32 %v7215, %v7452
        %v7474 = vmul.f32 %v7216, %v7452
        %v7475 = vmul.f32 %v7217, %v7452
        %v7476 = vmul.f32 %v7218, %v7452
        %v7477 = vmul.f32 %v7219, %v7452
        %v7478 = vmul.f32 %v7220, %v7452
        %v7479 = vmul.f32 %v7221, %v7452
        %v7480 = vmul.f32 %v7222, %v7452
        %v7481 = vmul.f32 %v7223, %v7452
        %v7482 = vmul.f32 %v7224, %v7452
        %v7483 = vmul.f32 %v7225, %v7452
        %v7484 = vmul.f32 %v7226, %v7452
        %v7485 = vmul.f32 %v7227, %v7452
        %v7486 = vmul.f32 %v7228, %v7452
        %v7487 = vmul.f32 %v7229, %v7452
        %v7488 = vmul.f32 %v7230, %v7452
        %v7489 = vmul.f32 %v7231, %v7452
        %v7490 = vmul.f32 %v7232, %v7452
        %v7491 = vmul.f32 %v7233, %v7452
        %v7492 = vmul.f32 %v7234, %v7452
        %v7493 = vmul.f32 %v7235, %v7452
        %v7494 = vmul.f32 %v7236, %v7452
        %v7495 = vmul.f32 %v7237, %v7452
        %v7496 = vmul.f32 %v7238, %v7452
        %v7497 = vmul.f32 %v7239, %v7452
        %v7498 = vmul.f32 %v7240, %v7452
        %v7499 = vmul.f32 %v7241, %v7452
        %v7500 = vmul.f32 %v7242, %v7452
        %v7501 = vmul.f32 %v7243, %v7452
        %v7502 = vmul.f32 %v7244, %v7452
        %v7503 = vmul.f32 %v7245, %v7452
        %v7504 = vmul.f32 %v7246, %v7452
        %v7505 = vmul.f32 %v7247, %v7452
        %v7506 = vmul.f32 %v7248, %v7452
        %v7507 = vmul.f32 %v7249, %v7452
        %v7508 = vmul.f32 %v7250, %v7452
        %v7509 = vmul.f32 %v7251, %v7452
        %v7510 = vmul.f32 %v7252, %v7452
        %v7511 = vmul.f32 %v7253, %v7452
        %v7512 = vmul.f32 %v7254, %v7452
        %v7513 = vmul.f32 %v7255, %v7452
        %v7514 = vmul.f32 %v7256, %v7452
        %v7515 = vmul.f32 %v7257, %v7452
        %v7516 = vmul.f32 %v7258, %v7452
        %v7517 = vmul.f32 %v7259, %v7452
        %v7518 = vmul.f32 %v7260, %v7452
        %v7519 = vmul.f32 %v7261, %v7452
        %v7520 = vmul.f32 %v7262, %v7452
        %v7521 = vmul.f32 %v7263, %v7452
        %v7522 = vmul.f32 %v7264, %v7452
        %v7523 = vmul.f32 %v7265, %v7452
        %v7524 = vmul.f32 %v7266, %v7452
        %v7525 = vmul.f32 %v7267, %v7452
        %v7526 = vmul.f32 %v7268, %v7452
        %v7527 = vmul.f32 %v7269, %v7452
        %v7528 = vmul.f32 %v7270, %v7452
        %v7529 = vmul.f32 %v7271, %v7452
        %v7530 = vmul.f32 %v7272, %v7452
        %v7531 = vmul.f32 %v7273, %v7452
        %v7532 = vmul.f32 %v7274, %v7452
        %v7533 = vmul.f32 %v7275, %v7452
        %v7534 = vmul.f32 %v7276, %v7452
        %v7535 = vmul.f32 %v7277, %v7452
        %v7536 = vmul.f32 %v7278, %v7452
        %v7537 = vmul.f32 %v7279, %v7452
        %v7538 = vmul.f32 %v7280, %v7452
        %v7539 = vmul.f32 %v7281, %v7452
        %v7540 = vmul.f32 %v7282, %v7452
        %v7541 = vmul.f32 %v7283, %v7452
        %v7542 = vmul.f32 %v7284, %v7452
        %v7543 = vmul.f32 %v7285, %v7452
        %v7544 = vmul.f32 %v7286, %v7452
        %v7545 = vmul.f32 %v7287, %v7452
        %v7546 = vmul.f32 %v7288, %v7452
        %v7547 = vmul.f32 %v7289, %v7452
        %v7548 = vmul.f32 %v7290, %v7452
        %v7549 = vmul.f32 %v7291, %v7452
        %v7550 = vmul.f32 %v7292, %v7452
        %v7551 = vmul.f32 %v7293, %v7452
        %v7552 = vmul.f32 %v7294, %v7452
        %v7553 = vmul.f32 %v7295, %v7452
        %v7554 = vmul.f32 %v7296, %v7452
        %v7555 = vmul.f32 %v7297, %v7452
        %v7556 = vmul.f32 %v7298, %v7452
        %v7557 = vmul.f32 %v7299, %v7452
        %v7558 = vmul.f32 %v7300, %v7452
        %v7559 = vmul.f32 %v7301, %v7452
        %v7560 = vmul.f32 %v7302, %v7452
        %v7561 = vmul.f32 %v7303, %v7452
        %v7562 = vmul.f32 %v7304, %v7452
        %v7563 = vmul.f32 %v7305, %v7452
        %v7564 = vmul.f32 %v7306, %v7452
        %v7565 = vmul.f32 %v7307, %v7452
        %v7566 = vmul.f32 %v7308, %v7452
        %v7567 = vmul.f32 %v7309, %v7452
        %v7568 = vmul.f32 %v7310, %v7452
        %v7569 = vmul.f32 %v7311, %v7452
        %v7570 = vmul.f32 %v7312, %v7452
        %v7571 = vmul.f32 %v7313, %v7452
        %v7572 = vmul.f32 %v7314, %v7452
        %v7573 = vmul.f32 %v7315, %v7452
        %v7574 = vmul.f32 %v7316, %v7452
        %v7575 = vmul.f32 %v7317, %v7452
        %v7576 = vmul.f32 %v7318, %v7452
        %v7577 = vmul.f32 %v7319, %v7452
        %v7578 = vmul.f32 %v7320, %v7452
        %v7579 = vmul.f32 %v7321, %v7452
        %v7580 = vmul.f32 %v7322, %v7452
        %v7581 = vmul.f32 %v7323, %v7452
        %v7582 = vmul.f32 %v7324, %v7452
        %v7583 = vmul.f32 %v7325, %v7452
        %v7584 = vmul.f32 %v7326, %v7452
        %v7585 = vmul.f32 %v7327, %v7452
        %v7586 = vmul.f32 %v7328, %v7452
        %v7587 = vmul.f32 %v7329, %v7452
        %v7588 = vmul.f32 %v7330, %v7452
        %v7589 = vmul.f32 %v7331, %v7452
        %v7590 = vmul.f32 %v7332, %v7452
        %v7591 = vmul.f32 %v7333, %v7452
        %v7592 = vmul.f32 %v7334, %v7452
        %v7593 = vmul.f32 %v7335, %v7452
        %v7594 = vmul.f32 %v7336, %v7452
        %v7595 = vmul.f32 %v7337, %v7452
        %v7596 = vmul.f32 %v7338, %v7452
        %v7597 = vmul.f32 %v7339, %v7452
        %v7598 = vmul.f32 %v7340, %v7452
        %v7599 = vmul.f32 %v7341, %v7452
        %v7600 = vmul.f32 %v7342, %v7452
        %v7601 = vmul.f32 %v7343, %v7452
        %v7602 = vmul.f32 %v7344, %v7452
        %v7603 = vmul.f32 %v7345, %v7452
        %v7604 = vmul.f32 %v7346, %v7452
        %v7605 = vmul.f32 %v7347, %v7452
        %v7606 = vmul.f32 %v7348, %v7452
        %v7607 = vmul.f32 %v7349, %v7452
        %v7608 = vmul.f32 %v7350, %v7452
        %v7609 = vmul.f32 %v7351, %v7452
        %v7610 = vmul.f32 %v7352, %v7452
        %v7611 = vmul.f32 %v7353, %v7452
        %v7612 = vmul.f32 %v7354, %v7452
        %v7613 = vmul.f32 %v7355, %v7452
        %v7614 = vmul.f32 %v7356, %v7452
        %v7615 = vmul.f32 %v7357, %v7452
        %v7616 = vmul.f32 %v7358, %v7452
        %v7617 = vmul.f32 %v7359, %v7452
        %v7618 = vmul.f32 %v7360, %v7452
        %v7619 = vmul.f32 %v7361, %v7452
        %v7620 = vmul.f32 %v7362, %v7452
        %v7621 = vmul.f32 %v7363, %v7452
        %v7622 = vmul.f32 %v7364, %v7452
        %v7623 = vmul.f32 %v7365, %v7452
        %v7624 = vmul.f32 %v7366, %v7452
        %v7625 = vmul.f32 %v7367, %v7452
        %v7626 = vmul.f32 %v7368, %v7452
        %v7627 = vmul.f32 %v7369, %v7452
        %v7628 = vmul.f32 %v7370, %v7452
        %v7629 = vmul.f32 %v7371, %v7452
        %v7630 = vmul.f32 %v7372, %v7452
        %v7631 = vmul.f32 %v7373, %v7452
        %v7632 = vmul.f32 %v7374, %v7452
        %v7633 = vmul.f32 %v7375, %v7452
        %v7634 = vmul.f32 %v7376, %v7452
        %v7635 = vmul.f32 %v7377, %v7452
        %v7636 = vmul.f32 %v7378, %v7452
        %v7637 = vmul.f32 %v7379, %v7452
        %v7638 = vmul.f32 %v7380, %v7452
        %v7639 = vmul.f32 %v7381, %v7452
        %v7640 = vmul.f32 %v7382, %v7452
        %v7641 = vmul.f32 %v7383, %v7452
        %v7642 = vmul.f32 %v7384, %v7452
        %v7643 = vmul.f32 %v7385, %v7452
        %v7644 = vmul.f32 %v7386, %v7452
        %v7645 = vmul.f32 %v7387, %v7452
        %v7646 = vmul.f32 %v7388, %v7452
        %v7647 = vmul.f32 %v7389, %v7452
        %v7648 = vmul.f32 %v7390, %v7452
        %v7649 = vmul.f32 %v7391, %v7452
        %v7650 = vmul.f32 %v7392, %v7452
        %v7651 = vmul.f32 %v7393, %v7452
        %v7652 = vmul.f32 %v7394, %v7452
        %v7653 = vmul.f32 %v7395, %v7452
        %v7654 = vmul.f32 %v7396, %v7452
        %v7655 = vmul.f32 %v7397, %v7452
        %v7656 = vmul.f32 %v7398, %v7452
        %v7657 = vmul.f32 %v7399, %v7452
        %v7658 = vmul.f32 %v7400, %v7452
        %v7659 = vmul.f32 %v7401, %v7452
        %v7660 = vmul.f32 %v7402, %v7452
        %v7661 = vmul.f32 %v7403, %v7452
        %v7662 = vmul.f32 %v7404, %v7452
        %v7663 = vmul.f32 %v7405, %v7452
        %v7664 = vmul.f32 %v7406, %v7452
        %v7665 = vmul.f32 %v7407, %v7452
        %v7666 = vmul.f32 %v7408, %v7452
        %v7667 = vmul.f32 %v7409, %v7452
        %v7668 = vmul.f32 %v7410, %v7452
        %v7669 = vmul.f32 %v7411, %v7452
        %v7670 = vmul.f32 %v7412, %v7452
        %v7671 = vmul.f32 %v7413, %v7452
        %v7672 = vmul.f32 %v7414, %v7452
        %v7673 = vmul.f32 %v7415, %v7452
        %v7674 = vmul.f32 %v7416, %v7452
        %v7675 = vmul.f32 %v7417, %v7452
        %v7676 = vmul.f32 %v7418, %v7452
        %v7677 = vmul.f32 %v7419, %v7452
        %v7678 = vmul.f32 %v7420, %v7452
        %v7679 = vmul.f32 %v7421, %v7452
        %v7680 = vmul.f32 %v7422, %v7452
        %v7681 = vmul.f32 %v7423, %v7452
        %v7682 = vmul.f32 %v7424, %v7452
        %v7683 = vmul.f32 %v7425, %v7452
        %v7684 = vmul.f32 %v7426, %v7452
        %v7685 = vmul.f32 %v7427, %v7452
        %v7686 = vmul.f32 %v7428, %v7452
        %v7687 = vmul.f32 %v7429, %v7452
        %v7688 = vmul.f32 %v7430, %v7452
        %v7689 = vmul.f32 %v7431, %v7452
        %v7690 = vmul.f32 %v7432, %v7452
        %v7691 = vmul.f32 %v7433, %v7452
        %v7692 = vmul.f32 %v7434, %v7452
        %v7693 = vmul.f32 %v7435, %v7452
        %v7694 = vmul.f32 %v7436, %v7452
        %v7695 = vmul.f32 %v7437, %v7452
        %v7696 = vmul.f32 %v7438, %v7452
        %v7697 = vmul.f32 %v7439, %v7452
        %v7698 = vmul.f32 %v7440, %v7452
        %v7699 = vmul.f32 %v7441, %v7452
        %v7700 = vmul.f32 %v7442, %v7452
        %v7701 = vmul.f32 %v7443, %v7452
        %v7702 = vmul.f32 %v7444, %v7452
        %v7703 = vmul.f32 %v7445, %v7452
        %v7704 = vmul.f32 %v7446, %v7452
        %v7705 = vmul.f32 %v7447, %v7452
        %v7706 = vmul.f32 %v7448, %v7452
        %v7707 = vmul.f32 %v7449, %v7452
        %v7708 = vmul.f32 %v7450, %v7452
        %v7709 = vadd.f32 %v6939, %v7453
        %v7710 = vadd.f32 %v6940, %v7454
        %v7711 = vadd.f32 %v6941, %v7455
        %v7712 = vadd.f32 %v6942, %v7456
        %v7713 = vadd.f32 %v6943, %v7457
        %v7714 = vadd.f32 %v6944, %v7458
        %v7715 = vadd.f32 %v6945, %v7459
        %v7716 = vadd.f32 %v6946, %v7460
        %v7717 = vadd.f32 %v6947, %v7461
        %v7718 = vadd.f32 %v6948, %v7462
        %v7719 = vadd.f32 %v6949, %v7463
        %v7720 = vadd.f32 %v6950, %v7464
        %v7721 = vadd.f32 %v6951, %v7465
        %v7722 = vadd.f32 %v6952, %v7466
        %v7723 = vadd.f32 %v6953, %v7467
        %v7724 = vadd.f32 %v6954, %v7468
        %v7725 = vadd.f32 %v6955, %v7469
        %v7726 = vadd.f32 %v6956, %v7470
        %v7727 = vadd.f32 %v6957, %v7471
        %v7728 = vadd.f32 %v6958, %v7472
        %v7729 = vadd.f32 %v6959, %v7473
        %v7730 = vadd.f32 %v6960, %v7474
        %v7731 = vadd.f32 %v6961, %v7475
        %v7732 = vadd.f32 %v6962, %v7476
        %v7733 = vadd.f32 %v6963, %v7477
        %v7734 = vadd.f32 %v6964, %v7478
        %v7735 = vadd.f32 %v6965, %v7479
        %v7736 = vadd.f32 %v6966, %v7480
        %v7737 = vadd.f32 %v6967, %v7481
        %v7738 = vadd.f32 %v6968, %v7482
        %v7739 = vadd.f32 %v6969, %v7483
        %v7740 = vadd.f32 %v6970, %v7484
        %v7741 = vadd.f32 %v6971, %v7485
        %v7742 = vadd.f32 %v6972, %v7486
        %v7743 = vadd.f32 %v6973, %v7487
        %v7744 = vadd.f32 %v6974, %v7488
        %v7745 = vadd.f32 %v6975, %v7489
        %v7746 = vadd.f32 %v6976, %v7490
        %v7747 = vadd.f32 %v6977, %v7491
        %v7748 = vadd.f32 %v6978, %v7492
        %v7749 = vadd.f32 %v6979, %v7493
        %v7750 = vadd.f32 %v6980, %v7494
        %v7751 = vadd.f32 %v6981, %v7495
        %v7752 = vadd.f32 %v6982, %v7496
        %v7753 = vadd.f32 %v6983, %v7497
        %v7754 = vadd.f32 %v6984, %v7498
        %v7755 = vadd.f32 %v6985, %v7499
        %v7756 = vadd.f32 %v6986, %v7500
        %v7757 = vadd.f32 %v6987, %v7501
        %v7758 = vadd.f32 %v6988, %v7502
        %v7759 = vadd.f32 %v6989, %v7503
        %v7760 = vadd.f32 %v6990, %v7504
        %v7761 = vadd.f32 %v6991, %v7505
        %v7762 = vadd.f32 %v6992, %v7506
        %v7763 = vadd.f32 %v6993, %v7507
        %v7764 = vadd.f32 %v6994, %v7508
        %v7765 = vadd.f32 %v6995, %v7509
        %v7766 = vadd.f32 %v6996, %v7510
        %v7767 = vadd.f32 %v6997, %v7511
        %v7768 = vadd.f32 %v6998, %v7512
        %v7769 = vadd.f32 %v6999, %v7513
        %v7770 = vadd.f32 %v7000, %v7514
        %v7771 = vadd.f32 %v7001, %v7515
        %v7772 = vadd.f32 %v7002, %v7516
        %v7773 = vadd.f32 %v7003, %v7517
        %v7774 = vadd.f32 %v7004, %v7518
        %v7775 = vadd.f32 %v7005, %v7519
        %v7776 = vadd.f32 %v7006, %v7520
        %v7777 = vadd.f32 %v7007, %v7521
        %v7778 = vadd.f32 %v7008, %v7522
        %v7779 = vadd.f32 %v7009, %v7523
        %v7780 = vadd.f32 %v7010, %v7524
        %v7781 = vadd.f32 %v7011, %v7525
        %v7782 = vadd.f32 %v7012, %v7526
        %v7783 = vadd.f32 %v7013, %v7527
        %v7784 = vadd.f32 %v7014, %v7528
        %v7785 = vadd.f32 %v7015, %v7529
        %v7786 = vadd.f32 %v7016, %v7530
        %v7787 = vadd.f32 %v7017, %v7531
        %v7788 = vadd.f32 %v7018, %v7532
        %v7789 = vadd.f32 %v7019, %v7533
        %v7790 = vadd.f32 %v7020, %v7534
        %v7791 = vadd.f32 %v7021, %v7535
        %v7792 = vadd.f32 %v7022, %v7536
        %v7793 = vadd.f32 %v7023, %v7537
        %v7794 = vadd.f32 %v7024, %v7538
        %v7795 = vadd.f32 %v7025, %v7539
        %v7796 = vadd.f32 %v7026, %v7540
        %v7797 = vadd.f32 %v7027, %v7541
        %v7798 = vadd.f32 %v7028, %v7542
        %v7799 = vadd.f32 %v7029, %v7543
        %v7800 = vadd.f32 %v7030, %v7544
        %v7801 = vadd.f32 %v7031, %v7545
        %v7802 = vadd.f32 %v7032, %v7546
        %v7803 = vadd.f32 %v7033, %v7547
        %v7804 = vadd.f32 %v7034, %v7548
        %v7805 = vadd.f32 %v7035, %v7549
        %v7806 = vadd.f32 %v7036, %v7550
        %v7807 = vadd.f32 %v7037, %v7551
        %v7808 = vadd.f32 %v7038, %v7552
        %v7809 = vadd.f32 %v7039, %v7553
        %v7810 = vadd.f32 %v7040, %v7554
        %v7811 = vadd.f32 %v7041, %v7555
        %v7812 = vadd.f32 %v7042, %v7556
        %v7813 = vadd.f32 %v7043, %v7557
        %v7814 = vadd.f32 %v7044, %v7558
        %v7815 = vadd.f32 %v7045, %v7559
        %v7816 = vadd.f32 %v7046, %v7560
        %v7817 = vadd.f32 %v7047, %v7561
        %v7818 = vadd.f32 %v7048, %v7562
        %v7819 = vadd.f32 %v7049, %v7563
        %v7820 = vadd.f32 %v7050, %v7564
        %v7821 = vadd.f32 %v7051, %v7565
        %v7822 = vadd.f32 %v7052, %v7566
        %v7823 = vadd.f32 %v7053, %v7567
        %v7824 = vadd.f32 %v7054, %v7568
        %v7825 = vadd.f32 %v7055, %v7569
        %v7826 = vadd.f32 %v7056, %v7570
        %v7827 = vadd.f32 %v7057, %v7571
        %v7828 = vadd.f32 %v7058, %v7572
        %v7829 = vadd.f32 %v7059, %v7573
        %v7830 = vadd.f32 %v7060, %v7574
        %v7831 = vadd.f32 %v7061, %v7575
        %v7832 = vadd.f32 %v7062, %v7576
        %v7833 = vadd.f32 %v7063, %v7577
        %v7834 = vadd.f32 %v7064, %v7578
        %v7835 = vadd.f32 %v7065, %v7579
        %v7836 = vadd.f32 %v7066, %v7580
        %v7837 = vadd.f32 %v7067, %v7581
        %v7838 = vadd.f32 %v7068, %v7582
        %v7839 = vadd.f32 %v7069, %v7583
        %v7840 = vadd.f32 %v7070, %v7584
        %v7841 = vadd.f32 %v7071, %v7585
        %v7842 = vadd.f32 %v7072, %v7586
        %v7843 = vadd.f32 %v7073, %v7587
        %v7844 = vadd.f32 %v7074, %v7588
        %v7845 = vadd.f32 %v7075, %v7589
        %v7846 = vadd.f32 %v7076, %v7590
        %v7847 = vadd.f32 %v7077, %v7591
        %v7848 = vadd.f32 %v7078, %v7592
        %v7849 = vadd.f32 %v7079, %v7593
        %v7850 = vadd.f32 %v7080, %v7594
        %v7851 = vadd.f32 %v7081, %v7595
        %v7852 = vadd.f32 %v7082, %v7596
        %v7853 = vadd.f32 %v7083, %v7597
        %v7854 = vadd.f32 %v7084, %v7598
        %v7855 = vadd.f32 %v7085, %v7599
        %v7856 = vadd.f32 %v7086, %v7600
        %v7857 = vadd.f32 %v7087, %v7601
        %v7858 = vadd.f32 %v7088, %v7602
        %v7859 = vadd.f32 %v7089, %v7603
        %v7860 = vadd.f32 %v7090, %v7604
        %v7861 = vadd.f32 %v7091, %v7605
        %v7862 = vadd.f32 %v7092, %v7606
        %v7863 = vadd.f32 %v7093, %v7607
        %v7864 = vadd.f32 %v7094, %v7608
        %v7865 = vadd.f32 %v7095, %v7609
        %v7866 = vadd.f32 %v7096, %v7610
        %v7867 = vadd.f32 %v7097, %v7611
        %v7868 = vadd.f32 %v7098, %v7612
        %v7869 = vadd.f32 %v7099, %v7613
        %v7870 = vadd.f32 %v7100, %v7614
        %v7871 = vadd.f32 %v7101, %v7615
        %v7872 = vadd.f32 %v7102, %v7616
        %v7873 = vadd.f32 %v7103, %v7617
        %v7874 = vadd.f32 %v7104, %v7618
        %v7875 = vadd.f32 %v7105, %v7619
        %v7876 = vadd.f32 %v7106, %v7620
        %v7877 = vadd.f32 %v7107, %v7621
        %v7878 = vadd.f32 %v7108, %v7622
        %v7879 = vadd.f32 %v7109, %v7623
        %v7880 = vadd.f32 %v7110, %v7624
        %v7881 = vadd.f32 %v7111, %v7625
        %v7882 = vadd.f32 %v7112, %v7626
        %v7883 = vadd.f32 %v7113, %v7627
        %v7884 = vadd.f32 %v7114, %v7628
        %v7885 = vadd.f32 %v7115, %v7629
        %v7886 = vadd.f32 %v7116, %v7630
        %v7887 = vadd.f32 %v7117, %v7631
        %v7888 = vadd.f32 %v7118, %v7632
        %v7889 = vadd.f32 %v7119, %v7633
        %v7890 = vadd.f32 %v7120, %v7634
        %v7891 = vadd.f32 %v7121, %v7635
        %v7892 = vadd.f32 %v7122, %v7636
        %v7893 = vadd.f32 %v7123, %v7637
        %v7894 = vadd.f32 %v7124, %v7638
        %v7895 = vadd.f32 %v7125, %v7639
        %v7896 = vadd.f32 %v7126, %v7640
        %v7897 = vadd.f32 %v7127, %v7641
        %v7898 = vadd.f32 %v7128, %v7642
        %v7899 = vadd.f32 %v7129, %v7643
        %v7900 = vadd.f32 %v7130, %v7644
        %v7901 = vadd.f32 %v7131, %v7645
        %v7902 = vadd.f32 %v7132, %v7646
        %v7903 = vadd.f32 %v7133, %v7647
        %v7904 = vadd.f32 %v7134, %v7648
        %v7905 = vadd.f32 %v7135, %v7649
        %v7906 = vadd.f32 %v7136, %v7650
        %v7907 = vadd.f32 %v7137, %v7651
        %v7908 = vadd.f32 %v7138, %v7652
        %v7909 = vadd.f32 %v7139, %v7653
        %v7910 = vadd.f32 %v7140, %v7654
        %v7911 = vadd.f32 %v7141, %v7655
        %v7912 = vadd.f32 %v7142, %v7656
        %v7913 = vadd.f32 %v7143, %v7657
        %v7914 = vadd.f32 %v7144, %v7658
        %v7915 = vadd.f32 %v7145, %v7659
        %v7916 = vadd.f32 %v7146, %v7660
        %v7917 = vadd.f32 %v7147, %v7661
        %v7918 = vadd.f32 %v7148, %v7662
        %v7919 = vadd.f32 %v7149, %v7663
        %v7920 = vadd.f32 %v7150, %v7664
        %v7921 = vadd.f32 %v7151, %v7665
        %v7922 = vadd.f32 %v7152, %v7666
        %v7923 = vadd.f32 %v7153, %v7667
        %v7924 = vadd.f32 %v7154, %v7668
        %v7925 = vadd.f32 %v7155, %v7669
        %v7926 = vadd.f32 %v7156, %v7670
        %v7927 = vadd.f32 %v7157, %v7671
        %v7928 = vadd.f32 %v7158, %v7672
        %v7929 = vadd.f32 %v7159, %v7673
        %v7930 = vadd.f32 %v7160, %v7674
        %v7931 = vadd.f32 %v7161, %v7675
        %v7932 = vadd.f32 %v7162, %v7676
        %v7933 = vadd.f32 %v7163, %v7677
        %v7934 = vadd.f32 %v7164, %v7678
        %v7935 = vadd.f32 %v7165, %v7679
        %v7936 = vadd.f32 %v7166, %v7680
        %v7937 = vadd.f32 %v7167, %v7681
        %v7938 = vadd.f32 %v7168, %v7682
        %v7939 = vadd.f32 %v7169, %v7683
        %v7940 = vadd.f32 %v7170, %v7684
        %v7941 = vadd.f32 %v7171, %v7685
        %v7942 = vadd.f32 %v7172, %v7686
        %v7943 = vadd.f32 %v7173, %v7687
        %v7944 = vadd.f32 %v7174, %v7688
        %v7945 = vadd.f32 %v7175, %v7689
        %v7946 = vadd.f32 %v7176, %v7690
        %v7947 = vadd.f32 %v7177, %v7691
        %v7948 = vadd.f32 %v7178, %v7692
        %v7949 = vadd.f32 %v7179, %v7693
        %v7950 = vadd.f32 %v7180, %v7694
        %v7951 = vadd.f32 %v7181, %v7695
        %v7952 = vadd.f32 %v7182, %v7696
        %v7953 = vadd.f32 %v7183, %v7697
        %v7954 = vadd.f32 %v7184, %v7698
        %v7955 = vadd.f32 %v7185, %v7699
        %v7956 = vadd.f32 %v7186, %v7700
        %v7957 = vadd.f32 %v7187, %v7701
        %v7958 = vadd.f32 %v7188, %v7702
        %v7959 = vadd.f32 %v7189, %v7703
        %v7960 = vadd.f32 %v7190, %v7704
        %v7961 = vadd.f32 %v7191, %v7705
        %v7962 = vadd.f32 %v7192, %v7706
        %v7963 = vadd.f32 %v7193, %v7707
        %v7964 = vadd.f32 %v7194, %v7708
        %s7965 = sld [smem:[#allocation8 + $0x2]]
        %v7966 = vstv %s7965
        %v7967 = vadd.f32 %v7709, %v7966
        %v7968 = vadd.f32 %v7710, %v7966
        %v7969 = vadd.f32 %v7711, %v7966
        %v7970 = vadd.f32 %v7712, %v7966
        %v7971 = vadd.f32 %v7713, %v7966
        %v7972 = vadd.f32 %v7714, %v7966
        %v7973 = vadd.f32 %v7715, %v7966
        %v7974 = vadd.f32 %v7716, %v7966
        %v7975 = vadd.f32 %v7717, %v7966
        %v7976 = vadd.f32 %v7718, %v7966
        %v7977 = vadd.f32 %v7719, %v7966
        %v7978 = vadd.f32 %v7720, %v7966
        %v7979 = vadd.f32 %v7721, %v7966
        %v7980 = vadd.f32 %v7722, %v7966
        %v7981 = vadd.f32 %v7723, %v7966
        %v7982 = vadd.f32 %v7724, %v7966
        %v7983 = vadd.f32 %v7725, %v7966
        %v7984 = vadd.f32 %v7726, %v7966
        %v7985 = vadd.f32 %v7727, %v7966
        %v7986 = vadd.f32 %v7728, %v7966
        %v7987 = vadd.f32 %v7729, %v7966
        %v7988 = vadd.f32 %v7730, %v7966
        %v7989 = vadd.f32 %v7731, %v7966
        %v7990 = vadd.f32 %v7732, %v7966
        %v7991 = vadd.f32 %v7733, %v7966
        %v7992 = vadd.f32 %v7734, %v7966
        %v7993 = vadd.f32 %v7735, %v7966
        %v7994 = vadd.f32 %v7736, %v7966
        %v7995 = vadd.f32 %v7737, %v7966
        %v7996 = vadd.f32 %v7738, %v7966
        %v7997 = vadd.f32 %v7739, %v7966
        %v7998 = vadd.f32 %v7740, %v7966
        %v7999 = vadd.f32 %v7741, %v7966
        %v8000 = vadd.f32 %v7742, %v7966
        %v8001 = vadd.f32 %v7743, %v7966
        %v8002 = vadd.f32 %v7744, %v7966
        %v8003 = vadd.f32 %v7745, %v7966
        %v8004 = vadd.f32 %v7746, %v7966
        %v8005 = vadd.f32 %v7747, %v7966
        %v8006 = vadd.f32 %v7748, %v7966
        %v8007 = vadd.f32 %v7749, %v7966
        %v8008 = vadd.f32 %v7750, %v7966
        %v8009 = vadd.f32 %v7751, %v7966
        %v8010 = vadd.f32 %v7752, %v7966
        %v8011 = vadd.f32 %v7753, %v7966
        %v8012 = vadd.f32 %v7754, %v7966
        %v8013 = vadd.f32 %v7755, %v7966
        %v8014 = vadd.f32 %v7756, %v7966
        %v8015 = vadd.f32 %v7757, %v7966
        %v8016 = vadd.f32 %v7758, %v7966
        %v8017 = vadd.f32 %v7759, %v7966
        %v8018 = vadd.f32 %v7760, %v7966
        %v8019 = vadd.f32 %v7761, %v7966
        %v8020 = vadd.f32 %v7762, %v7966
        %v8021 = vadd.f32 %v7763, %v7966
        %v8022 = vadd.f32 %v7764, %v7966
        %v8023 = vadd.f32 %v7765, %v7966
        %v8024 = vadd.f32 %v7766, %v7966
        %v8025 = vadd.f32 %v7767, %v7966
        %v8026 = vadd.f32 %v7768, %v7966
        %v8027 = vadd.f32 %v7769, %v7966
        %v8028 = vadd.f32 %v7770, %v7966
        %v8029 = vadd.f32 %v7771, %v7966
        %v8030 = vadd.f32 %v7772, %v7966
        %v8031 = vadd.f32 %v7773, %v7966
        %v8032 = vadd.f32 %v7774, %v7966
        %v8033 = vadd.f32 %v7775, %v7966
        %v8034 = vadd.f32 %v7776, %v7966
        %v8035 = vadd.f32 %v7777, %v7966
        %v8036 = vadd.f32 %v7778, %v7966
        %v8037 = vadd.f32 %v7779, %v7966
        %v8038 = vadd.f32 %v7780, %v7966
        %v8039 = vadd.f32 %v7781, %v7966
        %v8040 = vadd.f32 %v7782, %v7966
        %v8041 = vadd.f32 %v7783, %v7966
        %v8042 = vadd.f32 %v7784, %v7966
        %v8043 = vadd.f32 %v7785, %v7966
        %v8044 = vadd.f32 %v7786, %v7966
        %v8045 = vadd.f32 %v7787, %v7966
        %v8046 = vadd.f32 %v7788, %v7966
        %v8047 = vadd.f32 %v7789, %v7966
        %v8048 = vadd.f32 %v7790, %v7966
        %v8049 = vadd.f32 %v7791, %v7966
        %v8050 = vadd.f32 %v7792, %v7966
        %v8051 = vadd.f32 %v7793, %v7966
        %v8052 = vadd.f32 %v7794, %v7966
        %v8053 = vadd.f32 %v7795, %v7966
        %v8054 = vadd.f32 %v7796, %v7966
        %v8055 = vadd.f32 %v7797, %v7966
        %v8056 = vadd.f32 %v7798, %v7966
        %v8057 = vadd.f32 %v7799, %v7966
        %v8058 = vadd.f32 %v7800, %v7966
        %v8059 = vadd.f32 %v7801, %v7966
        %v8060 = vadd.f32 %v7802, %v7966
        %v8061 = vadd.f32 %v7803, %v7966
        %v8062 = vadd.f32 %v7804, %v7966
        %v8063 = vadd.f32 %v7805, %v7966
        %v8064 = vadd.f32 %v7806, %v7966
        %v8065 = vadd.f32 %v7807, %v7966
        %v8066 = vadd.f32 %v7808, %v7966
        %v8067 = vadd.f32 %v7809, %v7966
        %v8068 = vadd.f32 %v7810, %v7966
        %v8069 = vadd.f32 %v7811, %v7966
        %v8070 = vadd.f32 %v7812, %v7966
        %v8071 = vadd.f32 %v7813, %v7966
        %v8072 = vadd.f32 %v7814, %v7966
        %v8073 = vadd.f32 %v7815, %v7966
        %v8074 = vadd.f32 %v7816, %v7966
        %v8075 = vadd.f32 %v7817, %v7966
        %v8076 = vadd.f32 %v7818, %v7966
        %v8077 = vadd.f32 %v7819, %v7966
        %v8078 = vadd.f32 %v7820, %v7966
        %v8079 = vadd.f32 %v7821, %v7966
        %v8080 = vadd.f32 %v7822, %v7966
        %v8081 = vadd.f32 %v7823, %v7966
        %v8082 = vadd.f32 %v7824, %v7966
        %v8083 = vadd.f32 %v7825, %v7966
        %v8084 = vadd.f32 %v7826, %v7966
        %v8085 = vadd.f32 %v7827, %v7966
        %v8086 = vadd.f32 %v7828, %v7966
        %v8087 = vadd.f32 %v7829, %v7966
        %v8088 = vadd.f32 %v7830, %v7966
        %v8089 = vadd.f32 %v7831, %v7966
        %v8090 = vadd.f32 %v7832, %v7966
        %v8091 = vadd.f32 %v7833, %v7966
        %v8092 = vadd.f32 %v7834, %v7966
        %v8093 = vadd.f32 %v7835, %v7966
        %v8094 = vadd.f32 %v7836, %v7966
        %v8095 = vadd.f32 %v7837, %v7966
        %v8096 = vadd.f32 %v7838, %v7966
        %v8097 = vadd.f32 %v7839, %v7966
        %v8098 = vadd.f32 %v7840, %v7966
        %v8099 = vadd.f32 %v7841, %v7966
        %v8100 = vadd.f32 %v7842, %v7966
        %v8101 = vadd.f32 %v7843, %v7966
        %v8102 = vadd.f32 %v7844, %v7966
        %v8103 = vadd.f32 %v7845, %v7966
        %v8104 = vadd.f32 %v7846, %v7966
        %v8105 = vadd.f32 %v7847, %v7966
        %v8106 = vadd.f32 %v7848, %v7966
        %v8107 = vadd.f32 %v7849, %v7966
        %v8108 = vadd.f32 %v7850, %v7966
        %v8109 = vadd.f32 %v7851, %v7966
        %v8110 = vadd.f32 %v7852, %v7966
        %v8111 = vadd.f32 %v7853, %v7966
        %v8112 = vadd.f32 %v7854, %v7966
        %v8113 = vadd.f32 %v7855, %v7966
        %v8114 = vadd.f32 %v7856, %v7966
        %v8115 = vadd.f32 %v7857, %v7966
        %v8116 = vadd.f32 %v7858, %v7966
        %v8117 = vadd.f32 %v7859, %v7966
        %v8118 = vadd.f32 %v7860, %v7966
        %v8119 = vadd.f32 %v7861, %v7966
        %v8120 = vadd.f32 %v7862, %v7966
        %v8121 = vadd.f32 %v7863, %v7966
        %v8122 = vadd.f32 %v7864, %v7966
        %v8123 = vadd.f32 %v7865, %v7966
        %v8124 = vadd.f32 %v7866, %v7966
        %v8125 = vadd.f32 %v7867, %v7966
        %v8126 = vadd.f32 %v7868, %v7966
        %v8127 = vadd.f32 %v7869, %v7966
        %v8128 = vadd.f32 %v7870, %v7966
        %v8129 = vadd.f32 %v7871, %v7966
        %v8130 = vadd.f32 %v7872, %v7966
        %v8131 = vadd.f32 %v7873, %v7966
        %v8132 = vadd.f32 %v7874, %v7966
        %v8133 = vadd.f32 %v7875, %v7966
        %v8134 = vadd.f32 %v7876, %v7966
        %v8135 = vadd.f32 %v7877, %v7966
        %v8136 = vadd.f32 %v7878, %v7966
        %v8137 = vadd.f32 %v7879, %v7966
        %v8138 = vadd.f32 %v7880, %v7966
        %v8139 = vadd.f32 %v7881, %v7966
        %v8140 = vadd.f32 %v7882, %v7966
        %v8141 = vadd.f32 %v7883, %v7966
        %v8142 = vadd.f32 %v7884, %v7966
        %v8143 = vadd.f32 %v7885, %v7966
        %v8144 = vadd.f32 %v7886, %v7966
        %v8145 = vadd.f32 %v7887, %v7966
        %v8146 = vadd.f32 %v7888, %v7966
        %v8147 = vadd.f32 %v7889, %v7966
        %v8148 = vadd.f32 %v7890, %v7966
        %v8149 = vadd.f32 %v7891, %v7966
        %v8150 = vadd.f32 %v7892, %v7966
        %v8151 = vadd.f32 %v7893, %v7966
        %v8152 = vadd.f32 %v7894, %v7966
        %v8153 = vadd.f32 %v7895, %v7966
        %v8154 = vadd.f32 %v7896, %v7966
        %v8155 = vadd.f32 %v7897, %v7966
        %v8156 = vadd.f32 %v7898, %v7966
        %v8157 = vadd.f32 %v7899, %v7966
        %v8158 = vadd.f32 %v7900, %v7966
        %v8159 = vadd.f32 %v7901, %v7966
        %v8160 = vadd.f32 %v7902, %v7966
        %v8161 = vadd.f32 %v7903, %v7966
        %v8162 = vadd.f32 %v7904, %v7966
        %v8163 = vadd.f32 %v7905, %v7966
        %v8164 = vadd.f32 %v7906, %v7966
        %v8165 = vadd.f32 %v7907, %v7966
        %v8166 = vadd.f32 %v7908, %v7966
        %v8167 = vadd.f32 %v7909, %v7966
        %v8168 = vadd.f32 %v7910, %v7966
        %v8169 = vadd.f32 %v7911, %v7966
        %v8170 = vadd.f32 %v7912, %v7966
        %v8171 = vadd.f32 %v7913, %v7966
        %v8172 = vadd.f32 %v7914, %v7966
        %v8173 = vadd.f32 %v7915, %v7966
        %v8174 = vadd.f32 %v7916, %v7966
        %v8175 = vadd.f32 %v7917, %v7966
        %v8176 = vadd.f32 %v7918, %v7966
        %v8177 = vadd.f32 %v7919, %v7966
        %v8178 = vadd.f32 %v7920, %v7966
        %v8179 = vadd.f32 %v7921, %v7966
        %v8180 = vadd.f32 %v7922, %v7966
        %v8181 = vadd.f32 %v7923, %v7966
        %v8182 = vadd.f32 %v7924, %v7966
        %v8183 = vadd.f32 %v7925, %v7966
        %v8184 = vadd.f32 %v7926, %v7966
        %v8185 = vadd.f32 %v7927, %v7966
        %v8186 = vadd.f32 %v7928, %v7966
        %v8187 = vadd.f32 %v7929, %v7966
        %v8188 = vadd.f32 %v7930, %v7966
        %v8189 = vadd.f32 %v7931, %v7966
        %v8190 = vadd.f32 %v7932, %v7966
        %v8191 = vadd.f32 %v7933, %v7966
        %v8192 = vadd.f32 %v7934, %v7966
        %v8193 = vadd.f32 %v7935, %v7966
        %v8194 = vadd.f32 %v7936, %v7966
        %v8195 = vadd.f32 %v7937, %v7966
        %v8196 = vadd.f32 %v7938, %v7966
        %v8197 = vadd.f32 %v7939, %v7966
        %v8198 = vadd.f32 %v7940, %v7966
        %v8199 = vadd.f32 %v7941, %v7966
        %v8200 = vadd.f32 %v7942, %v7966
        %v8201 = vadd.f32 %v7943, %v7966
        %v8202 = vadd.f32 %v7944, %v7966
        %v8203 = vadd.f32 %v7945, %v7966
        %v8204 = vadd.f32 %v7946, %v7966
        %v8205 = vadd.f32 %v7947, %v7966
        %v8206 = vadd.f32 %v7948, %v7966
        %v8207 = vadd.f32 %v7949, %v7966
        %v8208 = vadd.f32 %v7950, %v7966
        %v8209 = vadd.f32 %v7951, %v7966
        %v8210 = vadd.f32 %v7952, %v7966
        %v8211 = vadd.f32 %v7953, %v7966
        %v8212 = vadd.f32 %v7954, %v7966
        %v8213 = vadd.f32 %v7955, %v7966
        %v8214 = vadd.f32 %v7956, %v7966
        %v8215 = vadd.f32 %v7957, %v7966
        %v8216 = vadd.f32 %v7958, %v7966
        %v8217 = vadd.f32 %v7959, %v7966
        %v8218 = vadd.f32 %v7960, %v7966
        %v8219 = vadd.f32 %v7961, %v7966
        %v8220 = vadd.f32 %v7962, %v7966
        %v8221 = vadd.f32 %v7963, %v7966
        %v8222 = vadd.f32 %v7964, %v7966
        %v8223 = vtanh.pop %v7967
        %v8224 = vtanh.pop %v7968
        %v8225 = vtanh.pop %v7969
        %v8226 = vtanh.pop %v7970
        %v8227 = vtanh.pop %v7971
        %v8228 = vtanh.pop %v7972
        %v8229 = vtanh.pop %v7973
        %v8230 = vtanh.pop %v7974
        %v8231 = vtanh.pop %v7975
        %v8232 = vtanh.pop %v7976
        %v8233 = vtanh.pop %v7977
        %v8234 = vtanh.pop %v7978
        %v8235 = vtanh.pop %v7979
        %v8236 = vtanh.pop %v7980
        %v8237 = vtanh.pop %v7981
        %v8238 = vtanh.pop %v7982
        %v8239 = vtanh.pop %v7983
        %v8240 = vtanh.pop %v7984
        %v8241 = vtanh.pop %v7985
        %v8242 = vtanh.pop %v7986
        %v8243 = vtanh.pop %v7987
        %v8244 = vtanh.pop %v7988
        %v8245 = vtanh.pop %v7989
        %v8246 = vtanh.pop %v7990
        %v8247 = vtanh.pop %v7991
        %v8248 = vtanh.pop %v7992
        %v8249 = vtanh.pop %v7993
        %v8250 = vtanh.pop %v7994
        %v8251 = vtanh.pop %v7995
        %v8252 = vtanh.pop %v7996
        %v8253 = vtanh.pop %v7997
        %v8254 = vtanh.pop %v7998
        %v8255 = vtanh.pop %v7999
        %v8256 = vtanh.pop %v8000
        %v8257 = vtanh.pop %v8001
        %v8258 = vtanh.pop %v8002
        %v8259 = vtanh.pop %v8003
        %v8260 = vtanh.pop %v8004
        %v8261 = vtanh.pop %v8005
        %v8262 = vtanh.pop %v8006
        %v8263 = vtanh.pop %v8007
        %v8264 = vtanh.pop %v8008
        %v8265 = vtanh.pop %v8009
        %v8266 = vtanh.pop %v8010
        %v8267 = vtanh.pop %v8011
        %v8268 = vtanh.pop %v8012
        %v8269 = vtanh.pop %v8013
        %v8270 = vtanh.pop %v8014
        %v8271 = vtanh.pop %v8015
        %v8272 = vtanh.pop %v8016
        %v8273 = vtanh.pop %v8017
        %v8274 = vtanh.pop %v8018
        %v8275 = vtanh.pop %v8019
        %v8276 = vtanh.pop %v8020
        %v8277 = vtanh.pop %v8021
        %v8278 = vtanh.pop %v8022
        %v8279 = vtanh.pop %v8023
        %v8280 = vtanh.pop %v8024
        %v8281 = vtanh.pop %v8025
        %v8282 = vtanh.pop %v8026
        %v8283 = vtanh.pop %v8027
        %v8284 = vtanh.pop %v8028
        %v8285 = vtanh.pop %v8029
        %v8286 = vtanh.pop %v8030
        %v8287 = vtanh.pop %v8031
        %v8288 = vtanh.pop %v8032
        %v8289 = vtanh.pop %v8033
        %v8290 = vtanh.pop %v8034
        %v8291 = vtanh.pop %v8035
        %v8292 = vtanh.pop %v8036
        %v8293 = vtanh.pop %v8037
        %v8294 = vtanh.pop %v8038
        %v8295 = vtanh.pop %v8039
        %v8296 = vtanh.pop %v8040
        %v8297 = vtanh.pop %v8041
        %v8298 = vtanh.pop %v8042
        %v8299 = vtanh.pop %v8043
        %v8300 = vtanh.pop %v8044
        %v8301 = vtanh.pop %v8045
        %v8302 = vtanh.pop %v8046
        %v8303 = vtanh.pop %v8047
        %v8304 = vtanh.pop %v8048
        %v8305 = vtanh.pop %v8049
        %v8306 = vtanh.pop %v8050
        %v8307 = vtanh.pop %v8051
        %v8308 = vtanh.pop %v8052
        %v8309 = vtanh.pop %v8053
        %v8310 = vtanh.pop %v8054
        %v8311 = vtanh.pop %v8055
        %v8312 = vtanh.pop %v8056
        %v8313 = vtanh.pop %v8057
        %v8314 = vtanh.pop %v8058
        %v8315 = vtanh.pop %v8059
        %v8316 = vtanh.pop %v8060
        %v8317 = vtanh.pop %v8061
        %v8318 = vtanh.pop %v8062
        %v8319 = vtanh.pop %v8063
        %v8320 = vtanh.pop %v8064
        %v8321 = vtanh.pop %v8065
        %v8322 = vtanh.pop %v8066
        %v8323 = vtanh.pop %v8067
        %v8324 = vtanh.pop %v8068
        %v8325 = vtanh.pop %v8069
        %v8326 = vtanh.pop %v8070
        %v8327 = vtanh.pop %v8071
        %v8328 = vtanh.pop %v8072
        %v8329 = vtanh.pop %v8073
        %v8330 = vtanh.pop %v8074
        %v8331 = vtanh.pop %v8075
        %v8332 = vtanh.pop %v8076
        %v8333 = vtanh.pop %v8077
        %v8334 = vtanh.pop %v8078
        %v8335 = vtanh.pop %v8079
        %v8336 = vtanh.pop %v8080
        %v8337 = vtanh.pop %v8081
        %v8338 = vtanh.pop %v8082
        %v8339 = vtanh.pop %v8083
        %v8340 = vtanh.pop %v8084
        %v8341 = vtanh.pop %v8085
        %v8342 = vtanh.pop %v8086
        %v8343 = vtanh.pop %v8087
        %v8344 = vtanh.pop %v8088
        %v8345 = vtanh.pop %v8089
        %v8346 = vtanh.pop %v8090
        %v8347 = vtanh.pop %v8091
        %v8348 = vtanh.pop %v8092
        %v8349 = vtanh.pop %v8093
        %v8350 = vtanh.pop %v8094
        %v8351 = vtanh.pop %v8095
        %v8352 = vtanh.pop %v8096
        %v8353 = vtanh.pop %v8097
        %v8354 = vtanh.pop %v8098
        %v8355 = vtanh.pop %v8099
        %v8356 = vtanh.pop %v8100
        %v8357 = vtanh.pop %v8101
        %v8358 = vtanh.pop %v8102
        %v8359 = vtanh.pop %v8103
        %v8360 = vtanh.pop %v8104
        %v8361 = vtanh.pop %v8105
        %v8362 = vtanh.pop %v8106
        %v8363 = vtanh.pop %v8107
        %v8364 = vtanh.pop %v8108
        %v8365 = vtanh.pop %v8109
        %v8366 = vtanh.pop %v8110
        %v8367 = vtanh.pop %v8111
        %v8368 = vtanh.pop %v8112
        %v8369 = vtanh.pop %v8113
        %v8370 = vtanh.pop %v8114
        %v8371 = vtanh.pop %v8115
        %v8372 = vtanh.pop %v8116
        %v8373 = vtanh.pop %v8117
        %v8374 = vtanh.pop %v8118
        %v8375 = vtanh.pop %v8119
        %v8376 = vtanh.pop %v8120
        %v8377 = vtanh.pop %v8121
        %v8378 = vtanh.pop %v8122
        %v8379 = vtanh.pop %v8123
        %v8380 = vtanh.pop %v8124
        %v8381 = vtanh.pop %v8125
        %v8382 = vtanh.pop %v8126
        %v8383 = vtanh.pop %v8127
        %v8384 = vtanh.pop %v8128
        %v8385 = vtanh.pop %v8129
        %v8386 = vtanh.pop %v8130
        %v8387 = vtanh.pop %v8131
        %v8388 = vtanh.pop %v8132
        %v8389 = vtanh.pop %v8133
        %v8390 = vtanh.pop %v8134
        %v8391 = vtanh.pop %v8135
        %v8392 = vtanh.pop %v8136
        %v8393 = vtanh.pop %v8137
        %v8394 = vtanh.pop %v8138
        %v8395 = vtanh.pop %v8139
        %v8396 = vtanh.pop %v8140
        %v8397 = vtanh.pop %v8141
        %v8398 = vtanh.pop %v8142
        %v8399 = vtanh.pop %v8143
        %v8400 = vtanh.pop %v8144
        %v8401 = vtanh.pop %v8145
        %v8402 = vtanh.pop %v8146
        %v8403 = vtanh.pop %v8147
        %v8404 = vtanh.pop %v8148
        %v8405 = vtanh.pop %v8149
        %v8406 = vtanh.pop %v8150
        %v8407 = vtanh.pop %v8151
        %v8408 = vtanh.pop %v8152
        %v8409 = vtanh.pop %v8153
        %v8410 = vtanh.pop %v8154
        %v8411 = vtanh.pop %v8155
        %v8412 = vtanh.pop %v8156
        %v8413 = vtanh.pop %v8157
        %v8414 = vtanh.pop %v8158
        %v8415 = vtanh.pop %v8159
        %v8416 = vtanh.pop %v8160
        %v8417 = vtanh.pop %v8161
        %v8418 = vtanh.pop %v8162
        %v8419 = vtanh.pop %v8163
        %v8420 = vtanh.pop %v8164
        %v8421 = vtanh.pop %v8165
        %v8422 = vtanh.pop %v8166
        %v8423 = vtanh.pop %v8167
        %v8424 = vtanh.pop %v8168
        %v8425 = vtanh.pop %v8169
        %v8426 = vtanh.pop %v8170
        %v8427 = vtanh.pop %v8171
        %v8428 = vtanh.pop %v8172
        %v8429 = vtanh.pop %v8173
        %v8430 = vtanh.pop %v8174
        %v8431 = vtanh.pop %v8175
        %v8432 = vtanh.pop %v8176
        %v8433 = vtanh.pop %v8177
        %v8434 = vtanh.pop %v8178
        %v8435 = vtanh.pop %v8179
        %v8436 = vtanh.pop %v8180
        %v8437 = vtanh.pop %v8181
        %v8438 = vtanh.pop %v8182
        %v8439 = vtanh.pop %v8183
        %v8440 = vtanh.pop %v8184
        %v8441 = vtanh.pop %v8185
        %v8442 = vtanh.pop %v8186
        %v8443 = vtanh.pop %v8187
        %v8444 = vtanh.pop %v8188
        %v8445 = vtanh.pop %v8189
        %v8446 = vtanh.pop %v8190
        %v8447 = vtanh.pop %v8191
        %v8448 = vtanh.pop %v8192
        %v8449 = vtanh.pop %v8193
        %v8450 = vtanh.pop %v8194
        %v8451 = vtanh.pop %v8195
        %v8452 = vtanh.pop %v8196
        %v8453 = vtanh.pop %v8197
        %v8454 = vtanh.pop %v8198
        %v8455 = vtanh.pop %v8199
        %v8456 = vtanh.pop %v8200
        %v8457 = vtanh.pop %v8201
        %v8458 = vtanh.pop %v8202
        %v8459 = vtanh.pop %v8203
        %v8460 = vtanh.pop %v8204
        %v8461 = vtanh.pop %v8205
        %v8462 = vtanh.pop %v8206
        %v8463 = vtanh.pop %v8207
        %v8464 = vtanh.pop %v8208
        %v8465 = vtanh.pop %v8209
        %v8466 = vtanh.pop %v8210
        %v8467 = vtanh.pop %v8211
        %v8468 = vtanh.pop %v8212
        %v8469 = vtanh.pop %v8213
        %v8470 = vtanh.pop %v8214
        %v8471 = vtanh.pop %v8215
        %v8472 = vtanh.pop %v8216
        %v8473 = vtanh.pop %v8217
        %v8474 = vtanh.pop %v8218
        %v8475 = vtanh.pop %v8219
        %v8476 = vtanh.pop %v8220
        %v8477 = vtanh.pop %v8221
        %v8478 = vtanh.pop %v8222
        %s8479 = scalar_lea.vmem %s257, 4096 [#allocation9]
        %8480 = vst [vmem:[%s8479] sm:$0xff] %v8223
        %8481 = vst [vmem:[%s8479 + $0x8] sm:$0xff] %v8224
        %8482 = vst [vmem:[%s8479 + $0x10] sm:$0xff] %v8225
        %8483 = vst [vmem:[%s8479 + $0x18] sm:$0xff] %v8226
        %8484 = vst [vmem:[%s8479 + $0x20] sm:$0xff] %v8227
        %8485 = vst [vmem:[%s8479 + $0x28] sm:$0xff] %v8228
        %8486 = vst [vmem:[%s8479 + $0x30] sm:$0xff] %v8229
        %8487 = vst [vmem:[%s8479 + $0x38] sm:$0xff] %v8230
        %8488 = vst [vmem:[%s8479 + $0x40] sm:$0xff] %v8231
        %8489 = vst [vmem:[%s8479 + $0x48] sm:$0xff] %v8232
        %8490 = vst [vmem:[%s8479 + $0x50] sm:$0xff] %v8233
        %8491 = vst [vmem:[%s8479 + $0x58] sm:$0xff] %v8234
        %8492 = vst [vmem:[%s8479 + $0x60] sm:$0xff] %v8235
        %8493 = vst [vmem:[%s8479 + $0x68] sm:$0xff] %v8236
        %8494 = vst [vmem:[%s8479 + $0x70] sm:$0xff] %v8237
        %8495 = vst [vmem:[%s8479 + $0x78] sm:$0xff] %v8238
        %8496 = vst [vmem:[%s8479 + $0x80] sm:$0xff] %v8239
        %8497 = vst [vmem:[%s8479 + $0x88] sm:$0xff] %v8240
        %8498 = vst [vmem:[%s8479 + $0x90] sm:$0xff] %v8241
        %8499 = vst [vmem:[%s8479 + $0x98] sm:$0xff] %v8242
        %8500 = vst [vmem:[%s8479 + $0xa0] sm:$0xff] %v8243
        %8501 = vst [vmem:[%s8479 + $0xa8] sm:$0xff] %v8244
        %8502 = vst [vmem:[%s8479 + $0xb0] sm:$0xff] %v8245
        %8503 = vst [vmem:[%s8479 + $0xb8] sm:$0xff] %v8246
        %8504 = vst [vmem:[%s8479 + $0xc0] sm:$0xff] %v8247
        %8505 = vst [vmem:[%s8479 + $0xc8] sm:$0xff] %v8248
        %8506 = vst [vmem:[%s8479 + $0xd0] sm:$0xff] %v8249
        %8507 = vst [vmem:[%s8479 + $0xd8] sm:$0xff] %v8250
        %8508 = vst [vmem:[%s8479 + $0xe0] sm:$0xff] %v8251
        %8509 = vst [vmem:[%s8479 + $0xe8] sm:$0xff] %v8252
        %8510 = vst [vmem:[%s8479 + $0xf0] sm:$0xff] %v8253
        %8511 = vst [vmem:[%s8479 + $0xf8] sm:$0xff] %v8254
        %8512 = vst [vmem:[%s8479 + $0x100] sm:$0xff] %v8255
        %8513 = vst [vmem:[%s8479 + $0x108] sm:$0xff] %v8256
        %8514 = vst [vmem:[%s8479 + $0x110] sm:$0xff] %v8257
        %8515 = vst [vmem:[%s8479 + $0x118] sm:$0xff] %v8258
        %8516 = vst [vmem:[%s8479 + $0x120] sm:$0xff] %v8259
        %8517 = vst [vmem:[%s8479 + $0x128] sm:$0xff] %v8260
        %8518 = vst [vmem:[%s8479 + $0x130] sm:$0xff] %v8261
        %8519 = vst [vmem:[%s8479 + $0x138] sm:$0xff] %v8262
        %8520 = vst [vmem:[%s8479 + $0x140] sm:$0xff] %v8263
        %8521 = vst [vmem:[%s8479 + $0x148] sm:$0xff] %v8264
        %8522 = vst [vmem:[%s8479 + $0x150] sm:$0xff] %v8265
        %8523 = vst [vmem:[%s8479 + $0x158] sm:$0xff] %v8266
        %8524 = vst [vmem:[%s8479 + $0x160] sm:$0xff] %v8267
        %8525 = vst [vmem:[%s8479 + $0x168] sm:$0xff] %v8268
        %8526 = vst [vmem:[%s8479 + $0x170] sm:$0xff] %v8269
        %8527 = vst [vmem:[%s8479 + $0x178] sm:$0xff] %v8270
        %8528 = vst [vmem:[%s8479 + $0x180] sm:$0xff] %v8271
        %8529 = vst [vmem:[%s8479 + $0x188] sm:$0xff] %v8272
        %8530 = vst [vmem:[%s8479 + $0x190] sm:$0xff] %v8273
        %8531 = vst [vmem:[%s8479 + $0x198] sm:$0xff] %v8274
        %8532 = vst [vmem:[%s8479 + $0x1a0] sm:$0xff] %v8275
        %8533 = vst [vmem:[%s8479 + $0x1a8] sm:$0xff] %v8276
        %8534 = vst [vmem:[%s8479 + $0x1b0] sm:$0xff] %v8277
        %8535 = vst [vmem:[%s8479 + $0x1b8] sm:$0xff] %v8278
        %8536 = vst [vmem:[%s8479 + $0x1c0] sm:$0xff] %v8279
        %8537 = vst [vmem:[%s8479 + $0x1c8] sm:$0xff] %v8280
        %8538 = vst [vmem:[%s8479 + $0x1d0] sm:$0xff] %v8281
        %8539 = vst [vmem:[%s8479 + $0x1d8] sm:$0xff] %v8282
        %8540 = vst [vmem:[%s8479 + $0x1e0] sm:$0xff] %v8283
        %8541 = vst [vmem:[%s8479 + $0x1e8] sm:$0xff] %v8284
        %8542 = vst [vmem:[%s8479 + $0x1f0] sm:$0xff] %v8285
        %8543 = vst [vmem:[%s8479 + $0x1f8] sm:$0xff] %v8286
        %8544 = vst [vmem:[%s8479 + $0x200] sm:$0xff] %v8287
        %8545 = vst [vmem:[%s8479 + $0x208] sm:$0xff] %v8288
        %8546 = vst [vmem:[%s8479 + $0x210] sm:$0xff] %v8289
        %8547 = vst [vmem:[%s8479 + $0x218] sm:$0xff] %v8290
        %8548 = vst [vmem:[%s8479 + $0x220] sm:$0xff] %v8291
        %8549 = vst [vmem:[%s8479 + $0x228] sm:$0xff] %v8292
        %8550 = vst [vmem:[%s8479 + $0x230] sm:$0xff] %v8293
        %8551 = vst [vmem:[%s8479 + $0x238] sm:$0xff] %v8294
        %8552 = vst [vmem:[%s8479 + $0x240] sm:$0xff] %v8295
        %8553 = vst [vmem:[%s8479 + $0x248] sm:$0xff] %v8296
        %8554 = vst [vmem:[%s8479 + $0x250] sm:$0xff] %v8297
        %8555 = vst [vmem:[%s8479 + $0x258] sm:$0xff] %v8298
        %8556 = vst [vmem:[%s8479 + $0x260] sm:$0xff] %v8299
        %8557 = vst [vmem:[%s8479 + $0x268] sm:$0xff] %v8300
        %8558 = vst [vmem:[%s8479 + $0x270] sm:$0xff] %v8301
        %8559 = vst [vmem:[%s8479 + $0x278] sm:$0xff] %v8302
        %8560 = vst [vmem:[%s8479 + $0x280] sm:$0xff] %v8303
        %8561 = vst [vmem:[%s8479 + $0x288] sm:$0xff] %v8304
        %8562 = vst [vmem:[%s8479 + $0x290] sm:$0xff] %v8305
        %8563 = vst [vmem:[%s8479 + $0x298] sm:$0xff] %v8306
        %8564 = vst [vmem:[%s8479 + $0x2a0] sm:$0xff] %v8307
        %8565 = vst [vmem:[%s8479 + $0x2a8] sm:$0xff] %v8308
        %8566 = vst [vmem:[%s8479 + $0x2b0] sm:$0xff] %v8309
        %8567 = vst [vmem:[%s8479 + $0x2b8] sm:$0xff] %v8310
        %8568 = vst [vmem:[%s8479 + $0x2c0] sm:$0xff] %v8311
        %8569 = vst [vmem:[%s8479 + $0x2c8] sm:$0xff] %v8312
        %8570 = vst [vmem:[%s8479 + $0x2d0] sm:$0xff] %v8313
        %8571 = vst [vmem:[%s8479 + $0x2d8] sm:$0xff] %v8314
        %8572 = vst [vmem:[%s8479 + $0x2e0] sm:$0xff] %v8315
        %8573 = vst [vmem:[%s8479 + $0x2e8] sm:$0xff] %v8316
        %8574 = vst [vmem:[%s8479 + $0x2f0] sm:$0xff] %v8317
        %8575 = vst [vmem:[%s8479 + $0x2f8] sm:$0xff] %v8318
        %8576 = vst [vmem:[%s8479 + $0x300] sm:$0xff] %v8319
        %8577 = vst [vmem:[%s8479 + $0x308] sm:$0xff] %v8320
        %8578 = vst [vmem:[%s8479 + $0x310] sm:$0xff] %v8321
        %8579 = vst [vmem:[%s8479 + $0x318] sm:$0xff] %v8322
        %8580 = vst [vmem:[%s8479 + $0x320] sm:$0xff] %v8323
        %8581 = vst [vmem:[%s8479 + $0x328] sm:$0xff] %v8324
        %8582 = vst [vmem:[%s8479 + $0x330] sm:$0xff] %v8325
        %8583 = vst [vmem:[%s8479 + $0x338] sm:$0xff] %v8326
        %8584 = vst [vmem:[%s8479 + $0x340] sm:$0xff] %v8327
        %8585 = vst [vmem:[%s8479 + $0x348] sm:$0xff] %v8328
        %8586 = vst [vmem:[%s8479 + $0x350] sm:$0xff] %v8329
        %8587 = vst [vmem:[%s8479 + $0x358] sm:$0xff] %v8330
        %8588 = vst [vmem:[%s8479 + $0x360] sm:$0xff] %v8331
        %8589 = vst [vmem:[%s8479 + $0x368] sm:$0xff] %v8332
        %8590 = vst [vmem:[%s8479 + $0x370] sm:$0xff] %v8333
        %8591 = vst [vmem:[%s8479 + $0x378] sm:$0xff] %v8334
        %8592 = vst [vmem:[%s8479 + $0x380] sm:$0xff] %v8335
        %8593 = vst [vmem:[%s8479 + $0x388] sm:$0xff] %v8336
        %8594 = vst [vmem:[%s8479 + $0x390] sm:$0xff] %v8337
        %8595 = vst [vmem:[%s8479 + $0x398] sm:$0xff] %v8338
        %8596 = vst [vmem:[%s8479 + $0x3a0] sm:$0xff] %v8339
        %8597 = vst [vmem:[%s8479 + $0x3a8] sm:$0xff] %v8340
        %8598 = vst [vmem:[%s8479 + $0x3b0] sm:$0xff] %v8341
        %8599 = vst [vmem:[%s8479 + $0x3b8] sm:$0xff] %v8342
        %8600 = vst [vmem:[%s8479 + $0x3c0] sm:$0xff] %v8343
        %8601 = vst [vmem:[%s8479 + $0x3c8] sm:$0xff] %v8344
        %8602 = vst [vmem:[%s8479 + $0x3d0] sm:$0xff] %v8345
        %8603 = vst [vmem:[%s8479 + $0x3d8] sm:$0xff] %v8346
        %8604 = vst [vmem:[%s8479 + $0x3e0] sm:$0xff] %v8347
        %8605 = vst [vmem:[%s8479 + $0x3e8] sm:$0xff] %v8348
        %8606 = vst [vmem:[%s8479 + $0x3f0] sm:$0xff] %v8349
        %8607 = vst [vmem:[%s8479 + $0x3f8] sm:$0xff] %v8350
        %8608 = vst [vmem:[%s8479 + $0x400] sm:$0xff] %v8351
        %8609 = vst [vmem:[%s8479 + $0x408] sm:$0xff] %v8352
        %8610 = vst [vmem:[%s8479 + $0x410] sm:$0xff] %v8353
        %8611 = vst [vmem:[%s8479 + $0x418] sm:$0xff] %v8354
        %8612 = vst [vmem:[%s8479 + $0x420] sm:$0xff] %v8355
        %8613 = vst [vmem:[%s8479 + $0x428] sm:$0xff] %v8356
        %8614 = vst [vmem:[%s8479 + $0x430] sm:$0xff] %v8357
        %8615 = vst [vmem:[%s8479 + $0x438] sm:$0xff] %v8358
        %8616 = vst [vmem:[%s8479 + $0x440] sm:$0xff] %v8359
        %8617 = vst [vmem:[%s8479 + $0x448] sm:$0xff] %v8360
        %8618 = vst [vmem:[%s8479 + $0x450] sm:$0xff] %v8361
        %8619 = vst [vmem:[%s8479 + $0x458] sm:$0xff] %v8362
        %8620 = vst [vmem:[%s8479 + $0x460] sm:$0xff] %v8363
        %8621 = vst [vmem:[%s8479 + $0x468] sm:$0xff] %v8364
        %8622 = vst [vmem:[%s8479 + $0x470] sm:$0xff] %v8365
        %8623 = vst [vmem:[%s8479 + $0x478] sm:$0xff] %v8366
        %8624 = vst [vmem:[%s8479 + $0x480] sm:$0xff] %v8367
        %8625 = vst [vmem:[%s8479 + $0x488] sm:$0xff] %v8368
        %8626 = vst [vmem:[%s8479 + $0x490] sm:$0xff] %v8369
        %8627 = vst [vmem:[%s8479 + $0x498] sm:$0xff] %v8370
        %8628 = vst [vmem:[%s8479 + $0x4a0] sm:$0xff] %v8371
        %8629 = vst [vmem:[%s8479 + $0x4a8] sm:$0xff] %v8372
        %8630 = vst [vmem:[%s8479 + $0x4b0] sm:$0xff] %v8373
        %8631 = vst [vmem:[%s8479 + $0x4b8] sm:$0xff] %v8374
        %8632 = vst [vmem:[%s8479 + $0x4c0] sm:$0xff] %v8375
        %8633 = vst [vmem:[%s8479 + $0x4c8] sm:$0xff] %v8376
        %8634 = vst [vmem:[%s8479 + $0x4d0] sm:$0xff] %v8377
        %8635 = vst [vmem:[%s8479 + $0x4d8] sm:$0xff] %v8378
        %8636 = vst [vmem:[%s8479 + $0x4e0] sm:$0xff] %v8379
        %8637 = vst [vmem:[%s8479 + $0x4e8] sm:$0xff] %v8380
        %8638 = vst [vmem:[%s8479 + $0x4f0] sm:$0xff] %v8381
        %8639 = vst [vmem:[%s8479 + $0x4f8] sm:$0xff] %v8382
        %8640 = vst [vmem:[%s8479 + $0x500] sm:$0xff] %v8383
        %8641 = vst [vmem:[%s8479 + $0x508] sm:$0xff] %v8384
        %8642 = vst [vmem:[%s8479 + $0x510] sm:$0xff] %v8385
        %8643 = vst [vmem:[%s8479 + $0x518] sm:$0xff] %v8386
        %8644 = vst [vmem:[%s8479 + $0x520] sm:$0xff] %v8387
        %8645 = vst [vmem:[%s8479 + $0x528] sm:$0xff] %v8388
        %8646 = vst [vmem:[%s8479 + $0x530] sm:$0xff] %v8389
        %8647 = vst [vmem:[%s8479 + $0x538] sm:$0xff] %v8390
        %8648 = vst [vmem:[%s8479 + $0x540] sm:$0xff] %v8391
        %8649 = vst [vmem:[%s8479 + $0x548] sm:$0xff] %v8392
        %8650 = vst [vmem:[%s8479 + $0x550] sm:$0xff] %v8393
        %8651 = vst [vmem:[%s8479 + $0x558] sm:$0xff] %v8394
        %8652 = vst [vmem:[%s8479 + $0x560] sm:$0xff] %v8395
        %8653 = vst [vmem:[%s8479 + $0x568] sm:$0xff] %v8396
        %8654 = vst [vmem:[%s8479 + $0x570] sm:$0xff] %v8397
        %8655 = vst [vmem:[%s8479 + $0x578] sm:$0xff] %v8398
        %8656 = vst [vmem:[%s8479 + $0x580] sm:$0xff] %v8399
        %8657 = vst [vmem:[%s8479 + $0x588] sm:$0xff] %v8400
        %8658 = vst [vmem:[%s8479 + $0x590] sm:$0xff] %v8401
        %8659 = vst [vmem:[%s8479 + $0x598] sm:$0xff] %v8402
        %8660 = vst [vmem:[%s8479 + $0x5a0] sm:$0xff] %v8403
        %8661 = vst [vmem:[%s8479 + $0x5a8] sm:$0xff] %v8404
        %8662 = vst [vmem:[%s8479 + $0x5b0] sm:$0xff] %v8405
        %8663 = vst [vmem:[%s8479 + $0x5b8] sm:$0xff] %v8406
        %8664 = vst [vmem:[%s8479 + $0x5c0] sm:$0xff] %v8407
        %8665 = vst [vmem:[%s8479 + $0x5c8] sm:$0xff] %v8408
        %8666 = vst [vmem:[%s8479 + $0x5d0] sm:$0xff] %v8409
        %8667 = vst [vmem:[%s8479 + $0x5d8] sm:$0xff] %v8410
        %8668 = vst [vmem:[%s8479 + $0x5e0] sm:$0xff] %v8411
        %8669 = vst [vmem:[%s8479 + $0x5e8] sm:$0xff] %v8412
        %8670 = vst [vmem:[%s8479 + $0x5f0] sm:$0xff] %v8413
        %8671 = vst [vmem:[%s8479 + $0x5f8] sm:$0xff] %v8414
        %8672 = vst [vmem:[%s8479 + $0x600] sm:$0xff] %v8415
        %8673 = vst [vmem:[%s8479 + $0x608] sm:$0xff] %v8416
        %8674 = vst [vmem:[%s8479 + $0x610] sm:$0xff] %v8417
        %8675 = vst [vmem:[%s8479 + $0x618] sm:$0xff] %v8418
        %8676 = vst [vmem:[%s8479 + $0x620] sm:$0xff] %v8419
        %8677 = vst [vmem:[%s8479 + $0x628] sm:$0xff] %v8420
        %8678 = vst [vmem:[%s8479 + $0x630] sm:$0xff] %v8421
        %8679 = vst [vmem:[%s8479 + $0x638] sm:$0xff] %v8422
        %8680 = vst [vmem:[%s8479 + $0x640] sm:$0xff] %v8423
        %8681 = vst [vmem:[%s8479 + $0x648] sm:$0xff] %v8424
        %8682 = vst [vmem:[%s8479 + $0x650] sm:$0xff] %v8425
        %8683 = vst [vmem:[%s8479 + $0x658] sm:$0xff] %v8426
        %8684 = vst [vmem:[%s8479 + $0x660] sm:$0xff] %v8427
        %8685 = vst [vmem:[%s8479 + $0x668] sm:$0xff] %v8428
        %8686 = vst [vmem:[%s8479 + $0x670] sm:$0xff] %v8429
        %8687 = vst [vmem:[%s8479 + $0x678] sm:$0xff] %v8430
        %8688 = vst [vmem:[%s8479 + $0x680] sm:$0xff] %v8431
        %8689 = vst [vmem:[%s8479 + $0x688] sm:$0xff] %v8432
        %8690 = vst [vmem:[%s8479 + $0x690] sm:$0xff] %v8433
        %8691 = vst [vmem:[%s8479 + $0x698] sm:$0xff] %v8434
        %8692 = vst [vmem:[%s8479 + $0x6a0] sm:$0xff] %v8435
        %8693 = vst [vmem:[%s8479 + $0x6a8] sm:$0xff] %v8436
        %8694 = vst [vmem:[%s8479 + $0x6b0] sm:$0xff] %v8437
        %8695 = vst [vmem:[%s8479 + $0x6b8] sm:$0xff] %v8438
        %8696 = vst [vmem:[%s8479 + $0x6c0] sm:$0xff] %v8439
        %8697 = vst [vmem:[%s8479 + $0x6c8] sm:$0xff] %v8440
        %8698 = vst [vmem:[%s8479 + $0x6d0] sm:$0xff] %v8441
        %8699 = vst [vmem:[%s8479 + $0x6d8] sm:$0xff] %v8442
        %8700 = vst [vmem:[%s8479 + $0x6e0] sm:$0xff] %v8443
        %8701 = vst [vmem:[%s8479 + $0x6e8] sm:$0xff] %v8444
        %8702 = vst [vmem:[%s8479 + $0x6f0] sm:$0xff] %v8445
        %8703 = vst [vmem:[%s8479 + $0x6f8] sm:$0xff] %v8446
        %8704 = vst [vmem:[%s8479 + $0x700] sm:$0xff] %v8447
        %8705 = vst [vmem:[%s8479 + $0x708] sm:$0xff] %v8448
        %8706 = vst [vmem:[%s8479 + $0x710] sm:$0xff] %v8449
        %8707 = vst [vmem:[%s8479 + $0x718] sm:$0xff] %v8450
        %8708 = vst [vmem:[%s8479 + $0x720] sm:$0xff] %v8451
        %8709 = vst [vmem:[%s8479 + $0x728] sm:$0xff] %v8452
        %8710 = vst [vmem:[%s8479 + $0x730] sm:$0xff] %v8453
        %8711 = vst [vmem:[%s8479 + $0x738] sm:$0xff] %v8454
        %8712 = vst [vmem:[%s8479 + $0x740] sm:$0xff] %v8455
        %8713 = vst [vmem:[%s8479 + $0x748] sm:$0xff] %v8456
        %8714 = vst [vmem:[%s8479 + $0x750] sm:$0xff] %v8457
        %8715 = vst [vmem:[%s8479 + $0x758] sm:$0xff] %v8458
        %8716 = vst [vmem:[%s8479 + $0x760] sm:$0xff] %v8459
        %8717 = vst [vmem:[%s8479 + $0x768] sm:$0xff] %v8460
        %8718 = vst [vmem:[%s8479 + $0x770] sm:$0xff] %v8461
        %8719 = vst [vmem:[%s8479 + $0x778] sm:$0xff] %v8462
        %8720 = vst [vmem:[%s8479 + $0x780] sm:$0xff] %v8463
        %8721 = vst [vmem:[%s8479 + $0x788] sm:$0xff] %v8464
        %8722 = vst [vmem:[%s8479 + $0x790] sm:$0xff] %v8465
        %8723 = vst [vmem:[%s8479 + $0x798] sm:$0xff] %v8466
        %8724 = vst [vmem:[%s8479 + $0x7a0] sm:$0xff] %v8467
        %8725 = vst [vmem:[%s8479 + $0x7a8] sm:$0xff] %v8468
        %8726 = vst [vmem:[%s8479 + $0x7b0] sm:$0xff] %v8469
        %8727 = vst [vmem:[%s8479 + $0x7b8] sm:$0xff] %v8470
        %8728 = vst [vmem:[%s8479 + $0x7c0] sm:$0xff] %v8471
        %8729 = vst [vmem:[%s8479 + $0x7c8] sm:$0xff] %v8472
        %8730 = vst [vmem:[%s8479 + $0x7d0] sm:$0xff] %v8473
        %8731 = vst [vmem:[%s8479 + $0x7d8] sm:$0xff] %v8474
        %8732 = vst [vmem:[%s8479 + $0x7e0] sm:$0xff] %v8475
        %8733 = vst [vmem:[%s8479 + $0x7e8] sm:$0xff] %v8476
        %8734 = vst [vmem:[%s8479 + $0x7f0] sm:$0xff] %v8477
        %8735 = vst [vmem:[%s8479 + $0x7f8] sm:$0xff] %v8478
        %s8736 = sand.u32 %s114, 1
        %s8737 = scalar_lea.sflag [#allocation4], %s8736
        %s8738 = sand.u32 %s114, 1
        %s8739 = smul.addr %s8738, 6144
        %s8740 = scalar_lea.vmem [#allocation9], %s8739
        // Predicated region
        $region45: #{unet_forward.1} parent=31 // pred_check
          %p8741 = pneg %p124
        $region46: #{unet_forward.1} parent=31 // pred_check_branch
          %8743 = sbr.rel (%p8741) target = $region48
        $region47: #{unet_forward.1} parent=31 // pred_region
          #allocation13 [shape = 'u32[6]{0}', space=smem, size = 0x18, scoped, tag = 'DMA stride descriptor']
          %s8744 = smul.u32 32, %s27
          %s8746 = ssub.s32 98304, 98304
          %8747 = vsyncadd %s8737, %s8746
          %s8748 = smul.addr %s8744, 8
          %s8749 = smul.addr %s26, 3072
          %s8750 = sadd.s32 %s8748, %s8749
          %s8751 = smul.addr %s8750, 128
          %s8752 = scalar_lea.hbm %s3, %s8751
          %s8754 = sshll.u32 1, 14
          %s8755 = sxor.u32 4294967295, %s8754
          %s8758 = sshll.u32 7, 18
          %s8759 = sxor.u32 4294967295, %s8758
          %s8760 = sand.u32 0, %s8759
          %s8762 = sor.u32 %s8760, 0
          %s8764 = sshll.u32 3, 24
          %s8765 = sxor.u32 4294967295, %s8764
          %s8766 = sand.u32 %s8762, %s8765
          %s8768 = sor.u32 %s8766, 0
          %s8769 = sshll.u32 %s8740, 4
          %s8770 = int_to_ptr.vmem [resolvable:$true] %s8769
          %8776 = sst [smem:[#allocation13]] 32768
          %s8777 = scalar_lea.smem [#allocation13], 1
          %8778 = sst [smem:[%s8777]] 131072
          %s8779 = scalar_lea.smem [#allocation13], 2
          %8780 = sst [smem:[%s8779]] 32
          %s8781 = scalar_lea.smem [#allocation13], 3
          %8782 = sst [smem:[%s8781]] 1024
          %s8783 = scalar_lea.smem [#allocation13], 4
          %8784 = sst [smem:[%s8783]] 1024
          %s8785 = scalar_lea.smem [#allocation13], 5
          %8786 = sst [smem:[%s8785]] 64
          %8788 = dma.general %s8770, 98304, %s8752, %s8737, [#allocation12], [#allocation13], %s8768, 0
        $region48: #{unet_forward.1} parent=31 // pred_fallthru
          _
      $region32: #{unet_forward.1} parent=5 // pred_fallthru
        _
      %p8789 = scmp.le.s32.totalorder 2, %s17
      // Predicated region
      $region49: #{unet_forward.1} parent=5 // pred_check
        %p8790 = pneg %p8789
      $region50: #{unet_forward.1} parent=5 // pred_check_branch
        %8792 = sbr.rel (%p8790) target = $region52
      $region51: #{unet_forward.1} parent=5 // pred_region
        %s8793 = ssub.s32 %s17, 2
        // Predicated region
        $region53: #{unet_forward.1} parent=51 // pred_check
          %p8794 = pneg %p130
        $region54: #{unet_forward.1} parent=51 // pred_check_branch
          %8796 = sbr.rel (%p8794) target = $region56
        $region55: #{unet_forward.1} parent=51 // pred_region
          %s8797 = sand.u32 %s115, 1
          %s8798 = scalar_lea.sflag [#allocation4], %s8797
          %s8799 = sand.u32 %s115, 1
          %s8800 = smul.addr %s8799, 6144
          %s8801 = scalar_lea.vmem [#allocation9], %s8800
          %8802 = dma.done %s8798, 98304
        $region56: #{unet_forward.1} parent=51 // pred_fallthru
          _
      $region52: #{unet_forward.1} parent=5 // pred_fallthru
        _
    $region6: #{unet_forward.1} parent=1 // loop_footer
      %s21 = sadd.s32 1, %s17
    $region7: #{unet_forward.1} parent=1 // loop_footer_branch
      %16 = sbr.rel target = $region3
    $region8: #{unet_forward.1} parent=1 // loop_exit
      _
    %8803 = vsyncpa [#allocation3], 1
    %s8804 = scalar_lea.sflag [#allocation3], 1
    %8805 = vsyncpa %s8804, 1
    %8806 = vsyncpa [#allocation4], 1
    %s8807 = scalar_lea.sflag [#allocation4], 1
    %8808 = vsyncpa %s8807, 1
    %8809 = vsyncpa [#allocation5], 1
    %s8810 = scalar_lea.sflag [#allocation5], 1
    %8811 = vsyncpa %s8810, 1
    %8812 = vsyncpa [#allocation6], 1
    %s8813 = scalar_lea.sflag [#allocation6], 1
    %8814 = vsyncpa %s8813, 1

</llo_original>
